<compile_context>
chip_gen: v6e
topology: v6e:2x2x1
jax: 0.10.0
libtpu: 0.0.40
codegen_flags: <defaults>
</compile_context>

<pallas_src>
import functools

import jax
import jax.numpy as jnp
from jax.experimental import pallas as pl
from jax.experimental.pallas import tpu as pltpu

NEG_INF = -1000000000.0
LN_EPS = 1e-5


def _layer_norm(x, gamma, beta):
    mean = jnp.mean(x, axis=-1, keepdims=True)
    var = jnp.mean((x - mean) ** 2, axis=-1, keepdims=True)
    return (x - mean) * jax.lax.rsqrt(var + LN_EPS) * gamma + beta


def encoder_layer_kernel(
    x_ref, bias_ref,
    wqkv_ref, bqkv_ref, wo_ref, bo_ref,
    g1_ref, be1_ref,
    w1_ref, b1_ref, w2_ref, b2_ref,
    g2_ref, be2_ref,
    o_ref,
    *, num_heads,
):
    _, N, C = x_ref.shape
    H = num_heads
    hd = C // H
    scale = float(hd) ** -0.5

    x = x_ref[0]                                        # (N, C) f32
    x_bf = x.astype(jnp.bfloat16)

    # ---------------- fused QKV projection (one MXU matmul) ----------------
    qkv = jnp.dot(x_bf, wqkv_ref[...], preferred_element_type=jnp.float32)
    qkv = qkv + bqkv_ref[...]                           # (N, 3C) f32

    # 1/sqrt(hd) folded into q once (not per (N,N) score tile).
    q = (qkv[:, :C] * scale).astype(jnp.bfloat16)       # lane slices (C-aligned)
    k = qkv[:, C:2 * C].astype(jnp.bfloat16)
    v = qkv[:, 2 * C:].astype(jnp.bfloat16)

    def heads_major(t):                                 # (N, C) -> (H, N, hd)
        return jnp.swapaxes(t.reshape(N, H, hd), 0, 1)

    qh = heads_major(q)
    kh = heads_major(k)
    vh = heads_major(v)
    # TODO(synk): if the bundle shows vxpose on kh in the score matmul becoming
    # the binding slot, produce k head-major as (H, hd, N) instead.

    # Head-batched scores: (H, N, hd) x (H, N, hd) -> (H, N, N), f32 accumulate.
    s = jnp.einsum("hqd,hkd->hqk", qh, kh, preferred_element_type=jnp.float32)
    # Additive mask bias precomputed on host (bf16), broadcast over heads.
    # NOTE: for a fully-masked query row this gives softmax over raw scores,
    # while masked_fill gives a uniform row -- both are degenerate cases.
    s = s + bias_ref[0].astype(jnp.float32)[None, :, :]

    m = jnp.max(s, axis=-1, keepdims=True)
    p = jnp.exp(s - m)
    denom = jnp.sum(p, axis=-1, keepdims=True)
    attn = p * pl.reciprocal(denom, approx=True)        # EUP slot

    ctx = jnp.einsum("hqk,hkd->hqd", attn.astype(jnp.bfloat16), vh,
                     preferred_element_type=jnp.float32)          # (H, N, hd)
    ctx_rows = jnp.swapaxes(ctx, 0, 1).reshape(N, C)               # (N, C)

    attn_out = jnp.dot(ctx_rows.astype(jnp.bfloat16), wo_ref[...],
                       preferred_element_type=jnp.float32) + bo_ref[...]

    # dropout -> identity (eval mode)
    # --------- residual + LayerNorm1 ---------
    h1 = _layer_norm(attn_out + x, g1_ref[...], be1_ref[...])

    # ---------------- FeedForward ----------------
    f = jnp.dot(h1.astype(jnp.bfloat16), w1_ref[...],
                preferred_element_type=jnp.float32) + b1_ref[...]
    f = jnp.maximum(f, 0.0)
    f = jnp.dot(f.astype(jnp.bfloat16), w2_ref[...],
                preferred_element_type=jnp.float32) + b2_ref[...]

    # --------- residual + LayerNorm2 ---------
    y = _layer_norm(f + h1, g2_ref[...], be2_ref[...])
    o_ref[0] = y.astype(o_ref.dtype)


def encoder_layer(x, params, att_mask=None, *, num_heads):
    B, N, C = x.shape
    Fd = params["w1"].shape[1]
    H = num_heads
    assert C % H == 0

    if att_mask is None:
        att_mask = jnp.ones((B, N, N), dtype=jnp.float32)
    # Host-precomputed additive mask bias in bf16 (half the bytes of f32 mask).
    mask_bias = jnp.where(att_mask == 0, NEG_INF, 0.0).astype(jnp.bfloat16)

    # Fuse Q/K/V weights on the host: one (C, 3C) matmul inside the kernel.
    wqkv = jnp.concatenate([params["wq"], params["wk"], params["wv"]],
                           axis=1).astype(jnp.bfloat16)
    bqkv = jnp.concatenate([params["bq"], params["bk"], params["bv"]], axis=1)
    wo = params["wo"].astype(jnp.bfloat16)
    w1 = params["w1"].astype(jnp.bfloat16)
    w2 = params["w2"].astype(jnp.bfloat16)

    args = (x, mask_bias,
            wqkv, bqkv, wo, params["bo"],
            params["g1"], params["be1"],
            w1, params["b1"], w2, params["b2"],
            params["g2"], params["be2"])

    # ---- explicit VMEM budget: weights (single-buffered) + 2x pipelined
    # x/mask/out blocks + straight-line intermediates, clamped to [32, 64] MiB.
    weight_bytes = 2 * (3 * C * C + C * C + 2 * C * Fd)          # bf16 weights
    param_bytes = 4 * (3 * C + C + Fd + C + 4 * C)               # f32 biases/LN
    block_bytes = 2 * (4 * N * C + 2 * N * N + 4 * N * C)        # 2x (x, bias, out)
    interm_bytes = 4 * (3 * N * C + 2 * H * N * N + N * Fd + 6 * N * C)
    vmem_limit = int(1.5 * (weight_bytes + param_bytes + block_bytes + interm_bytes))
    vmem_limit = min(max(vmem_limit, 32 << 20), 64 << 20)

    flops = (2 * B * N * C * 3 * C          # qkv projection
             + 4 * B * N * N * C            # scores + context
             + 2 * B * N * C * C            # output projection
             + 4 * B * N * C * Fd)          # feed-forward
    transcendentals = B * H * N * N + B * H * N + 4 * B * N
    bytes_accessed = (2 * 4 * B * N * C + 2 * B * N * N
                      + weight_bytes + param_bytes)
    cost = pl.CostEstimate(flops=flops, transcendentals=transcendentals,
                           bytes_accessed=bytes_accessed)

    kernel = functools.partial(encoder_layer_kernel, num_heads=num_heads)

    def run(single_buffer_weights):
        extra = {}
        if single_buffer_weights:
            # Constant-index blocks do not need double buffering.
            extra = dict(pipeline_mode=pl.Buffered(1))

        def const(shape):
            return pl.BlockSpec(shape, lambda b, _n=len(shape): (0,) * _n, **extra)

        in_specs = [
            pl.BlockSpec((1, N, C), lambda b: (b, 0, 0)),   # x
            pl.BlockSpec((1, N, N), lambda b: (b, 0, 0)),   # additive mask bias
            const((C, 3 * C)), const((1, 3 * C)),           # wqkv, bqkv
            const((C, C)), const((1, C)),                   # wo, bo
            const((1, C)), const((1, C)),                   # ln1 gamma, beta
            const((C, Fd)), const((1, Fd)),                 # fc1
            const((Fd, C)), const((1, C)),                  # fc2
            const((1, C)), const((1, C)),                   # ln2 gamma, beta
        ]
        return pl.pallas_call(
            kernel,
            out_shape=jax.ShapeDtypeStruct((B, N, C), x.dtype),
            grid=(B,),                                      # >= 2 steps when B >= 2 (megacore)
            in_specs=in_specs,
            out_specs=pl.BlockSpec((1, N, C), lambda b: (b, 0, 0)),
            compiler_params=pltpu.CompilerParams(
                dimension_semantics=("parallel",),
                vmem_limit_bytes=vmem_limit),
            cost_estimate=cost,
        )(*args)

    if hasattr(pl, "Buffered"):
        try:
            return run(True)
        except Exception:  # pragma: no cover - pipeline_mode/Buffered(1) unsupported
            pass
    return run(False)


def _reference(x, params, att_mask, num_heads):
    """Pure-JAX reference mirroring the kernel math (bf16 matmuls, f32 accum)."""
    B, N, C = x.shape
    H = num_heads
    hd = C // H
    scale = hd ** -0.5
    bf = jnp.bfloat16

    wqkv = jnp.concatenate(
        [params["wq"], params["wk"], params["wv"]], axis=1).astype(bf)
    bqkv = jnp.concatenate([params["bq"], params["bk"], params["bv"]], axis=1)

    qkv = jnp.einsum("bnc,cd->bnd", x.astype(bf), wqkv,
                     preferred_element_type=jnp.float32) + bqkv
    q = (qkv[..., :C] * scale).astype(bf).reshape(B, N, H, hd).transpose(0, 2, 1, 3)
    k = qkv[..., C:2 * C].astype(bf).reshape(B, N, H, hd).transpose(0, 2, 1, 3)
    v = qkv[..., 2 * C:].astype(bf).reshape(B, N, H, hd).transpose(0, 2, 1, 3)

    s = jnp.einsum("bhqd,bhkd->bhqk", q, k, preferred_element_type=jnp.float32)
    s = jnp.where(att_mask[:, None, :, :] == 0, NEG_INF, s)
    p = jax.nn.softmax(s, axis=-1)
    ctx = jnp.einsum("bhqk,bhkd->bhqd", p.astype(bf), v,
                     preferred_element_type=jnp.float32)
    ctx = ctx.transpose(0, 2, 1, 3).reshape(B, N, C)
    out = jnp.einsum("bnc,cd->bnd", ctx.astype(bf), params["wo"].astype(bf),
                     preferred_element_type=jnp.float32) + params["bo"]

    h = _layer_norm(out + x, params["g1"], params["be1"])
    f = jnp.einsum("bnc,cf->bnf", h.astype(bf), params["w1"].astype(bf),
                   preferred_element_type=jnp.float32) + params["b1"]
    f = jnp.maximum(f, 0.0)
    f = jnp.einsum("bnf,fc->bnc", f.astype(bf), params["w2"].astype(bf),
                   preferred_element_type=jnp.float32) + params["b2"]
    return _layer_norm(f + h, params["g2"], params["be2"])


if __name__ == "__main__":
    B, N, C = 2, 16, 128       # batch, seq-len, embed dim (lane-dense C)
    num_heads = 4
    mlp_ratio = 4
    Fd = C * mlp_ratio

    key = jax.random.PRNGKey(0)
    ks = jax.random.split(key, 14)

    def w(k, shape, scale=0.02):
        return (jax.random.normal(k, shape) * scale).astype(jnp.float32)

    params = {
        "wq": w(ks[0], (C, C)), "bq": w(ks[1], (1, C)),
        "wk": w(ks[2], (C, C)), "bk": w(ks[3], (1, C)),
        "wv": w(ks[4], (C, C)), "bv": w(ks[5], (1, C)),
        "wo": w(ks[6], (C, C)), "bo": w(ks[7], (1, C)),
        "g1": jnp.ones((1, C), jnp.float32), "be1": jnp.zeros((1, C), jnp.float32),
        "w1": w(ks[8], (C, Fd)), "b1": w(ks[9], (1, Fd)),
        "w2": w(ks[10], (Fd, C)), "b2": w(ks[11], (1, C)),
        "g2": jnp.ones((1, C), jnp.float32), "be2": jnp.zeros((1, C), jnp.float32),
    }

    x = jax.random.normal(ks[12], (B, N, C), dtype=jnp.float32)
    # example attention mask: (B, N, N), zero out the last 3 keys
    att_mask = jnp.ones((B, N, N), dtype=jnp.float32).at[:, :, -3:].set(0.0)

    out = encoder_layer(x, params, att_mask, num_heads=num_heads)
    out = jax.block_until_ready(out)

    ref = _reference(x, params, att_mask, num_heads)
    assert out.shape == (B, N, C)
    assert jnp.allclose(out, ref, atol=2e-2, rtol=2e-2), "mismatch vs reference"

    print("KERNEL_OK")
</pallas_src>

<mosaic_0001>
module attributes {stable_mosaic.version = 11 : i64} {
  func.func @encoder_layer_kernel(%arg0: i32, %arg1: memref<1x16x128xf32, #tpu.memory_space<vmem>>, %arg2: memref<1x16x16xbf16, #tpu.memory_space<vmem>>, %arg3: memref<128x384xbf16, #tpu.memory_space<vmem>>, %arg4: memref<1x384xf32, #tpu.memory_space<vmem>>, %arg5: memref<128x128xbf16, #tpu.memory_space<vmem>>, %arg6: memref<1x128xf32, #tpu.memory_space<vmem>>, %arg7: memref<1x128xf32, #tpu.memory_space<vmem>>, %arg8: memref<1x128xf32, #tpu.memory_space<vmem>>, %arg9: memref<128x512xbf16, #tpu.memory_space<vmem>>, %arg10: memref<1x512xf32, #tpu.memory_space<vmem>>, %arg11: memref<512x128xbf16, #tpu.memory_space<vmem>>, %arg12: memref<1x128xf32, #tpu.memory_space<vmem>>, %arg13: memref<1x128xf32, #tpu.memory_space<vmem>>, %arg14: memref<1x128xf32, #tpu.memory_space<vmem>>, %arg15: memref<1x16x128xf32, #tpu.memory_space<vmem>>) attributes {dimension_semantics = [#tpu.dimension_semantics<parallel>], iteration_bounds = array<i64: 2>, scalar_prefetch = 0 : i64, scratch_operands = 0 : i64, tpu.core_type = #tpu.core_type<tc>, window_params = [{transform_indices = @transform_0, window_bounds = array<i64: 1, 16, 128>}, {transform_indices = @transform_1, window_bounds = array<i64: 1, 16, 16>}, {pipeline_mode = #tpu.pipeline_mode<synchronous>, transform_indices = @transform_2, window_bounds = array<i64: 128, 384>}, {pipeline_mode = #tpu.pipeline_mode<synchronous>, transform_indices = @transform_3, window_bounds = array<i64: 1, 384>}, {pipeline_mode = #tpu.pipeline_mode<synchronous>, transform_indices = @transform_4, window_bounds = array<i64: 128, 128>}, {pipeline_mode = #tpu.pipeline_mode<synchronous>, transform_indices = @transform_5, window_bounds = array<i64: 1, 128>}, {pipeline_mode = #tpu.pipeline_mode<synchronous>, transform_indices = @transform_6, window_bounds = array<i64: 1, 128>}, {pipeline_mode = #tpu.pipeline_mode<synchronous>, transform_indices = @transform_7, window_bounds = array<i64: 1, 128>}, {pipeline_mode = #tpu.pipeline_mode<synchronous>, transform_indices = @transform_8, window_bounds = array<i64: 128, 512>}, {pipeline_mode = #tpu.pipeline_mode<synchronous>, transform_indices = @transform_9, window_bounds = array<i64: 1, 512>}, {pipeline_mode = #tpu.pipeline_mode<synchronous>, transform_indices = @transform_10, window_bounds = array<i64: 512, 128>}, {pipeline_mode = #tpu.pipeline_mode<synchronous>, transform_indices = @transform_11, window_bounds = array<i64: 1, 128>}, {pipeline_mode = #tpu.pipeline_mode<synchronous>, transform_indices = @transform_12, window_bounds = array<i64: 1, 128>}, {pipeline_mode = #tpu.pipeline_mode<synchronous>, transform_indices = @transform_13, window_bounds = array<i64: 1, 128>}, {transform_indices = @transform_14, window_bounds = array<i64: 1, 16, 128>}]} {
    %c0 = arith.constant 0 : index
    %c0_0 = arith.constant 0 : index
    %c0_1 = arith.constant 0 : index
    %0 = vector.load %arg1[%c0, %c0_0, %c0_1] : memref<1x16x128xf32, #tpu.memory_space<vmem>>, vector<1x16x128xf32>
    %1 = vector.shape_cast %0 : vector<1x16x128xf32> to vector<16x128xf32>
    %2 = arith.truncf %1 : vector<16x128xf32> to vector<16x128xbf16>
    %c0_2 = arith.constant 0 : index
    %c0_3 = arith.constant 0 : index
    %3 = vector.load %arg3[%c0_2, %c0_3] : memref<128x384xbf16, #tpu.memory_space<vmem>>, vector<128x384xbf16>
    %cst = arith.constant dense<0.000000e+00> : vector<16x384xf32>
    %4 = tpu.matmul %2, %3, %cst {dimension_numbers = #tpu.dot_dimension_numbers<[1], [0], [0], [1], [0, 0, 1, 1], [], []>} : vector<16x128xbf16>, vector<128x384xbf16>, vector<16x384xf32> -> vector<16x384xf32>
    %c0_4 = arith.constant 0 : index
    %c0_5 = arith.constant 0 : index
    %5 = vector.load %arg4[%c0_4, %c0_5] : memref<1x384xf32, #tpu.memory_space<vmem>>, vector<1x384xf32>
    %6 = vector.broadcast %5 : vector<1x384xf32> to vector<16x384xf32>
    %7 = arith.addf %4, %6 : vector<16x384xf32>
    %8 = vector.extract_strided_slice %7 {offsets = [0, 0], sizes = [16, 128], strides = [1, 1]} : vector<16x384xf32> to vector<16x128xf32>
    %cst_6 = arith.constant 0.176776692 : f32
    %9 = vector.broadcast %cst_6 : f32 to vector<16x128xf32>
    %10 = arith.mulf %8, %9 : vector<16x128xf32>
    %11 = arith.truncf %10 : vector<16x128xf32> to vector<16x128xbf16>
    %12 = vector.extract_strided_slice %7 {offsets = [0, 128], sizes = [16, 128], strides = [1, 1]} : vector<16x384xf32> to vector<16x128xf32>
    %13 = arith.truncf %12 : vector<16x128xf32> to vector<16x128xbf16>
    %14 = vector.extract_strided_slice %7 {offsets = [0, 256], sizes = [16, 128], strides = [1, 1]} : vector<16x384xf32> to vector<16x128xf32>
    %15 = arith.truncf %14 : vector<16x128xf32> to vector<16x128xbf16>
    %16 = vector.shape_cast %11 : vector<16x128xbf16> to vector<16x4x32xbf16>
    %17 = tpu.transpose %16, [1, 0, 2] : vector<16x4x32xbf16> -> vector<4x16x32xbf16>
    %18 = vector.shape_cast %13 : vector<16x128xbf16> to vector<16x4x32xbf16>
    %19 = tpu.transpose %18, [1, 0, 2] : vector<16x4x32xbf16> -> vector<4x16x32xbf16>
    %20 = vector.shape_cast %15 : vector<16x128xbf16> to vector<16x4x32xbf16>
    %21 = tpu.transpose %20, [1, 0, 2] : vector<16x4x32xbf16> -> vector<4x16x32xbf16>
    "tpu.trace_start"() <{level = 10 : i32, message = "hqd,hkd->hqk"}> : () -> ()
    %cst_7 = arith.constant dense<0.000000e+00> : vector<4x16x16xf32>
    %22 = tpu.matmul %17, %19, %cst_7 {dimension_numbers = #tpu.dot_dimension_numbers<[2], [2], [1], [1], [0, 0, 0, 1, 1, 1], [0], [0]>} : vector<4x16x32xbf16>, vector<4x16x32xbf16>, vector<4x16x16xf32> -> vector<4x16x16xf32>
    "tpu.trace_stop"() : () -> ()
    %c0_8 = arith.constant 0 : index
    %c0_9 = arith.constant 0 : index
    %c0_10 = arith.constant 0 : index
    %23 = vector.load %arg2[%c0_8, %c0_9, %c0_10] : memref<1x16x16xbf16, #tpu.memory_space<vmem>>, vector<1x16x16xbf16>
    %24 = vector.shape_cast %23 : vector<1x16x16xbf16> to vector<16x16xbf16>
    %25 = arith.extf %24 : vector<16x16xbf16> to vector<16x16xf32>
    %26 = vector.shape_cast %25 : vector<16x16xf32> to vector<1x16x16xf32>
    %27 = vector.broadcast %26 : vector<1x16x16xf32> to vector<4x16x16xf32>
    %28 = arith.addf %22, %27 : vector<4x16x16xf32>
    %cst_11 = arith.constant dense<0xFF800000> : vector<4x16xf32>
    %29 = vector.multi_reduction <maximumf>, %28, %cst_11 [2] : vector<4x16x16xf32> to vector<4x16xf32>
    %30 = vector.shape_cast %29 : vector<4x16xf32> to vector<4x16x1xf32>
    %31 = vector.broadcast %30 : vector<4x16x1xf32> to vector<4x16x16xf32>
    %32 = arith.subf %28, %31 : vector<4x16x16xf32>
    %33 = math.exp %32 : vector<4x16x16xf32>
    %cst_12 = arith.constant dense<0.000000e+00> : vector<4x16xf32>
    %34 = vector.multi_reduction <add>, %33, %cst_12 [2] : vector<4x16x16xf32> to vector<4x16xf32>
    %35 = vector.shape_cast %34 : vector<4x16xf32> to vector<4x16x1xf32>
    %36 = tpu.reciprocal %35 {approx = true} : vector<4x16x1xf32> -> vector<4x16x1xf32>
    %37 = vector.broadcast %36 : vector<4x16x1xf32> to vector<4x16x16xf32>
    %38 = arith.mulf %33, %37 : vector<4x16x16xf32>
    %39 = arith.truncf %38 : vector<4x16x16xf32> to vector<4x16x16xbf16>
    "tpu.trace_start"() <{level = 10 : i32, message = "hqk,hkd->hqd"}> : () -> ()
    %cst_13 = arith.constant dense<0.000000e+00> : vector<4x16x32xf32>
    %40 = tpu.matmul %39, %21, %cst_13 {dimension_numbers = #tpu.dot_dimension_numbers<[2], [1], [1], [2], [0, 0, 0, 1, 1, 2], [0], [0]>} : vector<4x16x16xbf16>, vector<4x16x32xbf16>, vector<4x16x32xf32> -> vector<4x16x32xf32>
    "tpu.trace_stop"() : () -> ()
    %41 = tpu.transpose %40, [1, 0, 2] : vector<4x16x32xf32> -> vector<16x4x32xf32>
    %42 = vector.shape_cast %41 : vector<16x4x32xf32> to vector<16x128xf32>
    %43 = arith.truncf %42 : vector<16x128xf32> to vector<16x128xbf16>
    %c0_14 = arith.constant 0 : index
    %c0_15 = arith.constant 0 : index
    %44 = vector.load %arg5[%c0_14, %c0_15] : memref<128x128xbf16, #tpu.memory_space<vmem>>, vector<128x128xbf16>
    %cst_16 = arith.constant dense<0.000000e+00> : vector<16x128xf32>
    %45 = tpu.matmul %43, %44, %cst_16 {dimension_numbers = #tpu.dot_dimension_numbers<[1], [0], [0], [1], [0, 0, 1, 1], [], []>} : vector<16x128xbf16>, vector<128x128xbf16>, vector<16x128xf32> -> vector<16x128xf32>
    %c0_17 = arith.constant 0 : index
    %c0_18 = arith.constant 0 : index
    %46 = vector.load %arg6[%c0_17, %c0_18] : memref<1x128xf32, #tpu.memory_space<vmem>>, vector<1x128xf32>
    %47 = vector.broadcast %46 : vector<1x128xf32> to vector<16x128xf32>
    %48 = arith.addf %45, %47 : vector<16x128xf32>
    %49 = arith.addf %48, %1 : vector<16x128xf32>
    %c0_19 = arith.constant 0 : index
    %c0_20 = arith.constant 0 : index
    %50 = vector.load %arg7[%c0_19, %c0_20] : memref<1x128xf32, #tpu.memory_space<vmem>>, vector<1x128xf32>
    %c0_21 = arith.constant 0 : index
    %c0_22 = arith.constant 0 : index
    %51 = vector.load %arg8[%c0_21, %c0_22] : memref<1x128xf32, #tpu.memory_space<vmem>>, vector<1x128xf32>
    %cst_23 = arith.constant dense<0.000000e+00> : vector<16xf32>
    %52 = vector.multi_reduction <add>, %49, %cst_23 [1] : vector<16x128xf32> to vector<16xf32>
    %53 = vector.shape_cast %52 : vector<16xf32> to vector<16x1xf32>
    %cst_24 = arith.constant 1.280000e+02 : f32
    %54 = vector.broadcast %cst_24 : f32 to vector<16x1xf32>
    %55 = arith.divf %53, %54 : vector<16x1xf32>
    %56 = vector.broadcast %55 : vector<16x1xf32> to vector<16x128xf32>
    %57 = arith.subf %49, %56 : vector<16x128xf32>
    %58 = arith.mulf %57, %57 : vector<16x128xf32>
    %cst_25 = arith.constant dense<0.000000e+00> : vector<16xf32>
    %59 = vector.multi_reduction <add>, %58, %cst_25 [1] : vector<16x128xf32> to vector<16xf32>
    %60 = vector.shape_cast %59 : vector<16xf32> to vector<16x1xf32>
    %cst_26 = arith.constant 1.280000e+02 : f32
    %61 = vector.broadcast %cst_26 : f32 to vector<16x1xf32>
    %62 = arith.divf %60, %61 : vector<16x1xf32>
    %63 = vector.broadcast %55 : vector<16x1xf32> to vector<16x128xf32>
    %64 = arith.subf %49, %63 : vector<16x128xf32>
    %cst_27 = arith.constant 9.99999974E-6 : f32
    %65 = vector.broadcast %cst_27 : f32 to vector<16x1xf32>
    %66 = arith.addf %62, %65 : vector<16x1xf32>
    %67 = math.rsqrt %66 : vector<16x1xf32>
    %68 = vector.broadcast %67 : vector<16x1xf32> to vector<16x128xf32>
    %69 = arith.mulf %64, %68 : vector<16x128xf32>
    %70 = vector.broadcast %50 : vector<1x128xf32> to vector<16x128xf32>
    %71 = arith.mulf %69, %70 : vector<16x128xf32>
    %72 = vector.broadcast %51 : vector<1x128xf32> to vector<16x128xf32>
    %73 = arith.addf %71, %72 : vector<16x128xf32>
    %74 = arith.truncf %73 : vector<16x128xf32> to vector<16x128xbf16>
    %c0_28 = arith.constant 0 : index
    %c0_29 = arith.constant 0 : index
    %75 = vector.load %arg9[%c0_28, %c0_29] : memref<128x512xbf16, #tpu.memory_space<vmem>>, vector<128x512xbf16>
    %cst_30 = arith.constant dense<0.000000e+00> : vector<16x512xf32>
    %76 = tpu.matmul %74, %75, %cst_30 {dimension_numbers = #tpu.dot_dimension_numbers<[1], [0], [0], [1], [0, 0, 1, 1], [], []>} : vector<16x128xbf16>, vector<128x512xbf16>, vector<16x512xf32> -> vector<16x512xf32>
    %c0_31 = arith.constant 0 : index
    %c0_32 = arith.constant 0 : index
    %77 = vector.load %arg10[%c0_31, %c0_32] : memref<1x512xf32, #tpu.memory_space<vmem>>, vector<1x512xf32>
    %78 = vector.broadcast %77 : vector<1x512xf32> to vector<16x512xf32>
    %79 = arith.addf %76, %78 : vector<16x512xf32>
    %cst_33 = arith.constant 0.000000e+00 : f32
    %80 = vector.broadcast %cst_33 : f32 to vector<16x512xf32>
    %81 = arith.maximumf %79, %80 : vector<16x512xf32>
    %82 = arith.truncf %81 : vector<16x512xf32> to vector<16x512xbf16>
    %c0_34 = arith.constant 0 : index
    %c0_35 = arith.constant 0 : index
    %83 = vector.load %arg11[%c0_34, %c0_35] : memref<512x128xbf16, #tpu.memory_space<vmem>>, vector<512x128xbf16>
    %cst_36 = arith.constant dense<0.000000e+00> : vector<16x128xf32>
    %84 = tpu.matmul %82, %83, %cst_36 {dimension_numbers = #tpu.dot_dimension_numbers<[1], [0], [0], [1], [0, 0, 1, 1], [], []>} : vector<16x512xbf16>, vector<512x128xbf16>, vector<16x128xf32> -> vector<16x128xf32>
    %c0_37 = arith.constant 0 : index
    %c0_38 = arith.constant 0 : index
    %85 = vector.load %arg12[%c0_37, %c0_38] : memref<1x128xf32, #tpu.memory_space<vmem>>, vector<1x128xf32>
    %86 = vector.broadcast %85 : vector<1x128xf32> to vector<16x128xf32>
    %87 = arith.addf %84, %86 : vector<16x128xf32>
    %88 = arith.addf %87, %73 : vector<16x128xf32>
    %c0_39 = arith.constant 0 : index
    %c0_40 = arith.constant 0 : index
    %89 = vector.load %arg13[%c0_39, %c0_40] : memref<1x128xf32, #tpu.memory_space<vmem>>, vector<1x128xf32>
    %c0_41 = arith.constant 0 : index
    %c0_42 = arith.constant 0 : index
    %90 = vector.load %arg14[%c0_41, %c0_42] : memref<1x128xf32, #tpu.memory_space<vmem>>, vector<1x128xf32>
    %cst_43 = arith.constant dense<0.000000e+00> : vector<16xf32>
    %91 = vector.multi_reduction <add>, %88, %cst_43 [1] : vector<16x128xf32> to vector<16xf32>
    %92 = vector.shape_cast %91 : vector<16xf32> to vector<16x1xf32>
    %cst_44 = arith.constant 1.280000e+02 : f32
    %93 = vector.broadcast %cst_44 : f32 to vector<16x1xf32>
    %94 = arith.divf %92, %93 : vector<16x1xf32>
    %95 = vector.broadcast %94 : vector<16x1xf32> to vector<16x128xf32>
    %96 = arith.subf %88, %95 : vector<16x128xf32>
    %97 = arith.mulf %96, %96 : vector<16x128xf32>
    %cst_45 = arith.constant dense<0.000000e+00> : vector<16xf32>
    %98 = vector.multi_reduction <add>, %97, %cst_45 [1] : vector<16x128xf32> to vector<16xf32>
    %99 = vector.shape_cast %98 : vector<16xf32> to vector<16x1xf32>
    %cst_46 = arith.constant 1.280000e+02 : f32
    %100 = vector.broadcast %cst_46 : f32 to vector<16x1xf32>
    %101 = arith.divf %99, %100 : vector<16x1xf32>
    %102 = vector.broadcast %94 : vector<16x1xf32> to vector<16x128xf32>
    %103 = arith.subf %88, %102 : vector<16x128xf32>
    %cst_47 = arith.constant 9.99999974E-6 : f32
    %104 = vector.broadcast %cst_47 : f32 to vector<16x1xf32>
    %105 = arith.addf %101, %104 : vector<16x1xf32>
    %106 = math.rsqrt %105 : vector<16x1xf32>
    %107 = vector.broadcast %106 : vector<16x1xf32> to vector<16x128xf32>
    %108 = arith.mulf %103, %107 : vector<16x128xf32>
    %109 = vector.broadcast %89 : vector<1x128xf32> to vector<16x128xf32>
    %110 = arith.mulf %108, %109 : vector<16x128xf32>
    %111 = vector.broadcast %90 : vector<1x128xf32> to vector<16x128xf32>
    %112 = arith.addf %110, %111 : vector<16x128xf32>
    %c0_48 = arith.constant 0 : index
    %c0_49 = arith.constant 0 : index
    %c0_50 = arith.constant 0 : index
    %113 = vector.load %arg15[%c0_48, %c0_49, %c0_50] : memref<1x16x128xf32, #tpu.memory_space<vmem>>, vector<1x16x128xf32>
    %114 = vector.shape_cast %113 : vector<1x16x128xf32> to vector<16x128xf32>
    %115 = vector.shape_cast %112 : vector<16x128xf32> to vector<1x16x128xf32>
    tpu.vector_store %arg15[%c0_48, %c0_49, %c0_50], %115 {strides = array<i32>} : memref<1x16x128xf32, #tpu.memory_space<vmem>>, vector<1x16x128xf32>,
    return
  }
  func.func @transform_0(%arg0: i32) -> (i32, i32, i32) {
    %c0_i32 = arith.constant 0 : i32
    %c0_i32_0 = arith.constant 0 : i32
    %c0_i32_1 = arith.constant 0 : i32
    return %arg0, %c0_i32, %c0_i32_0 : i32, i32, i32
  }
  func.func @transform_1(%arg0: i32) -> (i32, i32, i32) {
    %c0_i32 = arith.constant 0 : i32
    %c0_i32_0 = arith.constant 0 : i32
    %c0_i32_1 = arith.constant 0 : i32
    return %arg0, %c0_i32, %c0_i32_0 : i32, i32, i32
  }
  func.func @transform_2(%arg0: i32) -> (i32, i32) {
    %c0_i32 = arith.constant 0 : i32
    %c0_i32_0 = arith.constant 0 : i32
    %c0_i32_1 = arith.constant 0 : i32
    return %c0_i32, %c0_i32_0 : i32, i32
  }
  func.func @transform_3(%arg0: i32) -> (i32, i32) {
    %c0_i32 = arith.constant 0 : i32
    %c0_i32_0 = arith.constant 0 : i32
    %c0_i32_1 = arith.constant 0 : i32
    return %c0_i32, %c0_i32_0 : i32, i32
  }
  func.func @transform_4(%arg0: i32) -> (i32, i32) {
    %c0_i32 = arith.constant 0 : i32
    %c0_i32_0 = arith.constant 0 : i32
    %c0_i32_1 = arith.constant 0 : i32
    return %c0_i32, %c0_i32_0 : i32, i32
  }
  func.func @transform_5(%arg0: i32) -> (i32, i32) {
    %c0_i32 = arith.constant 0 : i32
    %c0_i32_0 = arith.constant 0 : i32
    %c0_i32_1 = arith.constant 0 : i32
    return %c0_i32, %c0_i32_0 : i32, i32
  }
  func.func @transform_6(%arg0: i32) -> (i32, i32) {
    %c0_i32 = arith.constant 0 : i32
    %c0_i32_0 = arith.constant 0 : i32
    %c0_i32_1 = arith.constant 0 : i32
    return %c0_i32, %c0_i32_0 : i32, i32
  }
  func.func @transform_7(%arg0: i32) -> (i32, i32) {
    %c0_i32 = arith.constant 0 : i32
    %c0_i32_0 = arith.constant 0 : i32
    %c0_i32_1 = arith.constant 0 : i32
    return %c0_i32, %c0_i32_0 : i32, i32
  }
  func.func @transform_8(%arg0: i32) -> (i32, i32) {
    %c0_i32 = arith.constant 0 : i32
    %c0_i32_0 = arith.constant 0 : i32
    %c0_i32_1 = arith.constant 0 : i32
    return %c0_i32, %c0_i32_0 : i32, i32
  }
  func.func @transform_9(%arg0: i32) -> (i32, i32) {
    %c0_i32 = arith.constant 0 : i32
    %c0_i32_0 = arith.constant 0 : i32
    %c0_i32_1 = arith.constant 0 : i32
    return %c0_i32, %c0_i32_0 : i32, i32
  }
  func.func @transform_10(%arg0: i32) -> (i32, i32) {
    %c0_i32 = arith.constant 0 : i32
    %c0_i32_0 = arith.constant 0 : i32
    %c0_i32_1 = arith.constant 0 : i32
    return %c0_i32, %c0_i32_0 : i32, i32
  }
  func.func @transform_11(%arg0: i32) -> (i32, i32) {
    %c0_i32 = arith.constant 0 : i32
    %c0_i32_0 = arith.constant 0 : i32
    %c0_i32_1 = arith.constant 0 : i32
    return %c0_i32, %c0_i32_0 : i32, i32
  }
  func.func @transform_12(%arg0: i32) -> (i32, i32) {
    %c0_i32 = arith.constant 0 : i32
    %c0_i32_0 = arith.constant 0 : i32
    %c0_i32_1 = arith.constant 0 : i32
    return %c0_i32, %c0_i32_0 : i32, i32
  }
  func.func @transform_13(%arg0: i32) -> (i32, i32) {
    %c0_i32 = arith.constant 0 : i32
    %c0_i32_0 = arith.constant 0 : i32
    %c0_i32_1 = arith.constant 0 : i32
    return %c0_i32, %c0_i32_0 : i32, i32
  }
  func.func @transform_14(%arg0: i32) -> (i32, i32, i32) {
    %c0_i32 = arith.constant 0 : i32
    %c0_i32_0 = arith.constant 0 : i32
    %c0_i32_1 = arith.constant 0 : i32
    return %arg0, %c0_i32, %c0_i32_0 : i32, i32, i32
  }
}

module attributes {stable_mosaic.version = 11 : i64} {
  func.func @encoder_layer_kernel(%arg0: i32, %arg1: memref<1x16x128xf32, #tpu.memory_space<vmem>>, %arg2: memref<1x16x16xbf16, #tpu.memory_space<vmem>>, %arg3: memref<128x384xbf16, #tpu.memory_space<vmem>>, %arg4: memref<1x384xf32, #tpu.memory_space<vmem>>, %arg5: memref<128x128xbf16, #tpu.memory_space<vmem>>, %arg6: memref<1x128xf32, #tpu.memory_space<vmem>>, %arg7: memref<1x128xf32, #tpu.memory_space<vmem>>, %arg8: memref<1x128xf32, #tpu.memory_space<vmem>>, %arg9: memref<128x512xbf16, #tpu.memory_space<vmem>>, %arg10: memref<1x512xf32, #tpu.memory_space<vmem>>, %arg11: memref<512x128xbf16, #tpu.memory_space<vmem>>, %arg12: memref<1x128xf32, #tpu.memory_space<vmem>>, %arg13: memref<1x128xf32, #tpu.memory_space<vmem>>, %arg14: memref<1x128xf32, #tpu.memory_space<vmem>>, %arg15: memref<1x16x128xf32, #tpu.memory_space<vmem>>) attributes {dimension_semantics = [#tpu.dimension_semantics<parallel>], iteration_bounds = array<i64: 2>, scalar_prefetch = 0 : i64, scratch_operands = 0 : i64, tpu.core_type = #tpu.core_type<tc>, window_params = [{transform_indices = @transform_0, window_bounds = array<i64: 1, 16, 128>}, {transform_indices = @transform_1, window_bounds = array<i64: 1, 16, 16>}, {pipeline_mode = #tpu.pipeline_mode<synchronous>, transform_indices = @transform_2, window_bounds = array<i64: 128, 384>}, {pipeline_mode = #tpu.pipeline_mode<synchronous>, transform_indices = @transform_3, window_bounds = array<i64: 1, 384>}, {pipeline_mode = #tpu.pipeline_mode<synchronous>, transform_indices = @transform_4, window_bounds = array<i64: 128, 128>}, {pipeline_mode = #tpu.pipeline_mode<synchronous>, transform_indices = @transform_5, window_bounds = array<i64: 1, 128>}, {pipeline_mode = #tpu.pipeline_mode<synchronous>, transform_indices = @transform_6, window_bounds = array<i64: 1, 128>}, {pipeline_mode = #tpu.pipeline_mode<synchronous>, transform_indices = @transform_7, window_bounds = array<i64: 1, 128>}, {pipeline_mode = #tpu.pipeline_mode<synchronous>, transform_indices = @transform_8, window_bounds = array<i64: 128, 512>}, {pipeline_mode = #tpu.pipeline_mode<synchronous>, transform_indices = @transform_9, window_bounds = array<i64: 1, 512>}, {pipeline_mode = #tpu.pipeline_mode<synchronous>, transform_indices = @transform_10, window_bounds = array<i64: 512, 128>}, {pipeline_mode = #tpu.pipeline_mode<synchronous>, transform_indices = @transform_11, window_bounds = array<i64: 1, 128>}, {pipeline_mode = #tpu.pipeline_mode<synchronous>, transform_indices = @transform_12, window_bounds = array<i64: 1, 128>}, {pipeline_mode = #tpu.pipeline_mode<synchronous>, transform_indices = @transform_13, window_bounds = array<i64: 1, 128>}, {transform_indices = @transform_14, window_bounds = array<i64: 1, 16, 128>}]} {
    %c0 = arith.constant 0 : index
    %c0_0 = arith.constant 0 : index
    %c0_1 = arith.constant 0 : index
    %0 = vector.load %arg1[%c0, %c0_0, %c0_1] : memref<1x16x128xf32, #tpu.memory_space<vmem>>, vector<1x16x128xf32>
    %1 = vector.shape_cast %0 : vector<1x16x128xf32> to vector<16x128xf32>
    %2 = arith.truncf %1 : vector<16x128xf32> to vector<16x128xbf16>
    %c0_2 = arith.constant 0 : index
    %c0_3 = arith.constant 0 : index
    %3 = vector.load %arg3[%c0_2, %c0_3] : memref<128x384xbf16, #tpu.memory_space<vmem>>, vector<128x384xbf16>
    %cst = arith.constant dense<0.000000e+00> : vector<16x384xf32>
    %4 = tpu.matmul %2, %3, %cst {dimension_numbers = #tpu.dot_dimension_numbers<[1], [0], [0], [1], [0, 0, 1, 1], [], []>} : vector<16x128xbf16>, vector<128x384xbf16>, vector<16x384xf32> -> vector<16x384xf32>
    %c0_4 = arith.constant 0 : index
    %c0_5 = arith.constant 0 : index
    %5 = vector.load %arg4[%c0_4, %c0_5] : memref<1x384xf32, #tpu.memory_space<vmem>>, vector<1x384xf32>
    %6 = vector.broadcast %5 : vector<1x384xf32> to vector<16x384xf32>
    %7 = arith.addf %4, %6 : vector<16x384xf32>
    %8 = vector.extract_strided_slice %7 {offsets = [0, 0], sizes = [16, 128], strides = [1, 1]} : vector<16x384xf32> to vector<16x128xf32>
    %cst_6 = arith.constant 0.176776692 : f32
    %9 = vector.broadcast %cst_6 : f32 to vector<16x128xf32>
    %10 = arith.mulf %8, %9 : vector<16x128xf32>
    %11 = arith.truncf %10 : vector<16x128xf32> to vector<16x128xbf16>
    %12 = vector.extract_strided_slice %7 {offsets = [0, 128], sizes = [16, 128], strides = [1, 1]} : vector<16x384xf32> to vector<16x128xf32>
    %13 = arith.truncf %12 : vector<16x128xf32> to vector<16x128xbf16>
    %14 = vector.extract_strided_slice %7 {offsets = [0, 256], sizes = [16, 128], strides = [1, 1]} : vector<16x384xf32> to vector<16x128xf32>
    %15 = arith.truncf %14 : vector<16x128xf32> to vector<16x128xbf16>
    %16 = vector.shape_cast %11 : vector<16x128xbf16> to vector<16x4x32xbf16>
    %17 = tpu.transpose %16, [1, 0, 2] : vector<16x4x32xbf16> -> vector<4x16x32xbf16>
    %18 = vector.shape_cast %13 : vector<16x128xbf16> to vector<16x4x32xbf16>
    %19 = tpu.transpose %18, [1, 0, 2] : vector<16x4x32xbf16> -> vector<4x16x32xbf16>
    %20 = vector.shape_cast %15 : vector<16x128xbf16> to vector<16x4x32xbf16>
    %21 = tpu.transpose %20, [1, 0, 2] : vector<16x4x32xbf16> -> vector<4x16x32xbf16>
    "tpu.trace_start"() <{level = 10 : i32, message = "hqd,hkd->hqk"}> : () -> ()
    %cst_7 = arith.constant dense<0.000000e+00> : vector<4x16x16xf32>
    %22 = tpu.matmul %17, %19, %cst_7 {dimension_numbers = #tpu.dot_dimension_numbers<[2], [2], [1], [1], [0, 0, 0, 1, 1, 1], [0], [0]>} : vector<4x16x32xbf16>, vector<4x16x32xbf16>, vector<4x16x16xf32> -> vector<4x16x16xf32>
    "tpu.trace_stop"() : () -> ()
    %c0_8 = arith.constant 0 : index
    %c0_9 = arith.constant 0 : index
    %c0_10 = arith.constant 0 : index
    %23 = vector.load %arg2[%c0_8, %c0_9, %c0_10] : memref<1x16x16xbf16, #tpu.memory_space<vmem>>, vector<1x16x16xbf16>
    %24 = vector.shape_cast %23 : vector<1x16x16xbf16> to vector<16x16xbf16>
    %25 = arith.extf %24 : vector<16x16xbf16> to vector<16x16xf32>
    %26 = vector.shape_cast %25 : vector<16x16xf32> to vector<1x16x16xf32>
    %27 = vector.broadcast %26 : vector<1x16x16xf32> to vector<4x16x16xf32>
    %28 = arith.addf %22, %27 : vector<4x16x16xf32>
    %cst_11 = arith.constant dense<0xFF800000> : vector<4x16xf32>
    %29 = vector.multi_reduction <maximumf>, %28, %cst_11 [2] : vector<4x16x16xf32> to vector<4x16xf32>
    %30 = vector.shape_cast %29 : vector<4x16xf32> to vector<4x16x1xf32>
    %31 = vector.broadcast %30 : vector<4x16x1xf32> to vector<4x16x16xf32>
    %32 = arith.subf %28, %31 : vector<4x16x16xf32>
    %33 = math.exp %32 : vector<4x16x16xf32>
    %cst_12 = arith.constant dense<0.000000e+00> : vector<4x16xf32>
    %34 = vector.multi_reduction <add>, %33, %cst_12 [2] : vector<4x16x16xf32> to vector<4x16xf32>
    %35 = vector.shape_cast %34 : vector<4x16xf32> to vector<4x16x1xf32>
    %36 = tpu.reciprocal %35 {approx = true} : vector<4x16x1xf32> -> vector<4x16x1xf32>
    %37 = vector.broadcast %36 : vector<4x16x1xf32> to vector<4x16x16xf32>
    %38 = arith.mulf %33, %37 : vector<4x16x16xf32>
    %39 = arith.truncf %38 : vector<4x16x16xf32> to vector<4x16x16xbf16>
    "tpu.trace_start"() <{level = 10 : i32, message = "hqk,hkd->hqd"}> : () -> ()
    %cst_13 = arith.constant dense<0.000000e+00> : vector<4x16x32xf32>
    %40 = tpu.matmul %39, %21, %cst_13 {dimension_numbers = #tpu.dot_dimension_numbers<[2], [1], [1], [2], [0, 0, 0, 1, 1, 2], [0], [0]>} : vector<4x16x16xbf16>, vector<4x16x32xbf16>, vector<4x16x32xf32> -> vector<4x16x32xf32>
    "tpu.trace_stop"() : () -> ()
    %41 = tpu.transpose %40, [1, 0, 2] : vector<4x16x32xf32> -> vector<16x4x32xf32>
    %42 = vector.shape_cast %41 : vector<16x4x32xf32> to vector<16x128xf32>
    %43 = arith.truncf %42 : vector<16x128xf32> to vector<16x128xbf16>
    %c0_14 = arith.constant 0 : index
    %c0_15 = arith.constant 0 : index
    %44 = vector.load %arg5[%c0_14, %c0_15] : memref<128x128xbf16, #tpu.memory_space<vmem>>, vector<128x128xbf16>
    %cst_16 = arith.constant dense<0.000000e+00> : vector<16x128xf32>
    %45 = tpu.matmul %43, %44, %cst_16 {dimension_numbers = #tpu.dot_dimension_numbers<[1], [0], [0], [1], [0, 0, 1, 1], [], []>} : vector<16x128xbf16>, vector<128x128xbf16>, vector<16x128xf32> -> vector<16x128xf32>
    %c0_17 = arith.constant 0 : index
    %c0_18 = arith.constant 0 : index
    %46 = vector.load %arg6[%c0_17, %c0_18] : memref<1x128xf32, #tpu.memory_space<vmem>>, vector<1x128xf32>
    %47 = vector.broadcast %46 : vector<1x128xf32> to vector<16x128xf32>
    %48 = arith.addf %45, %47 : vector<16x128xf32>
    %49 = arith.addf %48, %1 : vector<16x128xf32>
    %c0_19 = arith.constant 0 : index
    %c0_20 = arith.constant 0 : index
    %50 = vector.load %arg7[%c0_19, %c0_20] : memref<1x128xf32, #tpu.memory_space<vmem>>, vector<1x128xf32>
    %c0_21 = arith.constant 0 : index
    %c0_22 = arith.constant 0 : index
    %51 = vector.load %arg8[%c0_21, %c0_22] : memref<1x128xf32, #tpu.memory_space<vmem>>, vector<1x128xf32>
    %cst_23 = arith.constant dense<0.000000e+00> : vector<16xf32>
    %52 = vector.multi_reduction <add>, %49, %cst_23 [1] : vector<16x128xf32> to vector<16xf32>
    %53 = vector.shape_cast %52 : vector<16xf32> to vector<16x1xf32>
    %cst_24 = arith.constant 1.280000e+02 : f32
    %54 = vector.broadcast %cst_24 : f32 to vector<16x1xf32>
    %55 = arith.divf %53, %54 : vector<16x1xf32>
    %56 = vector.broadcast %55 : vector<16x1xf32> to vector<16x128xf32>
    %57 = arith.subf %49, %56 : vector<16x128xf32>
    %58 = arith.mulf %57, %57 : vector<16x128xf32>
    %cst_25 = arith.constant dense<0.000000e+00> : vector<16xf32>
    %59 = vector.multi_reduction <add>, %58, %cst_25 [1] : vector<16x128xf32> to vector<16xf32>
    %60 = vector.shape_cast %59 : vector<16xf32> to vector<16x1xf32>
    %cst_26 = arith.constant 1.280000e+02 : f32
    %61 = vector.broadcast %cst_26 : f32 to vector<16x1xf32>
    %62 = arith.divf %60, %61 : vector<16x1xf32>
    %63 = vector.broadcast %55 : vector<16x1xf32> to vector<16x128xf32>
    %64 = arith.subf %49, %63 : vector<16x128xf32>
    %cst_27 = arith.constant 9.99999974E-6 : f32
    %65 = vector.broadcast %cst_27 : f32 to vector<16x1xf32>
    %66 = arith.addf %62, %65 : vector<16x1xf32>
    %67 = math.rsqrt %66 : vector<16x1xf32>
    %68 = vector.broadcast %67 : vector<16x1xf32> to vector<16x128xf32>
    %69 = arith.mulf %64, %68 : vector<16x128xf32>
    %70 = vector.broadcast %50 : vector<1x128xf32> to vector<16x128xf32>
    %71 = arith.mulf %69, %70 : vector<16x128xf32>
    %72 = vector.broadcast %51 : vector<1x128xf32> to vector<16x128xf32>
    %73 = arith.addf %71, %72 : vector<16x128xf32>
    %74 = arith.truncf %73 : vector<16x128xf32> to vector<16x128xbf16>
    %c0_28 = arith.constant 0 : index
    %c0_29 = arith.constant 0 : index
    %75 = vector.load %arg9[%c0_28, %c0_29] : memref<128x512xbf16, #tpu.memory_space<vmem>>, vector<128x512xbf16>
    %cst_30 = arith.constant dense<0.000000e+00> : vector<16x512xf32>
    %76 = tpu.matmul %74, %75, %cst_30 {dimension_numbers = #tpu.dot_dimension_numbers<[1], [0], [0], [1], [0, 0, 1, 1], [], []>} : vector<16x128xbf16>, vector<128x512xbf16>, vector<16x512xf32> -> vector<16x512xf32>
    %c0_31 = arith.constant 0 : index
    %c0_32 = arith.constant 0 : index
    %77 = vector.load %arg10[%c0_31, %c0_32] : memref<1x512xf32, #tpu.memory_space<vmem>>, vector<1x512xf32>
    %78 = vector.broadcast %77 : vector<1x512xf32> to vector<16x512xf32>
    %79 = arith.addf %76, %78 : vector<16x512xf32>
    %cst_33 = arith.constant 0.000000e+00 : f32
    %80 = vector.broadcast %cst_33 : f32 to vector<16x512xf32>
    %81 = arith.maximumf %79, %80 : vector<16x512xf32>
    %82 = arith.truncf %81 : vector<16x512xf32> to vector<16x512xbf16>
    %c0_34 = arith.constant 0 : index
    %c0_35 = arith.constant 0 : index
    %83 = vector.load %arg11[%c0_34, %c0_35] : memref<512x128xbf16, #tpu.memory_space<vmem>>, vector<512x128xbf16>
    %cst_36 = arith.constant dense<0.000000e+00> : vector<16x128xf32>
    %84 = tpu.matmul %82, %83, %cst_36 {dimension_numbers = #tpu.dot_dimension_numbers<[1], [0], [0], [1], [0, 0, 1, 1], [], []>} : vector<16x512xbf16>, vector<512x128xbf16>, vector<16x128xf32> -> vector<16x128xf32>
    %c0_37 = arith.constant 0 : index
    %c0_38 = arith.constant 0 : index
    %85 = vector.load %arg12[%c0_37, %c0_38] : memref<1x128xf32, #tpu.memory_space<vmem>>, vector<1x128xf32>
    %86 = vector.broadcast %85 : vector<1x128xf32> to vector<16x128xf32>
    %87 = arith.addf %84, %86 : vector<16x128xf32>
    %88 = arith.addf %87, %73 : vector<16x128xf32>
    %c0_39 = arith.constant 0 : index
    %c0_40 = arith.constant 0 : index
    %89 = vector.load %arg13[%c0_39, %c0_40] : memref<1x128xf32, #tpu.memory_space<vmem>>, vector<1x128xf32>
    %c0_41 = arith.constant 0 : index
    %c0_42 = arith.constant 0 : index
    %90 = vector.load %arg14[%c0_41, %c0_42] : memref<1x128xf32, #tpu.memory_space<vmem>>, vector<1x128xf32>
    %cst_43 = arith.constant dense<0.000000e+00> : vector<16xf32>
    %91 = vector.multi_reduction <add>, %88, %cst_43 [1] : vector<16x128xf32> to vector<16xf32>
    %92 = vector.shape_cast %91 : vector<16xf32> to vector<16x1xf32>
    %cst_44 = arith.constant 1.280000e+02 : f32
    %93 = vector.broadcast %cst_44 : f32 to vector<16x1xf32>
    %94 = arith.divf %92, %93 : vector<16x1xf32>
    %95 = vector.broadcast %94 : vector<16x1xf32> to vector<16x128xf32>
    %96 = arith.subf %88, %95 : vector<16x128xf32>
    %97 = arith.mulf %96, %96 : vector<16x128xf32>
    %cst_45 = arith.constant dense<0.000000e+00> : vector<16xf32>
    %98 = vector.multi_reduction <add>, %97, %cst_45 [1] : vector<16x128xf32> to vector<16xf32>
    %99 = vector.shape_cast %98 : vector<16xf32> to vector<16x1xf32>
    %cst_46 = arith.constant 1.280000e+02 : f32
    %100 = vector.broadcast %cst_46 : f32 to vector<16x1xf32>
    %101 = arith.divf %99, %100 : vector<16x1xf32>
    %102 = vector.broadcast %94 : vector<16x1xf32> to vector<16x128xf32>
    %103 = arith.subf %88, %102 : vector<16x128xf32>
    %cst_47 = arith.constant 9.99999974E-6 : f32
    %104 = vector.broadcast %cst_47 : f32 to vector<16x1xf32>
    %105 = arith.addf %101, %104 : vector<16x1xf32>
    %106 = math.rsqrt %105 : vector<16x1xf32>
    %107 = vector.broadcast %106 : vector<16x1xf32> to vector<16x128xf32>
    %108 = arith.mulf %103, %107 : vector<16x128xf32>
    %109 = vector.broadcast %89 : vector<1x128xf32> to vector<16x128xf32>
    %110 = arith.mulf %108, %109 : vector<16x128xf32>
    %111 = vector.broadcast %90 : vector<1x128xf32> to vector<16x128xf32>
    %112 = arith.addf %110, %111 : vector<16x128xf32>
    %c0_48 = arith.constant 0 : index
    %c0_49 = arith.constant 0 : index
    %c0_50 = arith.constant 0 : index
    %113 = vector.load %arg15[%c0_48, %c0_49, %c0_50] : memref<1x16x128xf32, #tpu.memory_space<vmem>>, vector<1x16x128xf32>
    %114 = vector.shape_cast %113 : vector<1x16x128xf32> to vector<16x128xf32>
    %115 = vector.shape_cast %112 : vector<16x128xf32> to vector<1x16x128xf32>
    tpu.vector_store %arg15[%c0_48, %c0_49, %c0_50], %115 {strides = array<i32>} : memref<1x16x128xf32, #tpu.memory_space<vmem>>, vector<1x16x128xf32>,
    return
  }
  func.func @transform_0(%arg0: i32) -> (i32, i32, i32) {
    %c0_i32 = arith.constant 0 : i32
    %c0_i32_0 = arith.constant 0 : i32
    %c0_i32_1 = arith.constant 0 : i32
    return %arg0, %c0_i32, %c0_i32_0 : i32, i32, i32
  }
  func.func @transform_1(%arg0: i32) -> (i32, i32, i32) {
    %c0_i32 = arith.constant 0 : i32
    %c0_i32_0 = arith.constant 0 : i32
    %c0_i32_1 = arith.constant 0 : i32
    return %arg0, %c0_i32, %c0_i32_0 : i32, i32, i32
  }
  func.func @transform_2(%arg0: i32) -> (i32, i32) {
    %c0_i32 = arith.constant 0 : i32
    %c0_i32_0 = arith.constant 0 : i32
    %c0_i32_1 = arith.constant 0 : i32
    return %c0_i32, %c0_i32_0 : i32, i32
  }
  func.func @transform_3(%arg0: i32) -> (i32, i32) {
    %c0_i32 = arith.constant 0 : i32
    %c0_i32_0 = arith.constant 0 : i32
    %c0_i32_1 = arith.constant 0 : i32
    return %c0_i32, %c0_i32_0 : i32, i32
  }
  func.func @transform_4(%arg0: i32) -> (i32, i32) {
    %c0_i32 = arith.constant 0 : i32
    %c0_i32_0 = arith.constant 0 : i32
    %c0_i32_1 = arith.constant 0 : i32
    return %c0_i32, %c0_i32_0 : i32, i32
  }
  func.func @transform_5(%arg0: i32) -> (i32, i32) {
    %c0_i32 = arith.constant 0 : i32
    %c0_i32_0 = arith.constant 0 : i32
    %c0_i32_1 = arith.constant 0 : i32
    return %c0_i32, %c0_i32_0 : i32, i32
  }
  func.func @transform_6(%arg0: i32) -> (i32, i32) {
    %c0_i32 = arith.constant 0 : i32
    %c0_i32_0 = arith.constant 0 : i32
    %c0_i32_1 = arith.constant 0 : i32
    return %c0_i32, %c0_i32_0 : i32, i32
  }
  func.func @transform_7(%arg0: i32) -> (i32, i32) {
    %c0_i32 = arith.constant 0 : i32
    %c0_i32_0 = arith.constant 0 : i32
    %c0_i32_1 = arith.constant 0 : i32
    return %c0_i32, %c0_i32_0 : i32, i32
  }
  func.func @transform_8(%arg0: i32) -> (i32, i32) {
    %c0_i32 = arith.constant 0 : i32
    %c0_i32_0 = arith.constant 0 : i32
    %c0_i32_1 = arith.constant 0 : i32
    return %c0_i32, %c0_i32_0 : i32, i32
  }
  func.func @transform_9(%arg0: i32) -> (i32, i32) {
    %c0_i32 = arith.constant 0 : i32
    %c0_i32_0 = arith.constant 0 : i32
    %c0_i32_1 = arith.constant 0 : i32
    return %c0_i32, %c0_i32_0 : i32, i32
  }
  func.func @transform_10(%arg0: i32) -> (i32, i32) {
    %c0_i32 = arith.constant 0 : i32
    %c0_i32_0 = arith.constant 0 : i32
    %c0_i32_1 = arith.constant 0 : i32
    return %c0_i32, %c0_i32_0 : i32, i32
  }
  func.func @transform_11(%arg0: i32) -> (i32, i32) {
    %c0_i32 = arith.constant 0 : i32
    %c0_i32_0 = arith.constant 0 : i32
    %c0_i32_1 = arith.constant 0 : i32
    return %c0_i32, %c0_i32_0 : i32, i32
  }
  func.func @transform_12(%arg0: i32) -> (i32, i32) {
    %c0_i32 = arith.constant 0 : i32
    %c0_i32_0 = arith.constant 0 : i32
    %c0_i32_1 = arith.constant 0 : i32
    return %c0_i32, %c0_i32_0 : i32, i32
  }
  func.func @transform_13(%arg0: i32) -> (i32, i32) {
    %c0_i32 = arith.constant 0 : i32
    %c0_i32_0 = arith.constant 0 : i32
    %c0_i32_1 = arith.constant 0 : i32
    return %c0_i32, %c0_i32_0 : i32, i32
  }
  func.func @transform_14(%arg0: i32) -> (i32, i32, i32) {
    %c0_i32 = arith.constant 0 : i32
    %c0_i32_0 = arith.constant 0 : i32
    %c0_i32_1 = arith.constant 0 : i32
    return %arg0, %c0_i32, %c0_i32_0 : i32, i32, i32
  }
}

</mosaic_0001>

<llo_original>
// kernel: tpu_custom_call.1
$region0: #{tpu_custom_call.1}
  #allocation0 [shape = 'u32[]', space=smem, size = 0x4, offset = 0x4, fixed_abs, tag = 'smem constant byte address 0x4 - core index']
  #allocation1 [shape = 'u32[144,128]{1,0:T(1,128)}', space=vmem, size = 0x12000, scoped, tag = 'internal scratch']
  %s0 = inlined_call_operand.hbm [shape: f32[2,16,128], index: 0, kind: input, shape index: {}]
  %s1 = inlined_call_operand.hbm [shape: bf16[2,16,16], index: 1, kind: input, shape index: {}]
  %s2 = inlined_call_operand.hbm [shape: bf16[128,384], index: 2, kind: input, shape index: {}]
  %s3 = inlined_call_operand.vmem [shape: f32[1,384], index: 3, kind: input, shape index: {}]
  %s4 = inlined_call_operand.hbm [shape: bf16[128,128], index: 4, kind: input, shape index: {}]
  %s5 = inlined_call_operand.vmem [shape: f32[1,128], index: 5, kind: input, shape index: {}]
  %s6 = inlined_call_operand.vmem [shape: f32[1,128], index: 6, kind: input, shape index: {}]
  %s7 = inlined_call_operand.vmem [shape: f32[1,128], index: 7, kind: input, shape index: {}]
  %s8 = inlined_call_operand.hbm [shape: bf16[128,512], index: 8, kind: input, shape index: {}]
  %s9 = inlined_call_operand.vmem [shape: f32[1,512], index: 9, kind: input, shape index: {}]
  %s10 = inlined_call_operand.hbm [shape: bf16[512,128], index: 10, kind: input, shape index: {}]
  %s11 = inlined_call_operand.vmem [shape: f32[1,128], index: 11, kind: input, shape index: {}]
  %s12 = inlined_call_operand.vmem [shape: f32[1,128], index: 12, kind: input, shape index: {}]
  %s13 = inlined_call_operand.vmem [shape: f32[1,128], index: 13, kind: input, shape index: {}]
  %s14 = inlined_call_operand.hbm [shape: f32[2,16,128], index: 14, kind: output, shape index: {}]
  %s15 = sld [smem:[#allocation0]]
  $region113: #{tpu_custom_call.1} parent=0
    _
  %s17 = ssub.s32 1, %s15
  %s18 = scalar_select 0, %s17, %s15
  $region1: #{tpu_custom_call.1} parent=0
    #allocation2 [shape = 'u8[16384]{0}', space=vmem, size = 0x4000, scoped, tag = 'input window, operand 0']
    #allocation3 [shape = 's32[2]{0}', space=sflag, size = 0x8, scoped, tag = 'scoped memory for tpu_custom_call.1']
    #allocation4 [shape = 's32[2]{0}', space=sflag, size = 0x8, scoped, tag = 'scoped memory for tpu_custom_call.1']
    #allocation5 [shape = 'u8[8192]{0}', space=vmem, size = 0x2000, scoped, tag = 'input window, operand 1']
    #allocation6 [shape = 's32[2]{0}', space=sflag, size = 0x8, scoped, tag = 'scoped memory for tpu_custom_call.1']
    #allocation7 [shape = 'u8[98304]{0}', space=vmem, size = 0x18000, scoped, tag = 'input window, operand 2, single buffered']
    #allocation8 [shape = 'u8[32768]{0}', space=vmem, size = 0x8000, scoped, tag = 'input window, operand 4, single buffered']
    #allocation9 [shape = 's32[1]{0}', space=sflag, size = 0x4, scoped, tag = 'scoped memory for tpu_custom_call.1']
    #allocation10 [shape = 'u8[131072]{0}', space=vmem, size = 0x20000, scoped, tag = 'input window, operand 8, single buffered']
    #allocation11 [shape = 'u8[131072]{0}', space=vmem, size = 0x20000, scoped, tag = 'input window, operand 10, single buffered']
    #allocation12 [shape = 's32[1]{0}', space=sflag, size = 0x4, scoped, tag = 'scoped memory for tpu_custom_call.1']
    #allocation13 [shape = 'u8[16384]{0}', space=vmem, size = 0x4000, scoped, tag = 'output window, operand 0']
    %19 = vsyncpa [#allocation3], 0
    %s20 = scalar_lea.sflag [#allocation3], 1
    %21 = vsyncpa %s20, 0
    %22 = vsyncpa [#allocation6], 0
    %s23 = scalar_lea.sflag [#allocation6], 1
    %24 = vsyncpa %s23, 0
    %25 = vsyncpa [#allocation9], 0
    %26 = vsyncpa [#allocation12], 0
    %27 = vsyncpa [#allocation4], 0
    %s28 = scalar_lea.sflag [#allocation4], 1
    %29 = vsyncpa %s28, 0
    loop: start=0, step=1, limit=4
    $region2: #{tpu_custom_call.1} parent=1 // loop_pre_header
      _
    $region3: #{tpu_custom_call.1} parent=1 // loop_header
      %s31 = sphi 0, %s35
      %p32 = scmp.ge.s32.totalorder %s31, 4
      %s41 = sphi 0, %s43
      %s44 = sphi 0, %s41
      %s45 = sphi 0, %s44
      %s61 = sphi 0, %s45
      %s67 = sphi 0, %s69
      %s70 = sphi 0, %s67
      %s71 = sphi 0, %s70
      %s87 = sphi 0, %s71
      %s91 = sphi 0, %s91
      %s93 = sphi 0, %s91
      %s94 = sphi 0, %s93
      %s108 = sphi 0, %s94
      %s112 = sphi 0, %s112
      %s114 = sphi 0, %s112
      %s115 = sphi 0, %s114
      %s129 = sphi 0, %s115
      %s133 = sphi 0, %s133
      %s135 = sphi 0, %s133
      %s136 = sphi 0, %s135
      %s150 = sphi 0, %s136
      %s154 = sphi 0, %s154
      %s156 = sphi 0, %s154
      %s157 = sphi 0, %s156
      %s171 = sphi 0, %s157
      %s175 = sphi 0, %s175
      %s177 = sphi 0, %s175
      %s178 = sphi 0, %s177
      %s192 = sphi 0, %s178
      %s196 = sphi 0, %s196
      %s198 = sphi 0, %s196
      %s199 = sphi 0, %s198
      %s213 = sphi 0, %s199
      %s217 = sphi 0, %s217
      %s219 = sphi 0, %s217
      %s220 = sphi 0, %s219
      %s234 = sphi 0, %s220
      %s238 = sphi 0, %s238
      %s240 = sphi 0, %s238
      %s241 = sphi 0, %s240
      %s255 = sphi 0, %s241
      %s259 = sphi 0, %s259
      %s261 = sphi 0, %s259
      %s262 = sphi 0, %s261
      %s276 = sphi 0, %s262
      %s280 = sphi 0, %s280
      %s282 = sphi 0, %s280
      %s283 = sphi 0, %s282
      %s297 = sphi 0, %s283
      %s301 = sphi 0, %s301
      %s303 = sphi 0, %s301
      %s304 = sphi 0, %s303
      %s318 = sphi 0, %s304
      %s322 = sphi 0, %s322
      %s324 = sphi 0, %s322
      %s325 = sphi 0, %s324
      %s339 = sphi 0, %s325
      %s345 = sphi 0, %s347
      %s348 = sphi 0, %s345
      %s349 = sphi 0, %s348
      %s365 = sphi 0, %s349
    $region4: #{tpu_custom_call.1} parent=1 // loop_header_branch
      %34 = sbr.rel (%p32) target = $region8
    $region5: #{tpu_custom_call.1} parent=1 // loop_body
      %s36 = ssub.s32 %s31, 1
      %s37 = ssub.s32 %s31, 2
      %s38 = sadd.s32 %s31, 1
      %s39 = ssub.s32 %s31, %s38
      %p40 = scmp.eq.s32.totalorder %s39, 0
      %s42 = sadd.s32 %s41, 1
      %s43 = scalar_select %p40, %s41, %s42
      %p46 = pneg %p40
      %p47 = scmp.eq.s32.totalorder %s31, 1
      %p48 = por %p46, %p47
      %p49 = scmp.ne.s32.totalorder %s41, %s44
      %p50 = scmp.eq.s32.totalorder %s31, 0
      %p51 = por %p49, %p50
      %p52 = scmp.ne.s32.totalorder %s41, %s44
      %p53 = scmp.eq.s32.totalorder %s36, 1
      %p54 = por %p52, %p53
      %p55 = scmp.ne.s32.totalorder %s44, %s45
      %p56 = scmp.eq.s32.totalorder %s36, 0
      %p57 = por %p55, %p56
      %p58 = scmp.ne.s32.totalorder %s44, %s45
      %p59 = scmp.eq.s32.totalorder %s37, 1
      %p60 = por %p58, %p59
      %p62 = scmp.ne.s32.totalorder %s45, %s61
      %p63 = scmp.eq.s32.totalorder %s37, 0
      %p64 = por %p62, %p63
      %s65 = ssub.s32 %s31, %s38
      %p66 = scmp.eq.s32.totalorder %s65, 0
      %s68 = sadd.s32 %s67, 1
      %s69 = scalar_select %p66, %s67, %s68
      %p72 = pneg %p66
      %p73 = scmp.eq.s32.totalorder %s31, 1
      %p74 = por %p72, %p73
      %p75 = scmp.ne.s32.totalorder %s67, %s70
      %p76 = scmp.eq.s32.totalorder %s31, 0
      %p77 = por %p75, %p76
      %p78 = scmp.ne.s32.totalorder %s67, %s70
      %p79 = scmp.eq.s32.totalorder %s36, 1
      %p80 = por %p78, %p79
      %p81 = scmp.ne.s32.totalorder %s70, %s71
      %p82 = scmp.eq.s32.totalorder %s36, 0
      %p83 = por %p81, %p82
      %p84 = scmp.ne.s32.totalorder %s70, %s71
      %p85 = scmp.eq.s32.totalorder %s37, 1
      %p86 = por %p84, %p85
      %p88 = scmp.ne.s32.totalorder %s71, %s87
      %p89 = scmp.eq.s32.totalorder %s37, 0
      %p90 = por %p88, %p89
      %s92 = sadd.s32 %s91, 1
      %p95 = scmp.eq.s32.totalorder %s31, 1
      %p96 = scmp.ne.s32.totalorder %s91, %s93
      %p97 = scmp.eq.s32.totalorder %s31, 0
      %p98 = por %p96, %p97
      %p99 = scmp.ne.s32.totalorder %s91, %s93
      %p100 = scmp.eq.s32.totalorder %s36, 1
      %p101 = por %p99, %p100
      %p102 = scmp.ne.s32.totalorder %s93, %s94
      %p103 = scmp.eq.s32.totalorder %s36, 0
      %p104 = por %p102, %p103
      %p105 = scmp.ne.s32.totalorder %s93, %s94
      %p106 = scmp.eq.s32.totalorder %s37, 1
      %p107 = por %p105, %p106
      %p109 = scmp.ne.s32.totalorder %s94, %s108
      %p110 = scmp.eq.s32.totalorder %s37, 0
      %p111 = por %p109, %p110
      %s113 = sadd.s32 %s112, 1
      %p116 = scmp.eq.s32.totalorder %s31, 1
      %p117 = scmp.ne.s32.totalorder %s112, %s114
      %p118 = scmp.eq.s32.totalorder %s31, 0
      %p119 = por %p117, %p118
      %p120 = scmp.ne.s32.totalorder %s112, %s114
      %p121 = scmp.eq.s32.totalorder %s36, 1
      %p122 = por %p120, %p121
      %p123 = scmp.ne.s32.totalorder %s114, %s115
      %p124 = scmp.eq.s32.totalorder %s36, 0
      %p125 = por %p123, %p124
      %p126 = scmp.ne.s32.totalorder %s114, %s115
      %p127 = scmp.eq.s32.totalorder %s37, 1
      %p128 = por %p126, %p127
      %p130 = scmp.ne.s32.totalorder %s115, %s129
      %p131 = scmp.eq.s32.totalorder %s37, 0
      %p132 = por %p130, %p131
      %s134 = sadd.s32 %s133, 1
      %p137 = scmp.eq.s32.totalorder %s31, 1
      %p138 = scmp.ne.s32.totalorder %s133, %s135
      %p139 = scmp.eq.s32.totalorder %s31, 0
      %p140 = por %p138, %p139
      %p141 = scmp.ne.s32.totalorder %s133, %s135
      %p142 = scmp.eq.s32.totalorder %s36, 1
      %p143 = por %p141, %p142
      %p144 = scmp.ne.s32.totalorder %s135, %s136
      %p145 = scmp.eq.s32.totalorder %s36, 0
      %p146 = por %p144, %p145
      %p147 = scmp.ne.s32.totalorder %s135, %s136
      %p148 = scmp.eq.s32.totalorder %s37, 1
      %p149 = por %p147, %p148
      %p151 = scmp.ne.s32.totalorder %s136, %s150
      %p152 = scmp.eq.s32.totalorder %s37, 0
      %p153 = por %p151, %p152
      %s155 = sadd.s32 %s154, 1
      %p158 = scmp.eq.s32.totalorder %s31, 1
      %p159 = scmp.ne.s32.totalorder %s154, %s156
      %p160 = scmp.eq.s32.totalorder %s31, 0
      %p161 = por %p159, %p160
      %p162 = scmp.ne.s32.totalorder %s154, %s156
      %p163 = scmp.eq.s32.totalorder %s36, 1
      %p164 = por %p162, %p163
      %p165 = scmp.ne.s32.totalorder %s156, %s157
      %p166 = scmp.eq.s32.totalorder %s36, 0
      %p167 = por %p165, %p166
      %p168 = scmp.ne.s32.totalorder %s156, %s157
      %p169 = scmp.eq.s32.totalorder %s37, 1
      %p170 = por %p168, %p169
      %p172 = scmp.ne.s32.totalorder %s157, %s171
      %p173 = scmp.eq.s32.totalorder %s37, 0
      %p174 = por %p172, %p173
      %s176 = sadd.s32 %s175, 1
      %p179 = scmp.eq.s32.totalorder %s31, 1
      %p180 = scmp.ne.s32.totalorder %s175, %s177
      %p181 = scmp.eq.s32.totalorder %s31, 0
      %p182 = por %p180, %p181
      %p183 = scmp.ne.s32.totalorder %s175, %s177
      %p184 = scmp.eq.s32.totalorder %s36, 1
      %p185 = por %p183, %p184
      %p186 = scmp.ne.s32.totalorder %s177, %s178
      %p187 = scmp.eq.s32.totalorder %s36, 0
      %p188 = por %p186, %p187
      %p189 = scmp.ne.s32.totalorder %s177, %s178
      %p190 = scmp.eq.s32.totalorder %s37, 1
      %p191 = por %p189, %p190
      %p193 = scmp.ne.s32.totalorder %s178, %s192
      %p194 = scmp.eq.s32.totalorder %s37, 0
      %p195 = por %p193, %p194
      %s197 = sadd.s32 %s196, 1
      %p200 = scmp.eq.s32.totalorder %s31, 1
      %p201 = scmp.ne.s32.totalorder %s196, %s198
      %p202 = scmp.eq.s32.totalorder %s31, 0
      %p203 = por %p201, %p202
      %p204 = scmp.ne.s32.totalorder %s196, %s198
      %p205 = scmp.eq.s32.totalorder %s36, 1
      %p206 = por %p204, %p205
      %p207 = scmp.ne.s32.totalorder %s198, %s199
      %p208 = scmp.eq.s32.totalorder %s36, 0
      %p209 = por %p207, %p208
      %p210 = scmp.ne.s32.totalorder %s198, %s199
      %p211 = scmp.eq.s32.totalorder %s37, 1
      %p212 = por %p210, %p211
      %p214 = scmp.ne.s32.totalorder %s199, %s213
      %p215 = scmp.eq.s32.totalorder %s37, 0
      %p216 = por %p214, %p215
      %s218 = sadd.s32 %s217, 1
      %p221 = scmp.eq.s32.totalorder %s31, 1
      %p222 = scmp.ne.s32.totalorder %s217, %s219
      %p223 = scmp.eq.s32.totalorder %s31, 0
      %p224 = por %p222, %p223
      %p225 = scmp.ne.s32.totalorder %s217, %s219
      %p226 = scmp.eq.s32.totalorder %s36, 1
      %p227 = por %p225, %p226
      %p228 = scmp.ne.s32.totalorder %s219, %s220
      %p229 = scmp.eq.s32.totalorder %s36, 0
      %p230 = por %p228, %p229
      %p231 = scmp.ne.s32.totalorder %s219, %s220
      %p232 = scmp.eq.s32.totalorder %s37, 1
      %p233 = por %p231, %p232
      %p235 = scmp.ne.s32.totalorder %s220, %s234
      %p236 = scmp.eq.s32.totalorder %s37, 0
      %p237 = por %p235, %p236
      %s239 = sadd.s32 %s238, 1
      %p242 = scmp.eq.s32.totalorder %s31, 1
      %p243 = scmp.ne.s32.totalorder %s238, %s240
      %p244 = scmp.eq.s32.totalorder %s31, 0
      %p245 = por %p243, %p244
      %p246 = scmp.ne.s32.totalorder %s238, %s240
      %p247 = scmp.eq.s32.totalorder %s36, 1
      %p248 = por %p246, %p247
      %p249 = scmp.ne.s32.totalorder %s240, %s241
      %p250 = scmp.eq.s32.totalorder %s36, 0
      %p251 = por %p249, %p250
      %p252 = scmp.ne.s32.totalorder %s240, %s241
      %p253 = scmp.eq.s32.totalorder %s37, 1
      %p254 = por %p252, %p253
      %p256 = scmp.ne.s32.totalorder %s241, %s255
      %p257 = scmp.eq.s32.totalorder %s37, 0
      %p258 = por %p256, %p257
      %s260 = sadd.s32 %s259, 1
      %p263 = scmp.eq.s32.totalorder %s31, 1
      %p264 = scmp.ne.s32.totalorder %s259, %s261
      %p265 = scmp.eq.s32.totalorder %s31, 0
      %p266 = por %p264, %p265
      %p267 = scmp.ne.s32.totalorder %s259, %s261
      %p268 = scmp.eq.s32.totalorder %s36, 1
      %p269 = por %p267, %p268
      %p270 = scmp.ne.s32.totalorder %s261, %s262
      %p271 = scmp.eq.s32.totalorder %s36, 0
      %p272 = por %p270, %p271
      %p273 = scmp.ne.s32.totalorder %s261, %s262
      %p274 = scmp.eq.s32.totalorder %s37, 1
      %p275 = por %p273, %p274
      %p277 = scmp.ne.s32.totalorder %s262, %s276
      %p278 = scmp.eq.s32.totalorder %s37, 0
      %p279 = por %p277, %p278
      %s281 = sadd.s32 %s280, 1
      %p284 = scmp.eq.s32.totalorder %s31, 1
      %p285 = scmp.ne.s32.totalorder %s280, %s282
      %p286 = scmp.eq.s32.totalorder %s31, 0
      %p287 = por %p285, %p286
      %p288 = scmp.ne.s32.totalorder %s280, %s282
      %p289 = scmp.eq.s32.totalorder %s36, 1
      %p290 = por %p288, %p289
      %p291 = scmp.ne.s32.totalorder %s282, %s283
      %p292 = scmp.eq.s32.totalorder %s36, 0
      %p293 = por %p291, %p292
      %p294 = scmp.ne.s32.totalorder %s282, %s283
      %p295 = scmp.eq.s32.totalorder %s37, 1
      %p296 = por %p294, %p295
      %p298 = scmp.ne.s32.totalorder %s283, %s297
      %p299 = scmp.eq.s32.totalorder %s37, 0
      %p300 = por %p298, %p299
      %s302 = sadd.s32 %s301, 1
      %p305 = scmp.eq.s32.totalorder %s31, 1
      %p306 = scmp.ne.s32.totalorder %s301, %s303
      %p307 = scmp.eq.s32.totalorder %s31, 0
      %p308 = por %p306, %p307
      %p309 = scmp.ne.s32.totalorder %s301, %s303
      %p310 = scmp.eq.s32.totalorder %s36, 1
      %p311 = por %p309, %p310
      %p312 = scmp.ne.s32.totalorder %s303, %s304
      %p313 = scmp.eq.s32.totalorder %s36, 0
      %p314 = por %p312, %p313
      %p315 = scmp.ne.s32.totalorder %s303, %s304
      %p316 = scmp.eq.s32.totalorder %s37, 1
      %p317 = por %p315, %p316
      %p319 = scmp.ne.s32.totalorder %s304, %s318
      %p320 = scmp.eq.s32.totalorder %s37, 0
      %p321 = por %p319, %p320
      %s323 = sadd.s32 %s322, 1
      %p326 = scmp.eq.s32.totalorder %s31, 1
      %p327 = scmp.ne.s32.totalorder %s322, %s324
      %p328 = scmp.eq.s32.totalorder %s31, 0
      %p329 = por %p327, %p328
      %p330 = scmp.ne.s32.totalorder %s322, %s324
      %p331 = scmp.eq.s32.totalorder %s36, 1
      %p332 = por %p330, %p331
      %p333 = scmp.ne.s32.totalorder %s324, %s325
      %p334 = scmp.eq.s32.totalorder %s36, 0
      %p335 = por %p333, %p334
      %p336 = scmp.ne.s32.totalorder %s324, %s325
      %p337 = scmp.eq.s32.totalorder %s37, 1
      %p338 = por %p336, %p337
      %p340 = scmp.ne.s32.totalorder %s325, %s339
      %p341 = scmp.eq.s32.totalorder %s37, 0
      %p342 = por %p340, %p341
      %s343 = ssub.s32 %s31, %s38
      %p344 = scmp.eq.s32.totalorder %s343, 0
      %s346 = sadd.s32 %s345, 1
      %s347 = scalar_select %p344, %s345, %s346
      %p350 = pneg %p344
      %p351 = scmp.eq.s32.totalorder %s31, 1
      %p352 = por %p350, %p351
      %p353 = scmp.ne.s32.totalorder %s345, %s348
      %p354 = scmp.eq.s32.totalorder %s31, 0
      %p355 = por %p353, %p354
      %p356 = scmp.ne.s32.totalorder %s345, %s348
      %p357 = scmp.eq.s32.totalorder %s36, 1
      %p358 = por %p356, %p357
      %p359 = scmp.ne.s32.totalorder %s348, %s349
      %p360 = scmp.eq.s32.totalorder %s36, 0
      %p361 = por %p359, %p360
      %p362 = scmp.ne.s32.totalorder %s348, %s349
      %p363 = scmp.eq.s32.totalorder %s37, 1
      %p364 = por %p362, %p363
      %p366 = scmp.ne.s32.totalorder %s349, %s365
      %p367 = scmp.eq.s32.totalorder %s37, 0
      %p368 = por %p366, %p367
      %p369 = scmp.le.s32.totalorder 1, %s31
      %p370 = scmp.lt.s32.totalorder %s31, 3
      %p371 = pnand %p369, %p370
      %p372 = pneg %p371
      // Predicated region
      $region9: #{tpu_custom_call.1} parent=5 // pred_check
        _
      $region10: #{tpu_custom_call.1} parent=5 // pred_check_branch
        %374 = sbr.rel (%p371) target = $region12
      $region11: #{tpu_custom_call.1} parent=5 // pred_region
        %s375 = ssub.s32 %s31, 1
        // Predicated region
        $region13: #{tpu_custom_call.1} parent=11 // pred_check
          %p376 = pneg %p104
        $region14: #{tpu_custom_call.1} parent=11 // pred_check_branch
          %378 = sbr.rel (%p376) target = $region16
        $region15: #{tpu_custom_call.1} parent=11 // pred_region
          %s380 = ssub.s32 3072, 3072
          %381 = vsyncadd [#allocation6], %s380
          %s382 = sshll.u32 [#allocation7], 4
          %s383 = int_to_ptr.vmem [resolvable:$true] %s382
          %388 = dma.hbm_to_vmem [thread:$0]  %s2, 3072, %s383, [#allocation6], 192, 192, 12
        $region16: #{tpu_custom_call.1} parent=11 // pred_fallthru
          _
        // Predicated region
        $region17: #{tpu_custom_call.1} parent=11 // pred_check
          %p389 = pneg %p125
        $region18: #{tpu_custom_call.1} parent=11 // pred_check_branch
          %391 = sbr.rel (%p389) target = $region20
        $region19: #{tpu_custom_call.1} parent=11 // pred_region
          _
        $region20: #{tpu_custom_call.1} parent=11 // pred_fallthru
          _
        // Predicated region
        $region21: #{tpu_custom_call.1} parent=11 // pred_check
          %p392 = pneg %p146
        $region22: #{tpu_custom_call.1} parent=11 // pred_check_branch
          %394 = sbr.rel (%p392) target = $region24
        $region23: #{tpu_custom_call.1} parent=11 // pred_region
          %s396 = ssub.s32 1024, 1024
          %397 = vsyncadd [#allocation9], %s396
          %s398 = sshll.u32 [#allocation8], 4
          %s399 = int_to_ptr.vmem [resolvable:$true] %s398
          %404 = dma.hbm_to_vmem [thread:$0]  %s4, 1024, %s399, [#allocation9], 64, 64, 4
        $region24: #{tpu_custom_call.1} parent=11 // pred_fallthru
          _
        // Predicated region
        $region25: #{tpu_custom_call.1} parent=11 // pred_check
          %p405 = pneg %p167
        $region26: #{tpu_custom_call.1} parent=11 // pred_check_branch
          %407 = sbr.rel (%p405) target = $region28
        $region27: #{tpu_custom_call.1} parent=11 // pred_region
          _
        $region28: #{tpu_custom_call.1} parent=11 // pred_fallthru
          _
        // Predicated region
        $region29: #{tpu_custom_call.1} parent=11 // pred_check
          %p408 = pneg %p188
        $region30: #{tpu_custom_call.1} parent=11 // pred_check_branch
          %410 = sbr.rel (%p408) target = $region32
        $region31: #{tpu_custom_call.1} parent=11 // pred_region
          _
        $region32: #{tpu_custom_call.1} parent=11 // pred_fallthru
          _
        // Predicated region
        $region33: #{tpu_custom_call.1} parent=11 // pred_check
          %p411 = pneg %p209
        $region34: #{tpu_custom_call.1} parent=11 // pred_check_branch
          %413 = sbr.rel (%p411) target = $region36
        $region35: #{tpu_custom_call.1} parent=11 // pred_region
          _
        $region36: #{tpu_custom_call.1} parent=11 // pred_fallthru
          _
        // Predicated region
        $region37: #{tpu_custom_call.1} parent=11 // pred_check
          %p414 = pneg %p230
        $region38: #{tpu_custom_call.1} parent=11 // pred_check_branch
          %416 = sbr.rel (%p414) target = $region40
        $region39: #{tpu_custom_call.1} parent=11 // pred_region
          %s418 = ssub.s32 4096, 4096
          %419 = vsyncadd [#allocation9], %s418
          %s420 = sshll.u32 [#allocation10], 4
          %s421 = int_to_ptr.vmem [resolvable:$true] %s420
          %426 = dma.hbm_to_vmem [thread:$0]  %s8, 4096, %s421, [#allocation9], 256, 256, 16
        $region40: #{tpu_custom_call.1} parent=11 // pred_fallthru
          _
        // Predicated region
        $region41: #{tpu_custom_call.1} parent=11 // pred_check
          %p427 = pneg %p251
        $region42: #{tpu_custom_call.1} parent=11 // pred_check_branch
          %429 = sbr.rel (%p427) target = $region44
        $region43: #{tpu_custom_call.1} parent=11 // pred_region
          _
        $region44: #{tpu_custom_call.1} parent=11 // pred_fallthru
          _
        // Predicated region
        $region45: #{tpu_custom_call.1} parent=11 // pred_check
          %p430 = pneg %p272
        $region46: #{tpu_custom_call.1} parent=11 // pred_check_branch
          %432 = sbr.rel (%p430) target = $region48
        $region47: #{tpu_custom_call.1} parent=11 // pred_region
          %s434 = ssub.s32 4096, 4096
          %435 = vsyncadd [#allocation12], %s434
          %s436 = sshll.u32 [#allocation11], 4
          %s437 = int_to_ptr.vmem [resolvable:$true] %s436
          %442 = dma.hbm_to_vmem [thread:$0]  %s10, 4096, %s437, [#allocation12], 64, 64, 4
        $region48: #{tpu_custom_call.1} parent=11 // pred_fallthru
          _
        // Predicated region
        $region49: #{tpu_custom_call.1} parent=11 // pred_check
          %p443 = pneg %p293
        $region50: #{tpu_custom_call.1} parent=11 // pred_check_branch
          %445 = sbr.rel (%p443) target = $region52
        $region51: #{tpu_custom_call.1} parent=11 // pred_region
          _
        $region52: #{tpu_custom_call.1} parent=11 // pred_fallthru
          _
        // Predicated region
        $region53: #{tpu_custom_call.1} parent=11 // pred_check
          %p446 = pneg %p314
        $region54: #{tpu_custom_call.1} parent=11 // pred_check_branch
          %448 = sbr.rel (%p446) target = $region56
        $region55: #{tpu_custom_call.1} parent=11 // pred_region
          _
        $region56: #{tpu_custom_call.1} parent=11 // pred_fallthru
          _
        // Predicated region
        $region57: #{tpu_custom_call.1} parent=11 // pred_check
          %p449 = pneg %p335
        $region58: #{tpu_custom_call.1} parent=11 // pred_check_branch
          %451 = sbr.rel (%p449) target = $region60
        $region59: #{tpu_custom_call.1} parent=11 // pred_region
          _
        $region60: #{tpu_custom_call.1} parent=11 // pred_fallthru
          _
      $region12: #{tpu_custom_call.1} parent=5 // pred_fallthru
        _
      %p452 = scmp.lt.s32.totalorder %s31, 2
      // Predicated region
      $region61: #{tpu_custom_call.1} parent=5 // pred_check
        %p453 = pneg %p452
      $region62: #{tpu_custom_call.1} parent=5 // pred_check_branch
        %455 = sbr.rel (%p453) target = $region64
      $region63: #{tpu_custom_call.1} parent=5 // pred_region
        // Predicated region
        $region65: #{tpu_custom_call.1} parent=63 // pred_check
          %p456 = pneg %p51
        $region66: #{tpu_custom_call.1} parent=63 // pred_check_branch
          %458 = sbr.rel (%p456) target = $region68
        $region67: #{tpu_custom_call.1} parent=63 // pred_region
          %s459 = sand.u32 %s41, 1
          %s460 = scalar_lea.sflag [#allocation3], %s459
          %s461 = sand.u32 %s41, 1
          %s462 = smul.addr %s461, 16
          %s463 = scalar_lea.vmem [#allocation2], %s462
          %s465 = ssub.s32 256, 256
          %466 = vsyncadd %s460, %s465
          %s467 = smul.addr %s31, 2
          %s468 = smul.addr %s467, 128
          %s469 = scalar_lea.hbm %s0, %s468
          %s470 = sshll.u32 %s463, 4
          %s471 = int_to_ptr.vmem [resolvable:$true] %s470
          %476 = dma.hbm_to_vmem [thread:$0]  %s469, 256, %s471, %s460, 128, 128, 8
        $region68: #{tpu_custom_call.1} parent=63 // pred_fallthru
          _
        // Predicated region
        $region69: #{tpu_custom_call.1} parent=63 // pred_check
          %p477 = pneg %p77
        $region70: #{tpu_custom_call.1} parent=63 // pred_check_branch
          %479 = sbr.rel (%p477) target = $region72
        $region71: #{tpu_custom_call.1} parent=63 // pred_region
          %s480 = sand.u32 %s31, 1
          %s481 = scalar_lea.sflag [#allocation6], %s480
          %s482 = sand.u32 %s67, 1
          %s483 = smul.addr %s482, 8
          %s484 = scalar_lea.vmem [#allocation5], %s483
          %s486 = ssub.s32 128, 128
          %487 = vsyncadd %s481, %s486
          %s488 = smul.addr %s31, 2
          %s489 = smul.addr %s488, 64
          %s490 = scalar_lea.hbm %s1, %s489
          %s491 = sshll.u32 %s484, 4
          %s492 = int_to_ptr.vmem [resolvable:$true] %s491
          %497 = dma.hbm_to_vmem [thread:$0]  %s490, 128, %s492, %s481, 64, 64, 4
        $region72: #{tpu_custom_call.1} parent=63 // pred_fallthru
          _
      $region64: #{tpu_custom_call.1} parent=5 // pred_fallthru
        _
      %p498 = scmp.le.s32.totalorder 1, %s31
      %p499 = scmp.lt.s32.totalorder %s31, 3
      %p500 = pnand %p498, %p499
      %p501 = pneg %p500
      // Predicated region
      $region73: #{tpu_custom_call.1} parent=5 // pred_check
        _
      $region74: #{tpu_custom_call.1} parent=5 // pred_check_branch
        %503 = sbr.rel (%p500) target = $region76
      $region75: #{tpu_custom_call.1} parent=5 // pred_region
        %s504 = ssub.s32 %s31, 1
        %s505 = sand.u32 %s44, 1
        %s506 = scalar_lea.sflag [#allocation3], %s505
        %s507 = sand.u32 %s44, 1
        %s508 = smul.addr %s507, 16
        %s509 = scalar_lea.vmem [#allocation2], %s508
        // Predicated region
        $region77: #{tpu_custom_call.1} parent=75 // pred_check
          %p510 = pneg %p57
        $region78: #{tpu_custom_call.1} parent=75 // pred_check_branch
          %512 = sbr.rel (%p510) target = $region80
        $region79: #{tpu_custom_call.1} parent=75 // pred_region
          %513 = dma.done %s506, 256
        $region80: #{tpu_custom_call.1} parent=75 // pred_fallthru
          _
        %s514 = sand.u32 %s36, 1
        %s515 = scalar_lea.sflag [#allocation6], %s514
        %s516 = sand.u32 %s70, 1
        %s517 = smul.addr %s516, 8
        %s518 = scalar_lea.vmem [#allocation5], %s517
        // Predicated region
        $region81: #{tpu_custom_call.1} parent=75 // pred_check
          %p519 = pneg %p83
        $region82: #{tpu_custom_call.1} parent=75 // pred_check_branch
          %521 = sbr.rel (%p519) target = $region84
        $region83: #{tpu_custom_call.1} parent=75 // pred_region
          %522 = dma.done %s515, 128
        $region84: #{tpu_custom_call.1} parent=75 // pred_fallthru
          _
        // Predicated region
        $region85: #{tpu_custom_call.1} parent=75 // pred_check
          %p523 = pneg %p104
        $region86: #{tpu_custom_call.1} parent=75 // pred_check_branch
          %525 = sbr.rel (%p523) target = $region88
        $region87: #{tpu_custom_call.1} parent=75 // pred_region
          %526 = dma.done [#allocation6], 3072
        $region88: #{tpu_custom_call.1} parent=75 // pred_fallthru
          _
        // Predicated region
        $region89: #{tpu_custom_call.1} parent=75 // pred_check
          %p527 = pneg %p146
        $region90: #{tpu_custom_call.1} parent=75 // pred_check_branch
          %529 = sbr.rel (%p527) target = $region92
        $region91: #{tpu_custom_call.1} parent=75 // pred_region
          %530 = dma.done [#allocation9], 1024
        $region92: #{tpu_custom_call.1} parent=75 // pred_fallthru
          _
        // Predicated region
        $region93: #{tpu_custom_call.1} parent=75 // pred_check
          %p531 = pneg %p230
        $region94: #{tpu_custom_call.1} parent=75 // pred_check_branch
          %533 = sbr.rel (%p531) target = $region96
        $region95: #{tpu_custom_call.1} parent=75 // pred_region
          %534 = dma.done [#allocation9], 4096
        $region96: #{tpu_custom_call.1} parent=75 // pred_fallthru
          _
        // Predicated region
        $region97: #{tpu_custom_call.1} parent=75 // pred_check
          %p535 = pneg %p272
        $region98: #{tpu_custom_call.1} parent=75 // pred_check_branch
          %537 = sbr.rel (%p535) target = $region100
        $region99: #{tpu_custom_call.1} parent=75 // pred_region
          %538 = dma.done [#allocation12], 4096
        $region100: #{tpu_custom_call.1} parent=75 // pred_fallthru
          _
        %s539 = sand.u32 %s44, 1
        %s540 = scalar_lea.sflag [#allocation3], %s539
        %s541 = sand.u32 %s44, 1
        %s542 = smul.addr %s541, 16
        %s543 = scalar_lea.vmem [#allocation2], %s542
        %p544 = pneg %p57
        %p545 = pneg %p54
        %s546 = sand.u32 %s36, 1
        %s547 = scalar_lea.sflag [#allocation6], %s546
        %s548 = sand.u32 %s70, 1
        %s549 = smul.addr %s548, 8
        %s550 = scalar_lea.vmem [#allocation5], %s549
        %p551 = pneg %p83
        %p552 = pneg %p80
        %p553 = pneg %p104
        %p554 = pneg %p101
        %p555 = pneg %p125
        %p556 = pneg %p122
        %p557 = pneg %p146
        %p558 = pneg %p143
        %p559 = pneg %p167
        %p560 = pneg %p164
        %p561 = pneg %p188
        %p562 = pneg %p185
        %p563 = pneg %p209
        %p564 = pneg %p206
        %p565 = pneg %p230
        %p566 = pneg %p227
        %p567 = pneg %p251
        %p568 = pneg %p248
        %p569 = pneg %p272
        %p570 = pneg %p269
        %p571 = pneg %p293
        %p572 = pneg %p290
        %p573 = pneg %p314
        %p574 = pneg %p311
        %p575 = pneg %p335
        %p576 = pneg %p332
        %p577 = pneg %p361
        %p578 = pneg %p358
        %s579 = sand.u32 %s348, 1
        %s580 = scalar_lea.sflag [#allocation4], %s579
        %s581 = sand.u32 %s348, 1
        %s582 = smul.addr %s581, 16
        %s583 = scalar_lea.vmem [#allocation13], %s582
        %v585 = vld [vmem:[%s509] sm:$0xff]
        %v586 = vld [vmem:[%s509 + $0x8] sm:$0xff]
        %v587 = vpack.c.bf16 %v586, %v585
        %v588 = vld [vmem:[#allocation7] sm:$0xff]
        %v589 = vld [vmem:[#allocation7 + $0x8] sm:$0xf]
        %v590 = vld [vmem:[#allocation7 + $0xc] sm:$0xff]
        %v591 = vld [vmem:[#allocation7 + $0x14] sm:$0xf]
        %v592 = vld [vmem:[#allocation7 + $0x18] sm:$0xff]
        %v593 = vld [vmem:[#allocation7 + $0x20] sm:$0xf]
        %v594 = vld [vmem:[#allocation7 + $0x24] sm:$0xff]
        %v595 = vld [vmem:[#allocation7 + $0x2c] sm:$0xf]
        %v596 = vld [vmem:[#allocation7 + $0x30] sm:$0xff]
        %v597 = vld [vmem:[#allocation7 + $0x38] sm:$0xf]
        %v598 = vld [vmem:[#allocation7 + $0x3c] sm:$0xff]
        %v599 = vld [vmem:[#allocation7 + $0x44] sm:$0xf]
        %v600 = vld [vmem:[#allocation7 + $0x48] sm:$0xff]
        %v601 = vld [vmem:[#allocation7 + $0x50] sm:$0xf]
        %v602 = vld [vmem:[#allocation7 + $0x54] sm:$0xff]
        %v603 = vld [vmem:[#allocation7 + $0x5c] sm:$0xf]
        %v604 = vld [vmem:[#allocation7 + $0x60] sm:$0xff]
        %v605 = vld [vmem:[#allocation7 + $0x68] sm:$0xf]
        %v606 = vld [vmem:[#allocation7 + $0x6c] sm:$0xff]
        %v607 = vld [vmem:[#allocation7 + $0x74] sm:$0xf]
        %v608 = vld [vmem:[#allocation7 + $0x78] sm:$0xff]
        %v609 = vld [vmem:[#allocation7 + $0x80] sm:$0xf]
        %v610 = vld [vmem:[#allocation7 + $0x84] sm:$0xff]
        %v611 = vld [vmem:[#allocation7 + $0x8c] sm:$0xf]
        %v612 = vld [vmem:[#allocation7 + $0x90] sm:$0xff]
        %v613 = vld [vmem:[#allocation7 + $0x98] sm:$0xf]
        %v614 = vld [vmem:[#allocation7 + $0x9c] sm:$0xff]
        %v615 = vld [vmem:[#allocation7 + $0xa4] sm:$0xf]
        %v616 = vld [vmem:[#allocation7 + $0xa8] sm:$0xff]
        %v617 = vld [vmem:[#allocation7 + $0xb0] sm:$0xf]
        %v618 = vld [vmem:[#allocation7 + $0xb4] sm:$0xff]
        %v619 = vld [vmem:[#allocation7 + $0xbc] sm:$0xf]
        %v620 = vld [vmem:[%s3] sm:$0x7]
        %v622 = vlaneseq
        %v623 = vshrl.u32 %v622, 7
        %v624 = vsub.s32 0, %v623
        %v625 = vrot.slane %v620, %v624
        %v626 = vlaneseq
        %v627 = vshrl.u32 %v626, 7
        %v628 = vsub.s32 1, %v627
        %v629 = vrot.slane %v620, %v628
        %v630 = vlaneseq
        %v631 = vshrl.u32 %v630, 7
        %v632 = vsub.s32 2, %v631
        %v633 = vrot.slane %v620, %v632
        %v669 = vunpack.c.l.b16 %v588
        %v670 = vunpack.c.h.b16 %v588
        %v671 = vunpack.c.l.b16 %v589
        %v672 = vunpack.c.l.b16 %v590
        %v673 = vunpack.c.h.b16 %v590
        %v674 = vunpack.c.l.b16 %v591
        %v675 = vunpack.c.l.b16 %v592
        %v676 = vunpack.c.h.b16 %v592
        %v677 = vunpack.c.l.b16 %v593
        %v678 = vunpack.c.l.b16 %v594
        %v679 = vunpack.c.h.b16 %v594
        %v680 = vunpack.c.l.b16 %v595
        %v681 = vunpack.c.l.b16 %v596
        %v682 = vunpack.c.h.b16 %v596
        %v683 = vunpack.c.l.b16 %v597
        %v684 = vunpack.c.l.b16 %v598
        %v685 = vunpack.c.h.b16 %v598
        %v686 = vunpack.c.l.b16 %v599
        %v687 = vunpack.c.l.b16 %v600
        %v688 = vunpack.c.h.b16 %v600
        %v689 = vunpack.c.l.b16 %v601
        %v690 = vunpack.c.l.b16 %v602
        %v691 = vunpack.c.h.b16 %v602
        %v692 = vunpack.c.l.b16 %v603
        %v693 = vunpack.c.l.b16 %v604
        %v694 = vunpack.c.h.b16 %v604
        %v695 = vunpack.c.l.b16 %v605
        %v696 = vunpack.c.l.b16 %v606
        %v697 = vunpack.c.h.b16 %v606
        %v698 = vunpack.c.l.b16 %v607
        %v699 = vunpack.c.l.b16 %v608
        %v700 = vunpack.c.h.b16 %v608
        %v701 = vunpack.c.l.b16 %v609
        %v702 = vunpack.c.l.b16 %v610
        %v703 = vunpack.c.h.b16 %v610
        %v704 = vunpack.c.l.b16 %v611
        %v705 = vunpack.c.l.b16 %v612
        %v706 = vunpack.c.h.b16 %v612
        %v707 = vunpack.c.l.b16 %v613
        %v708 = vunpack.c.l.b16 %v614
        %v709 = vunpack.c.h.b16 %v614
        %v710 = vunpack.c.l.b16 %v615
        %v711 = vunpack.c.l.b16 %v616
        %v712 = vunpack.c.h.b16 %v616
        %v713 = vunpack.c.l.b16 %v617
        %v714 = vunpack.c.l.b16 %v618
        %v715 = vunpack.c.h.b16 %v618
        %v716 = vunpack.c.l.b16 %v619
        %v717 = vpack.c.b16 %v672, %v669
        %v718 = vpack.c.b16 %v673, %v670
        %v719 = vpack.c.b16 %v674, %v671
        %v720 = vpack.c.b16 %v678, %v675
        %v721 = vpack.c.b16 %v679, %v676
        %v722 = vpack.c.b16 %v680, %v677
        %v723 = vpack.c.b16 %v684, %v681
        %v724 = vpack.c.b16 %v685, %v682
        %v725 = vpack.c.b16 %v686, %v683
        %v726 = vpack.c.b16 %v690, %v687
        %v727 = vpack.c.b16 %v691, %v688
        %v728 = vpack.c.b16 %v692, %v689
        %v729 = vpack.c.b16 %v696, %v693
        %v730 = vpack.c.b16 %v697, %v694
        %v731 = vpack.c.b16 %v698, %v695
        %v732 = vpack.c.b16 %v702, %v699
        %v733 = vpack.c.b16 %v703, %v700
        %v734 = vpack.c.b16 %v704, %v701
        %v735 = vpack.c.b16 %v708, %v705
        %v736 = vpack.c.b16 %v709, %v706
        %v737 = vpack.c.b16 %v710, %v707
        %v738 = vpack.c.b16 %v714, %v711
        %v739 = vpack.c.b16 %v715, %v712
        %v740 = vpack.c.b16 %v716, %v713
        %765 = vmatprep.subr.bf16.mxu0 %v739
        %766 = vmatpush1.bf16.msra.mxu0 %v738
        %767 = vmatprep.subr.bf16.mxu0 %v736
        %768 = vmatpush1.bf16.msra.mxu0 %v735
        %769 = vmatprep.subr.bf16.mxu0 %v733
        %770 = vmatpush1.bf16.msra.mxu0 %v732
        %771 = vmatprep.subr.bf16.mxu0 %v730
        %772 = vmatpush1.bf16.msra.mxu0 %v729
        %773 = vmatprep.subr.bf16.mxu0 %v727
        %774 = vmatpush1.bf16.msra.mxu0 %v726
        %775 = vmatprep.subr.bf16.mxu0 %v724
        %776 = vmatpush1.bf16.msra.mxu0 %v723
        %777 = vmatprep.subr.bf16.mxu0 %v721
        %778 = vmatpush1.bf16.msra.mxu0 %v720
        %779 = vmatprep.subr.bf16.mxu0 %v718
        %780 = vmatpush1.bf16.msra.mxu0 %v717
        %781 = vmatprep.subr.bf16.mxu0 0
        %782 = vmatpush2.bf16.msra.mxu0 0
        %783 = vmatprep.subr.bf16.mxu0 0
        %784 = vmatpush2.bf16.msra.mxu0 0
        %785 = vmatprep.subr.bf16.mxu0 0
        %786 = vmatpush2.bf16.msra.mxu0 0
        %787 = vmatprep.subr.bf16.mxu0 0
        %788 = vmatpush2.bf16.msra.mxu0 0
        %789 = vmatprep.subr.bf16.mxu0 0
        %790 = vmatpush2.bf16.msra.mxu0 0
        %791 = vmatprep.subr.bf16.mxu0 0
        %792 = vmatpush2.bf16.msra.mxu0 0
        %793 = vmatprep.subr.bf16.mxu0 0
        %794 = vmatpush2.bf16.msra.mxu0 0
        %795 = vmatprep.subr.bf16.mxu0 0
        %796 = vmatpush2.bf16.msra.mxu0 0
        %797 = vmatprep.mubr.bf16.mxu0 0
        %798 = vmatmul.mubr.bf16.gmra.mxu0 %v587
        %v799 = vpop.f32.mrf.mxu0
        %v800 = vadd.f32 %v625, %v799
        %v801 = vpop.f32.mrf.mxu0
        %v802 = vadd.f32 %v629, %v801
        %v803 = vpop.f32.mrf.mxu0
        %v804 = vadd.f32 %v625, %v803
        %v805 = vpop.f32.mrf.mxu0
        %v806 = vadd.f32 %v629, %v805
        %807 = vdwg.mxu0
        %808 = vmatprep.subr.bf16.mxu0 0
        %809 = vmatpush1.bf16.msra.mxu0 %v740
        %810 = vmatprep.subr.bf16.mxu0 0
        %811 = vmatpush1.bf16.msra.mxu0 %v737
        %812 = vmatprep.subr.bf16.mxu0 0
        %813 = vmatpush1.bf16.msra.mxu0 %v734
        %814 = vmatprep.subr.bf16.mxu0 0
        %815 = vmatpush1.bf16.msra.mxu0 %v731
        %816 = vmatprep.subr.bf16.mxu0 0
        %817 = vmatpush1.bf16.msra.mxu0 %v728
        %818 = vmatprep.subr.bf16.mxu0 0
        %819 = vmatpush1.bf16.msra.mxu0 %v725
        %820 = vmatprep.subr.bf16.mxu0 0
        %821 = vmatpush1.bf16.msra.mxu0 %v722
        %822 = vmatprep.subr.bf16.mxu0 0
        %823 = vmatpush1.bf16.msra.mxu0 %v719
        %824 = vmatprep.subr.bf16.mxu0 0
        %825 = vmatpush2.bf16.msra.mxu0 0
        %826 = vmatprep.subr.bf16.mxu0 0
        %827 = vmatpush2.bf16.msra.mxu0 0
        %828 = vmatprep.subr.bf16.mxu0 0
        %829 = vmatpush2.bf16.msra.mxu0 0
        %830 = vmatprep.subr.bf16.mxu0 0
        %831 = vmatpush2.bf16.msra.mxu0 0
        %832 = vmatprep.subr.bf16.mxu0 0
        %833 = vmatpush2.bf16.msra.mxu0 0
        %834 = vmatprep.subr.bf16.mxu0 0
        %835 = vmatpush2.bf16.msra.mxu0 0
        %836 = vmatprep.subr.bf16.mxu0 0
        %837 = vmatpush2.bf16.msra.mxu0 0
        %838 = vmatprep.subr.bf16.mxu0 0
        %839 = vmatpush2.bf16.msra.mxu0 0
        %840 = vmatprep.mubr.bf16.mxu0 0
        %841 = vmatmul.mubr.bf16.gmra.mxu0 %v587
        %v842 = vpop.f32.mrf.mxu0
        %v843 = vadd.f32 %v633, %v842
        %v844 = vpop.f32.mrf.mxu0
        %v845 = vpop.f32.mrf.mxu0
        %v846 = vadd.f32 %v633, %v845
        %v847 = vpop.f32.mrf.mxu0
        %848 = vdwg.mxu0
        %v849 = vmul.f32 %v800, 0.17677669
        %v850 = vmul.f32 %v804, 0.17677669
        %v851 = vpack.c.bf16 %v850, %v849
        %v852 = vpack.c.bf16 %v806, %v802
        %v853 = vpack.c.bf16 %v846, %v843
        %855 = vrot.lane.b32.xlu0 %v851, 96
        %v856 = vpop.permute.xlu0 %855
        %857 = vrot.lane.b32.xlu0 %v851, 64
        %v858 = vpop.permute.xlu0 %857
        %859 = vrot.lane.b32.xlu0 %v851, 32
        %v860 = vpop.permute.xlu0 %859
        %v863 = vpack.i.b16 %v856, %v851
        %v865 = vshrl.u32 %v851, 16
        %v866 = vshrl.u32 %v856, 16
        %v867 = vpack.i.b16 %v866, %v865
        %v871 = vpack.i.b16 %v860, %v858
        %v873 = vshrl.u32 %v858, 16
        %v874 = vshrl.u32 %v860, 16
        %v875 = vpack.i.b16 %v874, %v873
        %v878 = vpack.i.b16 0, 0
        %v880 = vshrl.u32 0, 16
        %v881 = vpack.i.b16 %v880, %v880
        %v883 = vcombine.high %v863, %v878
        %v885 = vunpack.c.l.s4 1983009808
        %v886 = vunpack.c.0.s8 %v885
        %v887 = vlaneseq
        %v888 = vshrl.u32 %v887, 7
        %v889 = vsub.s32 %v886, %v888
        %v890 = vrot.slane %v863, %v889
        %v892 = vunpack.c.l.s4 1983009808
        %v893 = vunpack.c.0.s8 %v892
        %v894 = vlaneseq
        %v895 = vshrl.u32 %v894, 7
        %v896 = vsub.s32 %v893, %v895
        %v897 = vrot.slane %v883, %v896
        %v898 = vcombine.high %v871, %v878
        %v900 = vunpack.c.l.s4 1983009808
        %v901 = vunpack.c.0.s8 %v900
        %v902 = vlaneseq
        %v903 = vshrl.u32 %v902, 7
        %v904 = vsub.s32 %v901, %v903
        %v905 = vrot.slane %v871, %v904
        %v907 = vunpack.c.l.s4 1983009808
        %v908 = vunpack.c.0.s8 %v907
        %v909 = vlaneseq
        %v910 = vshrl.u32 %v909, 7
        %v911 = vsub.s32 %v908, %v910
        %v912 = vrot.slane %v898, %v911
        %v913 = vcombine.low %v890, %v905
        %v914 = vcombine.high %v890, %v905
        %v916 = vunpack.c.l.s4 1934713408
        %v917 = vunpack.c.0.s8 %v916
        %v918 = vlaneseq
        %v919 = vshrl.u32 %v918, 7
        %v920 = vsub.s32 %v917, %v919
        %v921 = vrot.slane %v913, %v920
        %v923 = vunpack.c.l.s4 1934713408
        %v924 = vunpack.c.0.s8 %v923
        %v925 = vlaneseq
        %v926 = vshrl.u32 %v925, 7
        %v927 = vsub.s32 %v924, %v926
        %v928 = vrot.slane %v914, %v927
        %v929 = vcombine.low %v897, %v912
        %v930 = vcombine.high %v897, %v912
        %v932 = vunpack.c.l.s4 1934713408
        %v933 = vunpack.c.0.s8 %v932
        %v934 = vlaneseq
        %v935 = vshrl.u32 %v934, 7
        %v936 = vsub.s32 %v933, %v935
        %v937 = vrot.slane %v929, %v936
        %v939 = vunpack.c.l.s4 1934713408
        %v940 = vunpack.c.0.s8 %v939
        %v941 = vlaneseq
        %v942 = vshrl.u32 %v941, 7
        %v943 = vsub.s32 %v940, %v942
        %v944 = vrot.slane %v930, %v943
        %v945 = vcombine.high %v921, 0
        %v946 = vcombine.high %v928, 0
        %v947 = vcombine.high %v937, 0
        %v948 = vcombine.high %v944, 0
        %v949 = vcombine.high %v867, %v881
        %v951 = vunpack.c.l.s4 1983009808
        %v952 = vunpack.c.0.s8 %v951
        %v953 = vlaneseq
        %v954 = vshrl.u32 %v953, 7
        %v955 = vsub.s32 %v952, %v954
        %v956 = vrot.slane %v867, %v955
        %v958 = vunpack.c.l.s4 1983009808
        %v959 = vunpack.c.0.s8 %v958
        %v960 = vlaneseq
        %v961 = vshrl.u32 %v960, 7
        %v962 = vsub.s32 %v959, %v961
        %v963 = vrot.slane %v949, %v962
        %v964 = vcombine.high %v875, %v881
        %v966 = vunpack.c.l.s4 1983009808
        %v967 = vunpack.c.0.s8 %v966
        %v968 = vlaneseq
        %v969 = vshrl.u32 %v968, 7
        %v970 = vsub.s32 %v967, %v969
        %v971 = vrot.slane %v875, %v970
        %v973 = vunpack.c.l.s4 1983009808
        %v974 = vunpack.c.0.s8 %v973
        %v975 = vlaneseq
        %v976 = vshrl.u32 %v975, 7
        %v977 = vsub.s32 %v974, %v976
        %v978 = vrot.slane %v964, %v977
        %v979 = vcombine.low %v956, %v971
        %v980 = vcombine.high %v956, %v971
        %v982 = vunpack.c.l.s4 1934713408
        %v983 = vunpack.c.0.s8 %v982
        %v984 = vlaneseq
        %v985 = vshrl.u32 %v984, 7
        %v986 = vsub.s32 %v983, %v985
        %v987 = vrot.slane %v979, %v986
        %v989 = vunpack.c.l.s4 1934713408
        %v990 = vunpack.c.0.s8 %v989
        %v991 = vlaneseq
        %v992 = vshrl.u32 %v991, 7
        %v993 = vsub.s32 %v990, %v992
        %v994 = vrot.slane %v980, %v993
        %v995 = vcombine.low %v963, %v978
        %v996 = vcombine.high %v963, %v978
        %v998 = vunpack.c.l.s4 1934713408
        %v999 = vunpack.c.0.s8 %v998
        %v1000 = vlaneseq
        %v1001 = vshrl.u32 %v1000, 7
        %v1002 = vsub.s32 %v999, %v1001
        %v1003 = vrot.slane %v995, %v1002
        %v1005 = vunpack.c.l.s4 1934713408
        %v1006 = vunpack.c.0.s8 %v1005
        %v1007 = vlaneseq
        %v1008 = vshrl.u32 %v1007, 7
        %v1009 = vsub.s32 %v1006, %v1008
        %v1010 = vrot.slane %v996, %v1009
        %v1011 = vcombine.high %v987, 0
        %v1012 = vcombine.high %v994, 0
        %v1013 = vcombine.high %v1003, 0
        %v1014 = vcombine.high %v1010, 0
        %v1015 = vcombine.low %v921, %v928
        %v1017 = vunpack.c.l.s4 1983009808
        %v1018 = vunpack.c.0.s8 %v1017
        %v1019 = vlaneseq
        %v1020 = vshrl.u32 %v1019, 7
        %v1021 = vsub.s32 %v1018, %v1020
        %v1022 = vrot.slane %v1015, %v1021
        %v1023 = vcombine.low %v945, %v946
        %v1025 = vunpack.c.l.s4 1983009808
        %v1026 = vunpack.c.0.s8 %v1025
        %v1027 = vlaneseq
        %v1028 = vshrl.u32 %v1027, 7
        %v1029 = vsub.s32 %v1026, %v1028
        %v1030 = vrot.slane %v1023, %v1029
        %v1031 = vcombine.low %v937, %v944
        %v1033 = vunpack.c.l.s4 1983009808
        %v1034 = vunpack.c.0.s8 %v1033
        %v1035 = vlaneseq
        %v1036 = vshrl.u32 %v1035, 7
        %v1037 = vsub.s32 %v1034, %v1036
        %v1038 = vrot.slane %v1031, %v1037
        %v1039 = vcombine.low %v947, %v948
        %v1041 = vunpack.c.l.s4 1983009808
        %v1042 = vunpack.c.0.s8 %v1041
        %v1043 = vlaneseq
        %v1044 = vshrl.u32 %v1043, 7
        %v1045 = vsub.s32 %v1042, %v1044
        %v1046 = vrot.slane %v1039, %v1045
        %v1047 = vcombine.low %v1022, %v1030
        %v1049 = vunpack.c.l.s4 1934713408
        %v1050 = vunpack.c.0.s8 %v1049
        %v1051 = vlaneseq
        %v1052 = vshrl.u32 %v1051, 7
        %v1053 = vsub.s32 %v1050, %v1052
        %v1054 = vrot.slane %v1047, %v1053
        %v1055 = vcombine.low %v1038, %v1046
        %v1057 = vunpack.c.l.s4 1934713408
        %v1058 = vunpack.c.0.s8 %v1057
        %v1059 = vlaneseq
        %v1060 = vshrl.u32 %v1059, 7
        %v1061 = vsub.s32 %v1058, %v1060
        %v1062 = vrot.slane %v1055, %v1061
        %v1063 = vcombine.low %v1054, %v1062
        %v1064 = vcombine.high %v1054, %v1062
        %v1065 = vcombine.low %v987, %v994
        %v1067 = vunpack.c.l.s4 1983009808
        %v1068 = vunpack.c.0.s8 %v1067
        %v1069 = vlaneseq
        %v1070 = vshrl.u32 %v1069, 7
        %v1071 = vsub.s32 %v1068, %v1070
        %v1072 = vrot.slane %v1065, %v1071
        %v1073 = vcombine.low %v1011, %v1012
        %v1075 = vunpack.c.l.s4 1983009808
        %v1076 = vunpack.c.0.s8 %v1075
        %v1077 = vlaneseq
        %v1078 = vshrl.u32 %v1077, 7
        %v1079 = vsub.s32 %v1076, %v1078
        %v1080 = vrot.slane %v1073, %v1079
        %v1081 = vcombine.low %v1003, %v1010
        %v1083 = vunpack.c.l.s4 1983009808
        %v1084 = vunpack.c.0.s8 %v1083
        %v1085 = vlaneseq
        %v1086 = vshrl.u32 %v1085, 7
        %v1087 = vsub.s32 %v1084, %v1086
        %v1088 = vrot.slane %v1081, %v1087
        %v1089 = vcombine.low %v1013, %v1014
        %v1091 = vunpack.c.l.s4 1983009808
        %v1092 = vunpack.c.0.s8 %v1091
        %v1093 = vlaneseq
        %v1094 = vshrl.u32 %v1093, 7
        %v1095 = vsub.s32 %v1092, %v1094
        %v1096 = vrot.slane %v1089, %v1095
        %v1097 = vcombine.low %v1072, %v1080
        %v1099 = vunpack.c.l.s4 1934713408
        %v1100 = vunpack.c.0.s8 %v1099
        %v1101 = vlaneseq
        %v1102 = vshrl.u32 %v1101, 7
        %v1103 = vsub.s32 %v1100, %v1102
        %v1104 = vrot.slane %v1097, %v1103
        %v1105 = vcombine.low %v1088, %v1096
        %v1107 = vunpack.c.l.s4 1934713408
        %v1108 = vunpack.c.0.s8 %v1107
        %v1109 = vlaneseq
        %v1110 = vshrl.u32 %v1109, 7
        %v1111 = vsub.s32 %v1108, %v1110
        %v1112 = vrot.slane %v1105, %v1111
        %v1113 = vcombine.low %v1104, %v1112
        %v1114 = vcombine.high %v1104, %v1112
        %v1117 = vpack.i.b16 %v1113, %v1063
        %v1118 = vshrl.u32 %v1063, 16
        %v1119 = vshrl.u32 %v1113, 16
        %v1120 = vpack.i.b16 %v1119, %v1118
        %v1123 = vpack.i.b16 %v1114, %v1064
        %v1124 = vshrl.u32 %v1064, 16
        %v1125 = vshrl.u32 %v1114, 16
        %v1126 = vpack.i.b16 %v1125, %v1124
        %1128 = vrot.lane.b32.xlu0 %v852, 96
        %v1129 = vpop.permute.xlu0 %1128
        %1130 = vrot.lane.b32.xlu0 %v852, 64
        %v1131 = vpop.permute.xlu0 %1130
        %1132 = vrot.lane.b32.xlu0 %v852, 32
        %v1133 = vpop.permute.xlu0 %1132
        %v1136 = vpack.i.b16 %v1129, %v852
        %v1138 = vshrl.u32 %v852, 16
        %v1139 = vshrl.u32 %v1129, 16
        %v1140 = vpack.i.b16 %v1139, %v1138
        %v1144 = vpack.i.b16 %v1133, %v1131
        %v1146 = vshrl.u32 %v1131, 16
        %v1147 = vshrl.u32 %v1133, 16
        %v1148 = vpack.i.b16 %v1147, %v1146
        %v1150 = vcombine.high %v1136, %v878
        %v1152 = vunpack.c.l.s4 1983009808
        %v1153 = vunpack.c.0.s8 %v1152
        %v1154 = vlaneseq
        %v1155 = vshrl.u32 %v1154, 7
        %v1156 = vsub.s32 %v1153, %v1155
        %v1157 = vrot.slane %v1136, %v1156
        %v1159 = vunpack.c.l.s4 1983009808
        %v1160 = vunpack.c.0.s8 %v1159
        %v1161 = vlaneseq
        %v1162 = vshrl.u32 %v1161, 7
        %v1163 = vsub.s32 %v1160, %v1162
        %v1164 = vrot.slane %v1150, %v1163
        %v1165 = vcombine.high %v1144, %v878
        %v1167 = vunpack.c.l.s4 1983009808
        %v1168 = vunpack.c.0.s8 %v1167
        %v1169 = vlaneseq
        %v1170 = vshrl.u32 %v1169, 7
        %v1171 = vsub.s32 %v1168, %v1170
        %v1172 = vrot.slane %v1144, %v1171
        %v1174 = vunpack.c.l.s4 1983009808
        %v1175 = vunpack.c.0.s8 %v1174
        %v1176 = vlaneseq
        %v1177 = vshrl.u32 %v1176, 7
        %v1178 = vsub.s32 %v1175, %v1177
        %v1179 = vrot.slane %v1165, %v1178
        %v1180 = vcombine.low %v1157, %v1172
        %v1181 = vcombine.high %v1157, %v1172
        %v1183 = vunpack.c.l.s4 1934713408
        %v1184 = vunpack.c.0.s8 %v1183
        %v1185 = vlaneseq
        %v1186 = vshrl.u32 %v1185, 7
        %v1187 = vsub.s32 %v1184, %v1186
        %v1188 = vrot.slane %v1180, %v1187
        %v1190 = vunpack.c.l.s4 1934713408
        %v1191 = vunpack.c.0.s8 %v1190
        %v1192 = vlaneseq
        %v1193 = vshrl.u32 %v1192, 7
        %v1194 = vsub.s32 %v1191, %v1193
        %v1195 = vrot.slane %v1181, %v1194
        %v1196 = vcombine.low %v1164, %v1179
        %v1197 = vcombine.high %v1164, %v1179
        %v1199 = vunpack.c.l.s4 1934713408
        %v1200 = vunpack.c.0.s8 %v1199
        %v1201 = vlaneseq
        %v1202 = vshrl.u32 %v1201, 7
        %v1203 = vsub.s32 %v1200, %v1202
        %v1204 = vrot.slane %v1196, %v1203
        %v1206 = vunpack.c.l.s4 1934713408
        %v1207 = vunpack.c.0.s8 %v1206
        %v1208 = vlaneseq
        %v1209 = vshrl.u32 %v1208, 7
        %v1210 = vsub.s32 %v1207, %v1209
        %v1211 = vrot.slane %v1197, %v1210
        %v1212 = vcombine.high %v1188, 0
        %v1213 = vcombine.high %v1195, 0
        %v1214 = vcombine.high %v1204, 0
        %v1215 = vcombine.high %v1211, 0
        %v1216 = vcombine.high %v1140, %v881
        %v1218 = vunpack.c.l.s4 1983009808
        %v1219 = vunpack.c.0.s8 %v1218
        %v1220 = vlaneseq
        %v1221 = vshrl.u32 %v1220, 7
        %v1222 = vsub.s32 %v1219, %v1221
        %v1223 = vrot.slane %v1140, %v1222
        %v1225 = vunpack.c.l.s4 1983009808
        %v1226 = vunpack.c.0.s8 %v1225
        %v1227 = vlaneseq
        %v1228 = vshrl.u32 %v1227, 7
        %v1229 = vsub.s32 %v1226, %v1228
        %v1230 = vrot.slane %v1216, %v1229
        %v1231 = vcombine.high %v1148, %v881
        %v1233 = vunpack.c.l.s4 1983009808
        %v1234 = vunpack.c.0.s8 %v1233
        %v1235 = vlaneseq
        %v1236 = vshrl.u32 %v1235, 7
        %v1237 = vsub.s32 %v1234, %v1236
        %v1238 = vrot.slane %v1148, %v1237
        %v1240 = vunpack.c.l.s4 1983009808
        %v1241 = vunpack.c.0.s8 %v1240
        %v1242 = vlaneseq
        %v1243 = vshrl.u32 %v1242, 7
        %v1244 = vsub.s32 %v1241, %v1243
        %v1245 = vrot.slane %v1231, %v1244
        %v1246 = vcombine.low %v1223, %v1238
        %v1247 = vcombine.high %v1223, %v1238
        %v1249 = vunpack.c.l.s4 1934713408
        %v1250 = vunpack.c.0.s8 %v1249
        %v1251 = vlaneseq
        %v1252 = vshrl.u32 %v1251, 7
        %v1253 = vsub.s32 %v1250, %v1252
        %v1254 = vrot.slane %v1246, %v1253
        %v1256 = vunpack.c.l.s4 1934713408
        %v1257 = vunpack.c.0.s8 %v1256
        %v1258 = vlaneseq
        %v1259 = vshrl.u32 %v1258, 7
        %v1260 = vsub.s32 %v1257, %v1259
        %v1261 = vrot.slane %v1247, %v1260
        %v1262 = vcombine.low %v1230, %v1245
        %v1263 = vcombine.high %v1230, %v1245
        %v1265 = vunpack.c.l.s4 1934713408
        %v1266 = vunpack.c.0.s8 %v1265
        %v1267 = vlaneseq
        %v1268 = vshrl.u32 %v1267, 7
        %v1269 = vsub.s32 %v1266, %v1268
        %v1270 = vrot.slane %v1262, %v1269
        %v1272 = vunpack.c.l.s4 1934713408
        %v1273 = vunpack.c.0.s8 %v1272
        %v1274 = vlaneseq
        %v1275 = vshrl.u32 %v1274, 7
        %v1276 = vsub.s32 %v1273, %v1275
        %v1277 = vrot.slane %v1263, %v1276
        %v1278 = vcombine.high %v1254, 0
        %v1279 = vcombine.high %v1261, 0
        %v1280 = vcombine.high %v1270, 0
        %v1281 = vcombine.high %v1277, 0
        %v1282 = vcombine.low %v1188, %v1195
        %v1284 = vunpack.c.l.s4 1983009808
        %v1285 = vunpack.c.0.s8 %v1284
        %v1286 = vlaneseq
        %v1287 = vshrl.u32 %v1286, 7
        %v1288 = vsub.s32 %v1285, %v1287
        %v1289 = vrot.slane %v1282, %v1288
        %v1290 = vcombine.low %v1212, %v1213
        %v1292 = vunpack.c.l.s4 1983009808
        %v1293 = vunpack.c.0.s8 %v1292
        %v1294 = vlaneseq
        %v1295 = vshrl.u32 %v1294, 7
        %v1296 = vsub.s32 %v1293, %v1295
        %v1297 = vrot.slane %v1290, %v1296
        %v1298 = vcombine.low %v1204, %v1211
        %v1300 = vunpack.c.l.s4 1983009808
        %v1301 = vunpack.c.0.s8 %v1300
        %v1302 = vlaneseq
        %v1303 = vshrl.u32 %v1302, 7
        %v1304 = vsub.s32 %v1301, %v1303
        %v1305 = vrot.slane %v1298, %v1304
        %v1306 = vcombine.low %v1214, %v1215
        %v1308 = vunpack.c.l.s4 1983009808
        %v1309 = vunpack.c.0.s8 %v1308
        %v1310 = vlaneseq
        %v1311 = vshrl.u32 %v1310, 7
        %v1312 = vsub.s32 %v1309, %v1311
        %v1313 = vrot.slane %v1306, %v1312
        %v1314 = vcombine.low %v1289, %v1297
        %v1316 = vunpack.c.l.s4 1934713408
        %v1317 = vunpack.c.0.s8 %v1316
        %v1318 = vlaneseq
        %v1319 = vshrl.u32 %v1318, 7
        %v1320 = vsub.s32 %v1317, %v1319
        %v1321 = vrot.slane %v1314, %v1320
        %v1322 = vcombine.low %v1305, %v1313
        %v1324 = vunpack.c.l.s4 1934713408
        %v1325 = vunpack.c.0.s8 %v1324
        %v1326 = vlaneseq
        %v1327 = vshrl.u32 %v1326, 7
        %v1328 = vsub.s32 %v1325, %v1327
        %v1329 = vrot.slane %v1322, %v1328
        %v1330 = vcombine.low %v1321, %v1329
        %v1331 = vcombine.high %v1321, %v1329
        %v1332 = vcombine.low %v1254, %v1261
        %v1334 = vunpack.c.l.s4 1983009808
        %v1335 = vunpack.c.0.s8 %v1334
        %v1336 = vlaneseq
        %v1337 = vshrl.u32 %v1336, 7
        %v1338 = vsub.s32 %v1335, %v1337
        %v1339 = vrot.slane %v1332, %v1338
        %v1340 = vcombine.low %v1278, %v1279
        %v1342 = vunpack.c.l.s4 1983009808
        %v1343 = vunpack.c.0.s8 %v1342
        %v1344 = vlaneseq
        %v1345 = vshrl.u32 %v1344, 7
        %v1346 = vsub.s32 %v1343, %v1345
        %v1347 = vrot.slane %v1340, %v1346
        %v1348 = vcombine.low %v1270, %v1277
        %v1350 = vunpack.c.l.s4 1983009808
        %v1351 = vunpack.c.0.s8 %v1350
        %v1352 = vlaneseq
        %v1353 = vshrl.u32 %v1352, 7
        %v1354 = vsub.s32 %v1351, %v1353
        %v1355 = vrot.slane %v1348, %v1354
        %v1356 = vcombine.low %v1280, %v1281
        %v1358 = vunpack.c.l.s4 1983009808
        %v1359 = vunpack.c.0.s8 %v1358
        %v1360 = vlaneseq
        %v1361 = vshrl.u32 %v1360, 7
        %v1362 = vsub.s32 %v1359, %v1361
        %v1363 = vrot.slane %v1356, %v1362
        %v1364 = vcombine.low %v1339, %v1347
        %v1366 = vunpack.c.l.s4 1934713408
        %v1367 = vunpack.c.0.s8 %v1366
        %v1368 = vlaneseq
        %v1369 = vshrl.u32 %v1368, 7
        %v1370 = vsub.s32 %v1367, %v1369
        %v1371 = vrot.slane %v1364, %v1370
        %v1372 = vcombine.low %v1355, %v1363
        %v1374 = vunpack.c.l.s4 1934713408
        %v1375 = vunpack.c.0.s8 %v1374
        %v1376 = vlaneseq
        %v1377 = vshrl.u32 %v1376, 7
        %v1378 = vsub.s32 %v1375, %v1377
        %v1379 = vrot.slane %v1372, %v1378
        %v1380 = vcombine.low %v1371, %v1379
        %v1381 = vcombine.high %v1371, %v1379
        %v1384 = vpack.i.b16 %v1380, %v1330
        %v1385 = vshrl.u32 %v1330, 16
        %v1386 = vshrl.u32 %v1380, 16
        %v1387 = vpack.i.b16 %v1386, %v1385
        %v1390 = vpack.i.b16 %v1381, %v1331
        %v1391 = vshrl.u32 %v1331, 16
        %v1392 = vshrl.u32 %v1381, 16
        %v1393 = vpack.i.b16 %v1392, %v1391
        %1395 = vrot.lane.b32.xlu0 %v853, 96
        %v1396 = vpop.permute.xlu0 %1395
        %1397 = vrot.lane.b32.xlu0 %v853, 64
        %v1398 = vpop.permute.xlu0 %1397
        %1399 = vrot.lane.b32.xlu0 %v853, 32
        %v1400 = vpop.permute.xlu0 %1399
        %v1403 = vpack.i.b16 %v1396, %v853
        %v1405 = vshrl.u32 %v853, 16
        %v1406 = vshrl.u32 %v1396, 16
        %v1407 = vpack.i.b16 %v1406, %v1405
        %v1411 = vpack.i.b16 %v1400, %v1398
        %v1413 = vshrl.u32 %v1398, 16
        %v1414 = vshrl.u32 %v1400, 16
        %v1415 = vpack.i.b16 %v1414, %v1413
        %v1417 = vcombine.high %v1403, %v878
        %v1419 = vunpack.c.l.s4 1983009808
        %v1420 = vunpack.c.0.s8 %v1419
        %v1421 = vlaneseq
        %v1422 = vshrl.u32 %v1421, 7
        %v1423 = vsub.s32 %v1420, %v1422
        %v1424 = vrot.slane %v1403, %v1423
        %v1426 = vunpack.c.l.s4 1983009808
        %v1427 = vunpack.c.0.s8 %v1426
        %v1428 = vlaneseq
        %v1429 = vshrl.u32 %v1428, 7
        %v1430 = vsub.s32 %v1427, %v1429
        %v1431 = vrot.slane %v1417, %v1430
        %v1432 = vcombine.high %v1411, %v878
        %v1434 = vunpack.c.l.s4 1983009808
        %v1435 = vunpack.c.0.s8 %v1434
        %v1436 = vlaneseq
        %v1437 = vshrl.u32 %v1436, 7
        %v1438 = vsub.s32 %v1435, %v1437
        %v1439 = vrot.slane %v1411, %v1438
        %v1441 = vunpack.c.l.s4 1983009808
        %v1442 = vunpack.c.0.s8 %v1441
        %v1443 = vlaneseq
        %v1444 = vshrl.u32 %v1443, 7
        %v1445 = vsub.s32 %v1442, %v1444
        %v1446 = vrot.slane %v1432, %v1445
        %v1447 = vcombine.low %v1424, %v1439
        %v1448 = vcombine.high %v1424, %v1439
        %v1450 = vunpack.c.l.s4 1934713408
        %v1451 = vunpack.c.0.s8 %v1450
        %v1452 = vlaneseq
        %v1453 = vshrl.u32 %v1452, 7
        %v1454 = vsub.s32 %v1451, %v1453
        %v1455 = vrot.slane %v1447, %v1454
        %v1457 = vunpack.c.l.s4 1934713408
        %v1458 = vunpack.c.0.s8 %v1457
        %v1459 = vlaneseq
        %v1460 = vshrl.u32 %v1459, 7
        %v1461 = vsub.s32 %v1458, %v1460
        %v1462 = vrot.slane %v1448, %v1461
        %v1463 = vcombine.low %v1431, %v1446
        %v1464 = vcombine.high %v1431, %v1446
        %v1466 = vunpack.c.l.s4 1934713408
        %v1467 = vunpack.c.0.s8 %v1466
        %v1468 = vlaneseq
        %v1469 = vshrl.u32 %v1468, 7
        %v1470 = vsub.s32 %v1467, %v1469
        %v1471 = vrot.slane %v1463, %v1470
        %v1473 = vunpack.c.l.s4 1934713408
        %v1474 = vunpack.c.0.s8 %v1473
        %v1475 = vlaneseq
        %v1476 = vshrl.u32 %v1475, 7
        %v1477 = vsub.s32 %v1474, %v1476
        %v1478 = vrot.slane %v1464, %v1477
        %v1479 = vcombine.high %v1455, 0
        %v1480 = vcombine.high %v1462, 0
        %v1481 = vcombine.high %v1471, 0
        %v1482 = vcombine.high %v1478, 0
        %v1483 = vcombine.high %v1407, %v881
        %v1485 = vunpack.c.l.s4 1983009808
        %v1486 = vunpack.c.0.s8 %v1485
        %v1487 = vlaneseq
        %v1488 = vshrl.u32 %v1487, 7
        %v1489 = vsub.s32 %v1486, %v1488
        %v1490 = vrot.slane %v1407, %v1489
        %v1492 = vunpack.c.l.s4 1983009808
        %v1493 = vunpack.c.0.s8 %v1492
        %v1494 = vlaneseq
        %v1495 = vshrl.u32 %v1494, 7
        %v1496 = vsub.s32 %v1493, %v1495
        %v1497 = vrot.slane %v1483, %v1496
        %v1498 = vcombine.high %v1415, %v881
        %v1500 = vunpack.c.l.s4 1983009808
        %v1501 = vunpack.c.0.s8 %v1500
        %v1502 = vlaneseq
        %v1503 = vshrl.u32 %v1502, 7
        %v1504 = vsub.s32 %v1501, %v1503
        %v1505 = vrot.slane %v1415, %v1504
        %v1507 = vunpack.c.l.s4 1983009808
        %v1508 = vunpack.c.0.s8 %v1507
        %v1509 = vlaneseq
        %v1510 = vshrl.u32 %v1509, 7
        %v1511 = vsub.s32 %v1508, %v1510
        %v1512 = vrot.slane %v1498, %v1511
        %v1513 = vcombine.low %v1490, %v1505
        %v1514 = vcombine.high %v1490, %v1505
        %v1516 = vunpack.c.l.s4 1934713408
        %v1517 = vunpack.c.0.s8 %v1516
        %v1518 = vlaneseq
        %v1519 = vshrl.u32 %v1518, 7
        %v1520 = vsub.s32 %v1517, %v1519
        %v1521 = vrot.slane %v1513, %v1520
        %v1523 = vunpack.c.l.s4 1934713408
        %v1524 = vunpack.c.0.s8 %v1523
        %v1525 = vlaneseq
        %v1526 = vshrl.u32 %v1525, 7
        %v1527 = vsub.s32 %v1524, %v1526
        %v1528 = vrot.slane %v1514, %v1527
        %v1529 = vcombine.low %v1497, %v1512
        %v1530 = vcombine.high %v1497, %v1512
        %v1532 = vunpack.c.l.s4 1934713408
        %v1533 = vunpack.c.0.s8 %v1532
        %v1534 = vlaneseq
        %v1535 = vshrl.u32 %v1534, 7
        %v1536 = vsub.s32 %v1533, %v1535
        %v1537 = vrot.slane %v1529, %v1536
        %v1539 = vunpack.c.l.s4 1934713408
        %v1540 = vunpack.c.0.s8 %v1539
        %v1541 = vlaneseq
        %v1542 = vshrl.u32 %v1541, 7
        %v1543 = vsub.s32 %v1540, %v1542
        %v1544 = vrot.slane %v1530, %v1543
        %v1545 = vcombine.high %v1521, 0
        %v1546 = vcombine.high %v1528, 0
        %v1547 = vcombine.high %v1537, 0
        %v1548 = vcombine.high %v1544, 0
        %v1549 = vcombine.low %v1455, %v1462
        %v1551 = vunpack.c.l.s4 1983009808
        %v1552 = vunpack.c.0.s8 %v1551
        %v1553 = vlaneseq
        %v1554 = vshrl.u32 %v1553, 7
        %v1555 = vsub.s32 %v1552, %v1554
        %v1556 = vrot.slane %v1549, %v1555
        %v1557 = vcombine.low %v1479, %v1480
        %v1559 = vunpack.c.l.s4 1983009808
        %v1560 = vunpack.c.0.s8 %v1559
        %v1561 = vlaneseq
        %v1562 = vshrl.u32 %v1561, 7
        %v1563 = vsub.s32 %v1560, %v1562
        %v1564 = vrot.slane %v1557, %v1563
        %v1565 = vcombine.low %v1471, %v1478
        %v1567 = vunpack.c.l.s4 1983009808
        %v1568 = vunpack.c.0.s8 %v1567
        %v1569 = vlaneseq
        %v1570 = vshrl.u32 %v1569, 7
        %v1571 = vsub.s32 %v1568, %v1570
        %v1572 = vrot.slane %v1565, %v1571
        %v1573 = vcombine.low %v1481, %v1482
        %v1575 = vunpack.c.l.s4 1983009808
        %v1576 = vunpack.c.0.s8 %v1575
        %v1577 = vlaneseq
        %v1578 = vshrl.u32 %v1577, 7
        %v1579 = vsub.s32 %v1576, %v1578
        %v1580 = vrot.slane %v1573, %v1579
        %v1581 = vcombine.low %v1556, %v1564
        %v1583 = vunpack.c.l.s4 1934713408
        %v1584 = vunpack.c.0.s8 %v1583
        %v1585 = vlaneseq
        %v1586 = vshrl.u32 %v1585, 7
        %v1587 = vsub.s32 %v1584, %v1586
        %v1588 = vrot.slane %v1581, %v1587
        %v1589 = vcombine.low %v1572, %v1580
        %v1591 = vunpack.c.l.s4 1934713408
        %v1592 = vunpack.c.0.s8 %v1591
        %v1593 = vlaneseq
        %v1594 = vshrl.u32 %v1593, 7
        %v1595 = vsub.s32 %v1592, %v1594
        %v1596 = vrot.slane %v1589, %v1595
        %v1597 = vcombine.low %v1588, %v1596
        %v1598 = vcombine.high %v1588, %v1596
        %v1599 = vcombine.low %v1521, %v1528
        %v1601 = vunpack.c.l.s4 1983009808
        %v1602 = vunpack.c.0.s8 %v1601
        %v1603 = vlaneseq
        %v1604 = vshrl.u32 %v1603, 7
        %v1605 = vsub.s32 %v1602, %v1604
        %v1606 = vrot.slane %v1599, %v1605
        %v1607 = vcombine.low %v1545, %v1546
        %v1609 = vunpack.c.l.s4 1983009808
        %v1610 = vunpack.c.0.s8 %v1609
        %v1611 = vlaneseq
        %v1612 = vshrl.u32 %v1611, 7
        %v1613 = vsub.s32 %v1610, %v1612
        %v1614 = vrot.slane %v1607, %v1613
        %v1615 = vcombine.low %v1537, %v1544
        %v1617 = vunpack.c.l.s4 1983009808
        %v1618 = vunpack.c.0.s8 %v1617
        %v1619 = vlaneseq
        %v1620 = vshrl.u32 %v1619, 7
        %v1621 = vsub.s32 %v1618, %v1620
        %v1622 = vrot.slane %v1615, %v1621
        %v1623 = vcombine.low %v1547, %v1548
        %v1625 = vunpack.c.l.s4 1983009808
        %v1626 = vunpack.c.0.s8 %v1625
        %v1627 = vlaneseq
        %v1628 = vshrl.u32 %v1627, 7
        %v1629 = vsub.s32 %v1626, %v1628
        %v1630 = vrot.slane %v1623, %v1629
        %v1631 = vcombine.low %v1606, %v1614
        %v1633 = vunpack.c.l.s4 1934713408
        %v1634 = vunpack.c.0.s8 %v1633
        %v1635 = vlaneseq
        %v1636 = vshrl.u32 %v1635, 7
        %v1637 = vsub.s32 %v1634, %v1636
        %v1638 = vrot.slane %v1631, %v1637
        %v1639 = vcombine.low %v1622, %v1630
        %v1641 = vunpack.c.l.s4 1934713408
        %v1642 = vunpack.c.0.s8 %v1641
        %v1643 = vlaneseq
        %v1644 = vshrl.u32 %v1643, 7
        %v1645 = vsub.s32 %v1642, %v1644
        %v1646 = vrot.slane %v1639, %v1645
        %v1647 = vcombine.low %v1638, %v1646
        %v1648 = vcombine.high %v1638, %v1646
        %v1651 = vpack.i.b16 %v1647, %v1597
        %v1653 = vshrl.u32 %v1597, 16
        %v1654 = vshrl.u32 %v1647, 16
        %v1655 = vpack.i.b16 %v1654, %v1653
        %v1659 = vpack.i.b16 %v1648, %v1598
        %v1661 = vshrl.u32 %v1598, 16
        %v1662 = vshrl.u32 %v1648, 16
        %v1663 = vpack.i.b16 %v1662, %v1661
        %v1665 = vld [vmem:[%s518] sm:$0xf]
        %v1666 = vld [vmem:[%s518 + $0x4] sm:$0xf]
        %v1667 = vunpack.c.l.bf16 %v1665
        %v1668 = vunpack.c.l.bf16 %v1666
        %vm1669 = vcmask 261120
        %v1671 = vsel %vm1669, %v1117, 0
        %v1674 = vsel %vm1669, %v1384, 0
        %1676 = vmatprep.subr.bf16.mxu0 0
        %1677 = vmatpush1.bf16.xpose.msra.mxu0 0
        %1678 = vmatprep.subr.bf16.mxu0 0
        %1679 = vmatpush1.bf16.xpose.msra.mxu0 0
        %1680 = vmatprep.subr.bf16.mxu0 0
        %1681 = vmatpush1.bf16.xpose.msra.mxu0 0
        %1682 = vmatprep.subr.bf16.mxu0 0
        %1683 = vmatpush1.bf16.xpose.msra.mxu0 0
        %1684 = vmatprep.subr.bf16.mxu0 0
        %1685 = vmatpush1.bf16.xpose.msra.mxu0 0
        %1686 = vmatprep.subr.bf16.mxu0 0
        %1687 = vmatpush1.bf16.xpose.msra.mxu0 0
        %1688 = vmatprep.subr.bf16.mxu0 0
        %1689 = vmatpush1.bf16.xpose.msra.mxu0 0
        %1690 = vmatprep.subr.bf16.mxu0 0
        %1691 = vmatpush1.bf16.xpose.msra.mxu0 %v1674
        %1692 = vmatprep.subr.bf16.mxu0 0
        %1693 = vmatpush2.bf16.xpose.msra.mxu0 0
        %1694 = vmatprep.subr.bf16.mxu0 0
        %1695 = vmatpush2.bf16.xpose.msra.mxu0 0
        %1696 = vmatprep.subr.bf16.mxu0 0
        %1697 = vmatpush2.bf16.xpose.msra.mxu0 0
        %1698 = vmatprep.subr.bf16.mxu0 0
        %1699 = vmatpush2.bf16.xpose.msra.mxu0 0
        %1700 = vmatprep.subr.bf16.mxu0 0
        %1701 = vmatpush2.bf16.xpose.msra.mxu0 0
        %1702 = vmatprep.subr.bf16.mxu0 0
        %1703 = vmatpush2.bf16.xpose.msra.mxu0 0
        %1704 = vmatprep.subr.bf16.mxu0 0
        %1705 = vmatpush2.bf16.xpose.msra.mxu0 0
        %1706 = vmatprep.subr.bf16.mxu0 0
        %1707 = vmatpush2.bf16.xpose.msra.mxu0 0
        %1708 = vmatprep.mubr.bf16.mxu0 0
        %1709 = vmatmul.mubr.bf16.gmra.mxu0 %v1671
        %v1710 = vpop.f32.mrf.mxu0
        %v1711 = vadd.f32 %v1667, %v1710
        %v1712 = vpop.f32.mrf.mxu0
        %v1713 = vpop.f32.mrf.mxu0
        %v1714 = vadd.f32 %v1668, %v1713
        %v1715 = vpop.f32.mrf.mxu0
        %1716 = vdwg.mxu0
        %v1718 = vsel %vm1669, %v1120, 0
        %v1721 = vsel %vm1669, %v1387, 0
        %1723 = vmatprep.subr.bf16.mxu0 0
        %1724 = vmatpush1.bf16.xpose.msra.mxu0 0
        %1725 = vmatprep.subr.bf16.mxu0 0
        %1726 = vmatpush1.bf16.xpose.msra.mxu0 0
        %1727 = vmatprep.subr.bf16.mxu0 0
        %1728 = vmatpush1.bf16.xpose.msra.mxu0 0
        %1729 = vmatprep.subr.bf16.mxu0 0
        %1730 = vmatpush1.bf16.xpose.msra.mxu0 0
        %1731 = vmatprep.subr.bf16.mxu0 0
        %1732 = vmatpush1.bf16.xpose.msra.mxu0 0
        %1733 = vmatprep.subr.bf16.mxu0 0
        %1734 = vmatpush1.bf16.xpose.msra.mxu0 0
        %1735 = vmatprep.subr.bf16.mxu0 0
        %1736 = vmatpush1.bf16.xpose.msra.mxu0 0
        %1737 = vmatprep.subr.bf16.mxu0 0
        %1738 = vmatpush1.bf16.xpose.msra.mxu0 %v1721
        %1739 = vmatprep.subr.bf16.mxu0 0
        %1740 = vmatpush2.bf16.xpose.msra.mxu0 0
        %1741 = vmatprep.subr.bf16.mxu0 0
        %1742 = vmatpush2.bf16.xpose.msra.mxu0 0
        %1743 = vmatprep.subr.bf16.mxu0 0
        %1744 = vmatpush2.bf16.xpose.msra.mxu0 0
        %1745 = vmatprep.subr.bf16.mxu0 0
        %1746 = vmatpush2.bf16.xpose.msra.mxu0 0
        %1747 = vmatprep.subr.bf16.mxu0 0
        %1748 = vmatpush2.bf16.xpose.msra.mxu0 0
        %1749 = vmatprep.subr.bf16.mxu0 0
        %1750 = vmatpush2.bf16.xpose.msra.mxu0 0
        %1751 = vmatprep.subr.bf16.mxu0 0
        %1752 = vmatpush2.bf16.xpose.msra.mxu0 0
        %1753 = vmatprep.subr.bf16.mxu0 0
        %1754 = vmatpush2.bf16.xpose.msra.mxu0 0
        %1755 = vmatprep.mubr.bf16.mxu0 0
        %1756 = vmatmul.mubr.bf16.gmra.mxu0 %v1718
        %v1757 = vpop.f32.mrf.mxu0
        %v1758 = vadd.f32 %v1667, %v1757
        %v1759 = vpop.f32.mrf.mxu0
        %v1760 = vpop.f32.mrf.mxu0
        %v1761 = vadd.f32 %v1668, %v1760
        %v1762 = vpop.f32.mrf.mxu0
        %1763 = vdwg.mxu0
        %v1765 = vsel %vm1669, %v1123, 0
        %v1768 = vsel %vm1669, %v1390, 0
        %1770 = vmatprep.subr.bf16.mxu0 0
        %1771 = vmatpush1.bf16.xpose.msra.mxu0 0
        %1772 = vmatprep.subr.bf16.mxu0 0
        %1773 = vmatpush1.bf16.xpose.msra.mxu0 0
        %1774 = vmatprep.subr.bf16.mxu0 0
        %1775 = vmatpush1.bf16.xpose.msra.mxu0 0
        %1776 = vmatprep.subr.bf16.mxu0 0
        %1777 = vmatpush1.bf16.xpose.msra.mxu0 0
        %1778 = vmatprep.subr.bf16.mxu0 0
        %1779 = vmatpush1.bf16.xpose.msra.mxu0 0
        %1780 = vmatprep.subr.bf16.mxu0 0
        %1781 = vmatpush1.bf16.xpose.msra.mxu0 0
        %1782 = vmatprep.subr.bf16.mxu0 0
        %1783 = vmatpush1.bf16.xpose.msra.mxu0 0
        %1784 = vmatprep.subr.bf16.mxu0 0
        %1785 = vmatpush1.bf16.xpose.msra.mxu0 %v1768
        %1786 = vmatprep.subr.bf16.mxu0 0
        %1787 = vmatpush2.bf16.xpose.msra.mxu0 0
        %1788 = vmatprep.subr.bf16.mxu0 0
        %1789 = vmatpush2.bf16.xpose.msra.mxu0 0
        %1790 = vmatprep.subr.bf16.mxu0 0
        %1791 = vmatpush2.bf16.xpose.msra.mxu0 0
        %1792 = vmatprep.subr.bf16.mxu0 0
        %1793 = vmatpush2.bf16.xpose.msra.mxu0 0
        %1794 = vmatprep.subr.bf16.mxu0 0
        %1795 = vmatpush2.bf16.xpose.msra.mxu0 0
        %1796 = vmatprep.subr.bf16.mxu0 0
        %1797 = vmatpush2.bf16.xpose.msra.mxu0 0
        %1798 = vmatprep.subr.bf16.mxu0 0
        %1799 = vmatpush2.bf16.xpose.msra.mxu0 0
        %1800 = vmatprep.subr.bf16.mxu0 0
        %1801 = vmatpush2.bf16.xpose.msra.mxu0 0
        %1802 = vmatprep.mubr.bf16.mxu0 0
        %1803 = vmatmul.mubr.bf16.gmra.mxu0 %v1765
        %v1804 = vpop.f32.mrf.mxu0
        %v1805 = vadd.f32 %v1667, %v1804
        %v1806 = vpop.f32.mrf.mxu0
        %v1807 = vpop.f32.mrf.mxu0
        %v1808 = vadd.f32 %v1668, %v1807
        %v1809 = vpop.f32.mrf.mxu0
        %1810 = vdwg.mxu0
        %v1812 = vsel %vm1669, %v1126, 0
        %v1815 = vsel %vm1669, %v1393, 0
        %1817 = vmatprep.subr.bf16.mxu0 0
        %1818 = vmatpush1.bf16.xpose.msra.mxu0 0
        %1819 = vmatprep.subr.bf16.mxu0 0
        %1820 = vmatpush1.bf16.xpose.msra.mxu0 0
        %1821 = vmatprep.subr.bf16.mxu0 0
        %1822 = vmatpush1.bf16.xpose.msra.mxu0 0
        %1823 = vmatprep.subr.bf16.mxu0 0
        %1824 = vmatpush1.bf16.xpose.msra.mxu0 0
        %1825 = vmatprep.subr.bf16.mxu0 0
        %1826 = vmatpush1.bf16.xpose.msra.mxu0 0
        %1827 = vmatprep.subr.bf16.mxu0 0
        %1828 = vmatpush1.bf16.xpose.msra.mxu0 0
        %1829 = vmatprep.subr.bf16.mxu0 0
        %1830 = vmatpush1.bf16.xpose.msra.mxu0 0
        %1831 = vmatprep.subr.bf16.mxu0 0
        %1832 = vmatpush1.bf16.xpose.msra.mxu0 %v1815
        %1833 = vmatprep.subr.bf16.mxu0 0
        %1834 = vmatpush2.bf16.xpose.msra.mxu0 0
        %1835 = vmatprep.subr.bf16.mxu0 0
        %1836 = vmatpush2.bf16.xpose.msra.mxu0 0
        %1837 = vmatprep.subr.bf16.mxu0 0
        %1838 = vmatpush2.bf16.xpose.msra.mxu0 0
        %1839 = vmatprep.subr.bf16.mxu0 0
        %1840 = vmatpush2.bf16.xpose.msra.mxu0 0
        %1841 = vmatprep.subr.bf16.mxu0 0
        %1842 = vmatpush2.bf16.xpose.msra.mxu0 0
        %1843 = vmatprep.subr.bf16.mxu0 0
        %1844 = vmatpush2.bf16.xpose.msra.mxu0 0
        %1845 = vmatprep.subr.bf16.mxu0 0
        %1846 = vmatpush2.bf16.xpose.msra.mxu0 0
        %1847 = vmatprep.subr.bf16.mxu0 0
        %1848 = vmatpush2.bf16.xpose.msra.mxu0 0
        %1849 = vmatprep.mubr.bf16.mxu0 0
        %1850 = vmatmul.mubr.bf16.gmra.mxu0 %v1812
        %v1851 = vpop.f32.mrf.mxu0
        %v1852 = vadd.f32 %v1667, %v1851
        %v1853 = vpop.f32.mrf.mxu0
        %v1854 = vpop.f32.mrf.mxu0
        %v1855 = vadd.f32 %v1668, %v1854
        %v1856 = vpop.f32.mrf.mxu0
        %1857 = vdwg.mxu0
        %vm1858 = vcmask 130048
        %v1859 = vsel %vm1858, %v1711, -inf
        %1860 = vmax.xlane.f32.xlu0 %v1859
        %v1861 = vpop.xlane.xlu0 %1860
        %v1862 = vsel %vm1858, %v1714, -inf
        %1863 = vmax.xlane.f32.xlu0 %v1862
        %v1864 = vpop.xlane.xlu0 %1863
        %v1865 = vsel %vm1858, %v1758, -inf
        %1866 = vmax.xlane.f32.xlu0 %v1865
        %v1867 = vpop.xlane.xlu0 %1866
        %v1868 = vsel %vm1858, %v1761, -inf
        %1869 = vmax.xlane.f32.xlu0 %v1868
        %v1870 = vpop.xlane.xlu0 %1869
        %v1871 = vsel %vm1858, %v1805, -inf
        %1872 = vmax.xlane.f32.xlu0 %v1871
        %v1873 = vpop.xlane.xlu0 %1872
        %v1874 = vsel %vm1858, %v1808, -inf
        %1875 = vmax.xlane.f32.xlu0 %v1874
        %v1876 = vpop.xlane.xlu0 %1875
        %v1877 = vsel %vm1858, %v1852, -inf
        %1878 = vmax.xlane.f32.xlu0 %v1877
        %v1879 = vpop.xlane.xlu0 %1878
        %v1880 = vsel %vm1858, %v1855, -inf
        %1881 = vmax.xlane.f32.xlu0 %v1880
        %v1882 = vpop.xlane.xlu0 %1881
        %v1883 = vsub.f32 %v1711, %v1861
        %v1884 = vsub.f32 %v1714, %v1864
        %v1885 = vsub.f32 %v1758, %v1867
        %v1886 = vsub.f32 %v1761, %v1870
        %v1887 = vsub.f32 %v1805, %v1873
        %v1888 = vsub.f32 %v1808, %v1876
        %v1889 = vsub.f32 %v1852, %v1879
        %v1890 = vsub.f32 %v1855, %v1882
        %v1891 = vmul.f32 %v1883, 1.442695
        %v1892 = vpow.pop %v1891
        %v1893 = vmul.f32 %v1884, 1.442695
        %v1894 = vpow.pop %v1893
        %v1895 = vmul.f32 %v1885, 1.442695
        %v1896 = vpow.pop %v1895
        %v1897 = vmul.f32 %v1886, 1.442695
        %v1898 = vpow.pop %v1897
        %v1899 = vmul.f32 %v1887, 1.442695
        %v1900 = vpow.pop %v1899
        %v1901 = vmul.f32 %v1888, 1.442695
        %v1902 = vpow.pop %v1901
        %v1903 = vmul.f32 %v1889, 1.442695
        %v1904 = vpow.pop %v1903
        %v1905 = vmul.f32 %v1890, 1.442695
        %v1906 = vpow.pop %v1905
        %v1907 = vsel %vm1858, %v1892, 0.0
        %1908 = vadd.xlane.f32.xlu0 %v1907
        %v1909 = vpop.xlane.xlu0 %1908
        %v1910 = vsel %vm1858, %v1894, 0.0
        %1911 = vadd.xlane.f32.xlu0 %v1910
        %v1912 = vpop.xlane.xlu0 %1911
        %v1913 = vsel %vm1858, %v1896, 0.0
        %1914 = vadd.xlane.f32.xlu0 %v1913
        %v1915 = vpop.xlane.xlu0 %1914
        %v1916 = vsel %vm1858, %v1898, 0.0
        %1917 = vadd.xlane.f32.xlu0 %v1916
        %v1918 = vpop.xlane.xlu0 %1917
        %v1919 = vsel %vm1858, %v1900, 0.0
        %1920 = vadd.xlane.f32.xlu0 %v1919
        %v1921 = vpop.xlane.xlu0 %1920
        %v1922 = vsel %vm1858, %v1902, 0.0
        %1923 = vadd.xlane.f32.xlu0 %v1922
        %v1924 = vpop.xlane.xlu0 %1923
        %v1925 = vsel %vm1858, %v1904, 0.0
        %1926 = vadd.xlane.f32.xlu0 %v1925
        %v1927 = vpop.xlane.xlu0 %1926
        %v1928 = vsel %vm1858, %v1906, 0.0
        %1929 = vadd.xlane.f32.xlu0 %v1928
        %v1930 = vpop.xlane.xlu0 %1929
        %v1931 = vrcp.pop %v1909
        %v1932 = vrcp.pop %v1912
        %v1933 = vrcp.pop %v1915
        %v1934 = vrcp.pop %v1918
        %v1935 = vrcp.pop %v1921
        %v1936 = vrcp.pop %v1924
        %v1937 = vrcp.pop %v1927
        %v1938 = vrcp.pop %v1930
        %v1939 = vmul.f32 %v1892, %v1931
        %v1940 = vmul.f32 %v1894, %v1932
        %v1941 = vmul.f32 %v1896, %v1933
        %v1942 = vmul.f32 %v1898, %v1934
        %v1943 = vmul.f32 %v1900, %v1935
        %v1944 = vmul.f32 %v1902, %v1936
        %v1945 = vmul.f32 %v1904, %v1937
        %v1946 = vmul.f32 %v1906, %v1938
        %v1947 = vpack.c.bf16 %v1940, %v1939
        %v1948 = vpack.c.bf16 %v1942, %v1941
        %v1949 = vpack.c.bf16 %v1944, %v1943
        %v1950 = vpack.c.bf16 %v1946, %v1945
        %v1952 = vsel %vm1858, %v1947, 0
        %1954 = vmatprep.subr.bf16.mxu0 0
        %1955 = vmatpush1.bf16.msra.mxu0 0
        %1956 = vmatprep.subr.bf16.mxu0 0
        %1957 = vmatpush1.bf16.msra.mxu0 0
        %1958 = vmatprep.subr.bf16.mxu0 0
        %1959 = vmatpush1.bf16.msra.mxu0 0
        %1960 = vmatprep.subr.bf16.mxu0 0
        %1961 = vmatpush1.bf16.msra.mxu0 0
        %1962 = vmatprep.subr.bf16.mxu0 0
        %1963 = vmatpush1.bf16.msra.mxu0 0
        %1964 = vmatprep.subr.bf16.mxu0 0
        %1965 = vmatpush1.bf16.msra.mxu0 0
        %1966 = vmatprep.subr.bf16.mxu0 0
        %1967 = vmatpush1.bf16.msra.mxu0 0
        %1968 = vmatprep.subr.bf16.mxu0 0
        %1969 = vmatpush1.bf16.msra.mxu0 %v1651
        %1970 = vmatprep.subr.bf16.mxu0 0
        %1971 = vmatpush2.bf16.msra.mxu0 0
        %1972 = vmatprep.subr.bf16.mxu0 0
        %1973 = vmatpush2.bf16.msra.mxu0 0
        %1974 = vmatprep.subr.bf16.mxu0 0
        %1975 = vmatpush2.bf16.msra.mxu0 0
        %1976 = vmatprep.subr.bf16.mxu0 0
        %1977 = vmatpush2.bf16.msra.mxu0 0
        %1978 = vmatprep.subr.bf16.mxu0 0
        %1979 = vmatpush2.bf16.msra.mxu0 0
        %1980 = vmatprep.subr.bf16.mxu0 0
        %1981 = vmatpush2.bf16.msra.mxu0 0
        %1982 = vmatprep.subr.bf16.mxu0 0
        %1983 = vmatpush2.bf16.msra.mxu0 0
        %1984 = vmatprep.subr.bf16.mxu0 0
        %1985 = vmatpush2.bf16.msra.mxu0 0
        %1986 = vmatprep.mubr.bf16.mxu0 0
        %1987 = vmatmul.mubr.bf16.gmra.mxu0 %v1952
        %v1988 = vpop.f32.mrf.mxu0
        %v1989 = vadd.f32 0.0, %v1988
        %v1990 = vpop.f32.mrf.mxu0
        %v1991 = vpop.f32.mrf.mxu0
        %v1992 = vadd.f32 0.0, %v1991
        %v1993 = vpop.f32.mrf.mxu0
        %1994 = vdwg.mxu0
        %v1996 = vsel %vm1858, %v1948, 0
        %1998 = vmatprep.subr.bf16.mxu0 0
        %1999 = vmatpush1.bf16.msra.mxu0 0
        %2000 = vmatprep.subr.bf16.mxu0 0
        %2001 = vmatpush1.bf16.msra.mxu0 0
        %2002 = vmatprep.subr.bf16.mxu0 0
        %2003 = vmatpush1.bf16.msra.mxu0 0
        %2004 = vmatprep.subr.bf16.mxu0 0
        %2005 = vmatpush1.bf16.msra.mxu0 0
        %2006 = vmatprep.subr.bf16.mxu0 0
        %2007 = vmatpush1.bf16.msra.mxu0 0
        %2008 = vmatprep.subr.bf16.mxu0 0
        %2009 = vmatpush1.bf16.msra.mxu0 0
        %2010 = vmatprep.subr.bf16.mxu0 0
        %2011 = vmatpush1.bf16.msra.mxu0 0
        %2012 = vmatprep.subr.bf16.mxu0 0
        %2013 = vmatpush1.bf16.msra.mxu0 %v1655
        %2014 = vmatprep.subr.bf16.mxu0 0
        %2015 = vmatpush2.bf16.msra.mxu0 0
        %2016 = vmatprep.subr.bf16.mxu0 0
        %2017 = vmatpush2.bf16.msra.mxu0 0
        %2018 = vmatprep.subr.bf16.mxu0 0
        %2019 = vmatpush2.bf16.msra.mxu0 0
        %2020 = vmatprep.subr.bf16.mxu0 0
        %2021 = vmatpush2.bf16.msra.mxu0 0
        %2022 = vmatprep.subr.bf16.mxu0 0
        %2023 = vmatpush2.bf16.msra.mxu0 0
        %2024 = vmatprep.subr.bf16.mxu0 0
        %2025 = vmatpush2.bf16.msra.mxu0 0
        %2026 = vmatprep.subr.bf16.mxu0 0
        %2027 = vmatpush2.bf16.msra.mxu0 0
        %2028 = vmatprep.subr.bf16.mxu0 0
        %2029 = vmatpush2.bf16.msra.mxu0 0
        %2030 = vmatprep.mubr.bf16.mxu0 0
        %2031 = vmatmul.mubr.bf16.gmra.mxu0 %v1996
        %v2032 = vpop.f32.mrf.mxu0
        %v2033 = vadd.f32 0.0, %v2032
        %v2034 = vpop.f32.mrf.mxu0
        %v2035 = vpop.f32.mrf.mxu0
        %v2036 = vadd.f32 0.0, %v2035
        %v2037 = vpop.f32.mrf.mxu0
        %2038 = vdwg.mxu0
        %v2040 = vsel %vm1858, %v1949, 0
        %2042 = vmatprep.subr.bf16.mxu0 0
        %2043 = vmatpush1.bf16.msra.mxu0 0
        %2044 = vmatprep.subr.bf16.mxu0 0
        %2045 = vmatpush1.bf16.msra.mxu0 0
        %2046 = vmatprep.subr.bf16.mxu0 0
        %2047 = vmatpush1.bf16.msra.mxu0 0
        %2048 = vmatprep.subr.bf16.mxu0 0
        %2049 = vmatpush1.bf16.msra.mxu0 0
        %2050 = vmatprep.subr.bf16.mxu0 0
        %2051 = vmatpush1.bf16.msra.mxu0 0
        %2052 = vmatprep.subr.bf16.mxu0 0
        %2053 = vmatpush1.bf16.msra.mxu0 0
        %2054 = vmatprep.subr.bf16.mxu0 0
        %2055 = vmatpush1.bf16.msra.mxu0 0
        %2056 = vmatprep.subr.bf16.mxu0 0
        %2057 = vmatpush1.bf16.msra.mxu0 %v1659
        %2058 = vmatprep.subr.bf16.mxu0 0
        %2059 = vmatpush2.bf16.msra.mxu0 0
        %2060 = vmatprep.subr.bf16.mxu0 0
        %2061 = vmatpush2.bf16.msra.mxu0 0
        %2062 = vmatprep.subr.bf16.mxu0 0
        %2063 = vmatpush2.bf16.msra.mxu0 0
        %2064 = vmatprep.subr.bf16.mxu0 0
        %2065 = vmatpush2.bf16.msra.mxu0 0
        %2066 = vmatprep.subr.bf16.mxu0 0
        %2067 = vmatpush2.bf16.msra.mxu0 0
        %2068 = vmatprep.subr.bf16.mxu0 0
        %2069 = vmatpush2.bf16.msra.mxu0 0
        %2070 = vmatprep.subr.bf16.mxu0 0
        %2071 = vmatpush2.bf16.msra.mxu0 0
        %2072 = vmatprep.subr.bf16.mxu0 0
        %2073 = vmatpush2.bf16.msra.mxu0 0
        %2074 = vmatprep.mubr.bf16.mxu0 0
        %2075 = vmatmul.mubr.bf16.gmra.mxu0 %v2040
        %v2076 = vpop.f32.mrf.mxu0
        %v2077 = vadd.f32 0.0, %v2076
        %v2078 = vpop.f32.mrf.mxu0
        %v2079 = vpop.f32.mrf.mxu0
        %v2080 = vadd.f32 0.0, %v2079
        %v2081 = vpop.f32.mrf.mxu0
        %2082 = vdwg.mxu0
        %v2084 = vsel %vm1858, %v1950, 0
        %2086 = vmatprep.subr.bf16.mxu0 0
        %2087 = vmatpush1.bf16.msra.mxu0 0
        %2088 = vmatprep.subr.bf16.mxu0 0
        %2089 = vmatpush1.bf16.msra.mxu0 0
        %2090 = vmatprep.subr.bf16.mxu0 0
        %2091 = vmatpush1.bf16.msra.mxu0 0
        %2092 = vmatprep.subr.bf16.mxu0 0
        %2093 = vmatpush1.bf16.msra.mxu0 0
        %2094 = vmatprep.subr.bf16.mxu0 0
        %2095 = vmatpush1.bf16.msra.mxu0 0
        %2096 = vmatprep.subr.bf16.mxu0 0
        %2097 = vmatpush1.bf16.msra.mxu0 0
        %2098 = vmatprep.subr.bf16.mxu0 0
        %2099 = vmatpush1.bf16.msra.mxu0 0
        %2100 = vmatprep.subr.bf16.mxu0 0
        %2101 = vmatpush1.bf16.msra.mxu0 %v1663
        %2102 = vmatprep.subr.bf16.mxu0 0
        %2103 = vmatpush2.bf16.msra.mxu0 0
        %2104 = vmatprep.subr.bf16.mxu0 0
        %2105 = vmatpush2.bf16.msra.mxu0 0
        %2106 = vmatprep.subr.bf16.mxu0 0
        %2107 = vmatpush2.bf16.msra.mxu0 0
        %2108 = vmatprep.subr.bf16.mxu0 0
        %2109 = vmatpush2.bf16.msra.mxu0 0
        %2110 = vmatprep.subr.bf16.mxu0 0
        %2111 = vmatpush2.bf16.msra.mxu0 0
        %2112 = vmatprep.subr.bf16.mxu0 0
        %2113 = vmatpush2.bf16.msra.mxu0 0
        %2114 = vmatprep.subr.bf16.mxu0 0
        %2115 = vmatpush2.bf16.msra.mxu0 0
        %2116 = vmatprep.subr.bf16.mxu0 0
        %2117 = vmatpush2.bf16.msra.mxu0 0
        %2118 = vmatprep.mubr.bf16.mxu0 0
        %2119 = vmatmul.mubr.bf16.gmra.mxu0 %v2084
        %v2120 = vpop.f32.mrf.mxu0
        %v2121 = vadd.f32 0.0, %v2120
        %v2122 = vpop.f32.mrf.mxu0
        %v2123 = vpop.f32.mrf.mxu0
        %v2124 = vadd.f32 0.0, %v2123
        %v2125 = vpop.f32.mrf.mxu0
        %2126 = vdwg.mxu0
        %v2127 = vcombine.low %v1989, %v2077
        %v2128 = vcombine.high %v1989, %v2077
        %v2130 = vunpack.c.l.s4 1983009808
        %v2131 = vunpack.c.0.s8 %v2130
        %v2132 = vlaneseq
        %v2133 = vshrl.u32 %v2132, 7
        %v2134 = vsub.s32 %v2131, %v2133
        %v2135 = vrot.slane %v2127, %v2134
        %v2137 = vunpack.c.l.s4 1983009808
        %v2138 = vunpack.c.0.s8 %v2137
        %v2139 = vlaneseq
        %v2140 = vshrl.u32 %v2139, 7
        %v2141 = vsub.s32 %v2138, %v2140
        %v2142 = vrot.slane %v2128, %v2141
        %v2143 = vcombine.low %v2033, %v2121
        %v2144 = vcombine.high %v2033, %v2121
        %v2146 = vunpack.c.l.s4 1983009808
        %v2147 = vunpack.c.0.s8 %v2146
        %v2148 = vlaneseq
        %v2149 = vshrl.u32 %v2148, 7
        %v2150 = vsub.s32 %v2147, %v2149
        %v2151 = vrot.slane %v2143, %v2150
        %v2153 = vunpack.c.l.s4 1983009808
        %v2154 = vunpack.c.0.s8 %v2153
        %v2155 = vlaneseq
        %v2156 = vshrl.u32 %v2155, 7
        %v2157 = vsub.s32 %v2154, %v2156
        %v2158 = vrot.slane %v2144, %v2157
        %v2159 = vcombine.low %v2135, %v2151
        %v2160 = vcombine.high %v2135, %v2151
        %v2162 = vunpack.c.l.s4 1934713408
        %v2163 = vunpack.c.0.s8 %v2162
        %v2164 = vlaneseq
        %v2165 = vshrl.u32 %v2164, 7
        %v2166 = vsub.s32 %v2163, %v2165
        %v2167 = vrot.slane %v2159, %v2166
        %v2169 = vunpack.c.l.s4 1934713408
        %v2170 = vunpack.c.0.s8 %v2169
        %v2171 = vlaneseq
        %v2172 = vshrl.u32 %v2171, 7
        %v2173 = vsub.s32 %v2170, %v2172
        %v2174 = vrot.slane %v2160, %v2173
        %v2175 = vcombine.low %v2142, %v2158
        %v2176 = vcombine.high %v2142, %v2158
        %v2178 = vunpack.c.l.s4 1934713408
        %v2179 = vunpack.c.0.s8 %v2178
        %v2180 = vlaneseq
        %v2181 = vshrl.u32 %v2180, 7
        %v2182 = vsub.s32 %v2179, %v2181
        %v2183 = vrot.slane %v2175, %v2182
        %v2185 = vunpack.c.l.s4 1934713408
        %v2186 = vunpack.c.0.s8 %v2185
        %v2187 = vlaneseq
        %v2188 = vshrl.u32 %v2187, 7
        %v2189 = vsub.s32 %v2186, %v2188
        %v2190 = vrot.slane %v2176, %v2189
        %v2191 = vcombine.high %v2167, 0.0
        %v2192 = vcombine.high %v2174, 0.0
        %v2193 = vcombine.high %v2183, 0.0
        %v2194 = vcombine.high %v2190, 0.0
        %v2195 = vcombine.low %v1992, %v2080
        %v2196 = vcombine.high %v1992, %v2080
        %v2198 = vunpack.c.l.s4 1983009808
        %v2199 = vunpack.c.0.s8 %v2198
        %v2200 = vlaneseq
        %v2201 = vshrl.u32 %v2200, 7
        %v2202 = vsub.s32 %v2199, %v2201
        %v2203 = vrot.slane %v2195, %v2202
        %v2205 = vunpack.c.l.s4 1983009808
        %v2206 = vunpack.c.0.s8 %v2205
        %v2207 = vlaneseq
        %v2208 = vshrl.u32 %v2207, 7
        %v2209 = vsub.s32 %v2206, %v2208
        %v2210 = vrot.slane %v2196, %v2209
        %v2211 = vcombine.low %v2036, %v2124
        %v2212 = vcombine.high %v2036, %v2124
        %v2214 = vunpack.c.l.s4 1983009808
        %v2215 = vunpack.c.0.s8 %v2214
        %v2216 = vlaneseq
        %v2217 = vshrl.u32 %v2216, 7
        %v2218 = vsub.s32 %v2215, %v2217
        %v2219 = vrot.slane %v2211, %v2218
        %v2221 = vunpack.c.l.s4 1983009808
        %v2222 = vunpack.c.0.s8 %v2221
        %v2223 = vlaneseq
        %v2224 = vshrl.u32 %v2223, 7
        %v2225 = vsub.s32 %v2222, %v2224
        %v2226 = vrot.slane %v2212, %v2225
        %v2227 = vcombine.low %v2203, %v2219
        %v2228 = vcombine.high %v2203, %v2219
        %v2230 = vunpack.c.l.s4 1934713408
        %v2231 = vunpack.c.0.s8 %v2230
        %v2232 = vlaneseq
        %v2233 = vshrl.u32 %v2232, 7
        %v2234 = vsub.s32 %v2231, %v2233
        %v2235 = vrot.slane %v2227, %v2234
        %v2237 = vunpack.c.l.s4 1934713408
        %v2238 = vunpack.c.0.s8 %v2237
        %v2239 = vlaneseq
        %v2240 = vshrl.u32 %v2239, 7
        %v2241 = vsub.s32 %v2238, %v2240
        %v2242 = vrot.slane %v2228, %v2241
        %v2243 = vcombine.low %v2210, %v2226
        %v2244 = vcombine.high %v2210, %v2226
        %v2246 = vunpack.c.l.s4 1934713408
        %v2247 = vunpack.c.0.s8 %v2246
        %v2248 = vlaneseq
        %v2249 = vshrl.u32 %v2248, 7
        %v2250 = vsub.s32 %v2247, %v2249
        %v2251 = vrot.slane %v2243, %v2250
        %v2253 = vunpack.c.l.s4 1934713408
        %v2254 = vunpack.c.0.s8 %v2253
        %v2255 = vlaneseq
        %v2256 = vshrl.u32 %v2255, 7
        %v2257 = vsub.s32 %v2254, %v2256
        %v2258 = vrot.slane %v2244, %v2257
        %v2259 = vcombine.high %v2235, 0.0
        %v2260 = vcombine.high %v2242, 0.0
        %v2261 = vcombine.high %v2251, 0.0
        %v2262 = vcombine.high %v2258, 0.0
        %v2263 = vcombine.low %v2167, %v2174
        %v2265 = vunpack.c.l.s4 1983009808
        %v2266 = vunpack.c.0.s8 %v2265
        %v2267 = vlaneseq
        %v2268 = vshrl.u32 %v2267, 7
        %v2269 = vsub.s32 %v2266, %v2268
        %v2270 = vrot.slane %v2263, %v2269
        %v2271 = vcombine.low %v2191, %v2192
        %v2273 = vunpack.c.l.s4 1983009808
        %v2274 = vunpack.c.0.s8 %v2273
        %v2275 = vlaneseq
        %v2276 = vshrl.u32 %v2275, 7
        %v2277 = vsub.s32 %v2274, %v2276
        %v2278 = vrot.slane %v2271, %v2277
        %v2279 = vcombine.low %v2183, %v2190
        %v2281 = vunpack.c.l.s4 1983009808
        %v2282 = vunpack.c.0.s8 %v2281
        %v2283 = vlaneseq
        %v2284 = vshrl.u32 %v2283, 7
        %v2285 = vsub.s32 %v2282, %v2284
        %v2286 = vrot.slane %v2279, %v2285
        %v2287 = vcombine.low %v2193, %v2194
        %v2289 = vunpack.c.l.s4 1983009808
        %v2290 = vunpack.c.0.s8 %v2289
        %v2291 = vlaneseq
        %v2292 = vshrl.u32 %v2291, 7
        %v2293 = vsub.s32 %v2290, %v2292
        %v2294 = vrot.slane %v2287, %v2293
        %v2295 = vcombine.low %v2270, %v2278
        %v2296 = vcombine.high %v2270, %v2278
        %v2298 = vunpack.c.l.s4 1934713408
        %v2299 = vunpack.c.0.s8 %v2298
        %v2300 = vlaneseq
        %v2301 = vshrl.u32 %v2300, 7
        %v2302 = vsub.s32 %v2299, %v2301
        %v2303 = vrot.slane %v2295, %v2302
        %v2305 = vunpack.c.l.s4 1934713408
        %v2306 = vunpack.c.0.s8 %v2305
        %v2307 = vlaneseq
        %v2308 = vshrl.u32 %v2307, 7
        %v2309 = vsub.s32 %v2306, %v2308
        %v2310 = vrot.slane %v2296, %v2309
        %v2311 = vcombine.low %v2286, %v2294
        %v2312 = vcombine.high %v2286, %v2294
        %v2314 = vunpack.c.l.s4 1934713408
        %v2315 = vunpack.c.0.s8 %v2314
        %v2316 = vlaneseq
        %v2317 = vshrl.u32 %v2316, 7
        %v2318 = vsub.s32 %v2315, %v2317
        %v2319 = vrot.slane %v2311, %v2318
        %v2321 = vunpack.c.l.s4 1934713408
        %v2322 = vunpack.c.0.s8 %v2321
        %v2323 = vlaneseq
        %v2324 = vshrl.u32 %v2323, 7
        %v2325 = vsub.s32 %v2322, %v2324
        %v2326 = vrot.slane %v2312, %v2325
        %v2327 = vcombine.low %v2303, %v2319
        %v2328 = vcombine.high %v2303, %v2319
        %v2329 = vcombine.low %v2310, %v2326
        %v2330 = vcombine.high %v2310, %v2326
        %v2331 = vcombine.low %v2235, %v2242
        %v2333 = vunpack.c.l.s4 1983009808
        %v2334 = vunpack.c.0.s8 %v2333
        %v2335 = vlaneseq
        %v2336 = vshrl.u32 %v2335, 7
        %v2337 = vsub.s32 %v2334, %v2336
        %v2338 = vrot.slane %v2331, %v2337
        %v2339 = vcombine.low %v2259, %v2260
        %v2341 = vunpack.c.l.s4 1983009808
        %v2342 = vunpack.c.0.s8 %v2341
        %v2343 = vlaneseq
        %v2344 = vshrl.u32 %v2343, 7
        %v2345 = vsub.s32 %v2342, %v2344
        %v2346 = vrot.slane %v2339, %v2345
        %v2347 = vcombine.low %v2251, %v2258
        %v2349 = vunpack.c.l.s4 1983009808
        %v2350 = vunpack.c.0.s8 %v2349
        %v2351 = vlaneseq
        %v2352 = vshrl.u32 %v2351, 7
        %v2353 = vsub.s32 %v2350, %v2352
        %v2354 = vrot.slane %v2347, %v2353
        %v2355 = vcombine.low %v2261, %v2262
        %v2357 = vunpack.c.l.s4 1983009808
        %v2358 = vunpack.c.0.s8 %v2357
        %v2359 = vlaneseq
        %v2360 = vshrl.u32 %v2359, 7
        %v2361 = vsub.s32 %v2358, %v2360
        %v2362 = vrot.slane %v2355, %v2361
        %v2363 = vcombine.low %v2338, %v2346
        %v2364 = vcombine.high %v2338, %v2346
        %v2366 = vunpack.c.l.s4 1934713408
        %v2367 = vunpack.c.0.s8 %v2366
        %v2368 = vlaneseq
        %v2369 = vshrl.u32 %v2368, 7
        %v2370 = vsub.s32 %v2367, %v2369
        %v2371 = vrot.slane %v2363, %v2370
        %v2373 = vunpack.c.l.s4 1934713408
        %v2374 = vunpack.c.0.s8 %v2373
        %v2375 = vlaneseq
        %v2376 = vshrl.u32 %v2375, 7
        %v2377 = vsub.s32 %v2374, %v2376
        %v2378 = vrot.slane %v2364, %v2377
        %v2379 = vcombine.low %v2354, %v2362
        %v2380 = vcombine.high %v2354, %v2362
        %v2382 = vunpack.c.l.s4 1934713408
        %v2383 = vunpack.c.0.s8 %v2382
        %v2384 = vlaneseq
        %v2385 = vshrl.u32 %v2384, 7
        %v2386 = vsub.s32 %v2383, %v2385
        %v2387 = vrot.slane %v2379, %v2386
        %v2389 = vunpack.c.l.s4 1934713408
        %v2390 = vunpack.c.0.s8 %v2389
        %v2391 = vlaneseq
        %v2392 = vshrl.u32 %v2391, 7
        %v2393 = vsub.s32 %v2390, %v2392
        %v2394 = vrot.slane %v2380, %v2393
        %v2395 = vcombine.low %v2371, %v2387
        %v2396 = vcombine.high %v2371, %v2387
        %v2397 = vcombine.low %v2378, %v2394
        %v2398 = vcombine.high %v2378, %v2394
        %2401 = vrot.lane.b32.xlu0 %v2328, 32
        %v2402 = vpop.permute.xlu0 %2401
        %2403 = vrot.lane.b32.xlu0 %v2396, 32
        %v2404 = vpop.permute.xlu0 %2403
        %2409 = vrot.lane.b32.xlu0 %v2329, 64
        %v2410 = vpop.permute.xlu0 %2409
        %2411 = vrot.lane.b32.xlu0 %v2397, 64
        %v2412 = vpop.permute.xlu0 %2411
        %2417 = vrot.lane.b32.xlu0 %v2330, 96
        %v2418 = vpop.permute.xlu0 %2417
        %2419 = vrot.lane.b32.xlu0 %v2398, 96
        %v2420 = vpop.permute.xlu0 %2419
        %v2423 = vsel %vm1669, %v2327, %v2402
        %v2424 = vsel %vm1669, %v2395, %v2404
        %vm2425 = vcmask 523264
        %v2426 = vsel %vm2425, %v2423, %v2410
        %v2427 = vsel %vm2425, %v2424, %v2412
        %vm2428 = vcmask 785408
        %v2429 = vsel %vm2428, %v2426, %v2418
        %v2430 = vsel %vm2428, %v2427, %v2420
        %v2431 = vpack.c.bf16 %v2430, %v2429
        %v2432 = vld [vmem:[#allocation8] sm:$0xf]
        %v2433 = vld [vmem:[#allocation8 + $0x4] sm:$0xf]
        %v2434 = vld [vmem:[#allocation8 + $0x8] sm:$0xf]
        %v2435 = vld [vmem:[#allocation8 + $0xc] sm:$0xf]
        %v2436 = vld [vmem:[#allocation8 + $0x10] sm:$0xf]
        %v2437 = vld [vmem:[#allocation8 + $0x14] sm:$0xf]
        %v2438 = vld [vmem:[#allocation8 + $0x18] sm:$0xf]
        %v2439 = vld [vmem:[#allocation8 + $0x1c] sm:$0xf]
        %v2440 = vld [vmem:[#allocation8 + $0x20] sm:$0xf]
        %v2441 = vld [vmem:[#allocation8 + $0x24] sm:$0xf]
        %v2442 = vld [vmem:[#allocation8 + $0x28] sm:$0xf]
        %v2443 = vld [vmem:[#allocation8 + $0x2c] sm:$0xf]
        %v2444 = vld [vmem:[#allocation8 + $0x30] sm:$0xf]
        %v2445 = vld [vmem:[#allocation8 + $0x34] sm:$0xf]
        %v2446 = vld [vmem:[#allocation8 + $0x38] sm:$0xf]
        %v2447 = vld [vmem:[#allocation8 + $0x3c] sm:$0xf]
        %v2448 = vld [vmem:[%s5] sm:$0x1]
        %v2450 = vlaneseq
        %v2451 = vshrl.u32 %v2450, 7
        %v2452 = vsub.s32 0, %v2451
        %v2453 = vrot.slane %v2448, %v2452
        %v2471 = vunpack.c.l.b16 %v2432
        %v2472 = vunpack.c.l.b16 %v2433
        %v2473 = vunpack.c.l.b16 %v2434
        %v2474 = vunpack.c.l.b16 %v2435
        %v2475 = vunpack.c.l.b16 %v2436
        %v2476 = vunpack.c.l.b16 %v2437
        %v2477 = vunpack.c.l.b16 %v2438
        %v2478 = vunpack.c.l.b16 %v2439
        %v2479 = vunpack.c.l.b16 %v2440
        %v2480 = vunpack.c.l.b16 %v2441
        %v2481 = vunpack.c.l.b16 %v2442
        %v2482 = vunpack.c.l.b16 %v2443
        %v2483 = vunpack.c.l.b16 %v2444
        %v2484 = vunpack.c.l.b16 %v2445
        %v2485 = vunpack.c.l.b16 %v2446
        %v2486 = vunpack.c.l.b16 %v2447
        %v2487 = vpack.c.b16 %v2472, %v2471
        %v2488 = vpack.c.b16 %v2474, %v2473
        %v2489 = vpack.c.b16 %v2476, %v2475
        %v2490 = vpack.c.b16 %v2478, %v2477
        %v2491 = vpack.c.b16 %v2480, %v2479
        %v2492 = vpack.c.b16 %v2482, %v2481
        %v2493 = vpack.c.b16 %v2484, %v2483
        %v2494 = vpack.c.b16 %v2486, %v2485
        %2503 = vmatprep.subr.bf16.mxu0 0
        %2504 = vmatpush1.bf16.msra.mxu0 %v2494
        %2505 = vmatprep.subr.bf16.mxu0 0
        %2506 = vmatpush1.bf16.msra.mxu0 %v2493
        %2507 = vmatprep.subr.bf16.mxu0 0
        %2508 = vmatpush1.bf16.msra.mxu0 %v2492
        %2509 = vmatprep.subr.bf16.mxu0 0
        %2510 = vmatpush1.bf16.msra.mxu0 %v2491
        %2511 = vmatprep.subr.bf16.mxu0 0
        %2512 = vmatpush1.bf16.msra.mxu0 %v2490
        %2513 = vmatprep.subr.bf16.mxu0 0
        %2514 = vmatpush1.bf16.msra.mxu0 %v2489
        %2515 = vmatprep.subr.bf16.mxu0 0
        %2516 = vmatpush1.bf16.msra.mxu0 %v2488
        %2517 = vmatprep.subr.bf16.mxu0 0
        %2518 = vmatpush1.bf16.msra.mxu0 %v2487
        %2519 = vmatprep.subr.bf16.mxu0 0
        %2520 = vmatpush2.bf16.msra.mxu0 0
        %2521 = vmatprep.subr.bf16.mxu0 0
        %2522 = vmatpush2.bf16.msra.mxu0 0
        %2523 = vmatprep.subr.bf16.mxu0 0
        %2524 = vmatpush2.bf16.msra.mxu0 0
        %2525 = vmatprep.subr.bf16.mxu0 0
        %2526 = vmatpush2.bf16.msra.mxu0 0
        %2527 = vmatprep.subr.bf16.mxu0 0
        %2528 = vmatpush2.bf16.msra.mxu0 0
        %2529 = vmatprep.subr.bf16.mxu0 0
        %2530 = vmatpush2.bf16.msra.mxu0 0
        %2531 = vmatprep.subr.bf16.mxu0 0
        %2532 = vmatpush2.bf16.msra.mxu0 0
        %2533 = vmatprep.subr.bf16.mxu0 0
        %2534 = vmatpush2.bf16.msra.mxu0 0
        %2535 = vmatprep.mubr.bf16.mxu0 0
        %2536 = vmatmul.mubr.bf16.gmra.mxu0 %v2431
        %v2537 = vpop.f32.mrf.mxu0
        %v2538 = vadd.f32 %v2453, %v2537
        %v2539 = vpop.f32.mrf.mxu0
        %v2540 = vpop.f32.mrf.mxu0
        %v2541 = vadd.f32 %v2453, %v2540
        %v2542 = vpop.f32.mrf.mxu0
        %2543 = vdwg.mxu0
        %v2544 = vadd.f32 %v2538, %v585
        %v2545 = vadd.f32 %v2541, %v586
        %v2546 = vld [vmem:[%s6] sm:$0x1]
        %v2547 = vld [vmem:[%s7] sm:$0x1]
        %2548 = vadd.xlane.f32.xlu0 %v2544
        %v2549 = vpop.xlane.xlu0 %2548
        %2550 = vadd.xlane.f32.xlu0 %v2545
        %v2551 = vpop.xlane.xlu0 %2550
        %v2552 = vrcp.pop 128.0
        %v2553 = vmul.f32 %v2549, %v2552
        %v2554 = vmul.f32 %v2551, %v2552
        %v2555 = vsub.f32 %v2544, %v2553
        %v2556 = vsub.f32 %v2545, %v2554
        %v2557 = vmul.f32 %v2555, %v2555
        %v2558 = vmul.f32 %v2556, %v2556
        %2559 = vadd.xlane.f32.xlu0 %v2557
        %v2560 = vpop.xlane.xlu0 %2559
        %2561 = vadd.xlane.f32.xlu0 %v2558
        %v2562 = vpop.xlane.xlu0 %2561
        %v2563 = vmul.f32 %v2560, %v2552
        %v2564 = vmul.f32 %v2562, %v2552
        %v2565 = vadd.f32 %v2563, 1e-05
        %v2566 = vadd.f32 %v2564, 1e-05
        %v2567 = vrsqrt.pop %v2565
        %v2568 = vrsqrt.pop %v2566
        %v2569 = vmul.f32 %v2555, %v2567
        %v2570 = vmul.f32 %v2556, %v2568
        %v2572 = vlaneseq
        %v2573 = vshrl.u32 %v2572, 7
        %v2574 = vsub.s32 0, %v2573
        %v2575 = vrot.slane %v2546, %v2574
        %v2577 = vmul.f32 %v2569, %v2575
        %v2578 = vmul.f32 %v2570, %v2575
        %v2580 = vlaneseq
        %v2581 = vshrl.u32 %v2580, 7
        %v2582 = vsub.s32 0, %v2581
        %v2583 = vrot.slane %v2547, %v2582
        %v2585 = vadd.f32 %v2577, %v2583
        %v2586 = vadd.f32 %v2578, %v2583
        %v2587 = vpack.c.bf16 %v2586, %v2585
        %v2588 = vld [vmem:[#allocation10] sm:$0xff]
        %v2589 = vld [vmem:[#allocation10 + $0x8] sm:$0xff]
        %v2590 = vld [vmem:[#allocation10 + $0x10] sm:$0xff]
        %v2591 = vld [vmem:[#allocation10 + $0x18] sm:$0xff]
        %v2592 = vld [vmem:[#allocation10 + $0x20] sm:$0xff]
        %v2593 = vld [vmem:[#allocation10 + $0x28] sm:$0xff]
        %v2594 = vld [vmem:[#allocation10 + $0x30] sm:$0xff]
        %v2595 = vld [vmem:[#allocation10 + $0x38] sm:$0xff]
        %v2596 = vld [vmem:[#allocation10 + $0x40] sm:$0xff]
        %v2597 = vld [vmem:[#allocation10 + $0x48] sm:$0xff]
        %v2598 = vld [vmem:[#allocation10 + $0x50] sm:$0xff]
        %v2599 = vld [vmem:[#allocation10 + $0x58] sm:$0xff]
        %v2600 = vld [vmem:[#allocation10 + $0x60] sm:$0xff]
        %v2601 = vld [vmem:[#allocation10 + $0x68] sm:$0xff]
        %v2602 = vld [vmem:[#allocation10 + $0x70] sm:$0xff]
        %v2603 = vld [vmem:[#allocation10 + $0x78] sm:$0xff]
        %v2604 = vld [vmem:[#allocation10 + $0x80] sm:$0xff]
        %v2605 = vld [vmem:[#allocation10 + $0x88] sm:$0xff]
        %v2606 = vld [vmem:[#allocation10 + $0x90] sm:$0xff]
        %v2607 = vld [vmem:[#allocation10 + $0x98] sm:$0xff]
        %v2608 = vld [vmem:[#allocation10 + $0xa0] sm:$0xff]
        %v2609 = vld [vmem:[#allocation10 + $0xa8] sm:$0xff]
        %v2610 = vld [vmem:[#allocation10 + $0xb0] sm:$0xff]
        %v2611 = vld [vmem:[#allocation10 + $0xb8] sm:$0xff]
        %v2612 = vld [vmem:[#allocation10 + $0xc0] sm:$0xff]
        %v2613 = vld [vmem:[#allocation10 + $0xc8] sm:$0xff]
        %v2614 = vld [vmem:[#allocation10 + $0xd0] sm:$0xff]
        %v2615 = vld [vmem:[#allocation10 + $0xd8] sm:$0xff]
        %v2616 = vld [vmem:[#allocation10 + $0xe0] sm:$0xff]
        %v2617 = vld [vmem:[#allocation10 + $0xe8] sm:$0xff]
        %v2618 = vld [vmem:[#allocation10 + $0xf0] sm:$0xff]
        %v2619 = vld [vmem:[#allocation10 + $0xf8] sm:$0xff]
        %v2620 = vld [vmem:[%s9] sm:$0xf]
        %v2622 = vlaneseq
        %v2623 = vshrl.u32 %v2622, 7
        %v2624 = vsub.s32 0, %v2623
        %v2625 = vrot.slane %v2620, %v2624
        %v2626 = vlaneseq
        %v2627 = vshrl.u32 %v2626, 7
        %v2628 = vsub.s32 1, %v2627
        %v2629 = vrot.slane %v2620, %v2628
        %v2630 = vlaneseq
        %v2631 = vshrl.u32 %v2630, 7
        %v2632 = vsub.s32 2, %v2631
        %v2633 = vrot.slane %v2620, %v2632
        %v2634 = vlaneseq
        %v2635 = vshrl.u32 %v2634, 7
        %v2636 = vsub.s32 3, %v2635
        %v2637 = vrot.slane %v2620, %v2636
        %v2674 = vunpack.c.l.b16 %v2588
        %v2675 = vunpack.c.h.b16 %v2588
        %v2676 = vunpack.c.l.b16 %v2589
        %v2677 = vunpack.c.h.b16 %v2589
        %v2678 = vunpack.c.l.b16 %v2590
        %v2679 = vunpack.c.h.b16 %v2590
        %v2680 = vunpack.c.l.b16 %v2591
        %v2681 = vunpack.c.h.b16 %v2591
        %v2682 = vunpack.c.l.b16 %v2592
        %v2683 = vunpack.c.h.b16 %v2592
        %v2684 = vunpack.c.l.b16 %v2593
        %v2685 = vunpack.c.h.b16 %v2593
        %v2686 = vunpack.c.l.b16 %v2594
        %v2687 = vunpack.c.h.b16 %v2594
        %v2688 = vunpack.c.l.b16 %v2595
        %v2689 = vunpack.c.h.b16 %v2595
        %v2690 = vunpack.c.l.b16 %v2596
        %v2691 = vunpack.c.h.b16 %v2596
        %v2692 = vunpack.c.l.b16 %v2597
        %v2693 = vunpack.c.h.b16 %v2597
        %v2694 = vunpack.c.l.b16 %v2598
        %v2695 = vunpack.c.h.b16 %v2598
        %v2696 = vunpack.c.l.b16 %v2599
        %v2697 = vunpack.c.h.b16 %v2599
        %v2698 = vunpack.c.l.b16 %v2600
        %v2699 = vunpack.c.h.b16 %v2600
        %v2700 = vunpack.c.l.b16 %v2601
        %v2701 = vunpack.c.h.b16 %v2601
        %v2702 = vunpack.c.l.b16 %v2602
        %v2703 = vunpack.c.h.b16 %v2602
        %v2704 = vunpack.c.l.b16 %v2603
        %v2705 = vunpack.c.h.b16 %v2603
        %v2706 = vunpack.c.l.b16 %v2604
        %v2707 = vunpack.c.h.b16 %v2604
        %v2708 = vunpack.c.l.b16 %v2605
        %v2709 = vunpack.c.h.b16 %v2605
        %v2710 = vunpack.c.l.b16 %v2606
        %v2711 = vunpack.c.h.b16 %v2606
        %v2712 = vunpack.c.l.b16 %v2607
        %v2713 = vunpack.c.h.b16 %v2607
        %v2714 = vunpack.c.l.b16 %v2608
        %v2715 = vunpack.c.h.b16 %v2608
        %v2716 = vunpack.c.l.b16 %v2609
        %v2717 = vunpack.c.h.b16 %v2609
        %v2718 = vunpack.c.l.b16 %v2610
        %v2719 = vunpack.c.h.b16 %v2610
        %v2720 = vunpack.c.l.b16 %v2611
        %v2721 = vunpack.c.h.b16 %v2611
        %v2722 = vunpack.c.l.b16 %v2612
        %v2723 = vunpack.c.h.b16 %v2612
        %v2724 = vunpack.c.l.b16 %v2613
        %v2725 = vunpack.c.h.b16 %v2613
        %v2726 = vunpack.c.l.b16 %v2614
        %v2727 = vunpack.c.h.b16 %v2614
        %v2728 = vunpack.c.l.b16 %v2615
        %v2729 = vunpack.c.h.b16 %v2615
        %v2730 = vunpack.c.l.b16 %v2616
        %v2731 = vunpack.c.h.b16 %v2616
        %v2732 = vunpack.c.l.b16 %v2617
        %v2733 = vunpack.c.h.b16 %v2617
        %v2734 = vunpack.c.l.b16 %v2618
        %v2735 = vunpack.c.h.b16 %v2618
        %v2736 = vunpack.c.l.b16 %v2619
        %v2737 = vunpack.c.h.b16 %v2619
        %v2738 = vpack.c.b16 %v2678, %v2674
        %v2739 = vpack.c.b16 %v2679, %v2675
        %v2740 = vpack.c.b16 %v2680, %v2676
        %v2741 = vpack.c.b16 %v2681, %v2677
        %v2742 = vpack.c.b16 %v2686, %v2682
        %v2743 = vpack.c.b16 %v2687, %v2683
        %v2744 = vpack.c.b16 %v2688, %v2684
        %v2745 = vpack.c.b16 %v2689, %v2685
        %v2746 = vpack.c.b16 %v2694, %v2690
        %v2747 = vpack.c.b16 %v2695, %v2691
        %v2748 = vpack.c.b16 %v2696, %v2692
        %v2749 = vpack.c.b16 %v2697, %v2693
        %v2750 = vpack.c.b16 %v2702, %v2698
        %v2751 = vpack.c.b16 %v2703, %v2699
        %v2752 = vpack.c.b16 %v2704, %v2700
        %v2753 = vpack.c.b16 %v2705, %v2701
        %v2754 = vpack.c.b16 %v2710, %v2706
        %v2755 = vpack.c.b16 %v2711, %v2707
        %v2756 = vpack.c.b16 %v2712, %v2708
        %v2757 = vpack.c.b16 %v2713, %v2709
        %v2758 = vpack.c.b16 %v2718, %v2714
        %v2759 = vpack.c.b16 %v2719, %v2715
        %v2760 = vpack.c.b16 %v2720, %v2716
        %v2761 = vpack.c.b16 %v2721, %v2717
        %v2762 = vpack.c.b16 %v2726, %v2722
        %v2763 = vpack.c.b16 %v2727, %v2723
        %v2764 = vpack.c.b16 %v2728, %v2724
        %v2765 = vpack.c.b16 %v2729, %v2725
        %v2766 = vpack.c.b16 %v2734, %v2730
        %v2767 = vpack.c.b16 %v2735, %v2731
        %v2768 = vpack.c.b16 %v2736, %v2732
        %v2769 = vpack.c.b16 %v2737, %v2733
        %2802 = vmatprep.subr.bf16.mxu0 %v2767
        %2803 = vmatpush1.bf16.msra.mxu0 %v2766
        %2804 = vmatprep.subr.bf16.mxu0 %v2763
        %2805 = vmatpush1.bf16.msra.mxu0 %v2762
        %2806 = vmatprep.subr.bf16.mxu0 %v2759
        %2807 = vmatpush1.bf16.msra.mxu0 %v2758
        %2808 = vmatprep.subr.bf16.mxu0 %v2755
        %2809 = vmatpush1.bf16.msra.mxu0 %v2754
        %2810 = vmatprep.subr.bf16.mxu0 %v2751
        %2811 = vmatpush1.bf16.msra.mxu0 %v2750
        %2812 = vmatprep.subr.bf16.mxu0 %v2747
        %2813 = vmatpush1.bf16.msra.mxu0 %v2746
        %2814 = vmatprep.subr.bf16.mxu0 %v2743
        %2815 = vmatpush1.bf16.msra.mxu0 %v2742
        %2816 = vmatprep.subr.bf16.mxu0 %v2739
        %2817 = vmatpush1.bf16.msra.mxu0 %v2738
        %2818 = vmatprep.subr.bf16.mxu0 0
        %2819 = vmatpush2.bf16.msra.mxu0 0
        %2820 = vmatprep.subr.bf16.mxu0 0
        %2821 = vmatpush2.bf16.msra.mxu0 0
        %2822 = vmatprep.subr.bf16.mxu0 0
        %2823 = vmatpush2.bf16.msra.mxu0 0
        %2824 = vmatprep.subr.bf16.mxu0 0
        %2825 = vmatpush2.bf16.msra.mxu0 0
        %2826 = vmatprep.subr.bf16.mxu0 0
        %2827 = vmatpush2.bf16.msra.mxu0 0
        %2828 = vmatprep.subr.bf16.mxu0 0
        %2829 = vmatpush2.bf16.msra.mxu0 0
        %2830 = vmatprep.subr.bf16.mxu0 0
        %2831 = vmatpush2.bf16.msra.mxu0 0
        %2832 = vmatprep.subr.bf16.mxu0 0
        %2833 = vmatpush2.bf16.msra.mxu0 0
        %2834 = vmatprep.mubr.bf16.mxu0 0
        %2835 = vmatmul.mubr.bf16.gmra.mxu0 %v2587
        %v2836 = vpop.f32.mrf.mxu0
        %v2837 = vadd.f32 %v2625, %v2836
        %v2838 = vpop.f32.mrf.mxu0
        %v2839 = vadd.f32 %v2629, %v2838
        %v2840 = vpop.f32.mrf.mxu0
        %v2841 = vadd.f32 %v2625, %v2840
        %v2842 = vpop.f32.mrf.mxu0
        %v2843 = vadd.f32 %v2629, %v2842
        %2844 = vdwg.mxu0
        %2845 = vmatprep.subr.bf16.mxu0 %v2769
        %2846 = vmatpush1.bf16.msra.mxu0 %v2768
        %2847 = vmatprep.subr.bf16.mxu0 %v2765
        %2848 = vmatpush1.bf16.msra.mxu0 %v2764
        %2849 = vmatprep.subr.bf16.mxu0 %v2761
        %2850 = vmatpush1.bf16.msra.mxu0 %v2760
        %2851 = vmatprep.subr.bf16.mxu0 %v2757
        %2852 = vmatpush1.bf16.msra.mxu0 %v2756
        %2853 = vmatprep.subr.bf16.mxu0 %v2753
        %2854 = vmatpush1.bf16.msra.mxu0 %v2752
        %2855 = vmatprep.subr.bf16.mxu0 %v2749
        %2856 = vmatpush1.bf16.msra.mxu0 %v2748
        %2857 = vmatprep.subr.bf16.mxu0 %v2745
        %2858 = vmatpush1.bf16.msra.mxu0 %v2744
        %2859 = vmatprep.subr.bf16.mxu0 %v2741
        %2860 = vmatpush1.bf16.msra.mxu0 %v2740
        %2861 = vmatprep.subr.bf16.mxu0 0
        %2862 = vmatpush2.bf16.msra.mxu0 0
        %2863 = vmatprep.subr.bf16.mxu0 0
        %2864 = vmatpush2.bf16.msra.mxu0 0
        %2865 = vmatprep.subr.bf16.mxu0 0
        %2866 = vmatpush2.bf16.msra.mxu0 0
        %2867 = vmatprep.subr.bf16.mxu0 0
        %2868 = vmatpush2.bf16.msra.mxu0 0
        %2869 = vmatprep.subr.bf16.mxu0 0
        %2870 = vmatpush2.bf16.msra.mxu0 0
        %2871 = vmatprep.subr.bf16.mxu0 0
        %2872 = vmatpush2.bf16.msra.mxu0 0
        %2873 = vmatprep.subr.bf16.mxu0 0
        %2874 = vmatpush2.bf16.msra.mxu0 0
        %2875 = vmatprep.subr.bf16.mxu0 0
        %2876 = vmatpush2.bf16.msra.mxu0 0
        %2877 = vmatprep.mubr.bf16.mxu0 0
        %2878 = vmatmul.mubr.bf16.gmra.mxu0 %v2587
        %v2879 = vpop.f32.mrf.mxu0
        %v2880 = vadd.f32 %v2633, %v2879
        %v2881 = vpop.f32.mrf.mxu0
        %v2882 = vadd.f32 %v2637, %v2881
        %v2883 = vpop.f32.mrf.mxu0
        %v2884 = vadd.f32 %v2633, %v2883
        %v2885 = vpop.f32.mrf.mxu0
        %v2886 = vadd.f32 %v2637, %v2885
        %2887 = vdwg.mxu0
        %v2888 = vmax.f32 %v2837, 0.0
        %v2889 = vmax.f32 %v2839, 0.0
        %v2890 = vmax.f32 %v2880, 0.0
        %v2891 = vmax.f32 %v2882, 0.0
        %v2892 = vmax.f32 %v2841, 0.0
        %v2893 = vmax.f32 %v2843, 0.0
        %v2894 = vmax.f32 %v2884, 0.0
        %v2895 = vmax.f32 %v2886, 0.0
        %v2896 = vpack.c.bf16 %v2892, %v2888
        %v2897 = vpack.c.bf16 %v2893, %v2889
        %v2898 = vpack.c.bf16 %v2894, %v2890
        %v2899 = vpack.c.bf16 %v2895, %v2891
        %v2900 = vld [vmem:[#allocation11] sm:$0xf]
        %v2901 = vld [vmem:[#allocation11 + $0x4] sm:$0xf]
        %v2902 = vld [vmem:[#allocation11 + $0x8] sm:$0xf]
        %v2903 = vld [vmem:[#allocation11 + $0xc] sm:$0xf]
        %v2904 = vld [vmem:[#allocation11 + $0x10] sm:$0xf]
        %v2905 = vld [vmem:[#allocation11 + $0x14] sm:$0xf]
        %v2906 = vld [vmem:[#allocation11 + $0x18] sm:$0xf]
        %v2907 = vld [vmem:[#allocation11 + $0x1c] sm:$0xf]
        %v2908 = vld [vmem:[#allocation11 + $0x20] sm:$0xf]
        %v2909 = vld [vmem:[#allocation11 + $0x24] sm:$0xf]
        %v2910 = vld [vmem:[#allocation11 + $0x28] sm:$0xf]
        %v2911 = vld [vmem:[#allocation11 + $0x2c] sm:$0xf]
        %v2912 = vld [vmem:[#allocation11 + $0x30] sm:$0xf]
        %v2913 = vld [vmem:[#allocation11 + $0x34] sm:$0xf]
        %v2914 = vld [vmem:[#allocation11 + $0x38] sm:$0xf]
        %v2915 = vld [vmem:[#allocation11 + $0x3c] sm:$0xf]
        %v2916 = vld [vmem:[#allocation11 + $0x40] sm:$0xf]
        %v2917 = vld [vmem:[#allocation11 + $0x44] sm:$0xf]
        %v2918 = vld [vmem:[#allocation11 + $0x48] sm:$0xf]
        %v2919 = vld [vmem:[#allocation11 + $0x4c] sm:$0xf]
        %v2920 = vld [vmem:[#allocation11 + $0x50] sm:$0xf]
        %v2921 = vld [vmem:[#allocation11 + $0x54] sm:$0xf]
        %v2922 = vld [vmem:[#allocation11 + $0x58] sm:$0xf]
        %v2923 = vld [vmem:[#allocation11 + $0x5c] sm:$0xf]
        %v2924 = vld [vmem:[#allocation11 + $0x60] sm:$0xf]
        %v2925 = vld [vmem:[#allocation11 + $0x64] sm:$0xf]
        %v2926 = vld [vmem:[#allocation11 + $0x68] sm:$0xf]
        %v2927 = vld [vmem:[#allocation11 + $0x6c] sm:$0xf]
        %v2928 = vld [vmem:[#allocation11 + $0x70] sm:$0xf]
        %v2929 = vld [vmem:[#allocation11 + $0x74] sm:$0xf]
        %v2930 = vld [vmem:[#allocation11 + $0x78] sm:$0xf]
        %v2931 = vld [vmem:[#allocation11 + $0x7c] sm:$0xf]
        %v2932 = vld [vmem:[#allocation11 + $0x80] sm:$0xf]
        %v2933 = vld [vmem:[#allocation11 + $0x84] sm:$0xf]
        %v2934 = vld [vmem:[#allocation11 + $0x88] sm:$0xf]
        %v2935 = vld [vmem:[#allocation11 + $0x8c] sm:$0xf]
        %v2936 = vld [vmem:[#allocation11 + $0x90] sm:$0xf]
        %v2937 = vld [vmem:[#allocation11 + $0x94] sm:$0xf]
        %v2938 = vld [vmem:[#allocation11 + $0x98] sm:$0xf]
        %v2939 = vld [vmem:[#allocation11 + $0x9c] sm:$0xf]
        %v2940 = vld [vmem:[#allocation11 + $0xa0] sm:$0xf]
        %v2941 = vld [vmem:[#allocation11 + $0xa4] sm:$0xf]
        %v2942 = vld [vmem:[#allocation11 + $0xa8] sm:$0xf]
        %v2943 = vld [vmem:[#allocation11 + $0xac] sm:$0xf]
        %v2944 = vld [vmem:[#allocation11 + $0xb0] sm:$0xf]
        %v2945 = vld [vmem:[#allocation11 + $0xb4] sm:$0xf]
        %v2946 = vld [vmem:[#allocation11 + $0xb8] sm:$0xf]
        %v2947 = vld [vmem:[#allocation11 + $0xbc] sm:$0xf]
        %v2948 = vld [vmem:[#allocation11 + $0xc0] sm:$0xf]
        %v2949 = vld [vmem:[#allocation11 + $0xc4] sm:$0xf]
        %v2950 = vld [vmem:[#allocation11 + $0xc8] sm:$0xf]
        %v2951 = vld [vmem:[#allocation11 + $0xcc] sm:$0xf]
        %v2952 = vld [vmem:[#allocation11 + $0xd0] sm:$0xf]
        %v2953 = vld [vmem:[#allocation11 + $0xd4] sm:$0xf]
        %v2954 = vld [vmem:[#allocation11 + $0xd8] sm:$0xf]
        %v2955 = vld [vmem:[#allocation11 + $0xdc] sm:$0xf]
        %v2956 = vld [vmem:[#allocation11 + $0xe0] sm:$0xf]
        %v2957 = vld [vmem:[#allocation11 + $0xe4] sm:$0xf]
        %v2958 = vld [vmem:[#allocation11 + $0xe8] sm:$0xf]
        %v2959 = vld [vmem:[#allocation11 + $0xec] sm:$0xf]
        %v2960 = vld [vmem:[#allocation11 + $0xf0] sm:$0xf]
        %v2961 = vld [vmem:[#allocation11 + $0xf4] sm:$0xf]
        %v2962 = vld [vmem:[#allocation11 + $0xf8] sm:$0xf]
        %v2963 = vld [vmem:[#allocation11 + $0xfc] sm:$0xf]
        %v2964 = vld [vmem:[%s11] sm:$0x1]
        %v2966 = vlaneseq
        %v2967 = vshrl.u32 %v2966, 7
        %v2968 = vsub.s32 0, %v2967
        %v2969 = vrot.slane %v2964, %v2968
        %v3035 = vunpack.c.l.b16 %v2900
        %v3036 = vunpack.c.l.b16 %v2901
        %v3037 = vunpack.c.l.b16 %v2902
        %v3038 = vunpack.c.l.b16 %v2903
        %v3039 = vunpack.c.l.b16 %v2904
        %v3040 = vunpack.c.l.b16 %v2905
        %v3041 = vunpack.c.l.b16 %v2906
        %v3042 = vunpack.c.l.b16 %v2907
        %v3043 = vunpack.c.l.b16 %v2908
        %v3044 = vunpack.c.l.b16 %v2909
        %v3045 = vunpack.c.l.b16 %v2910
        %v3046 = vunpack.c.l.b16 %v2911
        %v3047 = vunpack.c.l.b16 %v2912
        %v3048 = vunpack.c.l.b16 %v2913
        %v3049 = vunpack.c.l.b16 %v2914
        %v3050 = vunpack.c.l.b16 %v2915
        %v3051 = vunpack.c.l.b16 %v2916
        %v3052 = vunpack.c.l.b16 %v2917
        %v3053 = vunpack.c.l.b16 %v2918
        %v3054 = vunpack.c.l.b16 %v2919
        %v3055 = vunpack.c.l.b16 %v2920
        %v3056 = vunpack.c.l.b16 %v2921
        %v3057 = vunpack.c.l.b16 %v2922
        %v3058 = vunpack.c.l.b16 %v2923
        %v3059 = vunpack.c.l.b16 %v2924
        %v3060 = vunpack.c.l.b16 %v2925
        %v3061 = vunpack.c.l.b16 %v2926
        %v3062 = vunpack.c.l.b16 %v2927
        %v3063 = vunpack.c.l.b16 %v2928
        %v3064 = vunpack.c.l.b16 %v2929
        %v3065 = vunpack.c.l.b16 %v2930
        %v3066 = vunpack.c.l.b16 %v2931
        %v3067 = vunpack.c.l.b16 %v2932
        %v3068 = vunpack.c.l.b16 %v2933
        %v3069 = vunpack.c.l.b16 %v2934
        %v3070 = vunpack.c.l.b16 %v2935
        %v3071 = vunpack.c.l.b16 %v2936
        %v3072 = vunpack.c.l.b16 %v2937
        %v3073 = vunpack.c.l.b16 %v2938
        %v3074 = vunpack.c.l.b16 %v2939
        %v3075 = vunpack.c.l.b16 %v2940
        %v3076 = vunpack.c.l.b16 %v2941
        %v3077 = vunpack.c.l.b16 %v2942
        %v3078 = vunpack.c.l.b16 %v2943
        %v3079 = vunpack.c.l.b16 %v2944
        %v3080 = vunpack.c.l.b16 %v2945
        %v3081 = vunpack.c.l.b16 %v2946
        %v3082 = vunpack.c.l.b16 %v2947
        %v3083 = vunpack.c.l.b16 %v2948
        %v3084 = vunpack.c.l.b16 %v2949
        %v3085 = vunpack.c.l.b16 %v2950
        %v3086 = vunpack.c.l.b16 %v2951
        %v3087 = vunpack.c.l.b16 %v2952
        %v3088 = vunpack.c.l.b16 %v2953
        %v3089 = vunpack.c.l.b16 %v2954
        %v3090 = vunpack.c.l.b16 %v2955
        %v3091 = vunpack.c.l.b16 %v2956
        %v3092 = vunpack.c.l.b16 %v2957
        %v3093 = vunpack.c.l.b16 %v2958
        %v3094 = vunpack.c.l.b16 %v2959
        %v3095 = vunpack.c.l.b16 %v2960
        %v3096 = vunpack.c.l.b16 %v2961
        %v3097 = vunpack.c.l.b16 %v2962
        %v3098 = vunpack.c.l.b16 %v2963
        %v3099 = vpack.c.b16 %v3036, %v3035
        %v3100 = vpack.c.b16 %v3038, %v3037
        %v3101 = vpack.c.b16 %v3040, %v3039
        %v3102 = vpack.c.b16 %v3042, %v3041
        %v3103 = vpack.c.b16 %v3044, %v3043
        %v3104 = vpack.c.b16 %v3046, %v3045
        %v3105 = vpack.c.b16 %v3048, %v3047
        %v3106 = vpack.c.b16 %v3050, %v3049
        %v3107 = vpack.c.b16 %v3052, %v3051
        %v3108 = vpack.c.b16 %v3054, %v3053
        %v3109 = vpack.c.b16 %v3056, %v3055
        %v3110 = vpack.c.b16 %v3058, %v3057
        %v3111 = vpack.c.b16 %v3060, %v3059
        %v3112 = vpack.c.b16 %v3062, %v3061
        %v3113 = vpack.c.b16 %v3064, %v3063
        %v3114 = vpack.c.b16 %v3066, %v3065
        %v3115 = vpack.c.b16 %v3068, %v3067
        %v3116 = vpack.c.b16 %v3070, %v3069
        %v3117 = vpack.c.b16 %v3072, %v3071
        %v3118 = vpack.c.b16 %v3074, %v3073
        %v3119 = vpack.c.b16 %v3076, %v3075
        %v3120 = vpack.c.b16 %v3078, %v3077
        %v3121 = vpack.c.b16 %v3080, %v3079
        %v3122 = vpack.c.b16 %v3082, %v3081
        %v3123 = vpack.c.b16 %v3084, %v3083
        %v3124 = vpack.c.b16 %v3086, %v3085
        %v3125 = vpack.c.b16 %v3088, %v3087
        %v3126 = vpack.c.b16 %v3090, %v3089
        %v3127 = vpack.c.b16 %v3092, %v3091
        %v3128 = vpack.c.b16 %v3094, %v3093
        %v3129 = vpack.c.b16 %v3096, %v3095
        %v3130 = vpack.c.b16 %v3098, %v3097
        %3163 = vmatprep.subr.bf16.mxu0 0
        %3164 = vmatpush1.bf16.msra.mxu0 %v3106
        %3165 = vmatprep.subr.bf16.mxu0 0
        %3166 = vmatpush1.bf16.msra.mxu0 %v3105
        %3167 = vmatprep.subr.bf16.mxu0 0
        %3168 = vmatpush1.bf16.msra.mxu0 %v3104
        %3169 = vmatprep.subr.bf16.mxu0 0
        %3170 = vmatpush1.bf16.msra.mxu0 %v3103
        %3171 = vmatprep.subr.bf16.mxu0 0
        %3172 = vmatpush1.bf16.msra.mxu0 %v3102
        %3173 = vmatprep.subr.bf16.mxu0 0
        %3174 = vmatpush1.bf16.msra.mxu0 %v3101
        %3175 = vmatprep.subr.bf16.mxu0 0
        %3176 = vmatpush1.bf16.msra.mxu0 %v3100
        %3177 = vmatprep.subr.bf16.mxu0 0
        %3178 = vmatpush1.bf16.msra.mxu0 %v3099
        %3179 = vmatprep.subr.bf16.mxu0 0
        %3180 = vmatpush2.bf16.msra.mxu0 %v3114
        %3181 = vmatprep.subr.bf16.mxu0 0
        %3182 = vmatpush2.bf16.msra.mxu0 %v3113
        %3183 = vmatprep.subr.bf16.mxu0 0
        %3184 = vmatpush2.bf16.msra.mxu0 %v3112
        %3185 = vmatprep.subr.bf16.mxu0 0
        %3186 = vmatpush2.bf16.msra.mxu0 %v3111
        %3187 = vmatprep.subr.bf16.mxu0 0
        %3188 = vmatpush2.bf16.msra.mxu0 %v3110
        %3189 = vmatprep.subr.bf16.mxu0 0
        %3190 = vmatpush2.bf16.msra.mxu0 %v3109
        %3191 = vmatprep.subr.bf16.mxu0 0
        %3192 = vmatpush2.bf16.msra.mxu0 %v3108
        %3193 = vmatprep.subr.bf16.mxu0 0
        %3194 = vmatpush2.bf16.msra.mxu0 %v3107
        %3195 = vmatprep.mubr.bf16.mxu0 %v2897
        %3196 = vmatmul.mubr.bf16.gmra.mxu0 %v2896
        %v3197 = vpop.f32.mrf.mxu0
        %v3198 = vadd.f32 %v2969, %v3197
        %v3199 = vpop.f32.mrf.mxu0
        %v3200 = vpop.f32.mrf.mxu0
        %v3201 = vadd.f32 %v2969, %v3200
        %v3202 = vpop.f32.mrf.mxu0
        %3203 = vdwg.mxu0
        %3204 = vmatprep.subr.bf16.mxu0 0
        %3205 = vmatpush1.bf16.msra.mxu0 %v3122
        %3206 = vmatprep.subr.bf16.mxu0 0
        %3207 = vmatpush1.bf16.msra.mxu0 %v3121
        %3208 = vmatprep.subr.bf16.mxu0 0
        %3209 = vmatpush1.bf16.msra.mxu0 %v3120
        %3210 = vmatprep.subr.bf16.mxu0 0
        %3211 = vmatpush1.bf16.msra.mxu0 %v3119
        %3212 = vmatprep.subr.bf16.mxu0 0
        %3213 = vmatpush1.bf16.msra.mxu0 %v3118
        %3214 = vmatprep.subr.bf16.mxu0 0
        %3215 = vmatpush1.bf16.msra.mxu0 %v3117
        %3216 = vmatprep.subr.bf16.mxu0 0
        %3217 = vmatpush1.bf16.msra.mxu0 %v3116
        %3218 = vmatprep.subr.bf16.mxu0 0
        %3219 = vmatpush1.bf16.msra.mxu0 %v3115
        %3220 = vmatprep.subr.bf16.mxu0 0
        %3221 = vmatpush2.bf16.msra.mxu0 %v3130
        %3222 = vmatprep.subr.bf16.mxu0 0
        %3223 = vmatpush2.bf16.msra.mxu0 %v3129
        %3224 = vmatprep.subr.bf16.mxu0 0
        %3225 = vmatpush2.bf16.msra.mxu0 %v3128
        %3226 = vmatprep.subr.bf16.mxu0 0
        %3227 = vmatpush2.bf16.msra.mxu0 %v3127
        %3228 = vmatprep.subr.bf16.mxu0 0
        %3229 = vmatpush2.bf16.msra.mxu0 %v3126
        %3230 = vmatprep.subr.bf16.mxu0 0
        %3231 = vmatpush2.bf16.msra.mxu0 %v3125
        %3232 = vmatprep.subr.bf16.mxu0 0
        %3233 = vmatpush2.bf16.msra.mxu0 %v3124
        %3234 = vmatprep.subr.bf16.mxu0 0
        %3235 = vmatpush2.bf16.msra.mxu0 %v3123
        %3236 = vmatprep.mubr.bf16.mxu0 %v2899
        %3237 = vmatmul.mubr.bf16.gmra.mxu0 %v2898
        %v3238 = vpop.f32.mrf.mxu0
        %v3239 = vadd.f32 %v3198, %v3238
        %v3240 = vpop.f32.mrf.mxu0
        %v3241 = vpop.f32.mrf.mxu0
        %v3242 = vadd.f32 %v3201, %v3241
        %v3243 = vpop.f32.mrf.mxu0
        %3244 = vdwg.mxu0
        %v3245 = vadd.f32 %v3239, %v2585
        %v3246 = vadd.f32 %v3242, %v2586
        %v3247 = vld [vmem:[%s12] sm:$0x1]
        %v3248 = vld [vmem:[%s13] sm:$0x1]
        %3249 = vadd.xlane.f32.xlu0 %v3245
        %v3250 = vpop.xlane.xlu0 %3249
        %3251 = vadd.xlane.f32.xlu0 %v3246
        %v3252 = vpop.xlane.xlu0 %3251
        %v3253 = vmul.f32 %v3250, %v2552
        %v3254 = vmul.f32 %v3252, %v2552
        %v3255 = vsub.f32 %v3245, %v3253
        %v3256 = vsub.f32 %v3246, %v3254
        %v3257 = vmul.f32 %v3255, %v3255
        %v3258 = vmul.f32 %v3256, %v3256
        %3259 = vadd.xlane.f32.xlu0 %v3257
        %v3260 = vpop.xlane.xlu0 %3259
        %3261 = vadd.xlane.f32.xlu0 %v3258
        %v3262 = vpop.xlane.xlu0 %3261
        %v3263 = vmul.f32 %v3260, %v2552
        %v3264 = vmul.f32 %v3262, %v2552
        %v3265 = vadd.f32 %v3263, 1e-05
        %v3266 = vadd.f32 %v3264, 1e-05
        %v3267 = vrsqrt.pop %v3265
        %v3268 = vrsqrt.pop %v3266
        %v3269 = vmul.f32 %v3255, %v3267
        %v3270 = vmul.f32 %v3256, %v3268
        %v3272 = vlaneseq
        %v3273 = vshrl.u32 %v3272, 7
        %v3274 = vsub.s32 0, %v3273
        %v3275 = vrot.slane %v3247, %v3274
        %v3277 = vmul.f32 %v3269, %v3275
        %v3278 = vmul.f32 %v3270, %v3275
        %v3280 = vlaneseq
        %v3281 = vshrl.u32 %v3280, 7
        %v3282 = vsub.s32 0, %v3281
        %v3283 = vrot.slane %v3248, %v3282
        %v3285 = vadd.f32 %v3277, %v3283
        %v3286 = vadd.f32 %v3278, %v3283
        %3287 = vst [vmem:[%s583] sm:$0xff] %v3285
        %3288 = vst [vmem:[%s583 + $0x8] sm:$0xff] %v3286
        %s3289 = sand.u32 %s348, 1
        %s3290 = scalar_lea.sflag [#allocation4], %s3289
        %s3291 = sand.u32 %s348, 1
        %s3292 = smul.addr %s3291, 16
        %s3293 = scalar_lea.vmem [#allocation13], %s3292
        // Predicated region
        $region101: #{tpu_custom_call.1} parent=75 // pred_check
          %p3294 = pneg %p358
        $region102: #{tpu_custom_call.1} parent=75 // pred_check_branch
          %3296 = sbr.rel (%p3294) target = $region104
        $region103: #{tpu_custom_call.1} parent=75 // pred_region
          %s3298 = ssub.s32 256, 256
          %3299 = vsyncadd %s3290, %s3298
          %s3300 = smul.addr %s36, 2
          %s3301 = smul.addr %s3300, 128
          %s3302 = scalar_lea.hbm %s14, %s3301
          %s3303 = sshll.u32 %s3293, 4
          %s3304 = int_to_ptr.vmem [resolvable:$true] %s3303
          %3309 = dma.vmem_to_hbm [thread:$0]  %s3304, 256, %s3302, %s3290, 128, 128, 8
        $region104: #{tpu_custom_call.1} parent=75 // pred_fallthru
          _
      $region76: #{tpu_custom_call.1} parent=5 // pred_fallthru
        _
      %p3310 = scmp.le.s32.totalorder 2, %s31
      // Predicated region
      $region105: #{tpu_custom_call.1} parent=5 // pred_check
        %p3311 = pneg %p3310
      $region106: #{tpu_custom_call.1} parent=5 // pred_check_branch
        %3313 = sbr.rel (%p3311) target = $region108
      $region107: #{tpu_custom_call.1} parent=5 // pred_region
        %s3314 = ssub.s32 %s31, 2
        // Predicated region
        $region109: #{tpu_custom_call.1} parent=107 // pred_check
          %p3315 = pneg %p364
        $region110: #{tpu_custom_call.1} parent=107 // pred_check_branch
          %3317 = sbr.rel (%p3315) target = $region112
        $region111: #{tpu_custom_call.1} parent=107 // pred_region
          %s3318 = sand.u32 %s349, 1
          %s3319 = scalar_lea.sflag [#allocation4], %s3318
          %s3320 = sand.u32 %s349, 1
          %s3321 = smul.addr %s3320, 16
          %s3322 = scalar_lea.vmem [#allocation13], %s3321
          %3323 = dma.done %s3319, 256
        $region112: #{tpu_custom_call.1} parent=107 // pred_fallthru
          _
      $region108: #{tpu_custom_call.1} parent=5 // pred_fallthru
        _
    $region6: #{tpu_custom_call.1} parent=1 // loop_footer
      %s35 = sadd.s32 1, %s31
    $region7: #{tpu_custom_call.1} parent=1 // loop_footer_branch
      %30 = sbr.rel target = $region3
    $region8: #{tpu_custom_call.1} parent=1 // loop_exit
      _
    %3324 = vsyncpa [#allocation3], 1
    %s3325 = scalar_lea.sflag [#allocation3], 1
    %3326 = vsyncpa %s3325, 1
    %3327 = vsyncpa [#allocation6], 1
    %s3328 = scalar_lea.sflag [#allocation6], 1
    %3329 = vsyncpa %s3328, 1
    %3330 = vsyncpa [#allocation9], 1
    %3331 = vsyncpa [#allocation12], 1
    %3332 = vsyncpa [#allocation4], 1
    %s3333 = scalar_lea.sflag [#allocation4], 1
    %3334 = vsyncpa %s3333, 1

// kernel: tpu_custom_call.1
$region0: #{tpu_custom_call.1}
  #allocation0 [shape = 'u32[]', space=smem, size = 0x4, offset = 0x4, fixed_abs, tag = 'smem constant byte address 0x4 - core index']
  #allocation1 [shape = 'u32[144,128]{1,0:T(1,128)}', space=vmem, size = 0x12000, scoped, tag = 'internal scratch']
  %s0 = inlined_call_operand.hbm [shape: f32[2,16,128], index: 0, kind: input, shape index: {}]
  %s1 = inlined_call_operand.hbm [shape: bf16[2,16,16], index: 1, kind: input, shape index: {}]
  %s2 = inlined_call_operand.hbm [shape: bf16[128,384], index: 2, kind: input, shape index: {}]
  %s3 = inlined_call_operand.vmem [shape: f32[1,384], index: 3, kind: input, shape index: {}]
  %s4 = inlined_call_operand.hbm [shape: bf16[128,128], index: 4, kind: input, shape index: {}]
  %s5 = inlined_call_operand.vmem [shape: f32[1,128], index: 5, kind: input, shape index: {}]
  %s6 = inlined_call_operand.vmem [shape: f32[1,128], index: 6, kind: input, shape index: {}]
  %s7 = inlined_call_operand.vmem [shape: f32[1,128], index: 7, kind: input, shape index: {}]
  %s8 = inlined_call_operand.hbm [shape: bf16[128,512], index: 8, kind: input, shape index: {}]
  %s9 = inlined_call_operand.vmem [shape: f32[1,512], index: 9, kind: input, shape index: {}]
  %s10 = inlined_call_operand.hbm [shape: bf16[512,128], index: 10, kind: input, shape index: {}]
  %s11 = inlined_call_operand.vmem [shape: f32[1,128], index: 11, kind: input, shape index: {}]
  %s12 = inlined_call_operand.vmem [shape: f32[1,128], index: 12, kind: input, shape index: {}]
  %s13 = inlined_call_operand.vmem [shape: f32[1,128], index: 13, kind: input, shape index: {}]
  %s14 = inlined_call_operand.hbm [shape: f32[2,16,128], index: 14, kind: output, shape index: {}]
  %s15 = sld [smem:[#allocation0]]
  $region113: #{tpu_custom_call.1} parent=0
    _
  %s17 = ssub.s32 1, %s15
  %s18 = scalar_select 0, %s17, %s15
  $region1: #{tpu_custom_call.1} parent=0
    #allocation2 [shape = 'u8[16384]{0}', space=vmem, size = 0x4000, scoped, tag = 'input window, operand 0']
    #allocation3 [shape = 's32[2]{0}', space=sflag, size = 0x8, scoped, tag = 'scoped memory for tpu_custom_call.1']
    #allocation4 [shape = 's32[2]{0}', space=sflag, size = 0x8, scoped, tag = 'scoped memory for tpu_custom_call.1']
    #allocation5 [shape = 'u8[8192]{0}', space=vmem, size = 0x2000, scoped, tag = 'input window, operand 1']
    #allocation6 [shape = 's32[2]{0}', space=sflag, size = 0x8, scoped, tag = 'scoped memory for tpu_custom_call.1']
    #allocation7 [shape = 'u8[98304]{0}', space=vmem, size = 0x18000, scoped, tag = 'input window, operand 2, single buffered']
    #allocation8 [shape = 'u8[32768]{0}', space=vmem, size = 0x8000, scoped, tag = 'input window, operand 4, single buffered']
    #allocation9 [shape = 's32[1]{0}', space=sflag, size = 0x4, scoped, tag = 'scoped memory for tpu_custom_call.1']
    #allocation10 [shape = 'u8[131072]{0}', space=vmem, size = 0x20000, scoped, tag = 'input window, operand 8, single buffered']
    #allocation11 [shape = 'u8[131072]{0}', space=vmem, size = 0x20000, scoped, tag = 'input window, operand 10, single buffered']
    #allocation12 [shape = 's32[1]{0}', space=sflag, size = 0x4, scoped, tag = 'scoped memory for tpu_custom_call.1']
    #allocation13 [shape = 'u8[16384]{0}', space=vmem, size = 0x4000, scoped, tag = 'output window, operand 0']
    %19 = vsyncpa [#allocation3], 0
    %s20 = scalar_lea.sflag [#allocation3], 1
    %21 = vsyncpa %s20, 0
    %22 = vsyncpa [#allocation6], 0
    %s23 = scalar_lea.sflag [#allocation6], 1
    %24 = vsyncpa %s23, 0
    %25 = vsyncpa [#allocation9], 0
    %26 = vsyncpa [#allocation12], 0
    %27 = vsyncpa [#allocation4], 0
    %s28 = scalar_lea.sflag [#allocation4], 1
    %29 = vsyncpa %s28, 0
    loop: start=0, step=1, limit=4
    $region2: #{tpu_custom_call.1} parent=1 // loop_pre_header
      _
    $region3: #{tpu_custom_call.1} parent=1 // loop_header
      %s31 = sphi 0, %s35
      %p32 = scmp.ge.s32.totalorder %s31, 4
      %s41 = sphi 0, %s43
      %s44 = sphi 0, %s41
      %s45 = sphi 0, %s44
      %s61 = sphi 0, %s45
      %s67 = sphi 0, %s69
      %s70 = sphi 0, %s67
      %s71 = sphi 0, %s70
      %s87 = sphi 0, %s71
      %s91 = sphi 0, %s91
      %s93 = sphi 0, %s91
      %s94 = sphi 0, %s93
      %s108 = sphi 0, %s94
      %s112 = sphi 0, %s112
      %s114 = sphi 0, %s112
      %s115 = sphi 0, %s114
      %s129 = sphi 0, %s115
      %s133 = sphi 0, %s133
      %s135 = sphi 0, %s133
      %s136 = sphi 0, %s135
      %s150 = sphi 0, %s136
      %s154 = sphi 0, %s154
      %s156 = sphi 0, %s154
      %s157 = sphi 0, %s156
      %s171 = sphi 0, %s157
      %s175 = sphi 0, %s175
      %s177 = sphi 0, %s175
      %s178 = sphi 0, %s177
      %s192 = sphi 0, %s178
      %s196 = sphi 0, %s196
      %s198 = sphi 0, %s196
      %s199 = sphi 0, %s198
      %s213 = sphi 0, %s199
      %s217 = sphi 0, %s217
      %s219 = sphi 0, %s217
      %s220 = sphi 0, %s219
      %s234 = sphi 0, %s220
      %s238 = sphi 0, %s238
      %s240 = sphi 0, %s238
      %s241 = sphi 0, %s240
      %s255 = sphi 0, %s241
      %s259 = sphi 0, %s259
      %s261 = sphi 0, %s259
      %s262 = sphi 0, %s261
      %s276 = sphi 0, %s262
      %s280 = sphi 0, %s280
      %s282 = sphi 0, %s280
      %s283 = sphi 0, %s282
      %s297 = sphi 0, %s283
      %s301 = sphi 0, %s301
      %s303 = sphi 0, %s301
      %s304 = sphi 0, %s303
      %s318 = sphi 0, %s304
      %s322 = sphi 0, %s322
      %s324 = sphi 0, %s322
      %s325 = sphi 0, %s324
      %s339 = sphi 0, %s325
      %s345 = sphi 0, %s347
      %s348 = sphi 0, %s345
      %s349 = sphi 0, %s348
      %s365 = sphi 0, %s349
    $region4: #{tpu_custom_call.1} parent=1 // loop_header_branch
      %34 = sbr.rel (%p32) target = $region8
    $region5: #{tpu_custom_call.1} parent=1 // loop_body
      %s36 = ssub.s32 %s31, 1
      %s37 = ssub.s32 %s31, 2
      %s38 = sadd.s32 %s31, 1
      %s39 = ssub.s32 %s31, %s38
      %p40 = scmp.eq.s32.totalorder %s39, 0
      %s42 = sadd.s32 %s41, 1
      %s43 = scalar_select %p40, %s41, %s42
      %p46 = pneg %p40
      %p47 = scmp.eq.s32.totalorder %s31, 1
      %p48 = por %p46, %p47
      %p49 = scmp.ne.s32.totalorder %s41, %s44
      %p50 = scmp.eq.s32.totalorder %s31, 0
      %p51 = por %p49, %p50
      %p52 = scmp.ne.s32.totalorder %s41, %s44
      %p53 = scmp.eq.s32.totalorder %s36, 1
      %p54 = por %p52, %p53
      %p55 = scmp.ne.s32.totalorder %s44, %s45
      %p56 = scmp.eq.s32.totalorder %s36, 0
      %p57 = por %p55, %p56
      %p58 = scmp.ne.s32.totalorder %s44, %s45
      %p59 = scmp.eq.s32.totalorder %s37, 1
      %p60 = por %p58, %p59
      %p62 = scmp.ne.s32.totalorder %s45, %s61
      %p63 = scmp.eq.s32.totalorder %s37, 0
      %p64 = por %p62, %p63
      %s65 = ssub.s32 %s31, %s38
      %p66 = scmp.eq.s32.totalorder %s65, 0
      %s68 = sadd.s32 %s67, 1
      %s69 = scalar_select %p66, %s67, %s68
      %p72 = pneg %p66
      %p73 = scmp.eq.s32.totalorder %s31, 1
      %p74 = por %p72, %p73
      %p75 = scmp.ne.s32.totalorder %s67, %s70
      %p76 = scmp.eq.s32.totalorder %s31, 0
      %p77 = por %p75, %p76
      %p78 = scmp.ne.s32.totalorder %s67, %s70
      %p79 = scmp.eq.s32.totalorder %s36, 1
      %p80 = por %p78, %p79
      %p81 = scmp.ne.s32.totalorder %s70, %s71
      %p82 = scmp.eq.s32.totalorder %s36, 0
      %p83 = por %p81, %p82
      %p84 = scmp.ne.s32.totalorder %s70, %s71
      %p85 = scmp.eq.s32.totalorder %s37, 1
      %p86 = por %p84, %p85
      %p88 = scmp.ne.s32.totalorder %s71, %s87
      %p89 = scmp.eq.s32.totalorder %s37, 0
      %p90 = por %p88, %p89
      %s92 = sadd.s32 %s91, 1
      %p95 = scmp.eq.s32.totalorder %s31, 1
      %p96 = scmp.ne.s32.totalorder %s91, %s93
      %p97 = scmp.eq.s32.totalorder %s31, 0
      %p98 = por %p96, %p97
      %p99 = scmp.ne.s32.totalorder %s91, %s93
      %p100 = scmp.eq.s32.totalorder %s36, 1
      %p101 = por %p99, %p100
      %p102 = scmp.ne.s32.totalorder %s93, %s94
      %p103 = scmp.eq.s32.totalorder %s36, 0
      %p104 = por %p102, %p103
      %p105 = scmp.ne.s32.totalorder %s93, %s94
      %p106 = scmp.eq.s32.totalorder %s37, 1
      %p107 = por %p105, %p106
      %p109 = scmp.ne.s32.totalorder %s94, %s108
      %p110 = scmp.eq.s32.totalorder %s37, 0
      %p111 = por %p109, %p110
      %s113 = sadd.s32 %s112, 1
      %p116 = scmp.eq.s32.totalorder %s31, 1
      %p117 = scmp.ne.s32.totalorder %s112, %s114
      %p118 = scmp.eq.s32.totalorder %s31, 0
      %p119 = por %p117, %p118
      %p120 = scmp.ne.s32.totalorder %s112, %s114
      %p121 = scmp.eq.s32.totalorder %s36, 1
      %p122 = por %p120, %p121
      %p123 = scmp.ne.s32.totalorder %s114, %s115
      %p124 = scmp.eq.s32.totalorder %s36, 0
      %p125 = por %p123, %p124
      %p126 = scmp.ne.s32.totalorder %s114, %s115
      %p127 = scmp.eq.s32.totalorder %s37, 1
      %p128 = por %p126, %p127
      %p130 = scmp.ne.s32.totalorder %s115, %s129
      %p131 = scmp.eq.s32.totalorder %s37, 0
      %p132 = por %p130, %p131
      %s134 = sadd.s32 %s133, 1
      %p137 = scmp.eq.s32.totalorder %s31, 1
      %p138 = scmp.ne.s32.totalorder %s133, %s135
      %p139 = scmp.eq.s32.totalorder %s31, 0
      %p140 = por %p138, %p139
      %p141 = scmp.ne.s32.totalorder %s133, %s135
      %p142 = scmp.eq.s32.totalorder %s36, 1
      %p143 = por %p141, %p142
      %p144 = scmp.ne.s32.totalorder %s135, %s136
      %p145 = scmp.eq.s32.totalorder %s36, 0
      %p146 = por %p144, %p145
      %p147 = scmp.ne.s32.totalorder %s135, %s136
      %p148 = scmp.eq.s32.totalorder %s37, 1
      %p149 = por %p147, %p148
      %p151 = scmp.ne.s32.totalorder %s136, %s150
      %p152 = scmp.eq.s32.totalorder %s37, 0
      %p153 = por %p151, %p152
      %s155 = sadd.s32 %s154, 1
      %p158 = scmp.eq.s32.totalorder %s31, 1
      %p159 = scmp.ne.s32.totalorder %s154, %s156
      %p160 = scmp.eq.s32.totalorder %s31, 0
      %p161 = por %p159, %p160
      %p162 = scmp.ne.s32.totalorder %s154, %s156
      %p163 = scmp.eq.s32.totalorder %s36, 1
      %p164 = por %p162, %p163
      %p165 = scmp.ne.s32.totalorder %s156, %s157
      %p166 = scmp.eq.s32.totalorder %s36, 0
      %p167 = por %p165, %p166
      %p168 = scmp.ne.s32.totalorder %s156, %s157
      %p169 = scmp.eq.s32.totalorder %s37, 1
      %p170 = por %p168, %p169
      %p172 = scmp.ne.s32.totalorder %s157, %s171
      %p173 = scmp.eq.s32.totalorder %s37, 0
      %p174 = por %p172, %p173
      %s176 = sadd.s32 %s175, 1
      %p179 = scmp.eq.s32.totalorder %s31, 1
      %p180 = scmp.ne.s32.totalorder %s175, %s177
      %p181 = scmp.eq.s32.totalorder %s31, 0
      %p182 = por %p180, %p181
      %p183 = scmp.ne.s32.totalorder %s175, %s177
      %p184 = scmp.eq.s32.totalorder %s36, 1
      %p185 = por %p183, %p184
      %p186 = scmp.ne.s32.totalorder %s177, %s178
      %p187 = scmp.eq.s32.totalorder %s36, 0
      %p188 = por %p186, %p187
      %p189 = scmp.ne.s32.totalorder %s177, %s178
      %p190 = scmp.eq.s32.totalorder %s37, 1
      %p191 = por %p189, %p190
      %p193 = scmp.ne.s32.totalorder %s178, %s192
      %p194 = scmp.eq.s32.totalorder %s37, 0
      %p195 = por %p193, %p194
      %s197 = sadd.s32 %s196, 1
      %p200 = scmp.eq.s32.totalorder %s31, 1
      %p201 = scmp.ne.s32.totalorder %s196, %s198
      %p202 = scmp.eq.s32.totalorder %s31, 0
      %p203 = por %p201, %p202
      %p204 = scmp.ne.s32.totalorder %s196, %s198
      %p205 = scmp.eq.s32.totalorder %s36, 1
      %p206 = por %p204, %p205
      %p207 = scmp.ne.s32.totalorder %s198, %s199
      %p208 = scmp.eq.s32.totalorder %s36, 0
      %p209 = por %p207, %p208
      %p210 = scmp.ne.s32.totalorder %s198, %s199
      %p211 = scmp.eq.s32.totalorder %s37, 1
      %p212 = por %p210, %p211
      %p214 = scmp.ne.s32.totalorder %s199, %s213
      %p215 = scmp.eq.s32.totalorder %s37, 0
      %p216 = por %p214, %p215
      %s218 = sadd.s32 %s217, 1
      %p221 = scmp.eq.s32.totalorder %s31, 1
      %p222 = scmp.ne.s32.totalorder %s217, %s219
      %p223 = scmp.eq.s32.totalorder %s31, 0
      %p224 = por %p222, %p223
      %p225 = scmp.ne.s32.totalorder %s217, %s219
      %p226 = scmp.eq.s32.totalorder %s36, 1
      %p227 = por %p225, %p226
      %p228 = scmp.ne.s32.totalorder %s219, %s220
      %p229 = scmp.eq.s32.totalorder %s36, 0
      %p230 = por %p228, %p229
      %p231 = scmp.ne.s32.totalorder %s219, %s220
      %p232 = scmp.eq.s32.totalorder %s37, 1
      %p233 = por %p231, %p232
      %p235 = scmp.ne.s32.totalorder %s220, %s234
      %p236 = scmp.eq.s32.totalorder %s37, 0
      %p237 = por %p235, %p236
      %s239 = sadd.s32 %s238, 1
      %p242 = scmp.eq.s32.totalorder %s31, 1
      %p243 = scmp.ne.s32.totalorder %s238, %s240
      %p244 = scmp.eq.s32.totalorder %s31, 0
      %p245 = por %p243, %p244
      %p246 = scmp.ne.s32.totalorder %s238, %s240
      %p247 = scmp.eq.s32.totalorder %s36, 1
      %p248 = por %p246, %p247
      %p249 = scmp.ne.s32.totalorder %s240, %s241
      %p250 = scmp.eq.s32.totalorder %s36, 0
      %p251 = por %p249, %p250
      %p252 = scmp.ne.s32.totalorder %s240, %s241
      %p253 = scmp.eq.s32.totalorder %s37, 1
      %p254 = por %p252, %p253
      %p256 = scmp.ne.s32.totalorder %s241, %s255
      %p257 = scmp.eq.s32.totalorder %s37, 0
      %p258 = por %p256, %p257
      %s260 = sadd.s32 %s259, 1
      %p263 = scmp.eq.s32.totalorder %s31, 1
      %p264 = scmp.ne.s32.totalorder %s259, %s261
      %p265 = scmp.eq.s32.totalorder %s31, 0
      %p266 = por %p264, %p265
      %p267 = scmp.ne.s32.totalorder %s259, %s261
      %p268 = scmp.eq.s32.totalorder %s36, 1
      %p269 = por %p267, %p268
      %p270 = scmp.ne.s32.totalorder %s261, %s262
      %p271 = scmp.eq.s32.totalorder %s36, 0
      %p272 = por %p270, %p271
      %p273 = scmp.ne.s32.totalorder %s261, %s262
      %p274 = scmp.eq.s32.totalorder %s37, 1
      %p275 = por %p273, %p274
      %p277 = scmp.ne.s32.totalorder %s262, %s276
      %p278 = scmp.eq.s32.totalorder %s37, 0
      %p279 = por %p277, %p278
      %s281 = sadd.s32 %s280, 1
      %p284 = scmp.eq.s32.totalorder %s31, 1
      %p285 = scmp.ne.s32.totalorder %s280, %s282
      %p286 = scmp.eq.s32.totalorder %s31, 0
      %p287 = por %p285, %p286
      %p288 = scmp.ne.s32.totalorder %s280, %s282
      %p289 = scmp.eq.s32.totalorder %s36, 1
      %p290 = por %p288, %p289
      %p291 = scmp.ne.s32.totalorder %s282, %s283
      %p292 = scmp.eq.s32.totalorder %s36, 0
      %p293 = por %p291, %p292
      %p294 = scmp.ne.s32.totalorder %s282, %s283
      %p295 = scmp.eq.s32.totalorder %s37, 1
      %p296 = por %p294, %p295
      %p298 = scmp.ne.s32.totalorder %s283, %s297
      %p299 = scmp.eq.s32.totalorder %s37, 0
      %p300 = por %p298, %p299
      %s302 = sadd.s32 %s301, 1
      %p305 = scmp.eq.s32.totalorder %s31, 1
      %p306 = scmp.ne.s32.totalorder %s301, %s303
      %p307 = scmp.eq.s32.totalorder %s31, 0
      %p308 = por %p306, %p307
      %p309 = scmp.ne.s32.totalorder %s301, %s303
      %p310 = scmp.eq.s32.totalorder %s36, 1
      %p311 = por %p309, %p310
      %p312 = scmp.ne.s32.totalorder %s303, %s304
      %p313 = scmp.eq.s32.totalorder %s36, 0
      %p314 = por %p312, %p313
      %p315 = scmp.ne.s32.totalorder %s303, %s304
      %p316 = scmp.eq.s32.totalorder %s37, 1
      %p317 = por %p315, %p316
      %p319 = scmp.ne.s32.totalorder %s304, %s318
      %p320 = scmp.eq.s32.totalorder %s37, 0
      %p321 = por %p319, %p320
      %s323 = sadd.s32 %s322, 1
      %p326 = scmp.eq.s32.totalorder %s31, 1
      %p327 = scmp.ne.s32.totalorder %s322, %s324
      %p328 = scmp.eq.s32.totalorder %s31, 0
      %p329 = por %p327, %p328
      %p330 = scmp.ne.s32.totalorder %s322, %s324
      %p331 = scmp.eq.s32.totalorder %s36, 1
      %p332 = por %p330, %p331
      %p333 = scmp.ne.s32.totalorder %s324, %s325
      %p334 = scmp.eq.s32.totalorder %s36, 0
      %p335 = por %p333, %p334
      %p336 = scmp.ne.s32.totalorder %s324, %s325
      %p337 = scmp.eq.s32.totalorder %s37, 1
      %p338 = por %p336, %p337
      %p340 = scmp.ne.s32.totalorder %s325, %s339
      %p341 = scmp.eq.s32.totalorder %s37, 0
      %p342 = por %p340, %p341
      %s343 = ssub.s32 %s31, %s38
      %p344 = scmp.eq.s32.totalorder %s343, 0
      %s346 = sadd.s32 %s345, 1
      %s347 = scalar_select %p344, %s345, %s346
      %p350 = pneg %p344
      %p351 = scmp.eq.s32.totalorder %s31, 1
      %p352 = por %p350, %p351
      %p353 = scmp.ne.s32.totalorder %s345, %s348
      %p354 = scmp.eq.s32.totalorder %s31, 0
      %p355 = por %p353, %p354
      %p356 = scmp.ne.s32.totalorder %s345, %s348
      %p357 = scmp.eq.s32.totalorder %s36, 1
      %p358 = por %p356, %p357
      %p359 = scmp.ne.s32.totalorder %s348, %s349
      %p360 = scmp.eq.s32.totalorder %s36, 0
      %p361 = por %p359, %p360
      %p362 = scmp.ne.s32.totalorder %s348, %s349
      %p363 = scmp.eq.s32.totalorder %s37, 1
      %p364 = por %p362, %p363
      %p366 = scmp.ne.s32.totalorder %s349, %s365
      %p367 = scmp.eq.s32.totalorder %s37, 0
      %p368 = por %p366, %p367
      %p369 = scmp.le.s32.totalorder 1, %s31
      %p370 = scmp.lt.s32.totalorder %s31, 3
      %p371 = pnand %p369, %p370
      %p372 = pneg %p371
      // Predicated region
      $region9: #{tpu_custom_call.1} parent=5 // pred_check
        _
      $region10: #{tpu_custom_call.1} parent=5 // pred_check_branch
        %374 = sbr.rel (%p371) target = $region12
      $region11: #{tpu_custom_call.1} parent=5 // pred_region
        %s375 = ssub.s32 %s31, 1
        // Predicated region
        $region13: #{tpu_custom_call.1} parent=11 // pred_check
          %p376 = pneg %p104
        $region14: #{tpu_custom_call.1} parent=11 // pred_check_branch
          %378 = sbr.rel (%p376) target = $region16
        $region15: #{tpu_custom_call.1} parent=11 // pred_region
          %s380 = ssub.s32 3072, 3072
          %381 = vsyncadd [#allocation6], %s380
          %s382 = sshll.u32 [#allocation7], 4
          %s383 = int_to_ptr.vmem [resolvable:$true] %s382
          %388 = dma.hbm_to_vmem [thread:$0]  %s2, 3072, %s383, [#allocation6], 192, 192, 12
        $region16: #{tpu_custom_call.1} parent=11 // pred_fallthru
          _
        // Predicated region
        $region17: #{tpu_custom_call.1} parent=11 // pred_check
          %p389 = pneg %p125
        $region18: #{tpu_custom_call.1} parent=11 // pred_check_branch
          %391 = sbr.rel (%p389) target = $region20
        $region19: #{tpu_custom_call.1} parent=11 // pred_region
          _
        $region20: #{tpu_custom_call.1} parent=11 // pred_fallthru
          _
        // Predicated region
        $region21: #{tpu_custom_call.1} parent=11 // pred_check
          %p392 = pneg %p146
        $region22: #{tpu_custom_call.1} parent=11 // pred_check_branch
          %394 = sbr.rel (%p392) target = $region24
        $region23: #{tpu_custom_call.1} parent=11 // pred_region
          %s396 = ssub.s32 1024, 1024
          %397 = vsyncadd [#allocation9], %s396
          %s398 = sshll.u32 [#allocation8], 4
          %s399 = int_to_ptr.vmem [resolvable:$true] %s398
          %404 = dma.hbm_to_vmem [thread:$0]  %s4, 1024, %s399, [#allocation9], 64, 64, 4
        $region24: #{tpu_custom_call.1} parent=11 // pred_fallthru
          _
        // Predicated region
        $region25: #{tpu_custom_call.1} parent=11 // pred_check
          %p405 = pneg %p167
        $region26: #{tpu_custom_call.1} parent=11 // pred_check_branch
          %407 = sbr.rel (%p405) target = $region28
        $region27: #{tpu_custom_call.1} parent=11 // pred_region
          _
        $region28: #{tpu_custom_call.1} parent=11 // pred_fallthru
          _
        // Predicated region
        $region29: #{tpu_custom_call.1} parent=11 // pred_check
          %p408 = pneg %p188
        $region30: #{tpu_custom_call.1} parent=11 // pred_check_branch
          %410 = sbr.rel (%p408) target = $region32
        $region31: #{tpu_custom_call.1} parent=11 // pred_region
          _
        $region32: #{tpu_custom_call.1} parent=11 // pred_fallthru
          _
        // Predicated region
        $region33: #{tpu_custom_call.1} parent=11 // pred_check
          %p411 = pneg %p209
        $region34: #{tpu_custom_call.1} parent=11 // pred_check_branch
          %413 = sbr.rel (%p411) target = $region36
        $region35: #{tpu_custom_call.1} parent=11 // pred_region
          _
        $region36: #{tpu_custom_call.1} parent=11 // pred_fallthru
          _
        // Predicated region
        $region37: #{tpu_custom_call.1} parent=11 // pred_check
          %p414 = pneg %p230
        $region38: #{tpu_custom_call.1} parent=11 // pred_check_branch
          %416 = sbr.rel (%p414) target = $region40
        $region39: #{tpu_custom_call.1} parent=11 // pred_region
          %s418 = ssub.s32 4096, 4096
          %419 = vsyncadd [#allocation9], %s418
          %s420 = sshll.u32 [#allocation10], 4
          %s421 = int_to_ptr.vmem [resolvable:$true] %s420
          %426 = dma.hbm_to_vmem [thread:$0]  %s8, 4096, %s421, [#allocation9], 256, 256, 16
        $region40: #{tpu_custom_call.1} parent=11 // pred_fallthru
          _
        // Predicated region
        $region41: #{tpu_custom_call.1} parent=11 // pred_check
          %p427 = pneg %p251
        $region42: #{tpu_custom_call.1} parent=11 // pred_check_branch
          %429 = sbr.rel (%p427) target = $region44
        $region43: #{tpu_custom_call.1} parent=11 // pred_region
          _
        $region44: #{tpu_custom_call.1} parent=11 // pred_fallthru
          _
        // Predicated region
        $region45: #{tpu_custom_call.1} parent=11 // pred_check
          %p430 = pneg %p272
        $region46: #{tpu_custom_call.1} parent=11 // pred_check_branch
          %432 = sbr.rel (%p430) target = $region48
        $region47: #{tpu_custom_call.1} parent=11 // pred_region
          %s434 = ssub.s32 4096, 4096
          %435 = vsyncadd [#allocation12], %s434
          %s436 = sshll.u32 [#allocation11], 4
          %s437 = int_to_ptr.vmem [resolvable:$true] %s436
          %442 = dma.hbm_to_vmem [thread:$0]  %s10, 4096, %s437, [#allocation12], 64, 64, 4
        $region48: #{tpu_custom_call.1} parent=11 // pred_fallthru
          _
        // Predicated region
        $region49: #{tpu_custom_call.1} parent=11 // pred_check
          %p443 = pneg %p293
        $region50: #{tpu_custom_call.1} parent=11 // pred_check_branch
          %445 = sbr.rel (%p443) target = $region52
        $region51: #{tpu_custom_call.1} parent=11 // pred_region
          _
        $region52: #{tpu_custom_call.1} parent=11 // pred_fallthru
          _
        // Predicated region
        $region53: #{tpu_custom_call.1} parent=11 // pred_check
          %p446 = pneg %p314
        $region54: #{tpu_custom_call.1} parent=11 // pred_check_branch
          %448 = sbr.rel (%p446) target = $region56
        $region55: #{tpu_custom_call.1} parent=11 // pred_region
          _
        $region56: #{tpu_custom_call.1} parent=11 // pred_fallthru
          _
        // Predicated region
        $region57: #{tpu_custom_call.1} parent=11 // pred_check
          %p449 = pneg %p335
        $region58: #{tpu_custom_call.1} parent=11 // pred_check_branch
          %451 = sbr.rel (%p449) target = $region60
        $region59: #{tpu_custom_call.1} parent=11 // pred_region
          _
        $region60: #{tpu_custom_call.1} parent=11 // pred_fallthru
          _
      $region12: #{tpu_custom_call.1} parent=5 // pred_fallthru
        _
      %p452 = scmp.lt.s32.totalorder %s31, 2
      // Predicated region
      $region61: #{tpu_custom_call.1} parent=5 // pred_check
        %p453 = pneg %p452
      $region62: #{tpu_custom_call.1} parent=5 // pred_check_branch
        %455 = sbr.rel (%p453) target = $region64
      $region63: #{tpu_custom_call.1} parent=5 // pred_region
        // Predicated region
        $region65: #{tpu_custom_call.1} parent=63 // pred_check
          %p456 = pneg %p51
        $region66: #{tpu_custom_call.1} parent=63 // pred_check_branch
          %458 = sbr.rel (%p456) target = $region68
        $region67: #{tpu_custom_call.1} parent=63 // pred_region
          %s459 = sand.u32 %s41, 1
          %s460 = scalar_lea.sflag [#allocation3], %s459
          %s461 = sand.u32 %s41, 1
          %s462 = smul.addr %s461, 16
          %s463 = scalar_lea.vmem [#allocation2], %s462
          %s465 = ssub.s32 256, 256
          %466 = vsyncadd %s460, %s465
          %s467 = smul.addr %s31, 2
          %s468 = smul.addr %s467, 128
          %s469 = scalar_lea.hbm %s0, %s468
          %s470 = sshll.u32 %s463, 4
          %s471 = int_to_ptr.vmem [resolvable:$true] %s470
          %476 = dma.hbm_to_vmem [thread:$0]  %s469, 256, %s471, %s460, 128, 128, 8
        $region68: #{tpu_custom_call.1} parent=63 // pred_fallthru
          _
        // Predicated region
        $region69: #{tpu_custom_call.1} parent=63 // pred_check
          %p477 = pneg %p77
        $region70: #{tpu_custom_call.1} parent=63 // pred_check_branch
          %479 = sbr.rel (%p477) target = $region72
        $region71: #{tpu_custom_call.1} parent=63 // pred_region
          %s480 = sand.u32 %s31, 1
          %s481 = scalar_lea.sflag [#allocation6], %s480
          %s482 = sand.u32 %s67, 1
          %s483 = smul.addr %s482, 8
          %s484 = scalar_lea.vmem [#allocation5], %s483
          %s486 = ssub.s32 128, 128
          %487 = vsyncadd %s481, %s486
          %s488 = smul.addr %s31, 2
          %s489 = smul.addr %s488, 64
          %s490 = scalar_lea.hbm %s1, %s489
          %s491 = sshll.u32 %s484, 4
          %s492 = int_to_ptr.vmem [resolvable:$true] %s491
          %497 = dma.hbm_to_vmem [thread:$0]  %s490, 128, %s492, %s481, 64, 64, 4
        $region72: #{tpu_custom_call.1} parent=63 // pred_fallthru
          _
      $region64: #{tpu_custom_call.1} parent=5 // pred_fallthru
        _
      %p498 = scmp.le.s32.totalorder 1, %s31
      %p499 = scmp.lt.s32.totalorder %s31, 3
      %p500 = pnand %p498, %p499
      %p501 = pneg %p500
      // Predicated region
      $region73: #{tpu_custom_call.1} parent=5 // pred_check
        _
      $region74: #{tpu_custom_call.1} parent=5 // pred_check_branch
        %503 = sbr.rel (%p500) target = $region76
      $region75: #{tpu_custom_call.1} parent=5 // pred_region
        %s504 = ssub.s32 %s31, 1
        %s505 = sand.u32 %s44, 1
        %s506 = scalar_lea.sflag [#allocation3], %s505
        %s507 = sand.u32 %s44, 1
        %s508 = smul.addr %s507, 16
        %s509 = scalar_lea.vmem [#allocation2], %s508
        // Predicated region
        $region77: #{tpu_custom_call.1} parent=75 // pred_check
          %p510 = pneg %p57
        $region78: #{tpu_custom_call.1} parent=75 // pred_check_branch
          %512 = sbr.rel (%p510) target = $region80
        $region79: #{tpu_custom_call.1} parent=75 // pred_region
          %513 = dma.done %s506, 256
        $region80: #{tpu_custom_call.1} parent=75 // pred_fallthru
          _
        %s514 = sand.u32 %s36, 1
        %s515 = scalar_lea.sflag [#allocation6], %s514
        %s516 = sand.u32 %s70, 1
        %s517 = smul.addr %s516, 8
        %s518 = scalar_lea.vmem [#allocation5], %s517
        // Predicated region
        $region81: #{tpu_custom_call.1} parent=75 // pred_check
          %p519 = pneg %p83
        $region82: #{tpu_custom_call.1} parent=75 // pred_check_branch
          %521 = sbr.rel (%p519) target = $region84
        $region83: #{tpu_custom_call.1} parent=75 // pred_region
          %522 = dma.done %s515, 128
        $region84: #{tpu_custom_call.1} parent=75 // pred_fallthru
          _
        // Predicated region
        $region85: #{tpu_custom_call.1} parent=75 // pred_check
          %p523 = pneg %p104
        $region86: #{tpu_custom_call.1} parent=75 // pred_check_branch
          %525 = sbr.rel (%p523) target = $region88
        $region87: #{tpu_custom_call.1} parent=75 // pred_region
          %526 = dma.done [#allocation6], 3072
        $region88: #{tpu_custom_call.1} parent=75 // pred_fallthru
          _
        // Predicated region
        $region89: #{tpu_custom_call.1} parent=75 // pred_check
          %p527 = pneg %p146
        $region90: #{tpu_custom_call.1} parent=75 // pred_check_branch
          %529 = sbr.rel (%p527) target = $region92
        $region91: #{tpu_custom_call.1} parent=75 // pred_region
          %530 = dma.done [#allocation9], 1024
        $region92: #{tpu_custom_call.1} parent=75 // pred_fallthru
          _
        // Predicated region
        $region93: #{tpu_custom_call.1} parent=75 // pred_check
          %p531 = pneg %p230
        $region94: #{tpu_custom_call.1} parent=75 // pred_check_branch
          %533 = sbr.rel (%p531) target = $region96
        $region95: #{tpu_custom_call.1} parent=75 // pred_region
          %534 = dma.done [#allocation9], 4096
        $region96: #{tpu_custom_call.1} parent=75 // pred_fallthru
          _
        // Predicated region
        $region97: #{tpu_custom_call.1} parent=75 // pred_check
          %p535 = pneg %p272
        $region98: #{tpu_custom_call.1} parent=75 // pred_check_branch
          %537 = sbr.rel (%p535) target = $region100
        $region99: #{tpu_custom_call.1} parent=75 // pred_region
          %538 = dma.done [#allocation12], 4096
        $region100: #{tpu_custom_call.1} parent=75 // pred_fallthru
          _
        %s539 = sand.u32 %s44, 1
        %s540 = scalar_lea.sflag [#allocation3], %s539
        %s541 = sand.u32 %s44, 1
        %s542 = smul.addr %s541, 16
        %s543 = scalar_lea.vmem [#allocation2], %s542
        %p544 = pneg %p57
        %p545 = pneg %p54
        %s546 = sand.u32 %s36, 1
        %s547 = scalar_lea.sflag [#allocation6], %s546
        %s548 = sand.u32 %s70, 1
        %s549 = smul.addr %s548, 8
        %s550 = scalar_lea.vmem [#allocation5], %s549
        %p551 = pneg %p83
        %p552 = pneg %p80
        %p553 = pneg %p104
        %p554 = pneg %p101
        %p555 = pneg %p125
        %p556 = pneg %p122
        %p557 = pneg %p146
        %p558 = pneg %p143
        %p559 = pneg %p167
        %p560 = pneg %p164
        %p561 = pneg %p188
        %p562 = pneg %p185
        %p563 = pneg %p209
        %p564 = pneg %p206
        %p565 = pneg %p230
        %p566 = pneg %p227
        %p567 = pneg %p251
        %p568 = pneg %p248
        %p569 = pneg %p272
        %p570 = pneg %p269
        %p571 = pneg %p293
        %p572 = pneg %p290
        %p573 = pneg %p314
        %p574 = pneg %p311
        %p575 = pneg %p335
        %p576 = pneg %p332
        %p577 = pneg %p361
        %p578 = pneg %p358
        %s579 = sand.u32 %s348, 1
        %s580 = scalar_lea.sflag [#allocation4], %s579
        %s581 = sand.u32 %s348, 1
        %s582 = smul.addr %s581, 16
        %s583 = scalar_lea.vmem [#allocation13], %s582
        %v585 = vld [vmem:[%s509] sm:$0xff]
        %v586 = vld [vmem:[%s509 + $0x8] sm:$0xff]
        %v587 = vpack.c.bf16 %v586, %v585
        %v588 = vld [vmem:[#allocation7] sm:$0xff]
        %v589 = vld [vmem:[#allocation7 + $0x8] sm:$0xf]
        %v590 = vld [vmem:[#allocation7 + $0xc] sm:$0xff]
        %v591 = vld [vmem:[#allocation7 + $0x14] sm:$0xf]
        %v592 = vld [vmem:[#allocation7 + $0x18] sm:$0xff]
        %v593 = vld [vmem:[#allocation7 + $0x20] sm:$0xf]
        %v594 = vld [vmem:[#allocation7 + $0x24] sm:$0xff]
        %v595 = vld [vmem:[#allocation7 + $0x2c] sm:$0xf]
        %v596 = vld [vmem:[#allocation7 + $0x30] sm:$0xff]
        %v597 = vld [vmem:[#allocation7 + $0x38] sm:$0xf]
        %v598 = vld [vmem:[#allocation7 + $0x3c] sm:$0xff]
        %v599 = vld [vmem:[#allocation7 + $0x44] sm:$0xf]
        %v600 = vld [vmem:[#allocation7 + $0x48] sm:$0xff]
        %v601 = vld [vmem:[#allocation7 + $0x50] sm:$0xf]
        %v602 = vld [vmem:[#allocation7 + $0x54] sm:$0xff]
        %v603 = vld [vmem:[#allocation7 + $0x5c] sm:$0xf]
        %v604 = vld [vmem:[#allocation7 + $0x60] sm:$0xff]
        %v605 = vld [vmem:[#allocation7 + $0x68] sm:$0xf]
        %v606 = vld [vmem:[#allocation7 + $0x6c] sm:$0xff]
        %v607 = vld [vmem:[#allocation7 + $0x74] sm:$0xf]
        %v608 = vld [vmem:[#allocation7 + $0x78] sm:$0xff]
        %v609 = vld [vmem:[#allocation7 + $0x80] sm:$0xf]
        %v610 = vld [vmem:[#allocation7 + $0x84] sm:$0xff]
        %v611 = vld [vmem:[#allocation7 + $0x8c] sm:$0xf]
        %v612 = vld [vmem:[#allocation7 + $0x90] sm:$0xff]
        %v613 = vld [vmem:[#allocation7 + $0x98] sm:$0xf]
        %v614 = vld [vmem:[#allocation7 + $0x9c] sm:$0xff]
        %v615 = vld [vmem:[#allocation7 + $0xa4] sm:$0xf]
        %v616 = vld [vmem:[#allocation7 + $0xa8] sm:$0xff]
        %v617 = vld [vmem:[#allocation7 + $0xb0] sm:$0xf]
        %v618 = vld [vmem:[#allocation7 + $0xb4] sm:$0xff]
        %v619 = vld [vmem:[#allocation7 + $0xbc] sm:$0xf]
        %v620 = vld [vmem:[%s3] sm:$0x7]
        %v622 = vlaneseq
        %v623 = vshrl.u32 %v622, 7
        %v624 = vsub.s32 0, %v623
        %v625 = vrot.slane %v620, %v624
        %v626 = vlaneseq
        %v627 = vshrl.u32 %v626, 7
        %v628 = vsub.s32 1, %v627
        %v629 = vrot.slane %v620, %v628
        %v630 = vlaneseq
        %v631 = vshrl.u32 %v630, 7
        %v632 = vsub.s32 2, %v631
        %v633 = vrot.slane %v620, %v632
        %v669 = vunpack.c.l.b16 %v588
        %v670 = vunpack.c.h.b16 %v588
        %v671 = vunpack.c.l.b16 %v589
        %v672 = vunpack.c.l.b16 %v590
        %v673 = vunpack.c.h.b16 %v590
        %v674 = vunpack.c.l.b16 %v591
        %v675 = vunpack.c.l.b16 %v592
        %v676 = vunpack.c.h.b16 %v592
        %v677 = vunpack.c.l.b16 %v593
        %v678 = vunpack.c.l.b16 %v594
        %v679 = vunpack.c.h.b16 %v594
        %v680 = vunpack.c.l.b16 %v595
        %v681 = vunpack.c.l.b16 %v596
        %v682 = vunpack.c.h.b16 %v596
        %v683 = vunpack.c.l.b16 %v597
        %v684 = vunpack.c.l.b16 %v598
        %v685 = vunpack.c.h.b16 %v598
        %v686 = vunpack.c.l.b16 %v599
        %v687 = vunpack.c.l.b16 %v600
        %v688 = vunpack.c.h.b16 %v600
        %v689 = vunpack.c.l.b16 %v601
        %v690 = vunpack.c.l.b16 %v602
        %v691 = vunpack.c.h.b16 %v602
        %v692 = vunpack.c.l.b16 %v603
        %v693 = vunpack.c.l.b16 %v604
        %v694 = vunpack.c.h.b16 %v604
        %v695 = vunpack.c.l.b16 %v605
        %v696 = vunpack.c.l.b16 %v606
        %v697 = vunpack.c.h.b16 %v606
        %v698 = vunpack.c.l.b16 %v607
        %v699 = vunpack.c.l.b16 %v608
        %v700 = vunpack.c.h.b16 %v608
        %v701 = vunpack.c.l.b16 %v609
        %v702 = vunpack.c.l.b16 %v610
        %v703 = vunpack.c.h.b16 %v610
        %v704 = vunpack.c.l.b16 %v611
        %v705 = vunpack.c.l.b16 %v612
        %v706 = vunpack.c.h.b16 %v612
        %v707 = vunpack.c.l.b16 %v613
        %v708 = vunpack.c.l.b16 %v614
        %v709 = vunpack.c.h.b16 %v614
        %v710 = vunpack.c.l.b16 %v615
        %v711 = vunpack.c.l.b16 %v616
        %v712 = vunpack.c.h.b16 %v616
        %v713 = vunpack.c.l.b16 %v617
        %v714 = vunpack.c.l.b16 %v618
        %v715 = vunpack.c.h.b16 %v618
        %v716 = vunpack.c.l.b16 %v619
        %v717 = vpack.c.b16 %v672, %v669
        %v718 = vpack.c.b16 %v673, %v670
        %v719 = vpack.c.b16 %v674, %v671
        %v720 = vpack.c.b16 %v678, %v675
        %v721 = vpack.c.b16 %v679, %v676
        %v722 = vpack.c.b16 %v680, %v677
        %v723 = vpack.c.b16 %v684, %v681
        %v724 = vpack.c.b16 %v685, %v682
        %v725 = vpack.c.b16 %v686, %v683
        %v726 = vpack.c.b16 %v690, %v687
        %v727 = vpack.c.b16 %v691, %v688
        %v728 = vpack.c.b16 %v692, %v689
        %v729 = vpack.c.b16 %v696, %v693
        %v730 = vpack.c.b16 %v697, %v694
        %v731 = vpack.c.b16 %v698, %v695
        %v732 = vpack.c.b16 %v702, %v699
        %v733 = vpack.c.b16 %v703, %v700
        %v734 = vpack.c.b16 %v704, %v701
        %v735 = vpack.c.b16 %v708, %v705
        %v736 = vpack.c.b16 %v709, %v706
        %v737 = vpack.c.b16 %v710, %v707
        %v738 = vpack.c.b16 %v714, %v711
        %v739 = vpack.c.b16 %v715, %v712
        %v740 = vpack.c.b16 %v716, %v713
        %765 = vmatprep.subr.bf16.mxu0 %v739
        %766 = vmatpush1.bf16.msra.mxu0 %v738
        %767 = vmatprep.subr.bf16.mxu0 %v736
        %768 = vmatpush1.bf16.msra.mxu0 %v735
        %769 = vmatprep.subr.bf16.mxu0 %v733
        %770 = vmatpush1.bf16.msra.mxu0 %v732
        %771 = vmatprep.subr.bf16.mxu0 %v730
        %772 = vmatpush1.bf16.msra.mxu0 %v729
        %773 = vmatprep.subr.bf16.mxu0 %v727
        %774 = vmatpush1.bf16.msra.mxu0 %v726
        %775 = vmatprep.subr.bf16.mxu0 %v724
        %776 = vmatpush1.bf16.msra.mxu0 %v723
        %777 = vmatprep.subr.bf16.mxu0 %v721
        %778 = vmatpush1.bf16.msra.mxu0 %v720
        %779 = vmatprep.subr.bf16.mxu0 %v718
        %780 = vmatpush1.bf16.msra.mxu0 %v717
        %781 = vmatprep.subr.bf16.mxu0 0
        %782 = vmatpush2.bf16.msra.mxu0 0
        %783 = vmatprep.subr.bf16.mxu0 0
        %784 = vmatpush2.bf16.msra.mxu0 0
        %785 = vmatprep.subr.bf16.mxu0 0
        %786 = vmatpush2.bf16.msra.mxu0 0
        %787 = vmatprep.subr.bf16.mxu0 0
        %788 = vmatpush2.bf16.msra.mxu0 0
        %789 = vmatprep.subr.bf16.mxu0 0
        %790 = vmatpush2.bf16.msra.mxu0 0
        %791 = vmatprep.subr.bf16.mxu0 0
        %792 = vmatpush2.bf16.msra.mxu0 0
        %793 = vmatprep.subr.bf16.mxu0 0
        %794 = vmatpush2.bf16.msra.mxu0 0
        %795 = vmatprep.subr.bf16.mxu0 0
        %796 = vmatpush2.bf16.msra.mxu0 0
        %797 = vmatprep.mubr.bf16.mxu0 0
        %798 = vmatmul.mubr.bf16.gmra.mxu0 %v587
        %v799 = vpop.f32.mrf.mxu0
        %v800 = vadd.f32 %v625, %v799
        %v801 = vpop.f32.mrf.mxu0
        %v802 = vadd.f32 %v629, %v801
        %v803 = vpop.f32.mrf.mxu0
        %v804 = vadd.f32 %v625, %v803
        %v805 = vpop.f32.mrf.mxu0
        %v806 = vadd.f32 %v629, %v805
        %807 = vdwg.mxu0
        %808 = vmatprep.subr.bf16.mxu0 0
        %809 = vmatpush1.bf16.msra.mxu0 %v740
        %810 = vmatprep.subr.bf16.mxu0 0
        %811 = vmatpush1.bf16.msra.mxu0 %v737
        %812 = vmatprep.subr.bf16.mxu0 0
        %813 = vmatpush1.bf16.msra.mxu0 %v734
        %814 = vmatprep.subr.bf16.mxu0 0
        %815 = vmatpush1.bf16.msra.mxu0 %v731
        %816 = vmatprep.subr.bf16.mxu0 0
        %817 = vmatpush1.bf16.msra.mxu0 %v728
        %818 = vmatprep.subr.bf16.mxu0 0
        %819 = vmatpush1.bf16.msra.mxu0 %v725
        %820 = vmatprep.subr.bf16.mxu0 0
        %821 = vmatpush1.bf16.msra.mxu0 %v722
        %822 = vmatprep.subr.bf16.mxu0 0
        %823 = vmatpush1.bf16.msra.mxu0 %v719
        %824 = vmatprep.subr.bf16.mxu0 0
        %825 = vmatpush2.bf16.msra.mxu0 0
        %826 = vmatprep.subr.bf16.mxu0 0
        %827 = vmatpush2.bf16.msra.mxu0 0
        %828 = vmatprep.subr.bf16.mxu0 0
        %829 = vmatpush2.bf16.msra.mxu0 0
        %830 = vmatprep.subr.bf16.mxu0 0
        %831 = vmatpush2.bf16.msra.mxu0 0
        %832 = vmatprep.subr.bf16.mxu0 0
        %833 = vmatpush2.bf16.msra.mxu0 0
        %834 = vmatprep.subr.bf16.mxu0 0
        %835 = vmatpush2.bf16.msra.mxu0 0
        %836 = vmatprep.subr.bf16.mxu0 0
        %837 = vmatpush2.bf16.msra.mxu0 0
        %838 = vmatprep.subr.bf16.mxu0 0
        %839 = vmatpush2.bf16.msra.mxu0 0
        %840 = vmatprep.mubr.bf16.mxu0 0
        %841 = vmatmul.mubr.bf16.gmra.mxu0 %v587
        %v842 = vpop.f32.mrf.mxu0
        %v843 = vadd.f32 %v633, %v842
        %v844 = vpop.f32.mrf.mxu0
        %v845 = vpop.f32.mrf.mxu0
        %v846 = vadd.f32 %v633, %v845
        %v847 = vpop.f32.mrf.mxu0
        %848 = vdwg.mxu0
        %v849 = vmul.f32 %v800, 0.17677669
        %v850 = vmul.f32 %v804, 0.17677669
        %v851 = vpack.c.bf16 %v850, %v849
        %v852 = vpack.c.bf16 %v806, %v802
        %v853 = vpack.c.bf16 %v846, %v843
        %855 = vrot.lane.b32.xlu0 %v851, 96
        %v856 = vpop.permute.xlu0 %855
        %857 = vrot.lane.b32.xlu0 %v851, 64
        %v858 = vpop.permute.xlu0 %857
        %859 = vrot.lane.b32.xlu0 %v851, 32
        %v860 = vpop.permute.xlu0 %859
        %v863 = vpack.i.b16 %v856, %v851
        %v865 = vshrl.u32 %v851, 16
        %v866 = vshrl.u32 %v856, 16
        %v867 = vpack.i.b16 %v866, %v865
        %v871 = vpack.i.b16 %v860, %v858
        %v873 = vshrl.u32 %v858, 16
        %v874 = vshrl.u32 %v860, 16
        %v875 = vpack.i.b16 %v874, %v873
        %v878 = vpack.i.b16 0, 0
        %v880 = vshrl.u32 0, 16
        %v881 = vpack.i.b16 %v880, %v880
        %v883 = vcombine.high %v863, %v878
        %v885 = vunpack.c.l.s4 1983009808
        %v886 = vunpack.c.0.s8 %v885
        %v887 = vlaneseq
        %v888 = vshrl.u32 %v887, 7
        %v889 = vsub.s32 %v886, %v888
        %v890 = vrot.slane %v863, %v889
        %v892 = vunpack.c.l.s4 1983009808
        %v893 = vunpack.c.0.s8 %v892
        %v894 = vlaneseq
        %v895 = vshrl.u32 %v894, 7
        %v896 = vsub.s32 %v893, %v895
        %v897 = vrot.slane %v883, %v896
        %v898 = vcombine.high %v871, %v878
        %v900 = vunpack.c.l.s4 1983009808
        %v901 = vunpack.c.0.s8 %v900
        %v902 = vlaneseq
        %v903 = vshrl.u32 %v902, 7
        %v904 = vsub.s32 %v901, %v903
        %v905 = vrot.slane %v871, %v904
        %v907 = vunpack.c.l.s4 1983009808
        %v908 = vunpack.c.0.s8 %v907
        %v909 = vlaneseq
        %v910 = vshrl.u32 %v909, 7
        %v911 = vsub.s32 %v908, %v910
        %v912 = vrot.slane %v898, %v911
        %v913 = vcombine.low %v890, %v905
        %v914 = vcombine.high %v890, %v905
        %v916 = vunpack.c.l.s4 1934713408
        %v917 = vunpack.c.0.s8 %v916
        %v918 = vlaneseq
        %v919 = vshrl.u32 %v918, 7
        %v920 = vsub.s32 %v917, %v919
        %v921 = vrot.slane %v913, %v920
        %v923 = vunpack.c.l.s4 1934713408
        %v924 = vunpack.c.0.s8 %v923
        %v925 = vlaneseq
        %v926 = vshrl.u32 %v925, 7
        %v927 = vsub.s32 %v924, %v926
        %v928 = vrot.slane %v914, %v927
        %v929 = vcombine.low %v897, %v912
        %v930 = vcombine.high %v897, %v912
        %v932 = vunpack.c.l.s4 1934713408
        %v933 = vunpack.c.0.s8 %v932
        %v934 = vlaneseq
        %v935 = vshrl.u32 %v934, 7
        %v936 = vsub.s32 %v933, %v935
        %v937 = vrot.slane %v929, %v936
        %v939 = vunpack.c.l.s4 1934713408
        %v940 = vunpack.c.0.s8 %v939
        %v941 = vlaneseq
        %v942 = vshrl.u32 %v941, 7
        %v943 = vsub.s32 %v940, %v942
        %v944 = vrot.slane %v930, %v943
        %v945 = vcombine.high %v921, 0
        %v946 = vcombine.high %v928, 0
        %v947 = vcombine.high %v937, 0
        %v948 = vcombine.high %v944, 0
        %v949 = vcombine.high %v867, %v881
        %v951 = vunpack.c.l.s4 1983009808
        %v952 = vunpack.c.0.s8 %v951
        %v953 = vlaneseq
        %v954 = vshrl.u32 %v953, 7
        %v955 = vsub.s32 %v952, %v954
        %v956 = vrot.slane %v867, %v955
        %v958 = vunpack.c.l.s4 1983009808
        %v959 = vunpack.c.0.s8 %v958
        %v960 = vlaneseq
        %v961 = vshrl.u32 %v960, 7
        %v962 = vsub.s32 %v959, %v961
        %v963 = vrot.slane %v949, %v962
        %v964 = vcombine.high %v875, %v881
        %v966 = vunpack.c.l.s4 1983009808
        %v967 = vunpack.c.0.s8 %v966
        %v968 = vlaneseq
        %v969 = vshrl.u32 %v968, 7
        %v970 = vsub.s32 %v967, %v969
        %v971 = vrot.slane %v875, %v970
        %v973 = vunpack.c.l.s4 1983009808
        %v974 = vunpack.c.0.s8 %v973
        %v975 = vlaneseq
        %v976 = vshrl.u32 %v975, 7
        %v977 = vsub.s32 %v974, %v976
        %v978 = vrot.slane %v964, %v977
        %v979 = vcombine.low %v956, %v971
        %v980 = vcombine.high %v956, %v971
        %v982 = vunpack.c.l.s4 1934713408
        %v983 = vunpack.c.0.s8 %v982
        %v984 = vlaneseq
        %v985 = vshrl.u32 %v984, 7
        %v986 = vsub.s32 %v983, %v985
        %v987 = vrot.slane %v979, %v986
        %v989 = vunpack.c.l.s4 1934713408
        %v990 = vunpack.c.0.s8 %v989
        %v991 = vlaneseq
        %v992 = vshrl.u32 %v991, 7
        %v993 = vsub.s32 %v990, %v992
        %v994 = vrot.slane %v980, %v993
        %v995 = vcombine.low %v963, %v978
        %v996 = vcombine.high %v963, %v978
        %v998 = vunpack.c.l.s4 1934713408
        %v999 = vunpack.c.0.s8 %v998
        %v1000 = vlaneseq
        %v1001 = vshrl.u32 %v1000, 7
        %v1002 = vsub.s32 %v999, %v1001
        %v1003 = vrot.slane %v995, %v1002
        %v1005 = vunpack.c.l.s4 1934713408
        %v1006 = vunpack.c.0.s8 %v1005
        %v1007 = vlaneseq
        %v1008 = vshrl.u32 %v1007, 7
        %v1009 = vsub.s32 %v1006, %v1008
        %v1010 = vrot.slane %v996, %v1009
        %v1011 = vcombine.high %v987, 0
        %v1012 = vcombine.high %v994, 0
        %v1013 = vcombine.high %v1003, 0
        %v1014 = vcombine.high %v1010, 0
        %v1015 = vcombine.low %v921, %v928
        %v1017 = vunpack.c.l.s4 1983009808
        %v1018 = vunpack.c.0.s8 %v1017
        %v1019 = vlaneseq
        %v1020 = vshrl.u32 %v1019, 7
        %v1021 = vsub.s32 %v1018, %v1020
        %v1022 = vrot.slane %v1015, %v1021
        %v1023 = vcombine.low %v945, %v946
        %v1025 = vunpack.c.l.s4 1983009808
        %v1026 = vunpack.c.0.s8 %v1025
        %v1027 = vlaneseq
        %v1028 = vshrl.u32 %v1027, 7
        %v1029 = vsub.s32 %v1026, %v1028
        %v1030 = vrot.slane %v1023, %v1029
        %v1031 = vcombine.low %v937, %v944
        %v1033 = vunpack.c.l.s4 1983009808
        %v1034 = vunpack.c.0.s8 %v1033
        %v1035 = vlaneseq
        %v1036 = vshrl.u32 %v1035, 7
        %v1037 = vsub.s32 %v1034, %v1036
        %v1038 = vrot.slane %v1031, %v1037
        %v1039 = vcombine.low %v947, %v948
        %v1041 = vunpack.c.l.s4 1983009808
        %v1042 = vunpack.c.0.s8 %v1041
        %v1043 = vlaneseq
        %v1044 = vshrl.u32 %v1043, 7
        %v1045 = vsub.s32 %v1042, %v1044
        %v1046 = vrot.slane %v1039, %v1045
        %v1047 = vcombine.low %v1022, %v1030
        %v1049 = vunpack.c.l.s4 1934713408
        %v1050 = vunpack.c.0.s8 %v1049
        %v1051 = vlaneseq
        %v1052 = vshrl.u32 %v1051, 7
        %v1053 = vsub.s32 %v1050, %v1052
        %v1054 = vrot.slane %v1047, %v1053
        %v1055 = vcombine.low %v1038, %v1046
        %v1057 = vunpack.c.l.s4 1934713408
        %v1058 = vunpack.c.0.s8 %v1057
        %v1059 = vlaneseq
        %v1060 = vshrl.u32 %v1059, 7
        %v1061 = vsub.s32 %v1058, %v1060
        %v1062 = vrot.slane %v1055, %v1061
        %v1063 = vcombine.low %v1054, %v1062
        %v1064 = vcombine.high %v1054, %v1062
        %v1065 = vcombine.low %v987, %v994
        %v1067 = vunpack.c.l.s4 1983009808
        %v1068 = vunpack.c.0.s8 %v1067
        %v1069 = vlaneseq
        %v1070 = vshrl.u32 %v1069, 7
        %v1071 = vsub.s32 %v1068, %v1070
        %v1072 = vrot.slane %v1065, %v1071
        %v1073 = vcombine.low %v1011, %v1012
        %v1075 = vunpack.c.l.s4 1983009808
        %v1076 = vunpack.c.0.s8 %v1075
        %v1077 = vlaneseq
        %v1078 = vshrl.u32 %v1077, 7
        %v1079 = vsub.s32 %v1076, %v1078
        %v1080 = vrot.slane %v1073, %v1079
        %v1081 = vcombine.low %v1003, %v1010
        %v1083 = vunpack.c.l.s4 1983009808
        %v1084 = vunpack.c.0.s8 %v1083
        %v1085 = vlaneseq
        %v1086 = vshrl.u32 %v1085, 7
        %v1087 = vsub.s32 %v1084, %v1086
        %v1088 = vrot.slane %v1081, %v1087
        %v1089 = vcombine.low %v1013, %v1014
        %v1091 = vunpack.c.l.s4 1983009808
        %v1092 = vunpack.c.0.s8 %v1091
        %v1093 = vlaneseq
        %v1094 = vshrl.u32 %v1093, 7
        %v1095 = vsub.s32 %v1092, %v1094
        %v1096 = vrot.slane %v1089, %v1095
        %v1097 = vcombine.low %v1072, %v1080
        %v1099 = vunpack.c.l.s4 1934713408
        %v1100 = vunpack.c.0.s8 %v1099
        %v1101 = vlaneseq
        %v1102 = vshrl.u32 %v1101, 7
        %v1103 = vsub.s32 %v1100, %v1102
        %v1104 = vrot.slane %v1097, %v1103
        %v1105 = vcombine.low %v1088, %v1096
        %v1107 = vunpack.c.l.s4 1934713408
        %v1108 = vunpack.c.0.s8 %v1107
        %v1109 = vlaneseq
        %v1110 = vshrl.u32 %v1109, 7
        %v1111 = vsub.s32 %v1108, %v1110
        %v1112 = vrot.slane %v1105, %v1111
        %v1113 = vcombine.low %v1104, %v1112
        %v1114 = vcombine.high %v1104, %v1112
        %v1117 = vpack.i.b16 %v1113, %v1063
        %v1118 = vshrl.u32 %v1063, 16
        %v1119 = vshrl.u32 %v1113, 16
        %v1120 = vpack.i.b16 %v1119, %v1118
        %v1123 = vpack.i.b16 %v1114, %v1064
        %v1124 = vshrl.u32 %v1064, 16
        %v1125 = vshrl.u32 %v1114, 16
        %v1126 = vpack.i.b16 %v1125, %v1124
        %1128 = vrot.lane.b32.xlu0 %v852, 96
        %v1129 = vpop.permute.xlu0 %1128
        %1130 = vrot.lane.b32.xlu0 %v852, 64
        %v1131 = vpop.permute.xlu0 %1130
        %1132 = vrot.lane.b32.xlu0 %v852, 32
        %v1133 = vpop.permute.xlu0 %1132
        %v1136 = vpack.i.b16 %v1129, %v852
        %v1138 = vshrl.u32 %v852, 16
        %v1139 = vshrl.u32 %v1129, 16
        %v1140 = vpack.i.b16 %v1139, %v1138
        %v1144 = vpack.i.b16 %v1133, %v1131
        %v1146 = vshrl.u32 %v1131, 16
        %v1147 = vshrl.u32 %v1133, 16
        %v1148 = vpack.i.b16 %v1147, %v1146
        %v1150 = vcombine.high %v1136, %v878
        %v1152 = vunpack.c.l.s4 1983009808
        %v1153 = vunpack.c.0.s8 %v1152
        %v1154 = vlaneseq
        %v1155 = vshrl.u32 %v1154, 7
        %v1156 = vsub.s32 %v1153, %v1155
        %v1157 = vrot.slane %v1136, %v1156
        %v1159 = vunpack.c.l.s4 1983009808
        %v1160 = vunpack.c.0.s8 %v1159
        %v1161 = vlaneseq
        %v1162 = vshrl.u32 %v1161, 7
        %v1163 = vsub.s32 %v1160, %v1162
        %v1164 = vrot.slane %v1150, %v1163
        %v1165 = vcombine.high %v1144, %v878
        %v1167 = vunpack.c.l.s4 1983009808
        %v1168 = vunpack.c.0.s8 %v1167
        %v1169 = vlaneseq
        %v1170 = vshrl.u32 %v1169, 7
        %v1171 = vsub.s32 %v1168, %v1170
        %v1172 = vrot.slane %v1144, %v1171
        %v1174 = vunpack.c.l.s4 1983009808
        %v1175 = vunpack.c.0.s8 %v1174
        %v1176 = vlaneseq
        %v1177 = vshrl.u32 %v1176, 7
        %v1178 = vsub.s32 %v1175, %v1177
        %v1179 = vrot.slane %v1165, %v1178
        %v1180 = vcombine.low %v1157, %v1172
        %v1181 = vcombine.high %v1157, %v1172
        %v1183 = vunpack.c.l.s4 1934713408
        %v1184 = vunpack.c.0.s8 %v1183
        %v1185 = vlaneseq
        %v1186 = vshrl.u32 %v1185, 7
        %v1187 = vsub.s32 %v1184, %v1186
        %v1188 = vrot.slane %v1180, %v1187
        %v1190 = vunpack.c.l.s4 1934713408
        %v1191 = vunpack.c.0.s8 %v1190
        %v1192 = vlaneseq
        %v1193 = vshrl.u32 %v1192, 7
        %v1194 = vsub.s32 %v1191, %v1193
        %v1195 = vrot.slane %v1181, %v1194
        %v1196 = vcombine.low %v1164, %v1179
        %v1197 = vcombine.high %v1164, %v1179
        %v1199 = vunpack.c.l.s4 1934713408
        %v1200 = vunpack.c.0.s8 %v1199
        %v1201 = vlaneseq
        %v1202 = vshrl.u32 %v1201, 7
        %v1203 = vsub.s32 %v1200, %v1202
        %v1204 = vrot.slane %v1196, %v1203
        %v1206 = vunpack.c.l.s4 1934713408
        %v1207 = vunpack.c.0.s8 %v1206
        %v1208 = vlaneseq
        %v1209 = vshrl.u32 %v1208, 7
        %v1210 = vsub.s32 %v1207, %v1209
        %v1211 = vrot.slane %v1197, %v1210
        %v1212 = vcombine.high %v1188, 0
        %v1213 = vcombine.high %v1195, 0
        %v1214 = vcombine.high %v1204, 0
        %v1215 = vcombine.high %v1211, 0
        %v1216 = vcombine.high %v1140, %v881
        %v1218 = vunpack.c.l.s4 1983009808
        %v1219 = vunpack.c.0.s8 %v1218
        %v1220 = vlaneseq
        %v1221 = vshrl.u32 %v1220, 7
        %v1222 = vsub.s32 %v1219, %v1221
        %v1223 = vrot.slane %v1140, %v1222
        %v1225 = vunpack.c.l.s4 1983009808
        %v1226 = vunpack.c.0.s8 %v1225
        %v1227 = vlaneseq
        %v1228 = vshrl.u32 %v1227, 7
        %v1229 = vsub.s32 %v1226, %v1228
        %v1230 = vrot.slane %v1216, %v1229
        %v1231 = vcombine.high %v1148, %v881
        %v1233 = vunpack.c.l.s4 1983009808
        %v1234 = vunpack.c.0.s8 %v1233
        %v1235 = vlaneseq
        %v1236 = vshrl.u32 %v1235, 7
        %v1237 = vsub.s32 %v1234, %v1236
        %v1238 = vrot.slane %v1148, %v1237
        %v1240 = vunpack.c.l.s4 1983009808
        %v1241 = vunpack.c.0.s8 %v1240
        %v1242 = vlaneseq
        %v1243 = vshrl.u32 %v1242, 7
        %v1244 = vsub.s32 %v1241, %v1243
        %v1245 = vrot.slane %v1231, %v1244
        %v1246 = vcombine.low %v1223, %v1238
        %v1247 = vcombine.high %v1223, %v1238
        %v1249 = vunpack.c.l.s4 1934713408
        %v1250 = vunpack.c.0.s8 %v1249
        %v1251 = vlaneseq
        %v1252 = vshrl.u32 %v1251, 7
        %v1253 = vsub.s32 %v1250, %v1252
        %v1254 = vrot.slane %v1246, %v1253
        %v1256 = vunpack.c.l.s4 1934713408
        %v1257 = vunpack.c.0.s8 %v1256
        %v1258 = vlaneseq
        %v1259 = vshrl.u32 %v1258, 7
        %v1260 = vsub.s32 %v1257, %v1259
        %v1261 = vrot.slane %v1247, %v1260
        %v1262 = vcombine.low %v1230, %v1245
        %v1263 = vcombine.high %v1230, %v1245
        %v1265 = vunpack.c.l.s4 1934713408
        %v1266 = vunpack.c.0.s8 %v1265
        %v1267 = vlaneseq
        %v1268 = vshrl.u32 %v1267, 7
        %v1269 = vsub.s32 %v1266, %v1268
        %v1270 = vrot.slane %v1262, %v1269
        %v1272 = vunpack.c.l.s4 1934713408
        %v1273 = vunpack.c.0.s8 %v1272
        %v1274 = vlaneseq
        %v1275 = vshrl.u32 %v1274, 7
        %v1276 = vsub.s32 %v1273, %v1275
        %v1277 = vrot.slane %v1263, %v1276
        %v1278 = vcombine.high %v1254, 0
        %v1279 = vcombine.high %v1261, 0
        %v1280 = vcombine.high %v1270, 0
        %v1281 = vcombine.high %v1277, 0
        %v1282 = vcombine.low %v1188, %v1195
        %v1284 = vunpack.c.l.s4 1983009808
        %v1285 = vunpack.c.0.s8 %v1284
        %v1286 = vlaneseq
        %v1287 = vshrl.u32 %v1286, 7
        %v1288 = vsub.s32 %v1285, %v1287
        %v1289 = vrot.slane %v1282, %v1288
        %v1290 = vcombine.low %v1212, %v1213
        %v1292 = vunpack.c.l.s4 1983009808
        %v1293 = vunpack.c.0.s8 %v1292
        %v1294 = vlaneseq
        %v1295 = vshrl.u32 %v1294, 7
        %v1296 = vsub.s32 %v1293, %v1295
        %v1297 = vrot.slane %v1290, %v1296
        %v1298 = vcombine.low %v1204, %v1211
        %v1300 = vunpack.c.l.s4 1983009808
        %v1301 = vunpack.c.0.s8 %v1300
        %v1302 = vlaneseq
        %v1303 = vshrl.u32 %v1302, 7
        %v1304 = vsub.s32 %v1301, %v1303
        %v1305 = vrot.slane %v1298, %v1304
        %v1306 = vcombine.low %v1214, %v1215
        %v1308 = vunpack.c.l.s4 1983009808
        %v1309 = vunpack.c.0.s8 %v1308
        %v1310 = vlaneseq
        %v1311 = vshrl.u32 %v1310, 7
        %v1312 = vsub.s32 %v1309, %v1311
        %v1313 = vrot.slane %v1306, %v1312
        %v1314 = vcombine.low %v1289, %v1297
        %v1316 = vunpack.c.l.s4 1934713408
        %v1317 = vunpack.c.0.s8 %v1316
        %v1318 = vlaneseq
        %v1319 = vshrl.u32 %v1318, 7
        %v1320 = vsub.s32 %v1317, %v1319
        %v1321 = vrot.slane %v1314, %v1320
        %v1322 = vcombine.low %v1305, %v1313
        %v1324 = vunpack.c.l.s4 1934713408
        %v1325 = vunpack.c.0.s8 %v1324
        %v1326 = vlaneseq
        %v1327 = vshrl.u32 %v1326, 7
        %v1328 = vsub.s32 %v1325, %v1327
        %v1329 = vrot.slane %v1322, %v1328
        %v1330 = vcombine.low %v1321, %v1329
        %v1331 = vcombine.high %v1321, %v1329
        %v1332 = vcombine.low %v1254, %v1261
        %v1334 = vunpack.c.l.s4 1983009808
        %v1335 = vunpack.c.0.s8 %v1334
        %v1336 = vlaneseq
        %v1337 = vshrl.u32 %v1336, 7
        %v1338 = vsub.s32 %v1335, %v1337
        %v1339 = vrot.slane %v1332, %v1338
        %v1340 = vcombine.low %v1278, %v1279
        %v1342 = vunpack.c.l.s4 1983009808
        %v1343 = vunpack.c.0.s8 %v1342
        %v1344 = vlaneseq
        %v1345 = vshrl.u32 %v1344, 7
        %v1346 = vsub.s32 %v1343, %v1345
        %v1347 = vrot.slane %v1340, %v1346
        %v1348 = vcombine.low %v1270, %v1277
        %v1350 = vunpack.c.l.s4 1983009808
        %v1351 = vunpack.c.0.s8 %v1350
        %v1352 = vlaneseq
        %v1353 = vshrl.u32 %v1352, 7
        %v1354 = vsub.s32 %v1351, %v1353
        %v1355 = vrot.slane %v1348, %v1354
        %v1356 = vcombine.low %v1280, %v1281
        %v1358 = vunpack.c.l.s4 1983009808
        %v1359 = vunpack.c.0.s8 %v1358
        %v1360 = vlaneseq
        %v1361 = vshrl.u32 %v1360, 7
        %v1362 = vsub.s32 %v1359, %v1361
        %v1363 = vrot.slane %v1356, %v1362
        %v1364 = vcombine.low %v1339, %v1347
        %v1366 = vunpack.c.l.s4 1934713408
        %v1367 = vunpack.c.0.s8 %v1366
        %v1368 = vlaneseq
        %v1369 = vshrl.u32 %v1368, 7
        %v1370 = vsub.s32 %v1367, %v1369
        %v1371 = vrot.slane %v1364, %v1370
        %v1372 = vcombine.low %v1355, %v1363
        %v1374 = vunpack.c.l.s4 1934713408
        %v1375 = vunpack.c.0.s8 %v1374
        %v1376 = vlaneseq
        %v1377 = vshrl.u32 %v1376, 7
        %v1378 = vsub.s32 %v1375, %v1377
        %v1379 = vrot.slane %v1372, %v1378
        %v1380 = vcombine.low %v1371, %v1379
        %v1381 = vcombine.high %v1371, %v1379
        %v1384 = vpack.i.b16 %v1380, %v1330
        %v1385 = vshrl.u32 %v1330, 16
        %v1386 = vshrl.u32 %v1380, 16
        %v1387 = vpack.i.b16 %v1386, %v1385
        %v1390 = vpack.i.b16 %v1381, %v1331
        %v1391 = vshrl.u32 %v1331, 16
        %v1392 = vshrl.u32 %v1381, 16
        %v1393 = vpack.i.b16 %v1392, %v1391
        %1395 = vrot.lane.b32.xlu0 %v853, 96
        %v1396 = vpop.permute.xlu0 %1395
        %1397 = vrot.lane.b32.xlu0 %v853, 64
        %v1398 = vpop.permute.xlu0 %1397
        %1399 = vrot.lane.b32.xlu0 %v853, 32
        %v1400 = vpop.permute.xlu0 %1399
        %v1403 = vpack.i.b16 %v1396, %v853
        %v1405 = vshrl.u32 %v853, 16
        %v1406 = vshrl.u32 %v1396, 16
        %v1407 = vpack.i.b16 %v1406, %v1405
        %v1411 = vpack.i.b16 %v1400, %v1398
        %v1413 = vshrl.u32 %v1398, 16
        %v1414 = vshrl.u32 %v1400, 16
        %v1415 = vpack.i.b16 %v1414, %v1413
        %v1417 = vcombine.high %v1403, %v878
        %v1419 = vunpack.c.l.s4 1983009808
        %v1420 = vunpack.c.0.s8 %v1419
        %v1421 = vlaneseq
        %v1422 = vshrl.u32 %v1421, 7
        %v1423 = vsub.s32 %v1420, %v1422
        %v1424 = vrot.slane %v1403, %v1423
        %v1426 = vunpack.c.l.s4 1983009808
        %v1427 = vunpack.c.0.s8 %v1426
        %v1428 = vlaneseq
        %v1429 = vshrl.u32 %v1428, 7
        %v1430 = vsub.s32 %v1427, %v1429
        %v1431 = vrot.slane %v1417, %v1430
        %v1432 = vcombine.high %v1411, %v878
        %v1434 = vunpack.c.l.s4 1983009808
        %v1435 = vunpack.c.0.s8 %v1434
        %v1436 = vlaneseq
        %v1437 = vshrl.u32 %v1436, 7
        %v1438 = vsub.s32 %v1435, %v1437
        %v1439 = vrot.slane %v1411, %v1438
        %v1441 = vunpack.c.l.s4 1983009808
        %v1442 = vunpack.c.0.s8 %v1441
        %v1443 = vlaneseq
        %v1444 = vshrl.u32 %v1443, 7
        %v1445 = vsub.s32 %v1442, %v1444
        %v1446 = vrot.slane %v1432, %v1445
        %v1447 = vcombine.low %v1424, %v1439
        %v1448 = vcombine.high %v1424, %v1439
        %v1450 = vunpack.c.l.s4 1934713408
        %v1451 = vunpack.c.0.s8 %v1450
        %v1452 = vlaneseq
        %v1453 = vshrl.u32 %v1452, 7
        %v1454 = vsub.s32 %v1451, %v1453
        %v1455 = vrot.slane %v1447, %v1454
        %v1457 = vunpack.c.l.s4 1934713408
        %v1458 = vunpack.c.0.s8 %v1457
        %v1459 = vlaneseq
        %v1460 = vshrl.u32 %v1459, 7
        %v1461 = vsub.s32 %v1458, %v1460
        %v1462 = vrot.slane %v1448, %v1461
        %v1463 = vcombine.low %v1431, %v1446
        %v1464 = vcombine.high %v1431, %v1446
        %v1466 = vunpack.c.l.s4 1934713408
        %v1467 = vunpack.c.0.s8 %v1466
        %v1468 = vlaneseq
        %v1469 = vshrl.u32 %v1468, 7
        %v1470 = vsub.s32 %v1467, %v1469
        %v1471 = vrot.slane %v1463, %v1470
        %v1473 = vunpack.c.l.s4 1934713408
        %v1474 = vunpack.c.0.s8 %v1473
        %v1475 = vlaneseq
        %v1476 = vshrl.u32 %v1475, 7
        %v1477 = vsub.s32 %v1474, %v1476
        %v1478 = vrot.slane %v1464, %v1477
        %v1479 = vcombine.high %v1455, 0
        %v1480 = vcombine.high %v1462, 0
        %v1481 = vcombine.high %v1471, 0
        %v1482 = vcombine.high %v1478, 0
        %v1483 = vcombine.high %v1407, %v881
        %v1485 = vunpack.c.l.s4 1983009808
        %v1486 = vunpack.c.0.s8 %v1485
        %v1487 = vlaneseq
        %v1488 = vshrl.u32 %v1487, 7
        %v1489 = vsub.s32 %v1486, %v1488
        %v1490 = vrot.slane %v1407, %v1489
        %v1492 = vunpack.c.l.s4 1983009808
        %v1493 = vunpack.c.0.s8 %v1492
        %v1494 = vlaneseq
        %v1495 = vshrl.u32 %v1494, 7
        %v1496 = vsub.s32 %v1493, %v1495
        %v1497 = vrot.slane %v1483, %v1496
        %v1498 = vcombine.high %v1415, %v881
        %v1500 = vunpack.c.l.s4 1983009808
        %v1501 = vunpack.c.0.s8 %v1500
        %v1502 = vlaneseq
        %v1503 = vshrl.u32 %v1502, 7
        %v1504 = vsub.s32 %v1501, %v1503
        %v1505 = vrot.slane %v1415, %v1504
        %v1507 = vunpack.c.l.s4 1983009808
        %v1508 = vunpack.c.0.s8 %v1507
        %v1509 = vlaneseq
        %v1510 = vshrl.u32 %v1509, 7
        %v1511 = vsub.s32 %v1508, %v1510
        %v1512 = vrot.slane %v1498, %v1511
        %v1513 = vcombine.low %v1490, %v1505
        %v1514 = vcombine.high %v1490, %v1505
        %v1516 = vunpack.c.l.s4 1934713408
        %v1517 = vunpack.c.0.s8 %v1516
        %v1518 = vlaneseq
        %v1519 = vshrl.u32 %v1518, 7
        %v1520 = vsub.s32 %v1517, %v1519
        %v1521 = vrot.slane %v1513, %v1520
        %v1523 = vunpack.c.l.s4 1934713408
        %v1524 = vunpack.c.0.s8 %v1523
        %v1525 = vlaneseq
        %v1526 = vshrl.u32 %v1525, 7
        %v1527 = vsub.s32 %v1524, %v1526
        %v1528 = vrot.slane %v1514, %v1527
        %v1529 = vcombine.low %v1497, %v1512
        %v1530 = vcombine.high %v1497, %v1512
        %v1532 = vunpack.c.l.s4 1934713408
        %v1533 = vunpack.c.0.s8 %v1532
        %v1534 = vlaneseq
        %v1535 = vshrl.u32 %v1534, 7
        %v1536 = vsub.s32 %v1533, %v1535
        %v1537 = vrot.slane %v1529, %v1536
        %v1539 = vunpack.c.l.s4 1934713408
        %v1540 = vunpack.c.0.s8 %v1539
        %v1541 = vlaneseq
        %v1542 = vshrl.u32 %v1541, 7
        %v1543 = vsub.s32 %v1540, %v1542
        %v1544 = vrot.slane %v1530, %v1543
        %v1545 = vcombine.high %v1521, 0
        %v1546 = vcombine.high %v1528, 0
        %v1547 = vcombine.high %v1537, 0
        %v1548 = vcombine.high %v1544, 0
        %v1549 = vcombine.low %v1455, %v1462
        %v1551 = vunpack.c.l.s4 1983009808
        %v1552 = vunpack.c.0.s8 %v1551
        %v1553 = vlaneseq
        %v1554 = vshrl.u32 %v1553, 7
        %v1555 = vsub.s32 %v1552, %v1554
        %v1556 = vrot.slane %v1549, %v1555
        %v1557 = vcombine.low %v1479, %v1480
        %v1559 = vunpack.c.l.s4 1983009808
        %v1560 = vunpack.c.0.s8 %v1559
        %v1561 = vlaneseq
        %v1562 = vshrl.u32 %v1561, 7
        %v1563 = vsub.s32 %v1560, %v1562
        %v1564 = vrot.slane %v1557, %v1563
        %v1565 = vcombine.low %v1471, %v1478
        %v1567 = vunpack.c.l.s4 1983009808
        %v1568 = vunpack.c.0.s8 %v1567
        %v1569 = vlaneseq
        %v1570 = vshrl.u32 %v1569, 7
        %v1571 = vsub.s32 %v1568, %v1570
        %v1572 = vrot.slane %v1565, %v1571
        %v1573 = vcombine.low %v1481, %v1482
        %v1575 = vunpack.c.l.s4 1983009808
        %v1576 = vunpack.c.0.s8 %v1575
        %v1577 = vlaneseq
        %v1578 = vshrl.u32 %v1577, 7
        %v1579 = vsub.s32 %v1576, %v1578
        %v1580 = vrot.slane %v1573, %v1579
        %v1581 = vcombine.low %v1556, %v1564
        %v1583 = vunpack.c.l.s4 1934713408
        %v1584 = vunpack.c.0.s8 %v1583
        %v1585 = vlaneseq
        %v1586 = vshrl.u32 %v1585, 7
        %v1587 = vsub.s32 %v1584, %v1586
        %v1588 = vrot.slane %v1581, %v1587
        %v1589 = vcombine.low %v1572, %v1580
        %v1591 = vunpack.c.l.s4 1934713408
        %v1592 = vunpack.c.0.s8 %v1591
        %v1593 = vlaneseq
        %v1594 = vshrl.u32 %v1593, 7
        %v1595 = vsub.s32 %v1592, %v1594
        %v1596 = vrot.slane %v1589, %v1595
        %v1597 = vcombine.low %v1588, %v1596
        %v1598 = vcombine.high %v1588, %v1596
        %v1599 = vcombine.low %v1521, %v1528
        %v1601 = vunpack.c.l.s4 1983009808
        %v1602 = vunpack.c.0.s8 %v1601
        %v1603 = vlaneseq
        %v1604 = vshrl.u32 %v1603, 7
        %v1605 = vsub.s32 %v1602, %v1604
        %v1606 = vrot.slane %v1599, %v1605
        %v1607 = vcombine.low %v1545, %v1546
        %v1609 = vunpack.c.l.s4 1983009808
        %v1610 = vunpack.c.0.s8 %v1609
        %v1611 = vlaneseq
        %v1612 = vshrl.u32 %v1611, 7
        %v1613 = vsub.s32 %v1610, %v1612
        %v1614 = vrot.slane %v1607, %v1613
        %v1615 = vcombine.low %v1537, %v1544
        %v1617 = vunpack.c.l.s4 1983009808
        %v1618 = vunpack.c.0.s8 %v1617
        %v1619 = vlaneseq
        %v1620 = vshrl.u32 %v1619, 7
        %v1621 = vsub.s32 %v1618, %v1620
        %v1622 = vrot.slane %v1615, %v1621
        %v1623 = vcombine.low %v1547, %v1548
        %v1625 = vunpack.c.l.s4 1983009808
        %v1626 = vunpack.c.0.s8 %v1625
        %v1627 = vlaneseq
        %v1628 = vshrl.u32 %v1627, 7
        %v1629 = vsub.s32 %v1626, %v1628
        %v1630 = vrot.slane %v1623, %v1629
        %v1631 = vcombine.low %v1606, %v1614
        %v1633 = vunpack.c.l.s4 1934713408
        %v1634 = vunpack.c.0.s8 %v1633
        %v1635 = vlaneseq
        %v1636 = vshrl.u32 %v1635, 7
        %v1637 = vsub.s32 %v1634, %v1636
        %v1638 = vrot.slane %v1631, %v1637
        %v1639 = vcombine.low %v1622, %v1630
        %v1641 = vunpack.c.l.s4 1934713408
        %v1642 = vunpack.c.0.s8 %v1641
        %v1643 = vlaneseq
        %v1644 = vshrl.u32 %v1643, 7
        %v1645 = vsub.s32 %v1642, %v1644
        %v1646 = vrot.slane %v1639, %v1645
        %v1647 = vcombine.low %v1638, %v1646
        %v1648 = vcombine.high %v1638, %v1646
        %v1651 = vpack.i.b16 %v1647, %v1597
        %v1653 = vshrl.u32 %v1597, 16
        %v1654 = vshrl.u32 %v1647, 16
        %v1655 = vpack.i.b16 %v1654, %v1653
        %v1659 = vpack.i.b16 %v1648, %v1598
        %v1661 = vshrl.u32 %v1598, 16
        %v1662 = vshrl.u32 %v1648, 16
        %v1663 = vpack.i.b16 %v1662, %v1661
        %v1665 = vld [vmem:[%s518] sm:$0xf]
        %v1666 = vld [vmem:[%s518 + $0x4] sm:$0xf]
        %v1667 = vunpack.c.l.bf16 %v1665
        %v1668 = vunpack.c.l.bf16 %v1666
        %vm1669 = vcmask 261120
        %v1671 = vsel %vm1669, %v1117, 0
        %v1674 = vsel %vm1669, %v1384, 0
        %1676 = vmatprep.subr.bf16.mxu0 0
        %1677 = vmatpush1.bf16.xpose.msra.mxu0 0
        %1678 = vmatprep.subr.bf16.mxu0 0
        %1679 = vmatpush1.bf16.xpose.msra.mxu0 0
        %1680 = vmatprep.subr.bf16.mxu0 0
        %1681 = vmatpush1.bf16.xpose.msra.mxu0 0
        %1682 = vmatprep.subr.bf16.mxu0 0
        %1683 = vmatpush1.bf16.xpose.msra.mxu0 0
        %1684 = vmatprep.subr.bf16.mxu0 0
        %1685 = vmatpush1.bf16.xpose.msra.mxu0 0
        %1686 = vmatprep.subr.bf16.mxu0 0
        %1687 = vmatpush1.bf16.xpose.msra.mxu0 0
        %1688 = vmatprep.subr.bf16.mxu0 0
        %1689 = vmatpush1.bf16.xpose.msra.mxu0 0
        %1690 = vmatprep.subr.bf16.mxu0 0
        %1691 = vmatpush1.bf16.xpose.msra.mxu0 %v1674
        %1692 = vmatprep.subr.bf16.mxu0 0
        %1693 = vmatpush2.bf16.xpose.msra.mxu0 0
        %1694 = vmatprep.subr.bf16.mxu0 0
        %1695 = vmatpush2.bf16.xpose.msra.mxu0 0
        %1696 = vmatprep.subr.bf16.mxu0 0
        %1697 = vmatpush2.bf16.xpose.msra.mxu0 0
        %1698 = vmatprep.subr.bf16.mxu0 0
        %1699 = vmatpush2.bf16.xpose.msra.mxu0 0
        %1700 = vmatprep.subr.bf16.mxu0 0
        %1701 = vmatpush2.bf16.xpose.msra.mxu0 0
        %1702 = vmatprep.subr.bf16.mxu0 0
        %1703 = vmatpush2.bf16.xpose.msra.mxu0 0
        %1704 = vmatprep.subr.bf16.mxu0 0
        %1705 = vmatpush2.bf16.xpose.msra.mxu0 0
        %1706 = vmatprep.subr.bf16.mxu0 0
        %1707 = vmatpush2.bf16.xpose.msra.mxu0 0
        %1708 = vmatprep.mubr.bf16.mxu0 0
        %1709 = vmatmul.mubr.bf16.gmra.mxu0 %v1671
        %v1710 = vpop.f32.mrf.mxu0
        %v1711 = vadd.f32 %v1667, %v1710
        %v1712 = vpop.f32.mrf.mxu0
        %v1713 = vpop.f32.mrf.mxu0
        %v1714 = vadd.f32 %v1668, %v1713
        %v1715 = vpop.f32.mrf.mxu0
        %1716 = vdwg.mxu0
        %v1718 = vsel %vm1669, %v1120, 0
        %v1721 = vsel %vm1669, %v1387, 0
        %1723 = vmatprep.subr.bf16.mxu0 0
        %1724 = vmatpush1.bf16.xpose.msra.mxu0 0
        %1725 = vmatprep.subr.bf16.mxu0 0
        %1726 = vmatpush1.bf16.xpose.msra.mxu0 0
        %1727 = vmatprep.subr.bf16.mxu0 0
        %1728 = vmatpush1.bf16.xpose.msra.mxu0 0
        %1729 = vmatprep.subr.bf16.mxu0 0
        %1730 = vmatpush1.bf16.xpose.msra.mxu0 0
        %1731 = vmatprep.subr.bf16.mxu0 0
        %1732 = vmatpush1.bf16.xpose.msra.mxu0 0
        %1733 = vmatprep.subr.bf16.mxu0 0
        %1734 = vmatpush1.bf16.xpose.msra.mxu0 0
        %1735 = vmatprep.subr.bf16.mxu0 0
        %1736 = vmatpush1.bf16.xpose.msra.mxu0 0
        %1737 = vmatprep.subr.bf16.mxu0 0
        %1738 = vmatpush1.bf16.xpose.msra.mxu0 %v1721
        %1739 = vmatprep.subr.bf16.mxu0 0
        %1740 = vmatpush2.bf16.xpose.msra.mxu0 0
        %1741 = vmatprep.subr.bf16.mxu0 0
        %1742 = vmatpush2.bf16.xpose.msra.mxu0 0
        %1743 = vmatprep.subr.bf16.mxu0 0
        %1744 = vmatpush2.bf16.xpose.msra.mxu0 0
        %1745 = vmatprep.subr.bf16.mxu0 0
        %1746 = vmatpush2.bf16.xpose.msra.mxu0 0
        %1747 = vmatprep.subr.bf16.mxu0 0
        %1748 = vmatpush2.bf16.xpose.msra.mxu0 0
        %1749 = vmatprep.subr.bf16.mxu0 0
        %1750 = vmatpush2.bf16.xpose.msra.mxu0 0
        %1751 = vmatprep.subr.bf16.mxu0 0
        %1752 = vmatpush2.bf16.xpose.msra.mxu0 0
        %1753 = vmatprep.subr.bf16.mxu0 0
        %1754 = vmatpush2.bf16.xpose.msra.mxu0 0
        %1755 = vmatprep.mubr.bf16.mxu0 0
        %1756 = vmatmul.mubr.bf16.gmra.mxu0 %v1718
        %v1757 = vpop.f32.mrf.mxu0
        %v1758 = vadd.f32 %v1667, %v1757
        %v1759 = vpop.f32.mrf.mxu0
        %v1760 = vpop.f32.mrf.mxu0
        %v1761 = vadd.f32 %v1668, %v1760
        %v1762 = vpop.f32.mrf.mxu0
        %1763 = vdwg.mxu0
        %v1765 = vsel %vm1669, %v1123, 0
        %v1768 = vsel %vm1669, %v1390, 0
        %1770 = vmatprep.subr.bf16.mxu0 0
        %1771 = vmatpush1.bf16.xpose.msra.mxu0 0
        %1772 = vmatprep.subr.bf16.mxu0 0
        %1773 = vmatpush1.bf16.xpose.msra.mxu0 0
        %1774 = vmatprep.subr.bf16.mxu0 0
        %1775 = vmatpush1.bf16.xpose.msra.mxu0 0
        %1776 = vmatprep.subr.bf16.mxu0 0
        %1777 = vmatpush1.bf16.xpose.msra.mxu0 0
        %1778 = vmatprep.subr.bf16.mxu0 0
        %1779 = vmatpush1.bf16.xpose.msra.mxu0 0
        %1780 = vmatprep.subr.bf16.mxu0 0
        %1781 = vmatpush1.bf16.xpose.msra.mxu0 0
        %1782 = vmatprep.subr.bf16.mxu0 0
        %1783 = vmatpush1.bf16.xpose.msra.mxu0 0
        %1784 = vmatprep.subr.bf16.mxu0 0
        %1785 = vmatpush1.bf16.xpose.msra.mxu0 %v1768
        %1786 = vmatprep.subr.bf16.mxu0 0
        %1787 = vmatpush2.bf16.xpose.msra.mxu0 0
        %1788 = vmatprep.subr.bf16.mxu0 0
        %1789 = vmatpush2.bf16.xpose.msra.mxu0 0
        %1790 = vmatprep.subr.bf16.mxu0 0
        %1791 = vmatpush2.bf16.xpose.msra.mxu0 0
        %1792 = vmatprep.subr.bf16.mxu0 0
        %1793 = vmatpush2.bf16.xpose.msra.mxu0 0
        %1794 = vmatprep.subr.bf16.mxu0 0
        %1795 = vmatpush2.bf16.xpose.msra.mxu0 0
        %1796 = vmatprep.subr.bf16.mxu0 0
        %1797 = vmatpush2.bf16.xpose.msra.mxu0 0
        %1798 = vmatprep.subr.bf16.mxu0 0
        %1799 = vmatpush2.bf16.xpose.msra.mxu0 0
        %1800 = vmatprep.subr.bf16.mxu0 0
        %1801 = vmatpush2.bf16.xpose.msra.mxu0 0
        %1802 = vmatprep.mubr.bf16.mxu0 0
        %1803 = vmatmul.mubr.bf16.gmra.mxu0 %v1765
        %v1804 = vpop.f32.mrf.mxu0
        %v1805 = vadd.f32 %v1667, %v1804
        %v1806 = vpop.f32.mrf.mxu0
        %v1807 = vpop.f32.mrf.mxu0
        %v1808 = vadd.f32 %v1668, %v1807
        %v1809 = vpop.f32.mrf.mxu0
        %1810 = vdwg.mxu0
        %v1812 = vsel %vm1669, %v1126, 0
        %v1815 = vsel %vm1669, %v1393, 0
        %1817 = vmatprep.subr.bf16.mxu0 0
        %1818 = vmatpush1.bf16.xpose.msra.mxu0 0
        %1819 = vmatprep.subr.bf16.mxu0 0
        %1820 = vmatpush1.bf16.xpose.msra.mxu0 0
        %1821 = vmatprep.subr.bf16.mxu0 0
        %1822 = vmatpush1.bf16.xpose.msra.mxu0 0
        %1823 = vmatprep.subr.bf16.mxu0 0
        %1824 = vmatpush1.bf16.xpose.msra.mxu0 0
        %1825 = vmatprep.subr.bf16.mxu0 0
        %1826 = vmatpush1.bf16.xpose.msra.mxu0 0
        %1827 = vmatprep.subr.bf16.mxu0 0
        %1828 = vmatpush1.bf16.xpose.msra.mxu0 0
        %1829 = vmatprep.subr.bf16.mxu0 0
        %1830 = vmatpush1.bf16.xpose.msra.mxu0 0
        %1831 = vmatprep.subr.bf16.mxu0 0
        %1832 = vmatpush1.bf16.xpose.msra.mxu0 %v1815
        %1833 = vmatprep.subr.bf16.mxu0 0
        %1834 = vmatpush2.bf16.xpose.msra.mxu0 0
        %1835 = vmatprep.subr.bf16.mxu0 0
        %1836 = vmatpush2.bf16.xpose.msra.mxu0 0
        %1837 = vmatprep.subr.bf16.mxu0 0
        %1838 = vmatpush2.bf16.xpose.msra.mxu0 0
        %1839 = vmatprep.subr.bf16.mxu0 0
        %1840 = vmatpush2.bf16.xpose.msra.mxu0 0
        %1841 = vmatprep.subr.bf16.mxu0 0
        %1842 = vmatpush2.bf16.xpose.msra.mxu0 0
        %1843 = vmatprep.subr.bf16.mxu0 0
        %1844 = vmatpush2.bf16.xpose.msra.mxu0 0
        %1845 = vmatprep.subr.bf16.mxu0 0
        %1846 = vmatpush2.bf16.xpose.msra.mxu0 0
        %1847 = vmatprep.subr.bf16.mxu0 0
        %1848 = vmatpush2.bf16.xpose.msra.mxu0 0
        %1849 = vmatprep.mubr.bf16.mxu0 0
        %1850 = vmatmul.mubr.bf16.gmra.mxu0 %v1812
        %v1851 = vpop.f32.mrf.mxu0
        %v1852 = vadd.f32 %v1667, %v1851
        %v1853 = vpop.f32.mrf.mxu0
        %v1854 = vpop.f32.mrf.mxu0
        %v1855 = vadd.f32 %v1668, %v1854
        %v1856 = vpop.f32.mrf.mxu0
        %1857 = vdwg.mxu0
        %vm1858 = vcmask 130048
        %v1859 = vsel %vm1858, %v1711, -inf
        %1860 = vmax.xlane.f32.xlu0 %v1859
        %v1861 = vpop.xlane.xlu0 %1860
        %v1862 = vsel %vm1858, %v1714, -inf
        %1863 = vmax.xlane.f32.xlu0 %v1862
        %v1864 = vpop.xlane.xlu0 %1863
        %v1865 = vsel %vm1858, %v1758, -inf
        %1866 = vmax.xlane.f32.xlu0 %v1865
        %v1867 = vpop.xlane.xlu0 %1866
        %v1868 = vsel %vm1858, %v1761, -inf
        %1869 = vmax.xlane.f32.xlu0 %v1868
        %v1870 = vpop.xlane.xlu0 %1869
        %v1871 = vsel %vm1858, %v1805, -inf
        %1872 = vmax.xlane.f32.xlu0 %v1871
        %v1873 = vpop.xlane.xlu0 %1872
        %v1874 = vsel %vm1858, %v1808, -inf
        %1875 = vmax.xlane.f32.xlu0 %v1874
        %v1876 = vpop.xlane.xlu0 %1875
        %v1877 = vsel %vm1858, %v1852, -inf
        %1878 = vmax.xlane.f32.xlu0 %v1877
        %v1879 = vpop.xlane.xlu0 %1878
        %v1880 = vsel %vm1858, %v1855, -inf
        %1881 = vmax.xlane.f32.xlu0 %v1880
        %v1882 = vpop.xlane.xlu0 %1881
        %v1883 = vsub.f32 %v1711, %v1861
        %v1884 = vsub.f32 %v1714, %v1864
        %v1885 = vsub.f32 %v1758, %v1867
        %v1886 = vsub.f32 %v1761, %v1870
        %v1887 = vsub.f32 %v1805, %v1873
        %v1888 = vsub.f32 %v1808, %v1876
        %v1889 = vsub.f32 %v1852, %v1879
        %v1890 = vsub.f32 %v1855, %v1882
        %v1891 = vmul.f32 %v1883, 1.442695
        %v1892 = vpow.pop %v1891
        %v1893 = vmul.f32 %v1884, 1.442695
        %v1894 = vpow.pop %v1893
        %v1895 = vmul.f32 %v1885, 1.442695
        %v1896 = vpow.pop %v1895
        %v1897 = vmul.f32 %v1886, 1.442695
        %v1898 = vpow.pop %v1897
        %v1899 = vmul.f32 %v1887, 1.442695
        %v1900 = vpow.pop %v1899
        %v1901 = vmul.f32 %v1888, 1.442695
        %v1902 = vpow.pop %v1901
        %v1903 = vmul.f32 %v1889, 1.442695
        %v1904 = vpow.pop %v1903
        %v1905 = vmul.f32 %v1890, 1.442695
        %v1906 = vpow.pop %v1905
        %v1907 = vsel %vm1858, %v1892, 0.0
        %1908 = vadd.xlane.f32.xlu0 %v1907
        %v1909 = vpop.xlane.xlu0 %1908
        %v1910 = vsel %vm1858, %v1894, 0.0
        %1911 = vadd.xlane.f32.xlu0 %v1910
        %v1912 = vpop.xlane.xlu0 %1911
        %v1913 = vsel %vm1858, %v1896, 0.0
        %1914 = vadd.xlane.f32.xlu0 %v1913
        %v1915 = vpop.xlane.xlu0 %1914
        %v1916 = vsel %vm1858, %v1898, 0.0
        %1917 = vadd.xlane.f32.xlu0 %v1916
        %v1918 = vpop.xlane.xlu0 %1917
        %v1919 = vsel %vm1858, %v1900, 0.0
        %1920 = vadd.xlane.f32.xlu0 %v1919
        %v1921 = vpop.xlane.xlu0 %1920
        %v1922 = vsel %vm1858, %v1902, 0.0
        %1923 = vadd.xlane.f32.xlu0 %v1922
        %v1924 = vpop.xlane.xlu0 %1923
        %v1925 = vsel %vm1858, %v1904, 0.0
        %1926 = vadd.xlane.f32.xlu0 %v1925
        %v1927 = vpop.xlane.xlu0 %1926
        %v1928 = vsel %vm1858, %v1906, 0.0
        %1929 = vadd.xlane.f32.xlu0 %v1928
        %v1930 = vpop.xlane.xlu0 %1929
        %v1931 = vrcp.pop %v1909
        %v1932 = vrcp.pop %v1912
        %v1933 = vrcp.pop %v1915
        %v1934 = vrcp.pop %v1918
        %v1935 = vrcp.pop %v1921
        %v1936 = vrcp.pop %v1924
        %v1937 = vrcp.pop %v1927
        %v1938 = vrcp.pop %v1930
        %v1939 = vmul.f32 %v1892, %v1931
        %v1940 = vmul.f32 %v1894, %v1932
        %v1941 = vmul.f32 %v1896, %v1933
        %v1942 = vmul.f32 %v1898, %v1934
        %v1943 = vmul.f32 %v1900, %v1935
        %v1944 = vmul.f32 %v1902, %v1936
        %v1945 = vmul.f32 %v1904, %v1937
        %v1946 = vmul.f32 %v1906, %v1938
        %v1947 = vpack.c.bf16 %v1940, %v1939
        %v1948 = vpack.c.bf16 %v1942, %v1941
        %v1949 = vpack.c.bf16 %v1944, %v1943
        %v1950 = vpack.c.bf16 %v1946, %v1945
        %v1952 = vsel %vm1858, %v1947, 0
        %1954 = vmatprep.subr.bf16.mxu0 0
        %1955 = vmatpush1.bf16.msra.mxu0 0
        %1956 = vmatprep.subr.bf16.mxu0 0
        %1957 = vmatpush1.bf16.msra.mxu0 0
        %1958 = vmatprep.subr.bf16.mxu0 0
        %1959 = vmatpush1.bf16.msra.mxu0 0
        %1960 = vmatprep.subr.bf16.mxu0 0
        %1961 = vmatpush1.bf16.msra.mxu0 0
        %1962 = vmatprep.subr.bf16.mxu0 0
        %1963 = vmatpush1.bf16.msra.mxu0 0
        %1964 = vmatprep.subr.bf16.mxu0 0
        %1965 = vmatpush1.bf16.msra.mxu0 0
        %1966 = vmatprep.subr.bf16.mxu0 0
        %1967 = vmatpush1.bf16.msra.mxu0 0
        %1968 = vmatprep.subr.bf16.mxu0 0
        %1969 = vmatpush1.bf16.msra.mxu0 %v1651
        %1970 = vmatprep.subr.bf16.mxu0 0
        %1971 = vmatpush2.bf16.msra.mxu0 0
        %1972 = vmatprep.subr.bf16.mxu0 0
        %1973 = vmatpush2.bf16.msra.mxu0 0
        %1974 = vmatprep.subr.bf16.mxu0 0
        %1975 = vmatpush2.bf16.msra.mxu0 0
        %1976 = vmatprep.subr.bf16.mxu0 0
        %1977 = vmatpush2.bf16.msra.mxu0 0
        %1978 = vmatprep.subr.bf16.mxu0 0
        %1979 = vmatpush2.bf16.msra.mxu0 0
        %1980 = vmatprep.subr.bf16.mxu0 0
        %1981 = vmatpush2.bf16.msra.mxu0 0
        %1982 = vmatprep.subr.bf16.mxu0 0
        %1983 = vmatpush2.bf16.msra.mxu0 0
        %1984 = vmatprep.subr.bf16.mxu0 0
        %1985 = vmatpush2.bf16.msra.mxu0 0
        %1986 = vmatprep.mubr.bf16.mxu0 0
        %1987 = vmatmul.mubr.bf16.gmra.mxu0 %v1952
        %v1988 = vpop.f32.mrf.mxu0
        %v1989 = vadd.f32 0.0, %v1988
        %v1990 = vpop.f32.mrf.mxu0
        %v1991 = vpop.f32.mrf.mxu0
        %v1992 = vadd.f32 0.0, %v1991
        %v1993 = vpop.f32.mrf.mxu0
        %1994 = vdwg.mxu0
        %v1996 = vsel %vm1858, %v1948, 0
        %1998 = vmatprep.subr.bf16.mxu0 0
        %1999 = vmatpush1.bf16.msra.mxu0 0
        %2000 = vmatprep.subr.bf16.mxu0 0
        %2001 = vmatpush1.bf16.msra.mxu0 0
        %2002 = vmatprep.subr.bf16.mxu0 0
        %2003 = vmatpush1.bf16.msra.mxu0 0
        %2004 = vmatprep.subr.bf16.mxu0 0
        %2005 = vmatpush1.bf16.msra.mxu0 0
        %2006 = vmatprep.subr.bf16.mxu0 0
        %2007 = vmatpush1.bf16.msra.mxu0 0
        %2008 = vmatprep.subr.bf16.mxu0 0
        %2009 = vmatpush1.bf16.msra.mxu0 0
        %2010 = vmatprep.subr.bf16.mxu0 0
        %2011 = vmatpush1.bf16.msra.mxu0 0
        %2012 = vmatprep.subr.bf16.mxu0 0
        %2013 = vmatpush1.bf16.msra.mxu0 %v1655
        %2014 = vmatprep.subr.bf16.mxu0 0
        %2015 = vmatpush2.bf16.msra.mxu0 0
        %2016 = vmatprep.subr.bf16.mxu0 0
        %2017 = vmatpush2.bf16.msra.mxu0 0
        %2018 = vmatprep.subr.bf16.mxu0 0
        %2019 = vmatpush2.bf16.msra.mxu0 0
        %2020 = vmatprep.subr.bf16.mxu0 0
        %2021 = vmatpush2.bf16.msra.mxu0 0
        %2022 = vmatprep.subr.bf16.mxu0 0
        %2023 = vmatpush2.bf16.msra.mxu0 0
        %2024 = vmatprep.subr.bf16.mxu0 0
        %2025 = vmatpush2.bf16.msra.mxu0 0
        %2026 = vmatprep.subr.bf16.mxu0 0
        %2027 = vmatpush2.bf16.msra.mxu0 0
        %2028 = vmatprep.subr.bf16.mxu0 0
        %2029 = vmatpush2.bf16.msra.mxu0 0
        %2030 = vmatprep.mubr.bf16.mxu0 0
        %2031 = vmatmul.mubr.bf16.gmra.mxu0 %v1996
        %v2032 = vpop.f32.mrf.mxu0
        %v2033 = vadd.f32 0.0, %v2032
        %v2034 = vpop.f32.mrf.mxu0
        %v2035 = vpop.f32.mrf.mxu0
        %v2036 = vadd.f32 0.0, %v2035
        %v2037 = vpop.f32.mrf.mxu0
        %2038 = vdwg.mxu0
        %v2040 = vsel %vm1858, %v1949, 0
        %2042 = vmatprep.subr.bf16.mxu0 0
        %2043 = vmatpush1.bf16.msra.mxu0 0
        %2044 = vmatprep.subr.bf16.mxu0 0
        %2045 = vmatpush1.bf16.msra.mxu0 0
        %2046 = vmatprep.subr.bf16.mxu0 0
        %2047 = vmatpush1.bf16.msra.mxu0 0
        %2048 = vmatprep.subr.bf16.mxu0 0
        %2049 = vmatpush1.bf16.msra.mxu0 0
        %2050 = vmatprep.subr.bf16.mxu0 0
        %2051 = vmatpush1.bf16.msra.mxu0 0
        %2052 = vmatprep.subr.bf16.mxu0 0
        %2053 = vmatpush1.bf16.msra.mxu0 0
        %2054 = vmatprep.subr.bf16.mxu0 0
        %2055 = vmatpush1.bf16.msra.mxu0 0
        %2056 = vmatprep.subr.bf16.mxu0 0
        %2057 = vmatpush1.bf16.msra.mxu0 %v1659
        %2058 = vmatprep.subr.bf16.mxu0 0
        %2059 = vmatpush2.bf16.msra.mxu0 0
        %2060 = vmatprep.subr.bf16.mxu0 0
        %2061 = vmatpush2.bf16.msra.mxu0 0
        %2062 = vmatprep.subr.bf16.mxu0 0
        %2063 = vmatpush2.bf16.msra.mxu0 0
        %2064 = vmatprep.subr.bf16.mxu0 0
        %2065 = vmatpush2.bf16.msra.mxu0 0
        %2066 = vmatprep.subr.bf16.mxu0 0
        %2067 = vmatpush2.bf16.msra.mxu0 0
        %2068 = vmatprep.subr.bf16.mxu0 0
        %2069 = vmatpush2.bf16.msra.mxu0 0
        %2070 = vmatprep.subr.bf16.mxu0 0
        %2071 = vmatpush2.bf16.msra.mxu0 0
        %2072 = vmatprep.subr.bf16.mxu0 0
        %2073 = vmatpush2.bf16.msra.mxu0 0
        %2074 = vmatprep.mubr.bf16.mxu0 0
        %2075 = vmatmul.mubr.bf16.gmra.mxu0 %v2040
        %v2076 = vpop.f32.mrf.mxu0
        %v2077 = vadd.f32 0.0, %v2076
        %v2078 = vpop.f32.mrf.mxu0
        %v2079 = vpop.f32.mrf.mxu0
        %v2080 = vadd.f32 0.0, %v2079
        %v2081 = vpop.f32.mrf.mxu0
        %2082 = vdwg.mxu0
        %v2084 = vsel %vm1858, %v1950, 0
        %2086 = vmatprep.subr.bf16.mxu0 0
        %2087 = vmatpush1.bf16.msra.mxu0 0
        %2088 = vmatprep.subr.bf16.mxu0 0
        %2089 = vmatpush1.bf16.msra.mxu0 0
        %2090 = vmatprep.subr.bf16.mxu0 0
        %2091 = vmatpush1.bf16.msra.mxu0 0
        %2092 = vmatprep.subr.bf16.mxu0 0
        %2093 = vmatpush1.bf16.msra.mxu0 0
        %2094 = vmatprep.subr.bf16.mxu0 0
        %2095 = vmatpush1.bf16.msra.mxu0 0
        %2096 = vmatprep.subr.bf16.mxu0 0
        %2097 = vmatpush1.bf16.msra.mxu0 0
        %2098 = vmatprep.subr.bf16.mxu0 0
        %2099 = vmatpush1.bf16.msra.mxu0 0
        %2100 = vmatprep.subr.bf16.mxu0 0
        %2101 = vmatpush1.bf16.msra.mxu0 %v1663
        %2102 = vmatprep.subr.bf16.mxu0 0
        %2103 = vmatpush2.bf16.msra.mxu0 0
        %2104 = vmatprep.subr.bf16.mxu0 0
        %2105 = vmatpush2.bf16.msra.mxu0 0
        %2106 = vmatprep.subr.bf16.mxu0 0
        %2107 = vmatpush2.bf16.msra.mxu0 0
        %2108 = vmatprep.subr.bf16.mxu0 0
        %2109 = vmatpush2.bf16.msra.mxu0 0
        %2110 = vmatprep.subr.bf16.mxu0 0
        %2111 = vmatpush2.bf16.msra.mxu0 0
        %2112 = vmatprep.subr.bf16.mxu0 0
        %2113 = vmatpush2.bf16.msra.mxu0 0
        %2114 = vmatprep.subr.bf16.mxu0 0
        %2115 = vmatpush2.bf16.msra.mxu0 0
        %2116 = vmatprep.subr.bf16.mxu0 0
        %2117 = vmatpush2.bf16.msra.mxu0 0
        %2118 = vmatprep.mubr.bf16.mxu0 0
        %2119 = vmatmul.mubr.bf16.gmra.mxu0 %v2084
        %v2120 = vpop.f32.mrf.mxu0
        %v2121 = vadd.f32 0.0, %v2120
        %v2122 = vpop.f32.mrf.mxu0
        %v2123 = vpop.f32.mrf.mxu0
        %v2124 = vadd.f32 0.0, %v2123
        %v2125 = vpop.f32.mrf.mxu0
        %2126 = vdwg.mxu0
        %v2127 = vcombine.low %v1989, %v2077
        %v2128 = vcombine.high %v1989, %v2077
        %v2130 = vunpack.c.l.s4 1983009808
        %v2131 = vunpack.c.0.s8 %v2130
        %v2132 = vlaneseq
        %v2133 = vshrl.u32 %v2132, 7
        %v2134 = vsub.s32 %v2131, %v2133
        %v2135 = vrot.slane %v2127, %v2134
        %v2137 = vunpack.c.l.s4 1983009808
        %v2138 = vunpack.c.0.s8 %v2137
        %v2139 = vlaneseq
        %v2140 = vshrl.u32 %v2139, 7
        %v2141 = vsub.s32 %v2138, %v2140
        %v2142 = vrot.slane %v2128, %v2141
        %v2143 = vcombine.low %v2033, %v2121
        %v2144 = vcombine.high %v2033, %v2121
        %v2146 = vunpack.c.l.s4 1983009808
        %v2147 = vunpack.c.0.s8 %v2146
        %v2148 = vlaneseq
        %v2149 = vshrl.u32 %v2148, 7
        %v2150 = vsub.s32 %v2147, %v2149
        %v2151 = vrot.slane %v2143, %v2150
        %v2153 = vunpack.c.l.s4 1983009808
        %v2154 = vunpack.c.0.s8 %v2153
        %v2155 = vlaneseq
        %v2156 = vshrl.u32 %v2155, 7
        %v2157 = vsub.s32 %v2154, %v2156
        %v2158 = vrot.slane %v2144, %v2157
        %v2159 = vcombine.low %v2135, %v2151
        %v2160 = vcombine.high %v2135, %v2151
        %v2162 = vunpack.c.l.s4 1934713408
        %v2163 = vunpack.c.0.s8 %v2162
        %v2164 = vlaneseq
        %v2165 = vshrl.u32 %v2164, 7
        %v2166 = vsub.s32 %v2163, %v2165
        %v2167 = vrot.slane %v2159, %v2166
        %v2169 = vunpack.c.l.s4 1934713408
        %v2170 = vunpack.c.0.s8 %v2169
        %v2171 = vlaneseq
        %v2172 = vshrl.u32 %v2171, 7
        %v2173 = vsub.s32 %v2170, %v2172
        %v2174 = vrot.slane %v2160, %v2173
        %v2175 = vcombine.low %v2142, %v2158
        %v2176 = vcombine.high %v2142, %v2158
        %v2178 = vunpack.c.l.s4 1934713408
        %v2179 = vunpack.c.0.s8 %v2178
        %v2180 = vlaneseq
        %v2181 = vshrl.u32 %v2180, 7
        %v2182 = vsub.s32 %v2179, %v2181
        %v2183 = vrot.slane %v2175, %v2182
        %v2185 = vunpack.c.l.s4 1934713408
        %v2186 = vunpack.c.0.s8 %v2185
        %v2187 = vlaneseq
        %v2188 = vshrl.u32 %v2187, 7
        %v2189 = vsub.s32 %v2186, %v2188
        %v2190 = vrot.slane %v2176, %v2189
        %v2191 = vcombine.high %v2167, 0.0
        %v2192 = vcombine.high %v2174, 0.0
        %v2193 = vcombine.high %v2183, 0.0
        %v2194 = vcombine.high %v2190, 0.0
        %v2195 = vcombine.low %v1992, %v2080
        %v2196 = vcombine.high %v1992, %v2080
        %v2198 = vunpack.c.l.s4 1983009808
        %v2199 = vunpack.c.0.s8 %v2198
        %v2200 = vlaneseq
        %v2201 = vshrl.u32 %v2200, 7
        %v2202 = vsub.s32 %v2199, %v2201
        %v2203 = vrot.slane %v2195, %v2202
        %v2205 = vunpack.c.l.s4 1983009808
        %v2206 = vunpack.c.0.s8 %v2205
        %v2207 = vlaneseq
        %v2208 = vshrl.u32 %v2207, 7
        %v2209 = vsub.s32 %v2206, %v2208
        %v2210 = vrot.slane %v2196, %v2209
        %v2211 = vcombine.low %v2036, %v2124
        %v2212 = vcombine.high %v2036, %v2124
        %v2214 = vunpack.c.l.s4 1983009808
        %v2215 = vunpack.c.0.s8 %v2214
        %v2216 = vlaneseq
        %v2217 = vshrl.u32 %v2216, 7
        %v2218 = vsub.s32 %v2215, %v2217
        %v2219 = vrot.slane %v2211, %v2218
        %v2221 = vunpack.c.l.s4 1983009808
        %v2222 = vunpack.c.0.s8 %v2221
        %v2223 = vlaneseq
        %v2224 = vshrl.u32 %v2223, 7
        %v2225 = vsub.s32 %v2222, %v2224
        %v2226 = vrot.slane %v2212, %v2225
        %v2227 = vcombine.low %v2203, %v2219
        %v2228 = vcombine.high %v2203, %v2219
        %v2230 = vunpack.c.l.s4 1934713408
        %v2231 = vunpack.c.0.s8 %v2230
        %v2232 = vlaneseq
        %v2233 = vshrl.u32 %v2232, 7
        %v2234 = vsub.s32 %v2231, %v2233
        %v2235 = vrot.slane %v2227, %v2234
        %v2237 = vunpack.c.l.s4 1934713408
        %v2238 = vunpack.c.0.s8 %v2237
        %v2239 = vlaneseq
        %v2240 = vshrl.u32 %v2239, 7
        %v2241 = vsub.s32 %v2238, %v2240
        %v2242 = vrot.slane %v2228, %v2241
        %v2243 = vcombine.low %v2210, %v2226
        %v2244 = vcombine.high %v2210, %v2226
        %v2246 = vunpack.c.l.s4 1934713408
        %v2247 = vunpack.c.0.s8 %v2246
        %v2248 = vlaneseq
        %v2249 = vshrl.u32 %v2248, 7
        %v2250 = vsub.s32 %v2247, %v2249
        %v2251 = vrot.slane %v2243, %v2250
        %v2253 = vunpack.c.l.s4 1934713408
        %v2254 = vunpack.c.0.s8 %v2253
        %v2255 = vlaneseq
        %v2256 = vshrl.u32 %v2255, 7
        %v2257 = vsub.s32 %v2254, %v2256
        %v2258 = vrot.slane %v2244, %v2257
        %v2259 = vcombine.high %v2235, 0.0
        %v2260 = vcombine.high %v2242, 0.0
        %v2261 = vcombine.high %v2251, 0.0
        %v2262 = vcombine.high %v2258, 0.0
        %v2263 = vcombine.low %v2167, %v2174
        %v2265 = vunpack.c.l.s4 1983009808
        %v2266 = vunpack.c.0.s8 %v2265
        %v2267 = vlaneseq
        %v2268 = vshrl.u32 %v2267, 7
        %v2269 = vsub.s32 %v2266, %v2268
        %v2270 = vrot.slane %v2263, %v2269
        %v2271 = vcombine.low %v2191, %v2192
        %v2273 = vunpack.c.l.s4 1983009808
        %v2274 = vunpack.c.0.s8 %v2273
        %v2275 = vlaneseq
        %v2276 = vshrl.u32 %v2275, 7
        %v2277 = vsub.s32 %v2274, %v2276
        %v2278 = vrot.slane %v2271, %v2277
        %v2279 = vcombine.low %v2183, %v2190
        %v2281 = vunpack.c.l.s4 1983009808
        %v2282 = vunpack.c.0.s8 %v2281
        %v2283 = vlaneseq
        %v2284 = vshrl.u32 %v2283, 7
        %v2285 = vsub.s32 %v2282, %v2284
        %v2286 = vrot.slane %v2279, %v2285
        %v2287 = vcombine.low %v2193, %v2194
        %v2289 = vunpack.c.l.s4 1983009808
        %v2290 = vunpack.c.0.s8 %v2289
        %v2291 = vlaneseq
        %v2292 = vshrl.u32 %v2291, 7
        %v2293 = vsub.s32 %v2290, %v2292
        %v2294 = vrot.slane %v2287, %v2293
        %v2295 = vcombine.low %v2270, %v2278
        %v2296 = vcombine.high %v2270, %v2278
        %v2298 = vunpack.c.l.s4 1934713408
        %v2299 = vunpack.c.0.s8 %v2298
        %v2300 = vlaneseq
        %v2301 = vshrl.u32 %v2300, 7
        %v2302 = vsub.s32 %v2299, %v2301
        %v2303 = vrot.slane %v2295, %v2302
        %v2305 = vunpack.c.l.s4 1934713408
        %v2306 = vunpack.c.0.s8 %v2305
        %v2307 = vlaneseq
        %v2308 = vshrl.u32 %v2307, 7
        %v2309 = vsub.s32 %v2306, %v2308
        %v2310 = vrot.slane %v2296, %v2309
        %v2311 = vcombine.low %v2286, %v2294
        %v2312 = vcombine.high %v2286, %v2294
        %v2314 = vunpack.c.l.s4 1934713408
        %v2315 = vunpack.c.0.s8 %v2314
        %v2316 = vlaneseq
        %v2317 = vshrl.u32 %v2316, 7
        %v2318 = vsub.s32 %v2315, %v2317
        %v2319 = vrot.slane %v2311, %v2318
        %v2321 = vunpack.c.l.s4 1934713408
        %v2322 = vunpack.c.0.s8 %v2321
        %v2323 = vlaneseq
        %v2324 = vshrl.u32 %v2323, 7
        %v2325 = vsub.s32 %v2322, %v2324
        %v2326 = vrot.slane %v2312, %v2325
        %v2327 = vcombine.low %v2303, %v2319
        %v2328 = vcombine.high %v2303, %v2319
        %v2329 = vcombine.low %v2310, %v2326
        %v2330 = vcombine.high %v2310, %v2326
        %v2331 = vcombine.low %v2235, %v2242
        %v2333 = vunpack.c.l.s4 1983009808
        %v2334 = vunpack.c.0.s8 %v2333
        %v2335 = vlaneseq
        %v2336 = vshrl.u32 %v2335, 7
        %v2337 = vsub.s32 %v2334, %v2336
        %v2338 = vrot.slane %v2331, %v2337
        %v2339 = vcombine.low %v2259, %v2260
        %v2341 = vunpack.c.l.s4 1983009808
        %v2342 = vunpack.c.0.s8 %v2341
        %v2343 = vlaneseq
        %v2344 = vshrl.u32 %v2343, 7
        %v2345 = vsub.s32 %v2342, %v2344
        %v2346 = vrot.slane %v2339, %v2345
        %v2347 = vcombine.low %v2251, %v2258
        %v2349 = vunpack.c.l.s4 1983009808
        %v2350 = vunpack.c.0.s8 %v2349
        %v2351 = vlaneseq
        %v2352 = vshrl.u32 %v2351, 7
        %v2353 = vsub.s32 %v2350, %v2352
        %v2354 = vrot.slane %v2347, %v2353
        %v2355 = vcombine.low %v2261, %v2262
        %v2357 = vunpack.c.l.s4 1983009808
        %v2358 = vunpack.c.0.s8 %v2357
        %v2359 = vlaneseq
        %v2360 = vshrl.u32 %v2359, 7
        %v2361 = vsub.s32 %v2358, %v2360
        %v2362 = vrot.slane %v2355, %v2361
        %v2363 = vcombine.low %v2338, %v2346
        %v2364 = vcombine.high %v2338, %v2346
        %v2366 = vunpack.c.l.s4 1934713408
        %v2367 = vunpack.c.0.s8 %v2366
        %v2368 = vlaneseq
        %v2369 = vshrl.u32 %v2368, 7
        %v2370 = vsub.s32 %v2367, %v2369
        %v2371 = vrot.slane %v2363, %v2370
        %v2373 = vunpack.c.l.s4 1934713408
        %v2374 = vunpack.c.0.s8 %v2373
        %v2375 = vlaneseq
        %v2376 = vshrl.u32 %v2375, 7
        %v2377 = vsub.s32 %v2374, %v2376
        %v2378 = vrot.slane %v2364, %v2377
        %v2379 = vcombine.low %v2354, %v2362
        %v2380 = vcombine.high %v2354, %v2362
        %v2382 = vunpack.c.l.s4 1934713408
        %v2383 = vunpack.c.0.s8 %v2382
        %v2384 = vlaneseq
        %v2385 = vshrl.u32 %v2384, 7
        %v2386 = vsub.s32 %v2383, %v2385
        %v2387 = vrot.slane %v2379, %v2386
        %v2389 = vunpack.c.l.s4 1934713408
        %v2390 = vunpack.c.0.s8 %v2389
        %v2391 = vlaneseq
        %v2392 = vshrl.u32 %v2391, 7
        %v2393 = vsub.s32 %v2390, %v2392
        %v2394 = vrot.slane %v2380, %v2393
        %v2395 = vcombine.low %v2371, %v2387
        %v2396 = vcombine.high %v2371, %v2387
        %v2397 = vcombine.low %v2378, %v2394
        %v2398 = vcombine.high %v2378, %v2394
        %2401 = vrot.lane.b32.xlu0 %v2328, 32
        %v2402 = vpop.permute.xlu0 %2401
        %2403 = vrot.lane.b32.xlu0 %v2396, 32
        %v2404 = vpop.permute.xlu0 %2403
        %2409 = vrot.lane.b32.xlu0 %v2329, 64
        %v2410 = vpop.permute.xlu0 %2409
        %2411 = vrot.lane.b32.xlu0 %v2397, 64
        %v2412 = vpop.permute.xlu0 %2411
        %2417 = vrot.lane.b32.xlu0 %v2330, 96
        %v2418 = vpop.permute.xlu0 %2417
        %2419 = vrot.lane.b32.xlu0 %v2398, 96
        %v2420 = vpop.permute.xlu0 %2419
        %v2423 = vsel %vm1669, %v2327, %v2402
        %v2424 = vsel %vm1669, %v2395, %v2404
        %vm2425 = vcmask 523264
        %v2426 = vsel %vm2425, %v2423, %v2410
        %v2427 = vsel %vm2425, %v2424, %v2412
        %vm2428 = vcmask 785408
        %v2429 = vsel %vm2428, %v2426, %v2418
        %v2430 = vsel %vm2428, %v2427, %v2420
        %v2431 = vpack.c.bf16 %v2430, %v2429
        %v2432 = vld [vmem:[#allocation8] sm:$0xf]
        %v2433 = vld [vmem:[#allocation8 + $0x4] sm:$0xf]
        %v2434 = vld [vmem:[#allocation8 + $0x8] sm:$0xf]
        %v2435 = vld [vmem:[#allocation8 + $0xc] sm:$0xf]
        %v2436 = vld [vmem:[#allocation8 + $0x10] sm:$0xf]
        %v2437 = vld [vmem:[#allocation8 + $0x14] sm:$0xf]
        %v2438 = vld [vmem:[#allocation8 + $0x18] sm:$0xf]
        %v2439 = vld [vmem:[#allocation8 + $0x1c] sm:$0xf]
        %v2440 = vld [vmem:[#allocation8 + $0x20] sm:$0xf]
        %v2441 = vld [vmem:[#allocation8 + $0x24] sm:$0xf]
        %v2442 = vld [vmem:[#allocation8 + $0x28] sm:$0xf]
        %v2443 = vld [vmem:[#allocation8 + $0x2c] sm:$0xf]
        %v2444 = vld [vmem:[#allocation8 + $0x30] sm:$0xf]
        %v2445 = vld [vmem:[#allocation8 + $0x34] sm:$0xf]
        %v2446 = vld [vmem:[#allocation8 + $0x38] sm:$0xf]
        %v2447 = vld [vmem:[#allocation8 + $0x3c] sm:$0xf]
        %v2448 = vld [vmem:[%s5] sm:$0x1]
        %v2450 = vlaneseq
        %v2451 = vshrl.u32 %v2450, 7
        %v2452 = vsub.s32 0, %v2451
        %v2453 = vrot.slane %v2448, %v2452
        %v2471 = vunpack.c.l.b16 %v2432
        %v2472 = vunpack.c.l.b16 %v2433
        %v2473 = vunpack.c.l.b16 %v2434
        %v2474 = vunpack.c.l.b16 %v2435
        %v2475 = vunpack.c.l.b16 %v2436
        %v2476 = vunpack.c.l.b16 %v2437
        %v2477 = vunpack.c.l.b16 %v2438
        %v2478 = vunpack.c.l.b16 %v2439
        %v2479 = vunpack.c.l.b16 %v2440
        %v2480 = vunpack.c.l.b16 %v2441
        %v2481 = vunpack.c.l.b16 %v2442
        %v2482 = vunpack.c.l.b16 %v2443
        %v2483 = vunpack.c.l.b16 %v2444
        %v2484 = vunpack.c.l.b16 %v2445
        %v2485 = vunpack.c.l.b16 %v2446
        %v2486 = vunpack.c.l.b16 %v2447
        %v2487 = vpack.c.b16 %v2472, %v2471
        %v2488 = vpack.c.b16 %v2474, %v2473
        %v2489 = vpack.c.b16 %v2476, %v2475
        %v2490 = vpack.c.b16 %v2478, %v2477
        %v2491 = vpack.c.b16 %v2480, %v2479
        %v2492 = vpack.c.b16 %v2482, %v2481
        %v2493 = vpack.c.b16 %v2484, %v2483
        %v2494 = vpack.c.b16 %v2486, %v2485
        %2503 = vmatprep.subr.bf16.mxu0 0
        %2504 = vmatpush1.bf16.msra.mxu0 %v2494
        %2505 = vmatprep.subr.bf16.mxu0 0
        %2506 = vmatpush1.bf16.msra.mxu0 %v2493
        %2507 = vmatprep.subr.bf16.mxu0 0
        %2508 = vmatpush1.bf16.msra.mxu0 %v2492
        %2509 = vmatprep.subr.bf16.mxu0 0
        %2510 = vmatpush1.bf16.msra.mxu0 %v2491
        %2511 = vmatprep.subr.bf16.mxu0 0
        %2512 = vmatpush1.bf16.msra.mxu0 %v2490
        %2513 = vmatprep.subr.bf16.mxu0 0
        %2514 = vmatpush1.bf16.msra.mxu0 %v2489
        %2515 = vmatprep.subr.bf16.mxu0 0
        %2516 = vmatpush1.bf16.msra.mxu0 %v2488
        %2517 = vmatprep.subr.bf16.mxu0 0
        %2518 = vmatpush1.bf16.msra.mxu0 %v2487
        %2519 = vmatprep.subr.bf16.mxu0 0
        %2520 = vmatpush2.bf16.msra.mxu0 0
        %2521 = vmatprep.subr.bf16.mxu0 0
        %2522 = vmatpush2.bf16.msra.mxu0 0
        %2523 = vmatprep.subr.bf16.mxu0 0
        %2524 = vmatpush2.bf16.msra.mxu0 0
        %2525 = vmatprep.subr.bf16.mxu0 0
        %2526 = vmatpush2.bf16.msra.mxu0 0
        %2527 = vmatprep.subr.bf16.mxu0 0
        %2528 = vmatpush2.bf16.msra.mxu0 0
        %2529 = vmatprep.subr.bf16.mxu0 0
        %2530 = vmatpush2.bf16.msra.mxu0 0
        %2531 = vmatprep.subr.bf16.mxu0 0
        %2532 = vmatpush2.bf16.msra.mxu0 0
        %2533 = vmatprep.subr.bf16.mxu0 0
        %2534 = vmatpush2.bf16.msra.mxu0 0
        %2535 = vmatprep.mubr.bf16.mxu0 0
        %2536 = vmatmul.mubr.bf16.gmra.mxu0 %v2431
        %v2537 = vpop.f32.mrf.mxu0
        %v2538 = vadd.f32 %v2453, %v2537
        %v2539 = vpop.f32.mrf.mxu0
        %v2540 = vpop.f32.mrf.mxu0
        %v2541 = vadd.f32 %v2453, %v2540
        %v2542 = vpop.f32.mrf.mxu0
        %2543 = vdwg.mxu0
        %v2544 = vadd.f32 %v2538, %v585
        %v2545 = vadd.f32 %v2541, %v586
        %v2546 = vld [vmem:[%s6] sm:$0x1]
        %v2547 = vld [vmem:[%s7] sm:$0x1]
        %2548 = vadd.xlane.f32.xlu0 %v2544
        %v2549 = vpop.xlane.xlu0 %2548
        %2550 = vadd.xlane.f32.xlu0 %v2545
        %v2551 = vpop.xlane.xlu0 %2550
        %v2552 = vrcp.pop 128.0
        %v2553 = vmul.f32 %v2549, %v2552
        %v2554 = vmul.f32 %v2551, %v2552
        %v2555 = vsub.f32 %v2544, %v2553
        %v2556 = vsub.f32 %v2545, %v2554
        %v2557 = vmul.f32 %v2555, %v2555
        %v2558 = vmul.f32 %v2556, %v2556
        %2559 = vadd.xlane.f32.xlu0 %v2557
        %v2560 = vpop.xlane.xlu0 %2559
        %2561 = vadd.xlane.f32.xlu0 %v2558
        %v2562 = vpop.xlane.xlu0 %2561
        %v2563 = vmul.f32 %v2560, %v2552
        %v2564 = vmul.f32 %v2562, %v2552
        %v2565 = vadd.f32 %v2563, 1e-05
        %v2566 = vadd.f32 %v2564, 1e-05
        %v2567 = vrsqrt.pop %v2565
        %v2568 = vrsqrt.pop %v2566
        %v2569 = vmul.f32 %v2555, %v2567
        %v2570 = vmul.f32 %v2556, %v2568
        %v2572 = vlaneseq
        %v2573 = vshrl.u32 %v2572, 7
        %v2574 = vsub.s32 0, %v2573
        %v2575 = vrot.slane %v2546, %v2574
        %v2577 = vmul.f32 %v2569, %v2575
        %v2578 = vmul.f32 %v2570, %v2575
        %v2580 = vlaneseq
        %v2581 = vshrl.u32 %v2580, 7
        %v2582 = vsub.s32 0, %v2581
        %v2583 = vrot.slane %v2547, %v2582
        %v2585 = vadd.f32 %v2577, %v2583
        %v2586 = vadd.f32 %v2578, %v2583
        %v2587 = vpack.c.bf16 %v2586, %v2585
        %v2588 = vld [vmem:[#allocation10] sm:$0xff]
        %v2589 = vld [vmem:[#allocation10 + $0x8] sm:$0xff]
        %v2590 = vld [vmem:[#allocation10 + $0x10] sm:$0xff]
        %v2591 = vld [vmem:[#allocation10 + $0x18] sm:$0xff]
        %v2592 = vld [vmem:[#allocation10 + $0x20] sm:$0xff]
        %v2593 = vld [vmem:[#allocation10 + $0x28] sm:$0xff]
        %v2594 = vld [vmem:[#allocation10 + $0x30] sm:$0xff]
        %v2595 = vld [vmem:[#allocation10 + $0x38] sm:$0xff]
        %v2596 = vld [vmem:[#allocation10 + $0x40] sm:$0xff]
        %v2597 = vld [vmem:[#allocation10 + $0x48] sm:$0xff]
        %v2598 = vld [vmem:[#allocation10 + $0x50] sm:$0xff]
        %v2599 = vld [vmem:[#allocation10 + $0x58] sm:$0xff]
        %v2600 = vld [vmem:[#allocation10 + $0x60] sm:$0xff]
        %v2601 = vld [vmem:[#allocation10 + $0x68] sm:$0xff]
        %v2602 = vld [vmem:[#allocation10 + $0x70] sm:$0xff]
        %v2603 = vld [vmem:[#allocation10 + $0x78] sm:$0xff]
        %v2604 = vld [vmem:[#allocation10 + $0x80] sm:$0xff]
        %v2605 = vld [vmem:[#allocation10 + $0x88] sm:$0xff]
        %v2606 = vld [vmem:[#allocation10 + $0x90] sm:$0xff]
        %v2607 = vld [vmem:[#allocation10 + $0x98] sm:$0xff]
        %v2608 = vld [vmem:[#allocation10 + $0xa0] sm:$0xff]
        %v2609 = vld [vmem:[#allocation10 + $0xa8] sm:$0xff]
        %v2610 = vld [vmem:[#allocation10 + $0xb0] sm:$0xff]
        %v2611 = vld [vmem:[#allocation10 + $0xb8] sm:$0xff]
        %v2612 = vld [vmem:[#allocation10 + $0xc0] sm:$0xff]
        %v2613 = vld [vmem:[#allocation10 + $0xc8] sm:$0xff]
        %v2614 = vld [vmem:[#allocation10 + $0xd0] sm:$0xff]
        %v2615 = vld [vmem:[#allocation10 + $0xd8] sm:$0xff]
        %v2616 = vld [vmem:[#allocation10 + $0xe0] sm:$0xff]
        %v2617 = vld [vmem:[#allocation10 + $0xe8] sm:$0xff]
        %v2618 = vld [vmem:[#allocation10 + $0xf0] sm:$0xff]
        %v2619 = vld [vmem:[#allocation10 + $0xf8] sm:$0xff]
        %v2620 = vld [vmem:[%s9] sm:$0xf]
        %v2622 = vlaneseq
        %v2623 = vshrl.u32 %v2622, 7
        %v2624 = vsub.s32 0, %v2623
        %v2625 = vrot.slane %v2620, %v2624
        %v2626 = vlaneseq
        %v2627 = vshrl.u32 %v2626, 7
        %v2628 = vsub.s32 1, %v2627
        %v2629 = vrot.slane %v2620, %v2628
        %v2630 = vlaneseq
        %v2631 = vshrl.u32 %v2630, 7
        %v2632 = vsub.s32 2, %v2631
        %v2633 = vrot.slane %v2620, %v2632
        %v2634 = vlaneseq
        %v2635 = vshrl.u32 %v2634, 7
        %v2636 = vsub.s32 3, %v2635
        %v2637 = vrot.slane %v2620, %v2636
        %v2674 = vunpack.c.l.b16 %v2588
        %v2675 = vunpack.c.h.b16 %v2588
        %v2676 = vunpack.c.l.b16 %v2589
        %v2677 = vunpack.c.h.b16 %v2589
        %v2678 = vunpack.c.l.b16 %v2590
        %v2679 = vunpack.c.h.b16 %v2590
        %v2680 = vunpack.c.l.b16 %v2591
        %v2681 = vunpack.c.h.b16 %v2591
        %v2682 = vunpack.c.l.b16 %v2592
        %v2683 = vunpack.c.h.b16 %v2592
        %v2684 = vunpack.c.l.b16 %v2593
        %v2685 = vunpack.c.h.b16 %v2593
        %v2686 = vunpack.c.l.b16 %v2594
        %v2687 = vunpack.c.h.b16 %v2594
        %v2688 = vunpack.c.l.b16 %v2595
        %v2689 = vunpack.c.h.b16 %v2595
        %v2690 = vunpack.c.l.b16 %v2596
        %v2691 = vunpack.c.h.b16 %v2596
        %v2692 = vunpack.c.l.b16 %v2597
        %v2693 = vunpack.c.h.b16 %v2597
        %v2694 = vunpack.c.l.b16 %v2598
        %v2695 = vunpack.c.h.b16 %v2598
        %v2696 = vunpack.c.l.b16 %v2599
        %v2697 = vunpack.c.h.b16 %v2599
        %v2698 = vunpack.c.l.b16 %v2600
        %v2699 = vunpack.c.h.b16 %v2600
        %v2700 = vunpack.c.l.b16 %v2601
        %v2701 = vunpack.c.h.b16 %v2601
        %v2702 = vunpack.c.l.b16 %v2602
        %v2703 = vunpack.c.h.b16 %v2602
        %v2704 = vunpack.c.l.b16 %v2603
        %v2705 = vunpack.c.h.b16 %v2603
        %v2706 = vunpack.c.l.b16 %v2604
        %v2707 = vunpack.c.h.b16 %v2604
        %v2708 = vunpack.c.l.b16 %v2605
        %v2709 = vunpack.c.h.b16 %v2605
        %v2710 = vunpack.c.l.b16 %v2606
        %v2711 = vunpack.c.h.b16 %v2606
        %v2712 = vunpack.c.l.b16 %v2607
        %v2713 = vunpack.c.h.b16 %v2607
        %v2714 = vunpack.c.l.b16 %v2608
        %v2715 = vunpack.c.h.b16 %v2608
        %v2716 = vunpack.c.l.b16 %v2609
        %v2717 = vunpack.c.h.b16 %v2609
        %v2718 = vunpack.c.l.b16 %v2610
        %v2719 = vunpack.c.h.b16 %v2610
        %v2720 = vunpack.c.l.b16 %v2611
        %v2721 = vunpack.c.h.b16 %v2611
        %v2722 = vunpack.c.l.b16 %v2612
        %v2723 = vunpack.c.h.b16 %v2612
        %v2724 = vunpack.c.l.b16 %v2613
        %v2725 = vunpack.c.h.b16 %v2613
        %v2726 = vunpack.c.l.b16 %v2614
        %v2727 = vunpack.c.h.b16 %v2614
        %v2728 = vunpack.c.l.b16 %v2615
        %v2729 = vunpack.c.h.b16 %v2615
        %v2730 = vunpack.c.l.b16 %v2616
        %v2731 = vunpack.c.h.b16 %v2616
        %v2732 = vunpack.c.l.b16 %v2617
        %v2733 = vunpack.c.h.b16 %v2617
        %v2734 = vunpack.c.l.b16 %v2618
        %v2735 = vunpack.c.h.b16 %v2618
        %v2736 = vunpack.c.l.b16 %v2619
        %v2737 = vunpack.c.h.b16 %v2619
        %v2738 = vpack.c.b16 %v2678, %v2674
        %v2739 = vpack.c.b16 %v2679, %v2675
        %v2740 = vpack.c.b16 %v2680, %v2676
        %v2741 = vpack.c.b16 %v2681, %v2677
        %v2742 = vpack.c.b16 %v2686, %v2682
        %v2743 = vpack.c.b16 %v2687, %v2683
        %v2744 = vpack.c.b16 %v2688, %v2684
        %v2745 = vpack.c.b16 %v2689, %v2685
        %v2746 = vpack.c.b16 %v2694, %v2690
        %v2747 = vpack.c.b16 %v2695, %v2691
        %v2748 = vpack.c.b16 %v2696, %v2692
        %v2749 = vpack.c.b16 %v2697, %v2693
        %v2750 = vpack.c.b16 %v2702, %v2698
        %v2751 = vpack.c.b16 %v2703, %v2699
        %v2752 = vpack.c.b16 %v2704, %v2700
        %v2753 = vpack.c.b16 %v2705, %v2701
        %v2754 = vpack.c.b16 %v2710, %v2706
        %v2755 = vpack.c.b16 %v2711, %v2707
        %v2756 = vpack.c.b16 %v2712, %v2708
        %v2757 = vpack.c.b16 %v2713, %v2709
        %v2758 = vpack.c.b16 %v2718, %v2714
        %v2759 = vpack.c.b16 %v2719, %v2715
        %v2760 = vpack.c.b16 %v2720, %v2716
        %v2761 = vpack.c.b16 %v2721, %v2717
        %v2762 = vpack.c.b16 %v2726, %v2722
        %v2763 = vpack.c.b16 %v2727, %v2723
        %v2764 = vpack.c.b16 %v2728, %v2724
        %v2765 = vpack.c.b16 %v2729, %v2725
        %v2766 = vpack.c.b16 %v2734, %v2730
        %v2767 = vpack.c.b16 %v2735, %v2731
        %v2768 = vpack.c.b16 %v2736, %v2732
        %v2769 = vpack.c.b16 %v2737, %v2733
        %2802 = vmatprep.subr.bf16.mxu0 %v2767
        %2803 = vmatpush1.bf16.msra.mxu0 %v2766
        %2804 = vmatprep.subr.bf16.mxu0 %v2763
        %2805 = vmatpush1.bf16.msra.mxu0 %v2762
        %2806 = vmatprep.subr.bf16.mxu0 %v2759
        %2807 = vmatpush1.bf16.msra.mxu0 %v2758
        %2808 = vmatprep.subr.bf16.mxu0 %v2755
        %2809 = vmatpush1.bf16.msra.mxu0 %v2754
        %2810 = vmatprep.subr.bf16.mxu0 %v2751
        %2811 = vmatpush1.bf16.msra.mxu0 %v2750
        %2812 = vmatprep.subr.bf16.mxu0 %v2747
        %2813 = vmatpush1.bf16.msra.mxu0 %v2746
        %2814 = vmatprep.subr.bf16.mxu0 %v2743
        %2815 = vmatpush1.bf16.msra.mxu0 %v2742
        %2816 = vmatprep.subr.bf16.mxu0 %v2739
        %2817 = vmatpush1.bf16.msra.mxu0 %v2738
        %2818 = vmatprep.subr.bf16.mxu0 0
        %2819 = vmatpush2.bf16.msra.mxu0 0
        %2820 = vmatprep.subr.bf16.mxu0 0
        %2821 = vmatpush2.bf16.msra.mxu0 0
        %2822 = vmatprep.subr.bf16.mxu0 0
        %2823 = vmatpush2.bf16.msra.mxu0 0
        %2824 = vmatprep.subr.bf16.mxu0 0
        %2825 = vmatpush2.bf16.msra.mxu0 0
        %2826 = vmatprep.subr.bf16.mxu0 0
        %2827 = vmatpush2.bf16.msra.mxu0 0
        %2828 = vmatprep.subr.bf16.mxu0 0
        %2829 = vmatpush2.bf16.msra.mxu0 0
        %2830 = vmatprep.subr.bf16.mxu0 0
        %2831 = vmatpush2.bf16.msra.mxu0 0
        %2832 = vmatprep.subr.bf16.mxu0 0
        %2833 = vmatpush2.bf16.msra.mxu0 0
        %2834 = vmatprep.mubr.bf16.mxu0 0
        %2835 = vmatmul.mubr.bf16.gmra.mxu0 %v2587
        %v2836 = vpop.f32.mrf.mxu0
        %v2837 = vadd.f32 %v2625, %v2836
        %v2838 = vpop.f32.mrf.mxu0
        %v2839 = vadd.f32 %v2629, %v2838
        %v2840 = vpop.f32.mrf.mxu0
        %v2841 = vadd.f32 %v2625, %v2840
        %v2842 = vpop.f32.mrf.mxu0
        %v2843 = vadd.f32 %v2629, %v2842
        %2844 = vdwg.mxu0
        %2845 = vmatprep.subr.bf16.mxu0 %v2769
        %2846 = vmatpush1.bf16.msra.mxu0 %v2768
        %2847 = vmatprep.subr.bf16.mxu0 %v2765
        %2848 = vmatpush1.bf16.msra.mxu0 %v2764
        %2849 = vmatprep.subr.bf16.mxu0 %v2761
        %2850 = vmatpush1.bf16.msra.mxu0 %v2760
        %2851 = vmatprep.subr.bf16.mxu0 %v2757
        %2852 = vmatpush1.bf16.msra.mxu0 %v2756
        %2853 = vmatprep.subr.bf16.mxu0 %v2753
        %2854 = vmatpush1.bf16.msra.mxu0 %v2752
        %2855 = vmatprep.subr.bf16.mxu0 %v2749
        %2856 = vmatpush1.bf16.msra.mxu0 %v2748
        %2857 = vmatprep.subr.bf16.mxu0 %v2745
        %2858 = vmatpush1.bf16.msra.mxu0 %v2744
        %2859 = vmatprep.subr.bf16.mxu0 %v2741
        %2860 = vmatpush1.bf16.msra.mxu0 %v2740
        %2861 = vmatprep.subr.bf16.mxu0 0
        %2862 = vmatpush2.bf16.msra.mxu0 0
        %2863 = vmatprep.subr.bf16.mxu0 0
        %2864 = vmatpush2.bf16.msra.mxu0 0
        %2865 = vmatprep.subr.bf16.mxu0 0
        %2866 = vmatpush2.bf16.msra.mxu0 0
        %2867 = vmatprep.subr.bf16.mxu0 0
        %2868 = vmatpush2.bf16.msra.mxu0 0
        %2869 = vmatprep.subr.bf16.mxu0 0
        %2870 = vmatpush2.bf16.msra.mxu0 0
        %2871 = vmatprep.subr.bf16.mxu0 0
        %2872 = vmatpush2.bf16.msra.mxu0 0
        %2873 = vmatprep.subr.bf16.mxu0 0
        %2874 = vmatpush2.bf16.msra.mxu0 0
        %2875 = vmatprep.subr.bf16.mxu0 0
        %2876 = vmatpush2.bf16.msra.mxu0 0
        %2877 = vmatprep.mubr.bf16.mxu0 0
        %2878 = vmatmul.mubr.bf16.gmra.mxu0 %v2587
        %v2879 = vpop.f32.mrf.mxu0
        %v2880 = vadd.f32 %v2633, %v2879
        %v2881 = vpop.f32.mrf.mxu0
        %v2882 = vadd.f32 %v2637, %v2881
        %v2883 = vpop.f32.mrf.mxu0
        %v2884 = vadd.f32 %v2633, %v2883
        %v2885 = vpop.f32.mrf.mxu0
        %v2886 = vadd.f32 %v2637, %v2885
        %2887 = vdwg.mxu0
        %v2888 = vmax.f32 %v2837, 0.0
        %v2889 = vmax.f32 %v2839, 0.0
        %v2890 = vmax.f32 %v2880, 0.0
        %v2891 = vmax.f32 %v2882, 0.0
        %v2892 = vmax.f32 %v2841, 0.0
        %v2893 = vmax.f32 %v2843, 0.0
        %v2894 = vmax.f32 %v2884, 0.0
        %v2895 = vmax.f32 %v2886, 0.0
        %v2896 = vpack.c.bf16 %v2892, %v2888
        %v2897 = vpack.c.bf16 %v2893, %v2889
        %v2898 = vpack.c.bf16 %v2894, %v2890
        %v2899 = vpack.c.bf16 %v2895, %v2891
        %v2900 = vld [vmem:[#allocation11] sm:$0xf]
        %v2901 = vld [vmem:[#allocation11 + $0x4] sm:$0xf]
        %v2902 = vld [vmem:[#allocation11 + $0x8] sm:$0xf]
        %v2903 = vld [vmem:[#allocation11 + $0xc] sm:$0xf]
        %v2904 = vld [vmem:[#allocation11 + $0x10] sm:$0xf]
        %v2905 = vld [vmem:[#allocation11 + $0x14] sm:$0xf]
        %v2906 = vld [vmem:[#allocation11 + $0x18] sm:$0xf]
        %v2907 = vld [vmem:[#allocation11 + $0x1c] sm:$0xf]
        %v2908 = vld [vmem:[#allocation11 + $0x20] sm:$0xf]
        %v2909 = vld [vmem:[#allocation11 + $0x24] sm:$0xf]
        %v2910 = vld [vmem:[#allocation11 + $0x28] sm:$0xf]
        %v2911 = vld [vmem:[#allocation11 + $0x2c] sm:$0xf]
        %v2912 = vld [vmem:[#allocation11 + $0x30] sm:$0xf]
        %v2913 = vld [vmem:[#allocation11 + $0x34] sm:$0xf]
        %v2914 = vld [vmem:[#allocation11 + $0x38] sm:$0xf]
        %v2915 = vld [vmem:[#allocation11 + $0x3c] sm:$0xf]
        %v2916 = vld [vmem:[#allocation11 + $0x40] sm:$0xf]
        %v2917 = vld [vmem:[#allocation11 + $0x44] sm:$0xf]
        %v2918 = vld [vmem:[#allocation11 + $0x48] sm:$0xf]
        %v2919 = vld [vmem:[#allocation11 + $0x4c] sm:$0xf]
        %v2920 = vld [vmem:[#allocation11 + $0x50] sm:$0xf]
        %v2921 = vld [vmem:[#allocation11 + $0x54] sm:$0xf]
        %v2922 = vld [vmem:[#allocation11 + $0x58] sm:$0xf]
        %v2923 = vld [vmem:[#allocation11 + $0x5c] sm:$0xf]
        %v2924 = vld [vmem:[#allocation11 + $0x60] sm:$0xf]
        %v2925 = vld [vmem:[#allocation11 + $0x64] sm:$0xf]
        %v2926 = vld [vmem:[#allocation11 + $0x68] sm:$0xf]
        %v2927 = vld [vmem:[#allocation11 + $0x6c] sm:$0xf]
        %v2928 = vld [vmem:[#allocation11 + $0x70] sm:$0xf]
        %v2929 = vld [vmem:[#allocation11 + $0x74] sm:$0xf]
        %v2930 = vld [vmem:[#allocation11 + $0x78] sm:$0xf]
        %v2931 = vld [vmem:[#allocation11 + $0x7c] sm:$0xf]
        %v2932 = vld [vmem:[#allocation11 + $0x80] sm:$0xf]
        %v2933 = vld [vmem:[#allocation11 + $0x84] sm:$0xf]
        %v2934 = vld [vmem:[#allocation11 + $0x88] sm:$0xf]
        %v2935 = vld [vmem:[#allocation11 + $0x8c] sm:$0xf]
        %v2936 = vld [vmem:[#allocation11 + $0x90] sm:$0xf]
        %v2937 = vld [vmem:[#allocation11 + $0x94] sm:$0xf]
        %v2938 = vld [vmem:[#allocation11 + $0x98] sm:$0xf]
        %v2939 = vld [vmem:[#allocation11 + $0x9c] sm:$0xf]
        %v2940 = vld [vmem:[#allocation11 + $0xa0] sm:$0xf]
        %v2941 = vld [vmem:[#allocation11 + $0xa4] sm:$0xf]
        %v2942 = vld [vmem:[#allocation11 + $0xa8] sm:$0xf]
        %v2943 = vld [vmem:[#allocation11 + $0xac] sm:$0xf]
        %v2944 = vld [vmem:[#allocation11 + $0xb0] sm:$0xf]
        %v2945 = vld [vmem:[#allocation11 + $0xb4] sm:$0xf]
        %v2946 = vld [vmem:[#allocation11 + $0xb8] sm:$0xf]
        %v2947 = vld [vmem:[#allocation11 + $0xbc] sm:$0xf]
        %v2948 = vld [vmem:[#allocation11 + $0xc0] sm:$0xf]
        %v2949 = vld [vmem:[#allocation11 + $0xc4] sm:$0xf]
        %v2950 = vld [vmem:[#allocation11 + $0xc8] sm:$0xf]
        %v2951 = vld [vmem:[#allocation11 + $0xcc] sm:$0xf]
        %v2952 = vld [vmem:[#allocation11 + $0xd0] sm:$0xf]
        %v2953 = vld [vmem:[#allocation11 + $0xd4] sm:$0xf]
        %v2954 = vld [vmem:[#allocation11 + $0xd8] sm:$0xf]
        %v2955 = vld [vmem:[#allocation11 + $0xdc] sm:$0xf]
        %v2956 = vld [vmem:[#allocation11 + $0xe0] sm:$0xf]
        %v2957 = vld [vmem:[#allocation11 + $0xe4] sm:$0xf]
        %v2958 = vld [vmem:[#allocation11 + $0xe8] sm:$0xf]
        %v2959 = vld [vmem:[#allocation11 + $0xec] sm:$0xf]
        %v2960 = vld [vmem:[#allocation11 + $0xf0] sm:$0xf]
        %v2961 = vld [vmem:[#allocation11 + $0xf4] sm:$0xf]
        %v2962 = vld [vmem:[#allocation11 + $0xf8] sm:$0xf]
        %v2963 = vld [vmem:[#allocation11 + $0xfc] sm:$0xf]
        %v2964 = vld [vmem:[%s11] sm:$0x1]
        %v2966 = vlaneseq
        %v2967 = vshrl.u32 %v2966, 7
        %v2968 = vsub.s32 0, %v2967
        %v2969 = vrot.slane %v2964, %v2968
        %v3035 = vunpack.c.l.b16 %v2900
        %v3036 = vunpack.c.l.b16 %v2901
        %v3037 = vunpack.c.l.b16 %v2902
        %v3038 = vunpack.c.l.b16 %v2903
        %v3039 = vunpack.c.l.b16 %v2904
        %v3040 = vunpack.c.l.b16 %v2905
        %v3041 = vunpack.c.l.b16 %v2906
        %v3042 = vunpack.c.l.b16 %v2907
        %v3043 = vunpack.c.l.b16 %v2908
        %v3044 = vunpack.c.l.b16 %v2909
        %v3045 = vunpack.c.l.b16 %v2910
        %v3046 = vunpack.c.l.b16 %v2911
        %v3047 = vunpack.c.l.b16 %v2912
        %v3048 = vunpack.c.l.b16 %v2913
        %v3049 = vunpack.c.l.b16 %v2914
        %v3050 = vunpack.c.l.b16 %v2915
        %v3051 = vunpack.c.l.b16 %v2916
        %v3052 = vunpack.c.l.b16 %v2917
        %v3053 = vunpack.c.l.b16 %v2918
        %v3054 = vunpack.c.l.b16 %v2919
        %v3055 = vunpack.c.l.b16 %v2920
        %v3056 = vunpack.c.l.b16 %v2921
        %v3057 = vunpack.c.l.b16 %v2922
        %v3058 = vunpack.c.l.b16 %v2923
        %v3059 = vunpack.c.l.b16 %v2924
        %v3060 = vunpack.c.l.b16 %v2925
        %v3061 = vunpack.c.l.b16 %v2926
        %v3062 = vunpack.c.l.b16 %v2927
        %v3063 = vunpack.c.l.b16 %v2928
        %v3064 = vunpack.c.l.b16 %v2929
        %v3065 = vunpack.c.l.b16 %v2930
        %v3066 = vunpack.c.l.b16 %v2931
        %v3067 = vunpack.c.l.b16 %v2932
        %v3068 = vunpack.c.l.b16 %v2933
        %v3069 = vunpack.c.l.b16 %v2934
        %v3070 = vunpack.c.l.b16 %v2935
        %v3071 = vunpack.c.l.b16 %v2936
        %v3072 = vunpack.c.l.b16 %v2937
        %v3073 = vunpack.c.l.b16 %v2938
        %v3074 = vunpack.c.l.b16 %v2939
        %v3075 = vunpack.c.l.b16 %v2940
        %v3076 = vunpack.c.l.b16 %v2941
        %v3077 = vunpack.c.l.b16 %v2942
        %v3078 = vunpack.c.l.b16 %v2943
        %v3079 = vunpack.c.l.b16 %v2944
        %v3080 = vunpack.c.l.b16 %v2945
        %v3081 = vunpack.c.l.b16 %v2946
        %v3082 = vunpack.c.l.b16 %v2947
        %v3083 = vunpack.c.l.b16 %v2948
        %v3084 = vunpack.c.l.b16 %v2949
        %v3085 = vunpack.c.l.b16 %v2950
        %v3086 = vunpack.c.l.b16 %v2951
        %v3087 = vunpack.c.l.b16 %v2952
        %v3088 = vunpack.c.l.b16 %v2953
        %v3089 = vunpack.c.l.b16 %v2954
        %v3090 = vunpack.c.l.b16 %v2955
        %v3091 = vunpack.c.l.b16 %v2956
        %v3092 = vunpack.c.l.b16 %v2957
        %v3093 = vunpack.c.l.b16 %v2958
        %v3094 = vunpack.c.l.b16 %v2959
        %v3095 = vunpack.c.l.b16 %v2960
        %v3096 = vunpack.c.l.b16 %v2961
        %v3097 = vunpack.c.l.b16 %v2962
        %v3098 = vunpack.c.l.b16 %v2963
        %v3099 = vpack.c.b16 %v3036, %v3035
        %v3100 = vpack.c.b16 %v3038, %v3037
        %v3101 = vpack.c.b16 %v3040, %v3039
        %v3102 = vpack.c.b16 %v3042, %v3041
        %v3103 = vpack.c.b16 %v3044, %v3043
        %v3104 = vpack.c.b16 %v3046, %v3045
        %v3105 = vpack.c.b16 %v3048, %v3047
        %v3106 = vpack.c.b16 %v3050, %v3049
        %v3107 = vpack.c.b16 %v3052, %v3051
        %v3108 = vpack.c.b16 %v3054, %v3053
        %v3109 = vpack.c.b16 %v3056, %v3055
        %v3110 = vpack.c.b16 %v3058, %v3057
        %v3111 = vpack.c.b16 %v3060, %v3059
        %v3112 = vpack.c.b16 %v3062, %v3061
        %v3113 = vpack.c.b16 %v3064, %v3063
        %v3114 = vpack.c.b16 %v3066, %v3065
        %v3115 = vpack.c.b16 %v3068, %v3067
        %v3116 = vpack.c.b16 %v3070, %v3069
        %v3117 = vpack.c.b16 %v3072, %v3071
        %v3118 = vpack.c.b16 %v3074, %v3073
        %v3119 = vpack.c.b16 %v3076, %v3075
        %v3120 = vpack.c.b16 %v3078, %v3077
        %v3121 = vpack.c.b16 %v3080, %v3079
        %v3122 = vpack.c.b16 %v3082, %v3081
        %v3123 = vpack.c.b16 %v3084, %v3083
        %v3124 = vpack.c.b16 %v3086, %v3085
        %v3125 = vpack.c.b16 %v3088, %v3087
        %v3126 = vpack.c.b16 %v3090, %v3089
        %v3127 = vpack.c.b16 %v3092, %v3091
        %v3128 = vpack.c.b16 %v3094, %v3093
        %v3129 = vpack.c.b16 %v3096, %v3095
        %v3130 = vpack.c.b16 %v3098, %v3097
        %3163 = vmatprep.subr.bf16.mxu0 0
        %3164 = vmatpush1.bf16.msra.mxu0 %v3106
        %3165 = vmatprep.subr.bf16.mxu0 0
        %3166 = vmatpush1.bf16.msra.mxu0 %v3105
        %3167 = vmatprep.subr.bf16.mxu0 0
        %3168 = vmatpush1.bf16.msra.mxu0 %v3104
        %3169 = vmatprep.subr.bf16.mxu0 0
        %3170 = vmatpush1.bf16.msra.mxu0 %v3103
        %3171 = vmatprep.subr.bf16.mxu0 0
        %3172 = vmatpush1.bf16.msra.mxu0 %v3102
        %3173 = vmatprep.subr.bf16.mxu0 0
        %3174 = vmatpush1.bf16.msra.mxu0 %v3101
        %3175 = vmatprep.subr.bf16.mxu0 0
        %3176 = vmatpush1.bf16.msra.mxu0 %v3100
        %3177 = vmatprep.subr.bf16.mxu0 0
        %3178 = vmatpush1.bf16.msra.mxu0 %v3099
        %3179 = vmatprep.subr.bf16.mxu0 0
        %3180 = vmatpush2.bf16.msra.mxu0 %v3114
        %3181 = vmatprep.subr.bf16.mxu0 0
        %3182 = vmatpush2.bf16.msra.mxu0 %v3113
        %3183 = vmatprep.subr.bf16.mxu0 0
        %3184 = vmatpush2.bf16.msra.mxu0 %v3112
        %3185 = vmatprep.subr.bf16.mxu0 0
        %3186 = vmatpush2.bf16.msra.mxu0 %v3111
        %3187 = vmatprep.subr.bf16.mxu0 0
        %3188 = vmatpush2.bf16.msra.mxu0 %v3110
        %3189 = vmatprep.subr.bf16.mxu0 0
        %3190 = vmatpush2.bf16.msra.mxu0 %v3109
        %3191 = vmatprep.subr.bf16.mxu0 0
        %3192 = vmatpush2.bf16.msra.mxu0 %v3108
        %3193 = vmatprep.subr.bf16.mxu0 0
        %3194 = vmatpush2.bf16.msra.mxu0 %v3107
        %3195 = vmatprep.mubr.bf16.mxu0 %v2897
        %3196 = vmatmul.mubr.bf16.gmra.mxu0 %v2896
        %v3197 = vpop.f32.mrf.mxu0
        %v3198 = vadd.f32 %v2969, %v3197
        %v3199 = vpop.f32.mrf.mxu0
        %v3200 = vpop.f32.mrf.mxu0
        %v3201 = vadd.f32 %v2969, %v3200
        %v3202 = vpop.f32.mrf.mxu0
        %3203 = vdwg.mxu0
        %3204 = vmatprep.subr.bf16.mxu0 0
        %3205 = vmatpush1.bf16.msra.mxu0 %v3122
        %3206 = vmatprep.subr.bf16.mxu0 0
        %3207 = vmatpush1.bf16.msra.mxu0 %v3121
        %3208 = vmatprep.subr.bf16.mxu0 0
        %3209 = vmatpush1.bf16.msra.mxu0 %v3120
        %3210 = vmatprep.subr.bf16.mxu0 0
        %3211 = vmatpush1.bf16.msra.mxu0 %v3119
        %3212 = vmatprep.subr.bf16.mxu0 0
        %3213 = vmatpush1.bf16.msra.mxu0 %v3118
        %3214 = vmatprep.subr.bf16.mxu0 0
        %3215 = vmatpush1.bf16.msra.mxu0 %v3117
        %3216 = vmatprep.subr.bf16.mxu0 0
        %3217 = vmatpush1.bf16.msra.mxu0 %v3116
        %3218 = vmatprep.subr.bf16.mxu0 0
        %3219 = vmatpush1.bf16.msra.mxu0 %v3115
        %3220 = vmatprep.subr.bf16.mxu0 0
        %3221 = vmatpush2.bf16.msra.mxu0 %v3130
        %3222 = vmatprep.subr.bf16.mxu0 0
        %3223 = vmatpush2.bf16.msra.mxu0 %v3129
        %3224 = vmatprep.subr.bf16.mxu0 0
        %3225 = vmatpush2.bf16.msra.mxu0 %v3128
        %3226 = vmatprep.subr.bf16.mxu0 0
        %3227 = vmatpush2.bf16.msra.mxu0 %v3127
        %3228 = vmatprep.subr.bf16.mxu0 0
        %3229 = vmatpush2.bf16.msra.mxu0 %v3126
        %3230 = vmatprep.subr.bf16.mxu0 0
        %3231 = vmatpush2.bf16.msra.mxu0 %v3125
        %3232 = vmatprep.subr.bf16.mxu0 0
        %3233 = vmatpush2.bf16.msra.mxu0 %v3124
        %3234 = vmatprep.subr.bf16.mxu0 0
        %3235 = vmatpush2.bf16.msra.mxu0 %v3123
        %3236 = vmatprep.mubr.bf16.mxu0 %v2899
        %3237 = vmatmul.mubr.bf16.gmra.mxu0 %v2898
        %v3238 = vpop.f32.mrf.mxu0
        %v3239 = vadd.f32 %v3198, %v3238
        %v3240 = vpop.f32.mrf.mxu0
        %v3241 = vpop.f32.mrf.mxu0
        %v3242 = vadd.f32 %v3201, %v3241
        %v3243 = vpop.f32.mrf.mxu0
        %3244 = vdwg.mxu0
        %v3245 = vadd.f32 %v3239, %v2585
        %v3246 = vadd.f32 %v3242, %v2586
        %v3247 = vld [vmem:[%s12] sm:$0x1]
        %v3248 = vld [vmem:[%s13] sm:$0x1]
        %3249 = vadd.xlane.f32.xlu0 %v3245
        %v3250 = vpop.xlane.xlu0 %3249
        %3251 = vadd.xlane.f32.xlu0 %v3246
        %v3252 = vpop.xlane.xlu0 %3251
        %v3253 = vmul.f32 %v3250, %v2552
        %v3254 = vmul.f32 %v3252, %v2552
        %v3255 = vsub.f32 %v3245, %v3253
        %v3256 = vsub.f32 %v3246, %v3254
        %v3257 = vmul.f32 %v3255, %v3255
        %v3258 = vmul.f32 %v3256, %v3256
        %3259 = vadd.xlane.f32.xlu0 %v3257
        %v3260 = vpop.xlane.xlu0 %3259
        %3261 = vadd.xlane.f32.xlu0 %v3258
        %v3262 = vpop.xlane.xlu0 %3261
        %v3263 = vmul.f32 %v3260, %v2552
        %v3264 = vmul.f32 %v3262, %v2552
        %v3265 = vadd.f32 %v3263, 1e-05
        %v3266 = vadd.f32 %v3264, 1e-05
        %v3267 = vrsqrt.pop %v3265
        %v3268 = vrsqrt.pop %v3266
        %v3269 = vmul.f32 %v3255, %v3267
        %v3270 = vmul.f32 %v3256, %v3268
        %v3272 = vlaneseq
        %v3273 = vshrl.u32 %v3272, 7
        %v3274 = vsub.s32 0, %v3273
        %v3275 = vrot.slane %v3247, %v3274
        %v3277 = vmul.f32 %v3269, %v3275
        %v3278 = vmul.f32 %v3270, %v3275
        %v3280 = vlaneseq
        %v3281 = vshrl.u32 %v3280, 7
        %v3282 = vsub.s32 0, %v3281
        %v3283 = vrot.slane %v3248, %v3282
        %v3285 = vadd.f32 %v3277, %v3283
        %v3286 = vadd.f32 %v3278, %v3283
        %3287 = vst [vmem:[%s583] sm:$0xff] %v3285
        %3288 = vst [vmem:[%s583 + $0x8] sm:$0xff] %v3286
        %s3289 = sand.u32 %s348, 1
        %s3290 = scalar_lea.sflag [#allocation4], %s3289
        %s3291 = sand.u32 %s348, 1
        %s3292 = smul.addr %s3291, 16
        %s3293 = scalar_lea.vmem [#allocation13], %s3292
        // Predicated region
        $region101: #{tpu_custom_call.1} parent=75 // pred_check
          %p3294 = pneg %p358
        $region102: #{tpu_custom_call.1} parent=75 // pred_check_branch
          %3296 = sbr.rel (%p3294) target = $region104
        $region103: #{tpu_custom_call.1} parent=75 // pred_region
          %s3298 = ssub.s32 256, 256
          %3299 = vsyncadd %s3290, %s3298
          %s3300 = smul.addr %s36, 2
          %s3301 = smul.addr %s3300, 128
          %s3302 = scalar_lea.hbm %s14, %s3301
          %s3303 = sshll.u32 %s3293, 4
          %s3304 = int_to_ptr.vmem [resolvable:$true] %s3303
          %3309 = dma.vmem_to_hbm [thread:$0]  %s3304, 256, %s3302, %s3290, 128, 128, 8
        $region104: #{tpu_custom_call.1} parent=75 // pred_fallthru
          _
      $region76: #{tpu_custom_call.1} parent=5 // pred_fallthru
        _
      %p3310 = scmp.le.s32.totalorder 2, %s31
      // Predicated region
      $region105: #{tpu_custom_call.1} parent=5 // pred_check
        %p3311 = pneg %p3310
      $region106: #{tpu_custom_call.1} parent=5 // pred_check_branch
        %3313 = sbr.rel (%p3311) target = $region108
      $region107: #{tpu_custom_call.1} parent=5 // pred_region
        %s3314 = ssub.s32 %s31, 2
        // Predicated region
        $region109: #{tpu_custom_call.1} parent=107 // pred_check
          %p3315 = pneg %p364
        $region110: #{tpu_custom_call.1} parent=107 // pred_check_branch
          %3317 = sbr.rel (%p3315) target = $region112
        $region111: #{tpu_custom_call.1} parent=107 // pred_region
          %s3318 = sand.u32 %s349, 1
          %s3319 = scalar_lea.sflag [#allocation4], %s3318
          %s3320 = sand.u32 %s349, 1
          %s3321 = smul.addr %s3320, 16
          %s3322 = scalar_lea.vmem [#allocation13], %s3321
          %3323 = dma.done %s3319, 256
        $region112: #{tpu_custom_call.1} parent=107 // pred_fallthru
          _
      $region108: #{tpu_custom_call.1} parent=5 // pred_fallthru
        _
    $region6: #{tpu_custom_call.1} parent=1 // loop_footer
      %s35 = sadd.s32 1, %s31
    $region7: #{tpu_custom_call.1} parent=1 // loop_footer_branch
      %30 = sbr.rel target = $region3
    $region8: #{tpu_custom_call.1} parent=1 // loop_exit
      _
    %3324 = vsyncpa [#allocation3], 1
    %s3325 = scalar_lea.sflag [#allocation3], 1
    %3326 = vsyncpa %s3325, 1
    %3327 = vsyncpa [#allocation6], 1
    %s3328 = scalar_lea.sflag [#allocation6], 1
    %3329 = vsyncpa %s3328, 1
    %3330 = vsyncpa [#allocation9], 1
    %3331 = vsyncpa [#allocation12], 1
    %3332 = vsyncpa [#allocation4], 1
    %s3333 = scalar_lea.sflag [#allocation4], 1
    %3334 = vsyncpa %s3333, 1

</llo_original>
